<compile_context>
chip_gen: v7x
topology: tpu7x:2x2x1
jax: 0.10.0
libtpu: 0.0.40
codegen_flags: <defaults>
</compile_context>

<pallas_src>
import math
import jax
import jax.numpy as jnp
from jax import lax
from jax.experimental import pallas as pl
from jax.experimental.pallas import tpu as pltpu

# ------------------------- model hyper-parameters ---------------------------
B = 2            # batch
L = 8            # flip-angle sequence length
Q = 128          # fixed by module: torch.linspace(0, 1, 128)
D_TIME = 4       # embed_time
NUM_HEADS = 1    # n_heads (kernel written for the module default h = 1)
H = 32           # n_hidden; gru_bi = False -> hidden_reg = H
BH = B * H       # flattened (batch, hidden) lane layout for the GRU
D_REG = 200      # regression MLP width
GRU_UNROLL = 8   # GRU time-loop unroll / store-coalescing factor (divides Q)

# hp.* constants (synthetic)
XFA_MAX = 26.0
KEY_SCALE = math.radians(XFA_MAX - 1.0)     # fa_vals / radians(xFA[2][1]-1)
T10_LO, T10_HI = 0.5, 3.0                   # hp.simulations.T10bounds
M0_LO, M0_HI = 0.1, 10.0                    # hp.simulations.M0bounds

_SQRT2 = math.sqrt(2.0)
_INV_SQRT_DK = 1.0 / math.sqrt(D_TIME // NUM_HEADS)


def _gelu(x):
    # exact (erf) GELU, matching torch.nn.GELU default
    return 0.5 * x * (1.0 + lax.erf(x / _SQRT2))


# ---------------------------------------------------------------------------
# Fused kernel: attention -> GRU -> score pooling + regression + signal model.
# Single invocation (no grid); batch handled inside (B is tiny and static).
# ---------------------------------------------------------------------------
def fused_kernel(
    # data
    fa2d_ref, mask2d_ref, x_col_ref, m_col_ref, tr_ref,
    # time embedding + attention weights
    te_w_row_ref, te_b_row_ref, te_w_col_ref, te_b_col_ref,
    wq_ref, bq_ref, wk_t_ref, bk_col_ref, wout_ref, bout_ref,
    # GRU (block-diagonal, lane-aligned per gate)
    wih_r_ref, wih_z_ref, wih_n_ref, whh_r_ref, whh_z_ref, whh_n_ref,
    b_r_ref, b_z_ref, b_in_ref, b_hn_ref,
    # heads
    w_score_ref,
    t_w1_ref, t_b1_ref, t_w2_ref, t_b2_ref, t_w3_ref, t_b3_ref,
    m_w1_ref, m_b1_ref, m_w2_ref, m_b2_ref, m_w3_ref, m_b3_ref,
    # outputs
    x_out_ref, t10_ref, m0_ref,
    # scratch
    gi_r_ref, gi_z_ref, gi_n_ref, out_seq_ref,
):
    # ------------------ stage 1: MultiTimeAttention (batched) ----------------
    # Query-side work is identical for all batch elements: compute it once.
    q_t = (lax.broadcasted_iota(jnp.int32, (Q, 1), 0).astype(jnp.float32)
           * (1.0 / (Q - 1)))                                   # linspace(0,1,Q)
    pre_q = q_t * te_w_row_ref[...] + te_b_row_ref[...]         # (Q, D_TIME)
    lin_col_q = lax.broadcasted_iota(jnp.int32, pre_q.shape, 1) == 0
    q_emb = jnp.where(lin_col_q, pre_q, jnp.sin(pre_q))         # col0 linear, rest sin
    q = (jnp.dot(q_emb, wq_ref[...], preferred_element_type=jnp.float32)
         + bq_ref[...])                                          # (Q, D_TIME)

    te_w_col = te_w_col_ref[...]                                 # (D_TIME, 1)
    te_b_col = te_b_col_ref[...]
    wk_t = wk_t_ref[...]                                         # (D_TIME, D_TIME)
    bk_col = bk_col_ref[...]                                     # (D_TIME, 1)
    wout = wout_ref[...]                                         # (2, H)
    bout = bout_ref[...]                                         # (1, H)
    lin_row_k = lax.broadcasted_iota(jnp.int32, (D_TIME, L), 0) == 0

    att_cols = []
    for b in range(B):                                           # static unroll
        # key-side time embedding, kept in transposed (D_TIME, L) layout so no
        # explicit transposes are needed anywhere.
        key_row = fa2d_ref[pl.ds(b, 1), :] * (1.0 / KEY_SCALE)   # (1, L)
        pre_k = te_w_col * key_row + te_b_col                    # (D_TIME, L)
        k_emb_t = jnp.where(lin_row_k, pre_k, jnp.sin(pre_k))
        k_t = (jnp.dot(wk_t, k_emb_t, preferred_element_type=jnp.float32)
               + bk_col)                                         # (D_TIME, L)

        scores = (jnp.dot(q, k_t, preferred_element_type=jnp.float32)
                  * _INV_SQRT_DK)                                # (Q, L)
        mask_row = mask2d_ref[pl.ds(b, 1), :]                    # (1, L)
        scores = jnp.where(mask_row == 0.0, -1e9, scores)
        scores = scores - jnp.max(scores, axis=-1, keepdims=True)
        e = jnp.exp(scores)
        p = e * pl.reciprocal(jnp.sum(e, axis=-1, keepdims=True), approx=True)

        # Fold the output projection into the (L, 2) values:
        #   vw = v @ wout with v = [x | mask]  -> one lane-dense (Q,L)x(L,H).
        x_c = x_col_ref[pl.ds(b * L, L), :]                      # (L, 1)
        m_c = m_col_ref[pl.ds(b * L, L), :]                      # (L, 1)
        vw = x_c * wout[0:1, :] + m_c * wout[1:2, :]             # (L, H)
        att_cols.append(
            jnp.dot(p, vw, preferred_element_type=jnp.float32) + bout)   # (Q, H)

    att_flat = jnp.concatenate(att_cols, axis=1)                 # (Q, B*H)

    # ----------------- stage 2: GRU, batch folded into lanes -----------------
    # gi_* hold W_i{r,z,n} x_t (+ input/hidden biases) for all time steps.
    gi_r_ref[...] = (jnp.dot(att_flat, wih_r_ref[...],
                             preferred_element_type=jnp.float32) + b_r_ref[...])
    gi_z_ref[...] = (jnp.dot(att_flat, wih_z_ref[...],
                             preferred_element_type=jnp.float32) + b_z_ref[...])
    gi_n_ref[...] = (jnp.dot(att_flat, wih_n_ref[...],
                             preferred_element_type=jnp.float32) + b_in_ref[...])

    whh_r = whh_r_ref[...]
    whh_z = whh_z_ref[...]
    whh_n = whh_n_ref[...]
    b_hn = b_hn_ref[...]

    def gru_chunk(i, h):
        base = pl.multiple_of(i * GRU_UNROLL, GRU_UNROLL)
        gir_c = gi_r_ref[pl.ds(base, GRU_UNROLL), :]             # (U, B*H)
        giz_c = gi_z_ref[pl.ds(base, GRU_UNROLL), :]
        gin_c = gi_n_ref[pl.ds(base, GRU_UNROLL), :]
        rows = []
        for u in range(GRU_UNROLL):                              # static unroll
            gh_r = jnp.dot(h, whh_r, preferred_element_type=jnp.float32)
            gh_z = jnp.dot(h, whh_z, preferred_element_type=jnp.float32)
            gh_n = jnp.dot(h, whh_n, preferred_element_type=jnp.float32) + b_hn
            r = jax.nn.sigmoid(gir_c[u:u + 1, :] + gh_r)
            z = jax.nn.sigmoid(giz_c[u:u + 1, :] + gh_z)
            n = jnp.tanh(gin_c[u:u + 1, :] + r * gh_n)
            h = (1.0 - z) * n + z * h
            rows.append(h)
        out_seq_ref[pl.ds(base, GRU_UNROLL), :] = jnp.concatenate(rows, axis=0)
        return h

    lax.fori_loop(0, Q // GRU_UNROLL, gru_chunk,
                  jnp.zeros((1, BH), jnp.float32))

    # ---- stage 3: score pooling + regression MLPs + bounded sigmoid + SPGR ---
    out_seq = out_seq_ref[...]                                   # (Q, B*H)
    w_sc = w_score_ref[...]                                      # (2, H): [T10; M0]
    hid_t_rows, hid_m_rows = [], []
    for b in range(B):                                           # static unroll
        h_seq = out_seq[:, b * H:(b + 1) * H]                    # (Q, H)
        logits = lax.dot_general(w_sc, h_seq, (((1,), (1,)), ((), ())),
                                 preferred_element_type=jnp.float32)   # (2, Q)
        logits = logits - jnp.max(logits, axis=-1, keepdims=True)
        e = jnp.exp(logits)
        probs = e * pl.reciprocal(jnp.sum(e, axis=-1, keepdims=True), approx=True)
        pooled = jnp.dot(probs, h_seq, preferred_element_type=jnp.float32)  # (2, H)
        hid_t_rows.append(pooled[0:1, :])
        hid_m_rows.append(pooled[1:2, :])
    hid_t = jnp.concatenate(hid_t_rows, axis=0)                  # (B, H)
    hid_m = jnp.concatenate(hid_m_rows, axis=0)                  # (B, H)

    def mlp(hid, w1, b1, w2, b2, w3, b3):
        a1 = _gelu(jnp.dot(hid, w1[...], preferred_element_type=jnp.float32) + b1[...])
        a2 = _gelu(jnp.dot(a1, w2[...], preferred_element_type=jnp.float32) + b2[...])
        return jnp.dot(a2, w3[...], preferred_element_type=jnp.float32) + b3[...]

    raw_t = mlp(hid_t, t_w1_ref, t_b1_ref, t_w2_ref, t_b2_ref, t_w3_ref, t_b3_ref)
    raw_m = mlp(hid_m, m_w1_ref, m_b1_ref, m_w2_ref, m_b2_ref, m_w3_ref, m_b3_ref)

    t10 = T10_LO + jax.nn.sigmoid(raw_t) * (T10_HI - T10_LO)     # (B, 1)
    m0 = M0_LO + jax.nn.sigmoid(raw_m) * (M0_HI - M0_LO)         # (B, 1)

    e_tr = jnp.exp(-(tr_ref[...] / t10))                         # (B, 1)
    fa = fa2d_ref[...]                                           # (B, L)
    x_out = (1.0 - e_tr) * jnp.sin(fa) / (1.0 - jnp.cos(fa) * e_tr) * m0

    x_out_ref[...] = x_out
    t10_ref[...] = t10
    m0_ref[...] = m0


# ------------------------------ wrapper --------------------------------------
def _prep(p):
    """Repack torch-layout params into the kernel layout (block-diag GRU etc.)."""
    eye_b = jnp.eye(B, dtype=jnp.float32)

    def bd(w):                       # (H, H) -> block-diag (B*H, B*H)
        return jnp.kron(eye_b, w)

    def tile_b(row):                 # (1, H) -> (1, B*H)
        return jnp.tile(row, (1, B))

    w_ih, w_hh = p["w_ih"], p["w_hh"]
    b_ih, b_hh = p["b_ih"], p["b_hh"]
    return dict(
        te_w_row=p["te_w"], te_b_row=p["te_b"],
        te_w_col=p["te_w"].T, te_b_col=p["te_b"].T,
        wq=p["wq"], bq=p["bq"],
        wk_t=p["wk"].T, bk_col=p["bk"].T,
        wout=p["wout"], bout=p["bout"],
        wih_r=bd(w_ih[:, 0:H]), wih_z=bd(w_ih[:, H:2 * H]), wih_n=bd(w_ih[:, 2 * H:3 * H]),
        whh_r=bd(w_hh[:, 0:H]), whh_z=bd(w_hh[:, H:2 * H]), whh_n=bd(w_hh[:, 2 * H:3 * H]),
        b_r=tile_b(b_ih[:, 0:H] + b_hh[:, 0:H]),            # b_ir + b_hr folded
        b_z=tile_b(b_ih[:, H:2 * H] + b_hh[:, H:2 * H]),    # b_iz + b_hz folded
        b_in=tile_b(b_ih[:, 2 * H:3 * H]),                  # b_in (input side)
        b_hn=tile_b(b_hh[:, 2 * H:3 * H]),                  # b_hn (inside r*(.))
        w_score=jnp.concatenate([p["w_score_t"], p["w_score_m"]], axis=0),
        t_w1=p["t_w1"], t_b1=p["t_b1"], t_w2=p["t_w2"], t_b2=p["t_b2"],
        t_w3=p["t_w3"], t_b3=p["t_b3"],
        m_w1=p["m_w1"], m_b1=p["m_b1"], m_w2=p["m_w2"], m_b2=p["m_b2"],
        m_w3=p["m_w3"], m_b3=p["m_b3"],
    )


def t10_transformer_forward(params, X_fa_in, fa_vals, fa_mask, fa_len, TR_vals):
    """Returns (X_out (B,L), T10 (B,1), M0 (B,1)) — matches the torch forward.

    `fa_len` only feeds the reference module's unused `mean` term -> ignored.
    """
    del fa_len
    k = _prep(params)
    fa2d = fa_vals.astype(jnp.float32)                       # (B, L)
    mask2d = fa_mask.astype(jnp.float32)                     # (B, L)
    x_col = X_fa_in.astype(jnp.float32).reshape(B * L, 1)    # column layout
    m_col = mask2d.reshape(B * L, 1)
    tr = TR_vals.astype(jnp.float32).reshape(B, 1)

    out_shape = (
        jax.ShapeDtypeStruct((B, L), jnp.float32),
        jax.ShapeDtypeStruct((B, 1), jnp.float32),
        jax.ShapeDtypeStruct((B, 1), jnp.float32),
    )
    x_out, t10, m0 = pl.pallas_call(
        fused_kernel,
        out_shape=out_shape,
        scratch_shapes=[
            pltpu.VMEM((Q, BH), jnp.float32),   # gi_r
            pltpu.VMEM((Q, BH), jnp.float32),   # gi_z
            pltpu.VMEM((Q, BH), jnp.float32),   # gi_n
            pltpu.VMEM((Q, BH), jnp.float32),   # GRU output sequence
        ],
    )(fa2d, mask2d, x_col, m_col, tr,
      k["te_w_row"], k["te_b_row"], k["te_w_col"], k["te_b_col"],
      k["wq"], k["bq"], k["wk_t"], k["bk_col"], k["wout"], k["bout"],
      k["wih_r"], k["wih_z"], k["wih_n"], k["whh_r"], k["whh_z"], k["whh_n"],
      k["b_r"], k["b_z"], k["b_in"], k["b_hn"],
      k["w_score"],
      k["t_w1"], k["t_b1"], k["t_w2"], k["t_b2"], k["t_w3"], k["t_b3"],
      k["m_w1"], k["m_b1"], k["m_w2"], k["m_b2"], k["m_w3"], k["m_b3"])
    return x_out, t10, m0


def init_params(key):
    ks = jax.random.split(key, 26)
    it = iter(ks)

    def w(shape, scale=0.1):
        return scale * jax.random.normal(next(it), shape, dtype=jnp.float32)

    p = {}
    # TimeEmbedding: column 0 = linear(1->1), columns 1.. = periodic(1->D_TIME-1)
    p["te_w"] = w((1, D_TIME)); p["te_b"] = w((1, D_TIME))
    # attention q/k linears (stored transposed: (in, out)) and output linear
    p["wq"] = w((D_TIME, D_TIME)); p["bq"] = w((1, D_TIME))
    p["wk"] = w((D_TIME, D_TIME)); p["bk"] = w((1, D_TIME))
    p["wout"] = w((2 * NUM_HEADS, H)); p["bout"] = w((1, H))
    # GRU (gate order r|z|n along 3H, stored transposed)
    p["w_ih"] = w((H, 3 * H)); p["w_hh"] = w((H, 3 * H))
    p["b_ih"] = w((1, 3 * H)); p["b_hh"] = w((1, 3 * H))
    # score heads (Linear(H,1,bias=False), torch weight shape (1,H))
    p["w_score_t"] = w((1, H)); p["w_score_m"] = w((1, H))
    # regression MLPs (stored transposed)
    p["t_w1"] = w((H, D_REG)); p["t_b1"] = w((1, D_REG))
    p["t_w2"] = w((D_REG, D_REG)); p["t_b2"] = w((1, D_REG))
    p["t_w3"] = w((D_REG, 1)); p["t_b3"] = w((1, 1))
    p["m_w1"] = w((H, D_REG)); p["m_b1"] = w((1, D_REG))
    p["m_w2"] = w((D_REG, D_REG)); p["m_b2"] = w((1, D_REG))
    p["m_w3"] = w((D_REG, 1)); p["m_b3"] = w((1, 1))
    return p


if __name__ == "__main__":
    key = jax.random.PRNGKey(0)
    pkey, dkey = jax.random.split(key)
    params = init_params(pkey)

    dks = jax.random.split(dkey, 2)
    X_fa_in = jax.random.normal(dks[0], (B, L), dtype=jnp.float32)
    fa_vals = jax.random.uniform(dks[1], (B, L), dtype=jnp.float32,
                                 minval=math.radians(1.0),
                                 maxval=math.radians(25.0))
    fa_mask = jnp.ones((B, L), dtype=jnp.float32).at[1, L - 2:].set(0.0)
    fa_len = jnp.sum(fa_mask, axis=1, keepdims=True)
    TR_vals = jnp.full((B, 1), 0.005, dtype=jnp.float32)

    X_out, T10, M0 = t10_transformer_forward(
        params, X_fa_in, fa_vals, fa_mask, fa_len, TR_vals)
    jax.block_until_ready((X_out, T10, M0))
    assert X_out.shape == (B, L) and T10.shape == (B, 1) and M0.shape == (B, 1)
    assert bool(jnp.isfinite(X_out).all())
    assert bool(jnp.isfinite(T10).all()) and bool(jnp.isfinite(M0).all())
    print("KERNEL_OK")
</pallas_src>

<mosaic_0001>
module attributes {stable_mosaic.version = 11 : i64} {
  func.func @fused_kernel(%arg0: memref<2x8xf32, #tpu.memory_space<vmem>>, %arg1: memref<2x8xf32, #tpu.memory_space<vmem>>, %arg2: memref<16x1xf32, #tpu.memory_space<vmem>>, %arg3: memref<16x1xf32, #tpu.memory_space<vmem>>, %arg4: memref<2x1xf32, #tpu.memory_space<vmem>>, %arg5: memref<1x4xf32, #tpu.memory_space<vmem>>, %arg6: memref<1x4xf32, #tpu.memory_space<vmem>>, %arg7: memref<4x1xf32, #tpu.memory_space<vmem>>, %arg8: memref<4x1xf32, #tpu.memory_space<vmem>>, %arg9: memref<4x4xf32, #tpu.memory_space<vmem>>, %arg10: memref<1x4xf32, #tpu.memory_space<vmem>>, %arg11: memref<4x4xf32, #tpu.memory_space<vmem>>, %arg12: memref<4x1xf32, #tpu.memory_space<vmem>>, %arg13: memref<2x32xf32, #tpu.memory_space<vmem>>, %arg14: memref<1x32xf32, #tpu.memory_space<vmem>>, %arg15: memref<64x64xf32, #tpu.memory_space<vmem>>, %arg16: memref<64x64xf32, #tpu.memory_space<vmem>>, %arg17: memref<64x64xf32, #tpu.memory_space<vmem>>, %arg18: memref<64x64xf32, #tpu.memory_space<vmem>>, %arg19: memref<64x64xf32, #tpu.memory_space<vmem>>, %arg20: memref<64x64xf32, #tpu.memory_space<vmem>>, %arg21: memref<1x64xf32, #tpu.memory_space<vmem>>, %arg22: memref<1x64xf32, #tpu.memory_space<vmem>>, %arg23: memref<1x64xf32, #tpu.memory_space<vmem>>, %arg24: memref<1x64xf32, #tpu.memory_space<vmem>>, %arg25: memref<2x32xf32, #tpu.memory_space<vmem>>, %arg26: memref<32x200xf32, #tpu.memory_space<vmem>>, %arg27: memref<1x200xf32, #tpu.memory_space<vmem>>, %arg28: memref<200x200xf32, #tpu.memory_space<vmem>>, %arg29: memref<1x200xf32, #tpu.memory_space<vmem>>, %arg30: memref<200x1xf32, #tpu.memory_space<vmem>>, %arg31: memref<1x1xf32, #tpu.memory_space<vmem>>, %arg32: memref<32x200xf32, #tpu.memory_space<vmem>>, %arg33: memref<1x200xf32, #tpu.memory_space<vmem>>, %arg34: memref<200x200xf32, #tpu.memory_space<vmem>>, %arg35: memref<1x200xf32, #tpu.memory_space<vmem>>, %arg36: memref<200x1xf32, #tpu.memory_space<vmem>>, %arg37: memref<1x1xf32, #tpu.memory_space<vmem>>, %arg38: memref<2x8xf32, #tpu.memory_space<vmem>>, %arg39: memref<2x1xf32, #tpu.memory_space<vmem>>, %arg40: memref<2x1xf32, #tpu.memory_space<vmem>>, %arg41: memref<128x64xf32, #tpu.memory_space<vmem>>, %arg42: memref<128x64xf32, #tpu.memory_space<vmem>>, %arg43: memref<128x64xf32, #tpu.memory_space<vmem>>, %arg44: memref<128x64xf32, #tpu.memory_space<vmem>>) attributes {dimension_semantics = [], scalar_prefetch = 0 : i64, scratch_operands = 4 : i64, tpu.core_type = #tpu.core_type<tc>} {
    %0 = tpu.iota {dimensions = array<i32: 0>} : vector<128x1xi32>
    %1 = arith.sitofp %0 : vector<128x1xi32> to vector<128x1xf32>
    %cst = arith.constant 0.00787401571 : f32
    %2 = vector.broadcast %cst : f32 to vector<128x1xf32>
    %3 = arith.mulf %1, %2 : vector<128x1xf32>
    %c0 = arith.constant 0 : index
    %c0_0 = arith.constant 0 : index
    %4 = vector.load %arg5[%c0, %c0_0] : memref<1x4xf32, #tpu.memory_space<vmem>>, vector<1x4xf32>
    %5 = vector.broadcast %3 : vector<128x1xf32> to vector<128x4xf32>
    %6 = vector.broadcast %4 : vector<1x4xf32> to vector<128x4xf32>
    %7 = arith.mulf %5, %6 : vector<128x4xf32>
    %c0_1 = arith.constant 0 : index
    %c0_2 = arith.constant 0 : index
    %8 = vector.load %arg6[%c0_1, %c0_2] : memref<1x4xf32, #tpu.memory_space<vmem>>, vector<1x4xf32>
    %9 = vector.broadcast %8 : vector<1x4xf32> to vector<128x4xf32>
    %10 = arith.addf %7, %9 : vector<128x4xf32>
    %11 = tpu.iota {dimensions = array<i32: 1>} : vector<128x4xi32>
    %c0_i32 = arith.constant 0 : i32
    %12 = vector.broadcast %c0_i32 : i32 to vector<128x4xi32>
    %13 = arith.cmpi eq, %11, %12 : vector<128x4xi32>
    %14 = math.sin %10 : vector<128x4xf32>
    %15 = arith.select %13, %10, %14 : vector<128x4xi1>, vector<128x4xf32>
    %c0_3 = arith.constant 0 : index
    %c0_4 = arith.constant 0 : index
    %16 = vector.load %arg9[%c0_3, %c0_4] : memref<4x4xf32, #tpu.memory_space<vmem>>, vector<4x4xf32>
    %cst_5 = arith.constant dense<0.000000e+00> : vector<128x4xf32>
    %17 = tpu.matmul %15, %16, %cst_5 {dimension_numbers = #tpu.dot_dimension_numbers<[1], [0], [0], [1], [0, 0, 1, 1], [], []>} : vector<128x4xf32>, vector<4x4xf32>, vector<128x4xf32> -> vector<128x4xf32>
    %c0_6 = arith.constant 0 : index
    %c0_7 = arith.constant 0 : index
    %18 = vector.load %arg10[%c0_6, %c0_7] : memref<1x4xf32, #tpu.memory_space<vmem>>, vector<1x4xf32>
    %19 = vector.broadcast %18 : vector<1x4xf32> to vector<128x4xf32>
    %20 = arith.addf %17, %19 : vector<128x4xf32>
    %c0_8 = arith.constant 0 : index
    %c0_9 = arith.constant 0 : index
    %21 = vector.load %arg7[%c0_8, %c0_9] : memref<4x1xf32, #tpu.memory_space<vmem>>, vector<4x1xf32>
    %c0_10 = arith.constant 0 : index
    %c0_11 = arith.constant 0 : index
    %22 = vector.load %arg8[%c0_10, %c0_11] : memref<4x1xf32, #tpu.memory_space<vmem>>, vector<4x1xf32>
    %c0_12 = arith.constant 0 : index
    %c0_13 = arith.constant 0 : index
    %23 = vector.load %arg11[%c0_12, %c0_13] : memref<4x4xf32, #tpu.memory_space<vmem>>, vector<4x4xf32>
    %c0_14 = arith.constant 0 : index
    %c0_15 = arith.constant 0 : index
    %24 = vector.load %arg12[%c0_14, %c0_15] : memref<4x1xf32, #tpu.memory_space<vmem>>, vector<4x1xf32>
    %c0_16 = arith.constant 0 : index
    %c0_17 = arith.constant 0 : index
    %25 = vector.load %arg13[%c0_16, %c0_17] : memref<2x32xf32, #tpu.memory_space<vmem>>, vector<2x32xf32>
    %c0_18 = arith.constant 0 : index
    %c0_19 = arith.constant 0 : index
    %26 = vector.load %arg14[%c0_18, %c0_19] : memref<1x32xf32, #tpu.memory_space<vmem>>, vector<1x32xf32>
    %27 = tpu.iota {dimensions = array<i32: 0>} : vector<4x8xi32>
    %c0_i32_20 = arith.constant 0 : i32
    %28 = vector.broadcast %c0_i32_20 : i32 to vector<4x8xi32>
    %29 = arith.cmpi eq, %27, %28 : vector<4x8xi32>
    %c0_21 = arith.constant 0 : index
    %c0_22 = arith.constant 0 : index
    %30 = vector.load %arg0[%c0_21, %c0_22] : memref<2x8xf32, #tpu.memory_space<vmem>>, vector<1x8xf32>
    %cst_23 = arith.constant 2.29183125 : f32
    %31 = vector.broadcast %cst_23 : f32 to vector<1x8xf32>
    %32 = arith.mulf %30, %31 : vector<1x8xf32>
    %33 = vector.broadcast %21 : vector<4x1xf32> to vector<4x8xf32>
    %34 = vector.broadcast %32 : vector<1x8xf32> to vector<4x8xf32>
    %35 = arith.mulf %33, %34 : vector<4x8xf32>
    %36 = vector.broadcast %22 : vector<4x1xf32> to vector<4x8xf32>
    %37 = arith.addf %35, %36 : vector<4x8xf32>
    %38 = math.sin %37 : vector<4x8xf32>
    %39 = arith.select %29, %37, %38 : vector<4x8xi1>, vector<4x8xf32>
    %cst_24 = arith.constant dense<0.000000e+00> : vector<4x8xf32>
    %40 = tpu.matmul %23, %39, %cst_24 {dimension_numbers = #tpu.dot_dimension_numbers<[1], [0], [0], [1], [0, 0, 1, 1], [], []>} : vector<4x4xf32>, vector<4x8xf32>, vector<4x8xf32> -> vector<4x8xf32>
    %41 = vector.broadcast %24 : vector<4x1xf32> to vector<4x8xf32>
    %42 = arith.addf %40, %41 : vector<4x8xf32>
    %cst_25 = arith.constant dense<0.000000e+00> : vector<128x8xf32>
    %43 = tpu.matmul %20, %42, %cst_25 {dimension_numbers = #tpu.dot_dimension_numbers<[1], [0], [0], [1], [0, 0, 1, 1], [], []>} : vector<128x4xf32>, vector<4x8xf32>, vector<128x8xf32> -> vector<128x8xf32>
    %cst_26 = arith.constant 5.000000e-01 : f32
    %44 = vector.broadcast %cst_26 : f32 to vector<128x8xf32>
    %45 = arith.mulf %43, %44 : vector<128x8xf32>
    %c0_27 = arith.constant 0 : index
    %c0_28 = arith.constant 0 : index
    %46 = vector.load %arg1[%c0_27, %c0_28] : memref<2x8xf32, #tpu.memory_space<vmem>>, vector<1x8xf32>
    %cst_29 = arith.constant 0.000000e+00 : f32
    %47 = vector.broadcast %cst_29 : f32 to vector<1x8xf32>
    %48 = arith.cmpf oeq, %46, %47 : vector<1x8xf32>
    %cst_30 = arith.constant -1.000000e+09 : f32
    %49 = vector.shape_cast %48 : vector<1x8xi1> to vector<1x8xi1>
    %50 = vector.broadcast %49 : vector<1x8xi1> to vector<128x8xi1>
    %51 = vector.broadcast %cst_30 : f32 to vector<128x8xf32>
    %52 = arith.select %50, %51, %45 : vector<128x8xi1>, vector<128x8xf32>
    %cst_31 = arith.constant dense<0xFF800000> : vector<128xf32>
    %53 = vector.multi_reduction <maximumf>, %52, %cst_31 [1] : vector<128x8xf32> to vector<128xf32>
    %54 = vector.shape_cast %53 : vector<128xf32> to vector<128x1xf32>
    %55 = vector.broadcast %54 : vector<128x1xf32> to vector<128x8xf32>
    %56 = arith.subf %52, %55 : vector<128x8xf32>
    %57 = math.exp %56 : vector<128x8xf32>
    %cst_32 = arith.constant dense<0.000000e+00> : vector<128xf32>
    %58 = vector.multi_reduction <add>, %57, %cst_32 [1] : vector<128x8xf32> to vector<128xf32>
    %59 = vector.shape_cast %58 : vector<128xf32> to vector<128x1xf32>
    %60 = tpu.reciprocal %59 {approx = true} : vector<128x1xf32> -> vector<128x1xf32>
    %61 = vector.broadcast %60 : vector<128x1xf32> to vector<128x8xf32>
    %62 = arith.mulf %57, %61 : vector<128x8xf32>
    %c0_33 = arith.constant 0 : index
    %c0_34 = arith.constant 0 : index
    %63 = vector.load %arg2[%c0_33, %c0_34] : memref<16x1xf32, #tpu.memory_space<vmem>>, vector<8x1xf32>
    %c0_35 = arith.constant 0 : index
    %c0_36 = arith.constant 0 : index
    %64 = vector.load %arg3[%c0_35, %c0_36] : memref<16x1xf32, #tpu.memory_space<vmem>>, vector<8x1xf32>
    %65 = vector.extract_strided_slice %25 {offsets = [0, 0], sizes = [1, 32], strides = [1, 1]} : vector<2x32xf32> to vector<1x32xf32>
    %66 = vector.broadcast %63 : vector<8x1xf32> to vector<8x32xf32>
    %67 = vector.broadcast %65 : vector<1x32xf32> to vector<8x32xf32>
    %68 = arith.mulf %66, %67 : vector<8x32xf32>
    %69 = vector.extract_strided_slice %25 {offsets = [1, 0], sizes = [1, 32], strides = [1, 1]} : vector<2x32xf32> to vector<1x32xf32>
    %70 = vector.broadcast %64 : vector<8x1xf32> to vector<8x32xf32>
    %71 = vector.broadcast %69 : vector<1x32xf32> to vector<8x32xf32>
    %72 = arith.mulf %70, %71 : vector<8x32xf32>
    %73 = arith.addf %68, %72 : vector<8x32xf32>
    %cst_37 = arith.constant dense<0.000000e+00> : vector<128x32xf32>
    %74 = tpu.matmul %62, %73, %cst_37 {dimension_numbers = #tpu.dot_dimension_numbers<[1], [0], [0], [1], [0, 0, 1, 1], [], []>} : vector<128x8xf32>, vector<8x32xf32>, vector<128x32xf32> -> vector<128x32xf32>
    %75 = vector.broadcast %26 : vector<1x32xf32> to vector<128x32xf32>
    %76 = arith.addf %74, %75 : vector<128x32xf32>
    %c1 = arith.constant 1 : index
    %c0_38 = arith.constant 0 : index
    %77 = vector.load %arg0[%c1, %c0_38] : memref<2x8xf32, #tpu.memory_space<vmem>>, vector<1x8xf32>
    %cst_39 = arith.constant 2.29183125 : f32
    %78 = vector.broadcast %cst_39 : f32 to vector<1x8xf32>
    %79 = arith.mulf %77, %78 : vector<1x8xf32>
    %80 = vector.broadcast %21 : vector<4x1xf32> to vector<4x8xf32>
    %81 = vector.broadcast %79 : vector<1x8xf32> to vector<4x8xf32>
    %82 = arith.mulf %80, %81 : vector<4x8xf32>
    %83 = vector.broadcast %22 : vector<4x1xf32> to vector<4x8xf32>
    %84 = arith.addf %82, %83 : vector<4x8xf32>
    %85 = math.sin %84 : vector<4x8xf32>
    %86 = arith.select %29, %84, %85 : vector<4x8xi1>, vector<4x8xf32>
    %cst_40 = arith.constant dense<0.000000e+00> : vector<4x8xf32>
    %87 = tpu.matmul %23, %86, %cst_40 {dimension_numbers = #tpu.dot_dimension_numbers<[1], [0], [0], [1], [0, 0, 1, 1], [], []>} : vector<4x4xf32>, vector<4x8xf32>, vector<4x8xf32> -> vector<4x8xf32>
    %88 = vector.broadcast %24 : vector<4x1xf32> to vector<4x8xf32>
    %89 = arith.addf %87, %88 : vector<4x8xf32>
    %cst_41 = arith.constant dense<0.000000e+00> : vector<128x8xf32>
    %90 = tpu.matmul %20, %89, %cst_41 {dimension_numbers = #tpu.dot_dimension_numbers<[1], [0], [0], [1], [0, 0, 1, 1], [], []>} : vector<128x4xf32>, vector<4x8xf32>, vector<128x8xf32> -> vector<128x8xf32>
    %cst_42 = arith.constant 5.000000e-01 : f32
    %91 = vector.broadcast %cst_42 : f32 to vector<128x8xf32>
    %92 = arith.mulf %90, %91 : vector<128x8xf32>
    %c1_43 = arith.constant 1 : index
    %c0_44 = arith.constant 0 : index
    %93 = vector.load %arg1[%c1_43, %c0_44] : memref<2x8xf32, #tpu.memory_space<vmem>>, vector<1x8xf32>
    %cst_45 = arith.constant 0.000000e+00 : f32
    %94 = vector.broadcast %cst_45 : f32 to vector<1x8xf32>
    %95 = arith.cmpf oeq, %93, %94 : vector<1x8xf32>
    %cst_46 = arith.constant -1.000000e+09 : f32
    %96 = vector.shape_cast %95 : vector<1x8xi1> to vector<1x8xi1>
    %97 = vector.broadcast %96 : vector<1x8xi1> to vector<128x8xi1>
    %98 = vector.broadcast %cst_46 : f32 to vector<128x8xf32>
    %99 = arith.select %97, %98, %92 : vector<128x8xi1>, vector<128x8xf32>
    %cst_47 = arith.constant dense<0xFF800000> : vector<128xf32>
    %100 = vector.multi_reduction <maximumf>, %99, %cst_47 [1] : vector<128x8xf32> to vector<128xf32>
    %101 = vector.shape_cast %100 : vector<128xf32> to vector<128x1xf32>
    %102 = vector.broadcast %101 : vector<128x1xf32> to vector<128x8xf32>
    %103 = arith.subf %99, %102 : vector<128x8xf32>
    %104 = math.exp %103 : vector<128x8xf32>
    %cst_48 = arith.constant dense<0.000000e+00> : vector<128xf32>
    %105 = vector.multi_reduction <add>, %104, %cst_48 [1] : vector<128x8xf32> to vector<128xf32>
    %106 = vector.shape_cast %105 : vector<128xf32> to vector<128x1xf32>
    %107 = tpu.reciprocal %106 {approx = true} : vector<128x1xf32> -> vector<128x1xf32>
    %108 = vector.broadcast %107 : vector<128x1xf32> to vector<128x8xf32>
    %109 = arith.mulf %104, %108 : vector<128x8xf32>
    %c8 = arith.constant 8 : index
    %c0_49 = arith.constant 0 : index
    %110 = vector.load %arg2[%c8, %c0_49] : memref<16x1xf32, #tpu.memory_space<vmem>>, vector<8x1xf32>
    %c8_50 = arith.constant 8 : index
    %c0_51 = arith.constant 0 : index
    %111 = vector.load %arg3[%c8_50, %c0_51] : memref<16x1xf32, #tpu.memory_space<vmem>>, vector<8x1xf32>
    %112 = vector.extract_strided_slice %25 {offsets = [0, 0], sizes = [1, 32], strides = [1, 1]} : vector<2x32xf32> to vector<1x32xf32>
    %113 = vector.broadcast %110 : vector<8x1xf32> to vector<8x32xf32>
    %114 = vector.broadcast %112 : vector<1x32xf32> to vector<8x32xf32>
    %115 = arith.mulf %113, %114 : vector<8x32xf32>
    %116 = vector.extract_strided_slice %25 {offsets = [1, 0], sizes = [1, 32], strides = [1, 1]} : vector<2x32xf32> to vector<1x32xf32>
    %117 = vector.broadcast %111 : vector<8x1xf32> to vector<8x32xf32>
    %118 = vector.broadcast %116 : vector<1x32xf32> to vector<8x32xf32>
    %119 = arith.mulf %117, %118 : vector<8x32xf32>
    %120 = arith.addf %115, %119 : vector<8x32xf32>
    %cst_52 = arith.constant dense<0.000000e+00> : vector<128x32xf32>
    %121 = tpu.matmul %109, %120, %cst_52 {dimension_numbers = #tpu.dot_dimension_numbers<[1], [0], [0], [1], [0, 0, 1, 1], [], []>} : vector<128x8xf32>, vector<8x32xf32>, vector<128x32xf32> -> vector<128x32xf32>
    %122 = vector.broadcast %26 : vector<1x32xf32> to vector<128x32xf32>
    %123 = arith.addf %121, %122 : vector<128x32xf32>
    %124 = tpu.concatenate %76, %123 in 1 : vector<128x32xf32>, vector<128x32xf32> -> vector<128x64xf32>
    %c0_53 = arith.constant 0 : index
    %c0_54 = arith.constant 0 : index
    %125 = vector.load %arg15[%c0_53, %c0_54] : memref<64x64xf32, #tpu.memory_space<vmem>>, vector<64x64xf32>
    %cst_55 = arith.constant dense<0.000000e+00> : vector<128x64xf32>
    %126 = tpu.matmul %124, %125, %cst_55 {dimension_numbers = #tpu.dot_dimension_numbers<[1], [0], [0], [1], [0, 0, 1, 1], [], []>} : vector<128x64xf32>, vector<64x64xf32>, vector<128x64xf32> -> vector<128x64xf32>
    %c0_56 = arith.constant 0 : index
    %c0_57 = arith.constant 0 : index
    %127 = vector.load %arg21[%c0_56, %c0_57] : memref<1x64xf32, #tpu.memory_space<vmem>>, vector<1x64xf32>
    %128 = vector.broadcast %127 : vector<1x64xf32> to vector<128x64xf32>
    %129 = arith.addf %126, %128 : vector<128x64xf32>
    %c0_58 = arith.constant 0 : index
    %c0_59 = arith.constant 0 : index
    %130 = vector.load %arg41[%c0_58, %c0_59] : memref<128x64xf32, #tpu.memory_space<vmem>>, vector<128x64xf32>
    tpu.vector_store %arg41[%c0_58, %c0_59], %129 {strides = array<i32>} : memref<128x64xf32, #tpu.memory_space<vmem>>, vector<128x64xf32>,
    %c0_60 = arith.constant 0 : index
    %c0_61 = arith.constant 0 : index
    %131 = vector.load %arg16[%c0_60, %c0_61] : memref<64x64xf32, #tpu.memory_space<vmem>>, vector<64x64xf32>
    %cst_62 = arith.constant dense<0.000000e+00> : vector<128x64xf32>
    %132 = tpu.matmul %124, %131, %cst_62 {dimension_numbers = #tpu.dot_dimension_numbers<[1], [0], [0], [1], [0, 0, 1, 1], [], []>} : vector<128x64xf32>, vector<64x64xf32>, vector<128x64xf32> -> vector<128x64xf32>
    %c0_63 = arith.constant 0 : index
    %c0_64 = arith.constant 0 : index
    %133 = vector.load %arg22[%c0_63, %c0_64] : memref<1x64xf32, #tpu.memory_space<vmem>>, vector<1x64xf32>
    %134 = vector.broadcast %133 : vector<1x64xf32> to vector<128x64xf32>
    %135 = arith.addf %132, %134 : vector<128x64xf32>
    %c0_65 = arith.constant 0 : index
    %c0_66 = arith.constant 0 : index
    %136 = vector.load %arg42[%c0_65, %c0_66] : memref<128x64xf32, #tpu.memory_space<vmem>>, vector<128x64xf32>
    tpu.vector_store %arg42[%c0_65, %c0_66], %135 {strides = array<i32>} : memref<128x64xf32, #tpu.memory_space<vmem>>, vector<128x64xf32>,
    %c0_67 = arith.constant 0 : index
    %c0_68 = arith.constant 0 : index
    %137 = vector.load %arg17[%c0_67, %c0_68] : memref<64x64xf32, #tpu.memory_space<vmem>>, vector<64x64xf32>
    %cst_69 = arith.constant dense<0.000000e+00> : vector<128x64xf32>
    %138 = tpu.matmul %124, %137, %cst_69 {dimension_numbers = #tpu.dot_dimension_numbers<[1], [0], [0], [1], [0, 0, 1, 1], [], []>} : vector<128x64xf32>, vector<64x64xf32>, vector<128x64xf32> -> vector<128x64xf32>
    %c0_70 = arith.constant 0 : index
    %c0_71 = arith.constant 0 : index
    %139 = vector.load %arg23[%c0_70, %c0_71] : memref<1x64xf32, #tpu.memory_space<vmem>>, vector<1x64xf32>
    %140 = vector.broadcast %139 : vector<1x64xf32> to vector<128x64xf32>
    %141 = arith.addf %138, %140 : vector<128x64xf32>
    %c0_72 = arith.constant 0 : index
    %c0_73 = arith.constant 0 : index
    %142 = vector.load %arg43[%c0_72, %c0_73] : memref<128x64xf32, #tpu.memory_space<vmem>>, vector<128x64xf32>
    tpu.vector_store %arg43[%c0_72, %c0_73], %141 {strides = array<i32>} : memref<128x64xf32, #tpu.memory_space<vmem>>, vector<128x64xf32>,
    %c0_74 = arith.constant 0 : index
    %c0_75 = arith.constant 0 : index
    %143 = vector.load %arg18[%c0_74, %c0_75] : memref<64x64xf32, #tpu.memory_space<vmem>>, vector<64x64xf32>
    %c0_76 = arith.constant 0 : index
    %c0_77 = arith.constant 0 : index
    %144 = vector.load %arg19[%c0_76, %c0_77] : memref<64x64xf32, #tpu.memory_space<vmem>>, vector<64x64xf32>
    %c0_78 = arith.constant 0 : index
    %c0_79 = arith.constant 0 : index
    %145 = vector.load %arg20[%c0_78, %c0_79] : memref<64x64xf32, #tpu.memory_space<vmem>>, vector<64x64xf32>
    %c0_80 = arith.constant 0 : index
    %c0_81 = arith.constant 0 : index
    %146 = vector.load %arg24[%c0_80, %c0_81] : memref<1x64xf32, #tpu.memory_space<vmem>>, vector<1x64xf32>
    %cst_82 = arith.constant 0.000000e+00 : f32
    %147 = vector.broadcast %cst_82 : f32 to vector<1x64xf32>
    %c0_i32_83 = arith.constant 0 : i32
    %c16_i32 = arith.constant 16 : i32
    %148 = arith.addi %c0_i32_83, %c16_i32 : i32
    %c1_i32 = arith.constant 1 : i32
    %149 = scf.for %arg45 = %c0_i32_83 to %148 step %c1_i32 iter_args(%arg46 = %147) -> (vector<1x64xf32>)  : i32 {
      %c8_i32 = arith.constant 8 : i32
      %286 = arith.muli %arg45, %c8_i32 : i32
      %287 = tpu.assume_multiple %286, 8 : i32
      %288 = arith.index_cast %287 : i32 to index
      %c0_158 = arith.constant 0 : index
      %289 = vector.load %arg41[%288, %c0_158] : memref<128x64xf32, #tpu.memory_space<vmem>>, vector<8x64xf32>
      %290 = arith.index_cast %287 : i32 to index
      %c0_159 = arith.constant 0 : index
      %291 = vector.load %arg42[%290, %c0_159] : memref<128x64xf32, #tpu.memory_space<vmem>>, vector<8x64xf32>
      %292 = arith.index_cast %287 : i32 to index
      %c0_160 = arith.constant 0 : index
      %293 = vector.load %arg43[%292, %c0_160] : memref<128x64xf32, #tpu.memory_space<vmem>>, vector<8x64xf32>
      %cst_161 = arith.constant dense<0.000000e+00> : vector<1x64xf32>
      %294 = tpu.matmul %arg46, %143, %cst_161 {dimension_numbers = #tpu.dot_dimension_numbers<[1], [0], [0], [1], [0, 0, 1, 1], [], []>} : vector<1x64xf32>, vector<64x64xf32>, vector<1x64xf32> -> vector<1x64xf32>
      %cst_162 = arith.constant dense<0.000000e+00> : vector<1x64xf32>
      %295 = tpu.matmul %arg46, %144, %cst_162 {dimension_numbers = #tpu.dot_dimension_numbers<[1], [0], [0], [1], [0, 0, 1, 1], [], []>} : vector<1x64xf32>, vector<64x64xf32>, vector<1x64xf32> -> vector<1x64xf32>
      %cst_163 = arith.constant dense<0.000000e+00> : vector<1x64xf32>
      %296 = tpu.matmul %arg46, %145, %cst_163 {dimension_numbers = #tpu.dot_dimension_numbers<[1], [0], [0], [1], [0, 0, 1, 1], [], []>} : vector<1x64xf32>, vector<64x64xf32>, vector<1x64xf32> -> vector<1x64xf32>
      %297 = arith.addf %296, %146 : vector<1x64xf32>
      %298 = vector.extract_strided_slice %289 {offsets = [0, 0], sizes = [1, 64], strides = [1, 1]} : vector<8x64xf32> to vector<1x64xf32>
      %299 = arith.addf %298, %294 : vector<1x64xf32>
      %300 = arith.negf %299 : vector<1x64xf32>
      %301 = math.exp %300 : vector<1x64xf32>
      %cst_164 = arith.constant 1.000000e+00 : f32
      %302 = vector.broadcast %cst_164 : f32 to vector<1x64xf32>
      %303 = arith.addf %302, %301 : vector<1x64xf32>
      %304 = arith.divf %302, %303 : vector<1x64xf32>
      %305 = vector.extract_strided_slice %291 {offsets = [0, 0], sizes = [1, 64], strides = [1, 1]} : vector<8x64xf32> to vector<1x64xf32>
      %306 = arith.addf %305, %295 : vector<1x64xf32>
      %307 = arith.negf %306 : vector<1x64xf32>
      %308 = math.exp %307 : vector<1x64xf32>
      %cst_165 = arith.constant 1.000000e+00 : f32
      %309 = vector.broadcast %cst_165 : f32 to vector<1x64xf32>
      %310 = arith.addf %309, %308 : vector<1x64xf32>
      %311 = arith.divf %309, %310 : vector<1x64xf32>
      %312 = vector.extract_strided_slice %293 {offsets = [0, 0], sizes = [1, 64], strides = [1, 1]} : vector<8x64xf32> to vector<1x64xf32>
      %313 = arith.mulf %304, %297 : vector<1x64xf32>
      %314 = arith.addf %312, %313 : vector<1x64xf32>
      %315 = math.tanh %314 : vector<1x64xf32>
      %cst_166 = arith.constant 1.000000e+00 : f32
      %316 = vector.broadcast %cst_166 : f32 to vector<1x64xf32>
      %317 = arith.subf %316, %311 : vector<1x64xf32>
      %318 = arith.mulf %317, %315 : vector<1x64xf32>
      %319 = arith.mulf %311, %arg46 : vector<1x64xf32>
      %320 = arith.addf %318, %319 : vector<1x64xf32>
      %cst_167 = arith.constant dense<0.000000e+00> : vector<1x64xf32>
      %321 = tpu.matmul %320, %143, %cst_167 {dimension_numbers = #tpu.dot_dimension_numbers<[1], [0], [0], [1], [0, 0, 1, 1], [], []>} : vector<1x64xf32>, vector<64x64xf32>, vector<1x64xf32> -> vector<1x64xf32>
      %cst_168 = arith.constant dense<0.000000e+00> : vector<1x64xf32>
      %322 = tpu.matmul %320, %144, %cst_168 {dimension_numbers = #tpu.dot_dimension_numbers<[1], [0], [0], [1], [0, 0, 1, 1], [], []>} : vector<1x64xf32>, vector<64x64xf32>, vector<1x64xf32> -> vector<1x64xf32>
      %cst_169 = arith.constant dense<0.000000e+00> : vector<1x64xf32>
      %323 = tpu.matmul %320, %145, %cst_169 {dimension_numbers = #tpu.dot_dimension_numbers<[1], [0], [0], [1], [0, 0, 1, 1], [], []>} : vector<1x64xf32>, vector<64x64xf32>, vector<1x64xf32> -> vector<1x64xf32>
      %324 = arith.addf %323, %146 : vector<1x64xf32>
      %325 = vector.extract_strided_slice %289 {offsets = [1, 0], sizes = [1, 64], strides = [1, 1]} : vector<8x64xf32> to vector<1x64xf32>
      %326 = arith.addf %325, %321 : vector<1x64xf32>
      %327 = arith.negf %326 : vector<1x64xf32>
      %328 = math.exp %327 : vector<1x64xf32>
      %cst_170 = arith.constant 1.000000e+00 : f32
      %329 = vector.broadcast %cst_170 : f32 to vector<1x64xf32>
      %330 = arith.addf %329, %328 : vector<1x64xf32>
      %331 = arith.divf %329, %330 : vector<1x64xf32>
      %332 = vector.extract_strided_slice %291 {offsets = [1, 0], sizes = [1, 64], strides = [1, 1]} : vector<8x64xf32> to vector<1x64xf32>
      %333 = arith.addf %332, %322 : vector<1x64xf32>
      %334 = arith.negf %333 : vector<1x64xf32>
      %335 = math.exp %334 : vector<1x64xf32>
      %cst_171 = arith.constant 1.000000e+00 : f32
      %336 = vector.broadcast %cst_171 : f32 to vector<1x64xf32>
      %337 = arith.addf %336, %335 : vector<1x64xf32>
      %338 = arith.divf %336, %337 : vector<1x64xf32>
      %339 = vector.extract_strided_slice %293 {offsets = [1, 0], sizes = [1, 64], strides = [1, 1]} : vector<8x64xf32> to vector<1x64xf32>
      %340 = arith.mulf %331, %324 : vector<1x64xf32>
      %341 = arith.addf %339, %340 : vector<1x64xf32>
      %342 = math.tanh %341 : vector<1x64xf32>
      %cst_172 = arith.constant 1.000000e+00 : f32
      %343 = vector.broadcast %cst_172 : f32 to vector<1x64xf32>
      %344 = arith.subf %343, %338 : vector<1x64xf32>
      %345 = arith.mulf %344, %342 : vector<1x64xf32>
      %346 = arith.mulf %338, %320 : vector<1x64xf32>
      %347 = arith.addf %345, %346 : vector<1x64xf32>
      %cst_173 = arith.constant dense<0.000000e+00> : vector<1x64xf32>
      %348 = tpu.matmul %347, %143, %cst_173 {dimension_numbers = #tpu.dot_dimension_numbers<[1], [0], [0], [1], [0, 0, 1, 1], [], []>} : vector<1x64xf32>, vector<64x64xf32>, vector<1x64xf32> -> vector<1x64xf32>
      %cst_174 = arith.constant dense<0.000000e+00> : vector<1x64xf32>
      %349 = tpu.matmul %347, %144, %cst_174 {dimension_numbers = #tpu.dot_dimension_numbers<[1], [0], [0], [1], [0, 0, 1, 1], [], []>} : vector<1x64xf32>, vector<64x64xf32>, vector<1x64xf32> -> vector<1x64xf32>
      %cst_175 = arith.constant dense<0.000000e+00> : vector<1x64xf32>
      %350 = tpu.matmul %347, %145, %cst_175 {dimension_numbers = #tpu.dot_dimension_numbers<[1], [0], [0], [1], [0, 0, 1, 1], [], []>} : vector<1x64xf32>, vector<64x64xf32>, vector<1x64xf32> -> vector<1x64xf32>
      %351 = arith.addf %350, %146 : vector<1x64xf32>
      %352 = vector.extract_strided_slice %289 {offsets = [2, 0], sizes = [1, 64], strides = [1, 1]} : vector<8x64xf32> to vector<1x64xf32>
      %353 = arith.addf %352, %348 : vector<1x64xf32>
      %354 = arith.negf %353 : vector<1x64xf32>
      %355 = math.exp %354 : vector<1x64xf32>
      %cst_176 = arith.constant 1.000000e+00 : f32
      %356 = vector.broadcast %cst_176 : f32 to vector<1x64xf32>
      %357 = arith.addf %356, %355 : vector<1x64xf32>
      %358 = arith.divf %356, %357 : vector<1x64xf32>
      %359 = vector.extract_strided_slice %291 {offsets = [2, 0], sizes = [1, 64], strides = [1, 1]} : vector<8x64xf32> to vector<1x64xf32>
      %360 = arith.addf %359, %349 : vector<1x64xf32>
      %361 = arith.negf %360 : vector<1x64xf32>
      %362 = math.exp %361 : vector<1x64xf32>
      %cst_177 = arith.constant 1.000000e+00 : f32
      %363 = vector.broadcast %cst_177 : f32 to vector<1x64xf32>
      %364 = arith.addf %363, %362 : vector<1x64xf32>
      %365 = arith.divf %363, %364 : vector<1x64xf32>
      %366 = vector.extract_strided_slice %293 {offsets = [2, 0], sizes = [1, 64], strides = [1, 1]} : vector<8x64xf32> to vector<1x64xf32>
      %367 = arith.mulf %358, %351 : vector<1x64xf32>
      %368 = arith.addf %366, %367 : vector<1x64xf32>
      %369 = math.tanh %368 : vector<1x64xf32>
      %cst_178 = arith.constant 1.000000e+00 : f32
      %370 = vector.broadcast %cst_178 : f32 to vector<1x64xf32>
      %371 = arith.subf %370, %365 : vector<1x64xf32>
      %372 = arith.mulf %371, %369 : vector<1x64xf32>
      %373 = arith.mulf %365, %347 : vector<1x64xf32>
      %374 = arith.addf %372, %373 : vector<1x64xf32>
      %cst_179 = arith.constant dense<0.000000e+00> : vector<1x64xf32>
      %375 = tpu.matmul %374, %143, %cst_179 {dimension_numbers = #tpu.dot_dimension_numbers<[1], [0], [0], [1], [0, 0, 1, 1], [], []>} : vector<1x64xf32>, vector<64x64xf32>, vector<1x64xf32> -> vector<1x64xf32>
      %cst_180 = arith.constant dense<0.000000e+00> : vector<1x64xf32>
      %376 = tpu.matmul %374, %144, %cst_180 {dimension_numbers = #tpu.dot_dimension_numbers<[1], [0], [0], [1], [0, 0, 1, 1], [], []>} : vector<1x64xf32>, vector<64x64xf32>, vector<1x64xf32> -> vector<1x64xf32>
      %cst_181 = arith.constant dense<0.000000e+00> : vector<1x64xf32>
      %377 = tpu.matmul %374, %145, %cst_181 {dimension_numbers = #tpu.dot_dimension_numbers<[1], [0], [0], [1], [0, 0, 1, 1], [], []>} : vector<1x64xf32>, vector<64x64xf32>, vector<1x64xf32> -> vector<1x64xf32>
      %378 = arith.addf %377, %146 : vector<1x64xf32>
      %379 = vector.extract_strided_slice %289 {offsets = [3, 0], sizes = [1, 64], strides = [1, 1]} : vector<8x64xf32> to vector<1x64xf32>
      %380 = arith.addf %379, %375 : vector<1x64xf32>
      %381 = arith.negf %380 : vector<1x64xf32>
      %382 = math.exp %381 : vector<1x64xf32>
      %cst_182 = arith.constant 1.000000e+00 : f32
      %383 = vector.broadcast %cst_182 : f32 to vector<1x64xf32>
      %384 = arith.addf %383, %382 : vector<1x64xf32>
      %385 = arith.divf %383, %384 : vector<1x64xf32>
      %386 = vector.extract_strided_slice %291 {offsets = [3, 0], sizes = [1, 64], strides = [1, 1]} : vector<8x64xf32> to vector<1x64xf32>
      %387 = arith.addf %386, %376 : vector<1x64xf32>
      %388 = arith.negf %387 : vector<1x64xf32>
      %389 = math.exp %388 : vector<1x64xf32>
      %cst_183 = arith.constant 1.000000e+00 : f32
      %390 = vector.broadcast %cst_183 : f32 to vector<1x64xf32>
      %391 = arith.addf %390, %389 : vector<1x64xf32>
      %392 = arith.divf %390, %391 : vector<1x64xf32>
      %393 = vector.extract_strided_slice %293 {offsets = [3, 0], sizes = [1, 64], strides = [1, 1]} : vector<8x64xf32> to vector<1x64xf32>
      %394 = arith.mulf %385, %378 : vector<1x64xf32>
      %395 = arith.addf %393, %394 : vector<1x64xf32>
      %396 = math.tanh %395 : vector<1x64xf32>
      %cst_184 = arith.constant 1.000000e+00 : f32
      %397 = vector.broadcast %cst_184 : f32 to vector<1x64xf32>
      %398 = arith.subf %397, %392 : vector<1x64xf32>
      %399 = arith.mulf %398, %396 : vector<1x64xf32>
      %400 = arith.mulf %392, %374 : vector<1x64xf32>
      %401 = arith.addf %399, %400 : vector<1x64xf32>
      %cst_185 = arith.constant dense<0.000000e+00> : vector<1x64xf32>
      %402 = tpu.matmul %401, %143, %cst_185 {dimension_numbers = #tpu.dot_dimension_numbers<[1], [0], [0], [1], [0, 0, 1, 1], [], []>} : vector<1x64xf32>, vector<64x64xf32>, vector<1x64xf32> -> vector<1x64xf32>
      %cst_186 = arith.constant dense<0.000000e+00> : vector<1x64xf32>
      %403 = tpu.matmul %401, %144, %cst_186 {dimension_numbers = #tpu.dot_dimension_numbers<[1], [0], [0], [1], [0, 0, 1, 1], [], []>} : vector<1x64xf32>, vector<64x64xf32>, vector<1x64xf32> -> vector<1x64xf32>
      %cst_187 = arith.constant dense<0.000000e+00> : vector<1x64xf32>
      %404 = tpu.matmul %401, %145, %cst_187 {dimension_numbers = #tpu.dot_dimension_numbers<[1], [0], [0], [1], [0, 0, 1, 1], [], []>} : vector<1x64xf32>, vector<64x64xf32>, vector<1x64xf32> -> vector<1x64xf32>
      %405 = arith.addf %404, %146 : vector<1x64xf32>
      %406 = vector.extract_strided_slice %289 {offsets = [4, 0], sizes = [1, 64], strides = [1, 1]} : vector<8x64xf32> to vector<1x64xf32>
      %407 = arith.addf %406, %402 : vector<1x64xf32>
      %408 = arith.negf %407 : vector<1x64xf32>
      %409 = math.exp %408 : vector<1x64xf32>
      %cst_188 = arith.constant 1.000000e+00 : f32
      %410 = vector.broadcast %cst_188 : f32 to vector<1x64xf32>
      %411 = arith.addf %410, %409 : vector<1x64xf32>
      %412 = arith.divf %410, %411 : vector<1x64xf32>
      %413 = vector.extract_strided_slice %291 {offsets = [4, 0], sizes = [1, 64], strides = [1, 1]} : vector<8x64xf32> to vector<1x64xf32>
      %414 = arith.addf %413, %403 : vector<1x64xf32>
      %415 = arith.negf %414 : vector<1x64xf32>
      %416 = math.exp %415 : vector<1x64xf32>
      %cst_189 = arith.constant 1.000000e+00 : f32
      %417 = vector.broadcast %cst_189 : f32 to vector<1x64xf32>
      %418 = arith.addf %417, %416 : vector<1x64xf32>
      %419 = arith.divf %417, %418 : vector<1x64xf32>
      %420 = vector.extract_strided_slice %293 {offsets = [4, 0], sizes = [1, 64], strides = [1, 1]} : vector<8x64xf32> to vector<1x64xf32>
      %421 = arith.mulf %412, %405 : vector<1x64xf32>
      %422 = arith.addf %420, %421 : vector<1x64xf32>
      %423 = math.tanh %422 : vector<1x64xf32>
      %cst_190 = arith.constant 1.000000e+00 : f32
      %424 = vector.broadcast %cst_190 : f32 to vector<1x64xf32>
      %425 = arith.subf %424, %419 : vector<1x64xf32>
      %426 = arith.mulf %425, %423 : vector<1x64xf32>
      %427 = arith.mulf %419, %401 : vector<1x64xf32>
      %428 = arith.addf %426, %427 : vector<1x64xf32>
      %cst_191 = arith.constant dense<0.000000e+00> : vector<1x64xf32>
      %429 = tpu.matmul %428, %143, %cst_191 {dimension_numbers = #tpu.dot_dimension_numbers<[1], [0], [0], [1], [0, 0, 1, 1], [], []>} : vector<1x64xf32>, vector<64x64xf32>, vector<1x64xf32> -> vector<1x64xf32>
      %cst_192 = arith.constant dense<0.000000e+00> : vector<1x64xf32>
      %430 = tpu.matmul %428, %144, %cst_192 {dimension_numbers = #tpu.dot_dimension_numbers<[1], [0], [0], [1], [0, 0, 1, 1], [], []>} : vector<1x64xf32>, vector<64x64xf32>, vector<1x64xf32> -> vector<1x64xf32>
      %cst_193 = arith.constant dense<0.000000e+00> : vector<1x64xf32>
      %431 = tpu.matmul %428, %145, %cst_193 {dimension_numbers = #tpu.dot_dimension_numbers<[1], [0], [0], [1], [0, 0, 1, 1], [], []>} : vector<1x64xf32>, vector<64x64xf32>, vector<1x64xf32> -> vector<1x64xf32>
      %432 = arith.addf %431, %146 : vector<1x64xf32>
      %433 = vector.extract_strided_slice %289 {offsets = [5, 0], sizes = [1, 64], strides = [1, 1]} : vector<8x64xf32> to vector<1x64xf32>
      %434 = arith.addf %433, %429 : vector<1x64xf32>
      %435 = arith.negf %434 : vector<1x64xf32>
      %436 = math.exp %435 : vector<1x64xf32>
      %cst_194 = arith.constant 1.000000e+00 : f32
      %437 = vector.broadcast %cst_194 : f32 to vector<1x64xf32>
      %438 = arith.addf %437, %436 : vector<1x64xf32>
      %439 = arith.divf %437, %438 : vector<1x64xf32>
      %440 = vector.extract_strided_slice %291 {offsets = [5, 0], sizes = [1, 64], strides = [1, 1]} : vector<8x64xf32> to vector<1x64xf32>
      %441 = arith.addf %440, %430 : vector<1x64xf32>
      %442 = arith.negf %441 : vector<1x64xf32>
      %443 = math.exp %442 : vector<1x64xf32>
      %cst_195 = arith.constant 1.000000e+00 : f32
      %444 = vector.broadcast %cst_195 : f32 to vector<1x64xf32>
      %445 = arith.addf %444, %443 : vector<1x64xf32>
      %446 = arith.divf %444, %445 : vector<1x64xf32>
      %447 = vector.extract_strided_slice %293 {offsets = [5, 0], sizes = [1, 64], strides = [1, 1]} : vector<8x64xf32> to vector<1x64xf32>
      %448 = arith.mulf %439, %432 : vector<1x64xf32>
      %449 = arith.addf %447, %448 : vector<1x64xf32>
      %450 = math.tanh %449 : vector<1x64xf32>
      %cst_196 = arith.constant 1.000000e+00 : f32
      %451 = vector.broadcast %cst_196 : f32 to vector<1x64xf32>
      %452 = arith.subf %451, %446 : vector<1x64xf32>
      %453 = arith.mulf %452, %450 : vector<1x64xf32>
      %454 = arith.mulf %446, %428 : vector<1x64xf32>
      %455 = arith.addf %453, %454 : vector<1x64xf32>
      %cst_197 = arith.constant dense<0.000000e+00> : vector<1x64xf32>
      %456 = tpu.matmul %455, %143, %cst_197 {dimension_numbers = #tpu.dot_dimension_numbers<[1], [0], [0], [1], [0, 0, 1, 1], [], []>} : vector<1x64xf32>, vector<64x64xf32>, vector<1x64xf32> -> vector<1x64xf32>
      %cst_198 = arith.constant dense<0.000000e+00> : vector<1x64xf32>
      %457 = tpu.matmul %455, %144, %cst_198 {dimension_numbers = #tpu.dot_dimension_numbers<[1], [0], [0], [1], [0, 0, 1, 1], [], []>} : vector<1x64xf32>, vector<64x64xf32>, vector<1x64xf32> -> vector<1x64xf32>
      %cst_199 = arith.constant dense<0.000000e+00> : vector<1x64xf32>
      %458 = tpu.matmul %455, %145, %cst_199 {dimension_numbers = #tpu.dot_dimension_numbers<[1], [0], [0], [1], [0, 0, 1, 1], [], []>} : vector<1x64xf32>, vector<64x64xf32>, vector<1x64xf32> -> vector<1x64xf32>
      %459 = arith.addf %458, %146 : vector<1x64xf32>
      %460 = vector.extract_strided_slice %289 {offsets = [6, 0], sizes = [1, 64], strides = [1, 1]} : vector<8x64xf32> to vector<1x64xf32>
      %461 = arith.addf %460, %456 : vector<1x64xf32>
      %462 = arith.negf %461 : vector<1x64xf32>
      %463 = math.exp %462 : vector<1x64xf32>
      %cst_200 = arith.constant 1.000000e+00 : f32
      %464 = vector.broadcast %cst_200 : f32 to vector<1x64xf32>
      %465 = arith.addf %464, %463 : vector<1x64xf32>
      %466 = arith.divf %464, %465 : vector<1x64xf32>
      %467 = vector.extract_strided_slice %291 {offsets = [6, 0], sizes = [1, 64], strides = [1, 1]} : vector<8x64xf32> to vector<1x64xf32>
      %468 = arith.addf %467, %457 : vector<1x64xf32>
      %469 = arith.negf %468 : vector<1x64xf32>
      %470 = math.exp %469 : vector<1x64xf32>
      %cst_201 = arith.constant 1.000000e+00 : f32
      %471 = vector.broadcast %cst_201 : f32 to vector<1x64xf32>
      %472 = arith.addf %471, %470 : vector<1x64xf32>
      %473 = arith.divf %471, %472 : vector<1x64xf32>
      %474 = vector.extract_strided_slice %293 {offsets = [6, 0], sizes = [1, 64], strides = [1, 1]} : vector<8x64xf32> to vector<1x64xf32>
      %475 = arith.mulf %466, %459 : vector<1x64xf32>
      %476 = arith.addf %474, %475 : vector<1x64xf32>
      %477 = math.tanh %476 : vector<1x64xf32>
      %cst_202 = arith.constant 1.000000e+00 : f32
      %478 = vector.broadcast %cst_202 : f32 to vector<1x64xf32>
      %479 = arith.subf %478, %473 : vector<1x64xf32>
      %480 = arith.mulf %479, %477 : vector<1x64xf32>
      %481 = arith.mulf %473, %455 : vector<1x64xf32>
      %482 = arith.addf %480, %481 : vector<1x64xf32>
      %cst_203 = arith.constant dense<0.000000e+00> : vector<1x64xf32>
      %483 = tpu.matmul %482, %143, %cst_203 {dimension_numbers = #tpu.dot_dimension_numbers<[1], [0], [0], [1], [0, 0, 1, 1], [], []>} : vector<1x64xf32>, vector<64x64xf32>, vector<1x64xf32> -> vector<1x64xf32>
      %cst_204 = arith.constant dense<0.000000e+00> : vector<1x64xf32>
      %484 = tpu.matmul %482, %144, %cst_204 {dimension_numbers = #tpu.dot_dimension_numbers<[1], [0], [0], [1], [0, 0, 1, 1], [], []>} : vector<1x64xf32>, vector<64x64xf32>, vector<1x64xf32> -> vector<1x64xf32>
      %cst_205 = arith.constant dense<0.000000e+00> : vector<1x64xf32>
      %485 = tpu.matmul %482, %145, %cst_205 {dimension_numbers = #tpu.dot_dimension_numbers<[1], [0], [0], [1], [0, 0, 1, 1], [], []>} : vector<1x64xf32>, vector<64x64xf32>, vector<1x64xf32> -> vector<1x64xf32>
      %486 = arith.addf %485, %146 : vector<1x64xf32>
      %487 = vector.extract_strided_slice %289 {offsets = [7, 0], sizes = [1, 64], strides = [1, 1]} : vector<8x64xf32> to vector<1x64xf32>
      %488 = arith.addf %487, %483 : vector<1x64xf32>
      %489 = arith.negf %488 : vector<1x64xf32>
      %490 = math.exp %489 : vector<1x64xf32>
      %cst_206 = arith.constant 1.000000e+00 : f32
      %491 = vector.broadcast %cst_206 : f32 to vector<1x64xf32>
      %492 = arith.addf %491, %490 : vector<1x64xf32>
      %493 = arith.divf %491, %492 : vector<1x64xf32>
      %494 = vector.extract_strided_slice %291 {offsets = [7, 0], sizes = [1, 64], strides = [1, 1]} : vector<8x64xf32> to vector<1x64xf32>
      %495 = arith.addf %494, %484 : vector<1x64xf32>
      %496 = arith.negf %495 : vector<1x64xf32>
      %497 = math.exp %496 : vector<1x64xf32>
      %cst_207 = arith.constant 1.000000e+00 : f32
      %498 = vector.broadcast %cst_207 : f32 to vector<1x64xf32>
      %499 = arith.addf %498, %497 : vector<1x64xf32>
      %500 = arith.divf %498, %499 : vector<1x64xf32>
      %501 = vector.extract_strided_slice %293 {offsets = [7, 0], sizes = [1, 64], strides = [1, 1]} : vector<8x64xf32> to vector<1x64xf32>
      %502 = arith.mulf %493, %486 : vector<1x64xf32>
      %503 = arith.addf %501, %502 : vector<1x64xf32>
      %504 = math.tanh %503 : vector<1x64xf32>
      %cst_208 = arith.constant 1.000000e+00 : f32
      %505 = vector.broadcast %cst_208 : f32 to vector<1x64xf32>
      %506 = arith.subf %505, %500 : vector<1x64xf32>
      %507 = arith.mulf %506, %504 : vector<1x64xf32>
      %508 = arith.mulf %500, %482 : vector<1x64xf32>
      %509 = arith.addf %507, %508 : vector<1x64xf32>
      %510 = tpu.concatenate %320, %347, %374, %401, %428, %455, %482, %509 in 0 : vector<1x64xf32>, vector<1x64xf32>, vector<1x64xf32>, vector<1x64xf32>, vector<1x64xf32>, vector<1x64xf32>, vector<1x64xf32>, vector<1x64xf32> -> vector<8x64xf32>
      %511 = arith.index_cast %287 : i32 to index
      %c0_209 = arith.constant 0 : index
      %512 = vector.load %arg44[%511, %c0_209] : memref<128x64xf32, #tpu.memory_space<vmem>>, vector<8x64xf32>
      tpu.vector_store %arg44[%511, %c0_209], %510 {strides = array<i32>} : memref<128x64xf32, #tpu.memory_space<vmem>>, vector<8x64xf32>,
      scf.yield %509 : vector<1x64xf32>
    }
    %c16_i32_84 = arith.constant 16 : i32
    %c0_85 = arith.constant 0 : index
    %c0_86 = arith.constant 0 : index
    %150 = vector.load %arg44[%c0_85, %c0_86] : memref<128x64xf32, #tpu.memory_space<vmem>>, vector<128x64xf32>
    %c0_87 = arith.constant 0 : index
    %c0_88 = arith.constant 0 : index
    %151 = vector.load %arg25[%c0_87, %c0_88] : memref<2x32xf32, #tpu.memory_space<vmem>>, vector<2x32xf32>
    %152 = vector.extract_strided_slice %150 {offsets = [0, 0], sizes = [128, 32], strides = [1, 1]} : vector<128x64xf32> to vector<128x32xf32>
    %cst_89 = arith.constant dense<0.000000e+00> : vector<2x128xf32>
    %153 = tpu.matmul %151, %152, %cst_89 {dimension_numbers = #tpu.dot_dimension_numbers<[1], [1], [0], [0], [0, 0, 1, 0], [], []>} : vector<2x32xf32>, vector<128x32xf32>, vector<2x128xf32> -> vector<2x128xf32>
    %cst_90 = arith.constant dense<0xFF800000> : vector<2xf32>
    %154 = vector.multi_reduction <maximumf>, %153, %cst_90 [1] : vector<2x128xf32> to vector<2xf32>
    %155 = vector.shape_cast %154 : vector<2xf32> to vector<2x1xf32>
    %156 = vector.broadcast %155 : vector<2x1xf32> to vector<2x128xf32>
    %157 = arith.subf %153, %156 : vector<2x128xf32>
    %158 = math.exp %157 : vector<2x128xf32>
    %cst_91 = arith.constant dense<0.000000e+00> : vector<2xf32>
    %159 = vector.multi_reduction <add>, %158, %cst_91 [1] : vector<2x128xf32> to vector<2xf32>
    %160 = vector.shape_cast %159 : vector<2xf32> to vector<2x1xf32>
    %161 = tpu.reciprocal %160 {approx = true} : vector<2x1xf32> -> vector<2x1xf32>
    %162 = vector.broadcast %161 : vector<2x1xf32> to vector<2x128xf32>
    %163 = arith.mulf %158, %162 : vector<2x128xf32>
    %cst_92 = arith.constant dense<0.000000e+00> : vector<2x32xf32>
    %164 = tpu.matmul %163, %152, %cst_92 {dimension_numbers = #tpu.dot_dimension_numbers<[1], [0], [0], [1], [0, 0, 1, 1], [], []>} : vector<2x128xf32>, vector<128x32xf32>, vector<2x32xf32> -> vector<2x32xf32>
    %165 = vector.extract_strided_slice %164 {offsets = [0, 0], sizes = [1, 32], strides = [1, 1]} : vector<2x32xf32> to vector<1x32xf32>
    %166 = vector.extract_strided_slice %164 {offsets = [1, 0], sizes = [1, 32], strides = [1, 1]} : vector<2x32xf32> to vector<1x32xf32>
    %167 = vector.extract_strided_slice %150 {offsets = [0, 32], sizes = [128, 32], strides = [1, 1]} : vector<128x64xf32> to vector<128x32xf32>
    %cst_93 = arith.constant dense<0.000000e+00> : vector<2x128xf32>
    %168 = tpu.matmul %151, %167, %cst_93 {dimension_numbers = #tpu.dot_dimension_numbers<[1], [1], [0], [0], [0, 0, 1, 0], [], []>} : vector<2x32xf32>, vector<128x32xf32>, vector<2x128xf32> -> vector<2x128xf32>
    %cst_94 = arith.constant dense<0xFF800000> : vector<2xf32>
    %169 = vector.multi_reduction <maximumf>, %168, %cst_94 [1] : vector<2x128xf32> to vector<2xf32>
    %170 = vector.shape_cast %169 : vector<2xf32> to vector<2x1xf32>
    %171 = vector.broadcast %170 : vector<2x1xf32> to vector<2x128xf32>
    %172 = arith.subf %168, %171 : vector<2x128xf32>
    %173 = math.exp %172 : vector<2x128xf32>
    %cst_95 = arith.constant dense<0.000000e+00> : vector<2xf32>
    %174 = vector.multi_reduction <add>, %173, %cst_95 [1] : vector<2x128xf32> to vector<2xf32>
    %175 = vector.shape_cast %174 : vector<2xf32> to vector<2x1xf32>
    %176 = tpu.reciprocal %175 {approx = true} : vector<2x1xf32> -> vector<2x1xf32>
    %177 = vector.broadcast %176 : vector<2x1xf32> to vector<2x128xf32>
    %178 = arith.mulf %173, %177 : vector<2x128xf32>
    %cst_96 = arith.constant dense<0.000000e+00> : vector<2x32xf32>
    %179 = tpu.matmul %178, %167, %cst_96 {dimension_numbers = #tpu.dot_dimension_numbers<[1], [0], [0], [1], [0, 0, 1, 1], [], []>} : vector<2x128xf32>, vector<128x32xf32>, vector<2x32xf32> -> vector<2x32xf32>
    %180 = vector.extract_strided_slice %179 {offsets = [0, 0], sizes = [1, 32], strides = [1, 1]} : vector<2x32xf32> to vector<1x32xf32>
    %181 = vector.extract_strided_slice %179 {offsets = [1, 0], sizes = [1, 32], strides = [1, 1]} : vector<2x32xf32> to vector<1x32xf32>
    %182 = tpu.concatenate %165, %180 in 0 : vector<1x32xf32>, vector<1x32xf32> -> vector<2x32xf32>
    %183 = tpu.concatenate %166, %181 in 0 : vector<1x32xf32>, vector<1x32xf32> -> vector<2x32xf32>
    %c0_97 = arith.constant 0 : index
    %c0_98 = arith.constant 0 : index
    %184 = vector.load %arg26[%c0_97, %c0_98] : memref<32x200xf32, #tpu.memory_space<vmem>>, vector<32x200xf32>
    %cst_99 = arith.constant dense<0.000000e+00> : vector<2x200xf32>
    %185 = tpu.matmul %182, %184, %cst_99 {dimension_numbers = #tpu.dot_dimension_numbers<[1], [0], [0], [1], [0, 0, 1, 1], [], []>} : vector<2x32xf32>, vector<32x200xf32>, vector<2x200xf32> -> vector<2x200xf32>
    %c0_100 = arith.constant 0 : index
    %c0_101 = arith.constant 0 : index
    %186 = vector.load %arg27[%c0_100, %c0_101] : memref<1x200xf32, #tpu.memory_space<vmem>>, vector<1x200xf32>
    %187 = vector.broadcast %186 : vector<1x200xf32> to vector<2x200xf32>
    %188 = arith.addf %185, %187 : vector<2x200xf32>
    %cst_102 = arith.constant 5.000000e-01 : f32
    %189 = vector.broadcast %cst_102 : f32 to vector<2x200xf32>
    %190 = arith.mulf %189, %188 : vector<2x200xf32>
    %cst_103 = arith.constant 1.41421354 : f32
    %191 = vector.broadcast %cst_103 : f32 to vector<2x200xf32>
    %192 = arith.divf %188, %191 : vector<2x200xf32>
    %193 = math.erf %192 : vector<2x200xf32>
    %cst_104 = arith.constant 1.000000e+00 : f32
    %194 = vector.broadcast %cst_104 : f32 to vector<2x200xf32>
    %195 = arith.addf %194, %193 : vector<2x200xf32>
    %196 = arith.mulf %190, %195 : vector<2x200xf32>
    %c0_105 = arith.constant 0 : index
    %c0_106 = arith.constant 0 : index
    %197 = vector.load %arg28[%c0_105, %c0_106] : memref<200x200xf32, #tpu.memory_space<vmem>>, vector<200x200xf32>
    %cst_107 = arith.constant dense<0.000000e+00> : vector<2x200xf32>
    %198 = tpu.matmul %196, %197, %cst_107 {dimension_numbers = #tpu.dot_dimension_numbers<[1], [0], [0], [1], [0, 0, 1, 1], [], []>} : vector<2x200xf32>, vector<200x200xf32>, vector<2x200xf32> -> vector<2x200xf32>
    %c0_108 = arith.constant 0 : index
    %c0_109 = arith.constant 0 : index
    %199 = vector.load %arg29[%c0_108, %c0_109] : memref<1x200xf32, #tpu.memory_space<vmem>>, vector<1x200xf32>
    %200 = vector.broadcast %199 : vector<1x200xf32> to vector<2x200xf32>
    %201 = arith.addf %198, %200 : vector<2x200xf32>
    %cst_110 = arith.constant 5.000000e-01 : f32
    %202 = vector.broadcast %cst_110 : f32 to vector<2x200xf32>
    %203 = arith.mulf %202, %201 : vector<2x200xf32>
    %cst_111 = arith.constant 1.41421354 : f32
    %204 = vector.broadcast %cst_111 : f32 to vector<2x200xf32>
    %205 = arith.divf %201, %204 : vector<2x200xf32>
    %206 = math.erf %205 : vector<2x200xf32>
    %cst_112 = arith.constant 1.000000e+00 : f32
    %207 = vector.broadcast %cst_112 : f32 to vector<2x200xf32>
    %208 = arith.addf %207, %206 : vector<2x200xf32>
    %209 = arith.mulf %203, %208 : vector<2x200xf32>
    %c0_113 = arith.constant 0 : index
    %c0_114 = arith.constant 0 : index
    %210 = vector.load %arg30[%c0_113, %c0_114] : memref<200x1xf32, #tpu.memory_space<vmem>>, vector<200x1xf32>
    %cst_115 = arith.constant dense<0.000000e+00> : vector<2x1xf32>
    %211 = tpu.matmul %209, %210, %cst_115 {dimension_numbers = #tpu.dot_dimension_numbers<[1], [0], [0], [1], [0, 0, 1, 1], [], []>} : vector<2x200xf32>, vector<200x1xf32>, vector<2x1xf32> -> vector<2x1xf32>
    %c0_116 = arith.constant 0 : index
    %c0_117 = arith.constant 0 : index
    %212 = vector.load %arg31[%c0_116, %c0_117] : memref<1x1xf32, #tpu.memory_space<vmem>>, vector<1x1xf32>
    %213 = vector.broadcast %212 : vector<1x1xf32> to vector<2x1xf32>
    %214 = arith.addf %211, %213 : vector<2x1xf32>
    %c0_118 = arith.constant 0 : index
    %c0_119 = arith.constant 0 : index
    %215 = vector.load %arg32[%c0_118, %c0_119] : memref<32x200xf32, #tpu.memory_space<vmem>>, vector<32x200xf32>
    %cst_120 = arith.constant dense<0.000000e+00> : vector<2x200xf32>
    %216 = tpu.matmul %183, %215, %cst_120 {dimension_numbers = #tpu.dot_dimension_numbers<[1], [0], [0], [1], [0, 0, 1, 1], [], []>} : vector<2x32xf32>, vector<32x200xf32>, vector<2x200xf32> -> vector<2x200xf32>
    %c0_121 = arith.constant 0 : index
    %c0_122 = arith.constant 0 : index
    %217 = vector.load %arg33[%c0_121, %c0_122] : memref<1x200xf32, #tpu.memory_space<vmem>>, vector<1x200xf32>
    %218 = vector.broadcast %217 : vector<1x200xf32> to vector<2x200xf32>
    %219 = arith.addf %216, %218 : vector<2x200xf32>
    %cst_123 = arith.constant 5.000000e-01 : f32
    %220 = vector.broadcast %cst_123 : f32 to vector<2x200xf32>
    %221 = arith.mulf %220, %219 : vector<2x200xf32>
    %cst_124 = arith.constant 1.41421354 : f32
    %222 = vector.broadcast %cst_124 : f32 to vector<2x200xf32>
    %223 = arith.divf %219, %222 : vector<2x200xf32>
    %224 = math.erf %223 : vector<2x200xf32>
    %cst_125 = arith.constant 1.000000e+00 : f32
    %225 = vector.broadcast %cst_125 : f32 to vector<2x200xf32>
    %226 = arith.addf %225, %224 : vector<2x200xf32>
    %227 = arith.mulf %221, %226 : vector<2x200xf32>
    %c0_126 = arith.constant 0 : index
    %c0_127 = arith.constant 0 : index
    %228 = vector.load %arg34[%c0_126, %c0_127] : memref<200x200xf32, #tpu.memory_space<vmem>>, vector<200x200xf32>
    %cst_128 = arith.constant dense<0.000000e+00> : vector<2x200xf32>
    %229 = tpu.matmul %227, %228, %cst_128 {dimension_numbers = #tpu.dot_dimension_numbers<[1], [0], [0], [1], [0, 0, 1, 1], [], []>} : vector<2x200xf32>, vector<200x200xf32>, vector<2x200xf32> -> vector<2x200xf32>
    %c0_129 = arith.constant 0 : index
    %c0_130 = arith.constant 0 : index
    %230 = vector.load %arg35[%c0_129, %c0_130] : memref<1x200xf32, #tpu.memory_space<vmem>>, vector<1x200xf32>
    %231 = vector.broadcast %230 : vector<1x200xf32> to vector<2x200xf32>
    %232 = arith.addf %229, %231 : vector<2x200xf32>
    %cst_131 = arith.constant 5.000000e-01 : f32
    %233 = vector.broadcast %cst_131 : f32 to vector<2x200xf32>
    %234 = arith.mulf %233, %232 : vector<2x200xf32>
    %cst_132 = arith.constant 1.41421354 : f32
    %235 = vector.broadcast %cst_132 : f32 to vector<2x200xf32>
    %236 = arith.divf %232, %235 : vector<2x200xf32>
    %237 = math.erf %236 : vector<2x200xf32>
    %cst_133 = arith.constant 1.000000e+00 : f32
    %238 = vector.broadcast %cst_133 : f32 to vector<2x200xf32>
    %239 = arith.addf %238, %237 : vector<2x200xf32>
    %240 = arith.mulf %234, %239 : vector<2x200xf32>
    %c0_134 = arith.constant 0 : index
    %c0_135 = arith.constant 0 : index
    %241 = vector.load %arg36[%c0_134, %c0_135] : memref<200x1xf32, #tpu.memory_space<vmem>>, vector<200x1xf32>
    %cst_136 = arith.constant dense<0.000000e+00> : vector<2x1xf32>
    %242 = tpu.matmul %240, %241, %cst_136 {dimension_numbers = #tpu.dot_dimension_numbers<[1], [0], [0], [1], [0, 0, 1, 1], [], []>} : vector<2x200xf32>, vector<200x1xf32>, vector<2x1xf32> -> vector<2x1xf32>
    %c0_137 = arith.constant 0 : index
    %c0_138 = arith.constant 0 : index
    %243 = vector.load %arg37[%c0_137, %c0_138] : memref<1x1xf32, #tpu.memory_space<vmem>>, vector<1x1xf32>
    %244 = vector.broadcast %243 : vector<1x1xf32> to vector<2x1xf32>
    %245 = arith.addf %242, %244 : vector<2x1xf32>
    %246 = arith.negf %214 : vector<2x1xf32>
    %247 = math.exp %246 : vector<2x1xf32>
    %cst_139 = arith.constant 1.000000e+00 : f32
    %248 = vector.broadcast %cst_139 : f32 to vector<2x1xf32>
    %249 = arith.addf %248, %247 : vector<2x1xf32>
    %250 = arith.divf %248, %249 : vector<2x1xf32>
    %cst_140 = arith.constant 2.500000e+00 : f32
    %251 = vector.broadcast %cst_140 : f32 to vector<2x1xf32>
    %252 = arith.mulf %250, %251 : vector<2x1xf32>
    %cst_141 = arith.constant 5.000000e-01 : f32
    %253 = vector.broadcast %cst_141 : f32 to vector<2x1xf32>
    %254 = arith.addf %253, %252 : vector<2x1xf32>
    %255 = arith.negf %245 : vector<2x1xf32>
    %256 = math.exp %255 : vector<2x1xf32>
    %cst_142 = arith.constant 1.000000e+00 : f32
    %257 = vector.broadcast %cst_142 : f32 to vector<2x1xf32>
    %258 = arith.addf %257, %256 : vector<2x1xf32>
    %259 = arith.divf %257, %258 : vector<2x1xf32>
    %cst_143 = arith.constant 9.89999961 : f32
    %260 = vector.broadcast %cst_143 : f32 to vector<2x1xf32>
    %261 = arith.mulf %259, %260 : vector<2x1xf32>
    %cst_144 = arith.constant 1.000000e-01 : f32
    %262 = vector.broadcast %cst_144 : f32 to vector<2x1xf32>
    %263 = arith.addf %262, %261 : vector<2x1xf32>
    %c0_145 = arith.constant 0 : index
    %c0_146 = arith.constant 0 : index
    %264 = vector.load %arg4[%c0_145, %c0_146] : memref<2x1xf32, #tpu.memory_space<vmem>>, vector<2x1xf32>
    %265 = arith.divf %264, %254 : vector<2x1xf32>
    %cst_147 = arith.constant 0.000000e+00 : f32
    %266 = vector.broadcast %cst_147 : f32 to vector<2x1xf32>
    %267 = arith.subf %266, %265 : vector<2x1xf32>
    %268 = math.exp %267 : vector<2x1xf32>
    %c0_148 = arith.constant 0 : index
    %c0_149 = arith.constant 0 : index
    %269 = vector.load %arg0[%c0_148, %c0_149] : memref<2x8xf32, #tpu.memory_space<vmem>>, vector<2x8xf32>
    %cst_150 = arith.constant 1.000000e+00 : f32
    %270 = vector.broadcast %cst_150 : f32 to vector<2x1xf32>
    %271 = arith.subf %270, %268 : vector<2x1xf32>
    %272 = math.sin %269 : vector<2x8xf32>
    %273 = vector.broadcast %271 : vector<2x1xf32> to vector<2x8xf32>
    %274 = arith.mulf %273, %272 : vector<2x8xf32>
    %275 = math.cos %269 : vector<2x8xf32>
    %276 = vector.broadcast %268 : vector<2x1xf32> to vector<2x8xf32>
    %277 = arith.mulf %275, %276 : vector<2x8xf32>
    %cst_151 = arith.constant 1.000000e+00 : f32
    %278 = vector.broadcast %cst_151 : f32 to vector<2x8xf32>
    %279 = arith.subf %278, %277 : vector<2x8xf32>
    %280 = arith.divf %274, %279 : vector<2x8xf32>
    %281 = vector.broadcast %263 : vector<2x1xf32> to vector<2x8xf32>
    %282 = arith.mulf %280, %281 : vector<2x8xf32>
    %c0_152 = arith.constant 0 : index
    %c0_153 = arith.constant 0 : index
    %283 = vector.load %arg38[%c0_152, %c0_153] : memref<2x8xf32, #tpu.memory_space<vmem>>, vector<2x8xf32>
    tpu.vector_store %arg38[%c0_152, %c0_153], %282 {strides = array<i32>} : memref<2x8xf32, #tpu.memory_space<vmem>>, vector<2x8xf32>,
    %c0_154 = arith.constant 0 : index
    %c0_155 = arith.constant 0 : index
    %284 = vector.load %arg39[%c0_154, %c0_155] : memref<2x1xf32, #tpu.memory_space<vmem>>, vector<2x1xf32>
    tpu.vector_store %arg39[%c0_154, %c0_155], %254 {strides = array<i32>} : memref<2x1xf32, #tpu.memory_space<vmem>>, vector<2x1xf32>,
    %c0_156 = arith.constant 0 : index
    %c0_157 = arith.constant 0 : index
    %285 = vector.load %arg40[%c0_156, %c0_157] : memref<2x1xf32, #tpu.memory_space<vmem>>, vector<2x1xf32>
    tpu.vector_store %arg40[%c0_156, %c0_157], %263 {strides = array<i32>} : memref<2x1xf32, #tpu.memory_space<vmem>>, vector<2x1xf32>,
    return
  }
}

</mosaic_0001>

<llo_original>
// kernel: tpu_custom_call.1
$region0: #{tpu_custom_call.1}
  #allocation0 [shape = 'u32[]', space=smem, size = 0x4, offset = 0x4, fixed_abs, tag = 'smem constant byte address 0x4 - core index']
  #allocation1 [shape = 'u32[144,128]{1,0:T(1,128)}', space=vmem, size = 0x12000, scoped, tag = 'internal scratch']
  #allocation2 [shape = 'f32[128,64]{1,0:T(8,128)}', space=vmem, size = 0x10000, scoped, tag = 'scratch operand']
  #allocation3 [shape = 'f32[128,64]{1,0:T(8,128)}', space=vmem, size = 0x10000, scoped, tag = 'scratch operand']
  #allocation4 [shape = 'f32[128,64]{1,0:T(8,128)}', space=vmem, size = 0x10000, scoped, tag = 'scratch operand']
  #allocation5 [shape = 'f32[128,64]{1,0:T(8,128)}', space=vmem, size = 0x10000, scoped, tag = 'scratch operand']
  #allocation6 [shape = 'f32[1,1]{1,0:T(1,128)S(1)}', space=vmem, size = 0x200, scoped, tag = 'scoped memory for tpu_custom_call.1']
  #allocation7 [shape = 'f32[1,1]{1,0:T(1,128)S(1)}', space=vmem, size = 0x200, scoped, tag = 'scoped memory for tpu_custom_call.1']
  %s0 = inlined_call_operand.smem [shape: u32[41], index: -1, kind: input, shape index: {}]
  %s1 = sld [smem:[%s0]]
  %s2 = scalar_lea.smem %s0, 1
  %s3 = sld [smem:[%s2]]
  %s4 = scalar_lea.smem %s0, 2
  %s5 = sld [smem:[%s4]]
  %s6 = scalar_lea.smem %s0, 3
  %s7 = sld [smem:[%s6]]
  %s8 = scalar_lea.smem %s0, 4
  %s9 = sld [smem:[%s8]]
  %s10 = scalar_lea.smem %s0, 5
  %s11 = sld [smem:[%s10]]
  %s12 = scalar_lea.smem %s0, 6
  %s13 = sld [smem:[%s12]]
  %s14 = scalar_lea.smem %s0, 7
  %s15 = sld [smem:[%s14]]
  %s16 = scalar_lea.smem %s0, 8
  %s17 = sld [smem:[%s16]]
  %s18 = scalar_lea.smem %s0, 9
  %s19 = sld [smem:[%s18]]
  %s20 = scalar_lea.smem %s0, 10
  %s21 = sld [smem:[%s20]]
  %s22 = scalar_lea.smem %s0, 11
  %s23 = sld [smem:[%s22]]
  %s24 = scalar_lea.smem %s0, 12
  %s25 = sld [smem:[%s24]]
  %s26 = scalar_lea.smem %s0, 13
  %s27 = sld [smem:[%s26]]
  %s28 = scalar_lea.smem %s0, 14
  %s29 = sld [smem:[%s28]]
  %s30 = scalar_lea.smem %s0, 15
  %s31 = sld [smem:[%s30]]
  %s32 = scalar_lea.smem %s0, 16
  %s33 = sld [smem:[%s32]]
  %s34 = scalar_lea.smem %s0, 17
  %s35 = sld [smem:[%s34]]
  %s36 = scalar_lea.smem %s0, 18
  %s37 = sld [smem:[%s36]]
  %s38 = scalar_lea.smem %s0, 19
  %s39 = sld [smem:[%s38]]
  %s40 = scalar_lea.smem %s0, 20
  %s41 = sld [smem:[%s40]]
  %s42 = scalar_lea.smem %s0, 21
  %s43 = sld [smem:[%s42]]
  %s44 = scalar_lea.smem %s0, 22
  %s45 = sld [smem:[%s44]]
  %s46 = scalar_lea.smem %s0, 23
  %s47 = sld [smem:[%s46]]
  %s48 = scalar_lea.smem %s0, 24
  %s49 = sld [smem:[%s48]]
  %s50 = scalar_lea.smem %s0, 25
  %s51 = sld [smem:[%s50]]
  %s52 = scalar_lea.smem %s0, 26
  %s53 = sld [smem:[%s52]]
  %s54 = scalar_lea.smem %s0, 27
  %s55 = sld [smem:[%s54]]
  %s56 = scalar_lea.smem %s0, 28
  %s57 = sld [smem:[%s56]]
  %s58 = scalar_lea.smem %s0, 29
  %s59 = sld [smem:[%s58]]
  %s60 = scalar_lea.smem %s0, 30
  %s61 = sld [smem:[%s60]]
  %s62 = scalar_lea.smem %s0, 31
  %s63 = sld [smem:[%s62]]
  %s64 = scalar_lea.smem %s0, 32
  %s65 = sld [smem:[%s64]]
  %s66 = scalar_lea.smem %s0, 33
  %s67 = sld [smem:[%s66]]
  %s68 = scalar_lea.smem %s0, 34
  %s69 = sld [smem:[%s68]]
  %s70 = scalar_lea.smem %s0, 35
  %s71 = sld [smem:[%s70]]
  %s72 = scalar_lea.smem %s0, 36
  %s73 = sld [smem:[%s72]]
  %s74 = scalar_lea.smem %s0, 37
  %s75 = sld [smem:[%s74]]
  %s76 = scalar_lea.smem %s0, 38
  %s77 = sld [smem:[%s76]]
  %s78 = scalar_lea.smem %s0, 39
  %s79 = sld [smem:[%s78]]
  %s80 = scalar_lea.smem %s0, 40
  %s81 = sld [smem:[%s80]]
  %82 = xla_tuple %s77, %s79, %s81
  %s83 = sld [smem:[#allocation0]]
  $region213: #{tpu_custom_call.1} parent=0
    _
  %s85 = ssub.s32 1, %s83
  %s86 = scalar_select 0, %s85, %s83
  %v87 = vstv %s63
  %88 = vst [vmem:[#allocation6] sm:$0x1] %v87
  %v89 = vstv %s75
  %90 = vst [vmem:[#allocation7] sm:$0x1] %v89
  $region1: #{tpu_custom_call.1} parent=0
    #allocation8 [shape = 'u8[32768]{0}', space=vmem, size = 0x8000, scoped, tag = 'input window, operand 17, single buffered']
    #allocation9 [shape = 's32[1]{0}', space=sflag, size = 0x4, scoped, tag = 'scoped memory for tpu_custom_call.1']
    #allocation10 [shape = 's32[1]{0}', space=sflag, size = 0x4, scoped, tag = 'scoped memory for tpu_custom_call.1']
    #allocation11 [shape = 'u8[32768]{0}', space=vmem, size = 0x8000, scoped, tag = 'input window, operand 18, single buffered']
    #allocation12 [shape = 's32[1]{0}', space=sflag, size = 0x4, scoped, tag = 'scoped memory for tpu_custom_call.1']
    #allocation13 [shape = 'u8[32768]{0}', space=vmem, size = 0x8000, scoped, tag = 'input window, operand 19, single buffered']
    #allocation14 [shape = 'u8[32768]{0}', space=vmem, size = 0x8000, scoped, tag = 'input window, operand 20, single buffered']
    #allocation15 [shape = 's32[1]{0}', space=sflag, size = 0x4, scoped, tag = 'scoped memory for tpu_custom_call.1']
    #allocation16 [shape = 'u8[32768]{0}', space=vmem, size = 0x8000, scoped, tag = 'input window, operand 26, single buffered']
    #allocation17 [shape = 'u8[32768]{0}', space=vmem, size = 0x8000, scoped, tag = 'input window, operand 32, single buffered']
    #allocation18 [shape = 's32[1]{0}', space=sflag, size = 0x4, scoped, tag = 'scoped memory for tpu_custom_call.1']
    #allocation19 [shape = 'u8[204800]{0}', space=vmem, size = 0x32000, scoped, tag = 'input window, operand 34, single buffered']
    #allocation20 [shape = 'u8[1024]{0}', space=vmem, size = 0x400, scoped, tag = 'output window, operand 0, single buffered']
    %91 = vsyncpa [#allocation9], 0
    %92 = vsyncpa [#allocation12], 0
    %93 = vsyncpa [#allocation15], 0
    %94 = vsyncpa [#allocation18], 0
    %95 = vsyncpa [#allocation10], 0
    // Predicated region
    $region2: #{tpu_custom_call.1} parent=1 // pred_check
      _
    $region3: #{tpu_custom_call.1} parent=1 // pred_check_branch
      %97 = sbr.rel (0) target = $region5
    $region4: #{tpu_custom_call.1} parent=1 // pred_region
      _
    $region5: #{tpu_custom_call.1} parent=1 // pred_fallthru
      _
    // Predicated region
    $region6: #{tpu_custom_call.1} parent=1 // pred_check
      _
    $region7: #{tpu_custom_call.1} parent=1 // pred_check_branch
      %99 = sbr.rel (0) target = $region9
    $region8: #{tpu_custom_call.1} parent=1 // pred_region
      _
    $region9: #{tpu_custom_call.1} parent=1 // pred_fallthru
      _
    // Predicated region
    $region10: #{tpu_custom_call.1} parent=1 // pred_check
      _
    $region11: #{tpu_custom_call.1} parent=1 // pred_check_branch
      %101 = sbr.rel (0) target = $region13
    $region12: #{tpu_custom_call.1} parent=1 // pred_region
      _
    $region13: #{tpu_custom_call.1} parent=1 // pred_fallthru
      _
    // Predicated region
    $region14: #{tpu_custom_call.1} parent=1 // pred_check
      _
    $region15: #{tpu_custom_call.1} parent=1 // pred_check_branch
      %103 = sbr.rel (0) target = $region17
    $region16: #{tpu_custom_call.1} parent=1 // pred_region
      _
    $region17: #{tpu_custom_call.1} parent=1 // pred_fallthru
      _
    // Predicated region
    $region18: #{tpu_custom_call.1} parent=1 // pred_check
      _
    $region19: #{tpu_custom_call.1} parent=1 // pred_check_branch
      %105 = sbr.rel (0) target = $region21
    $region20: #{tpu_custom_call.1} parent=1 // pred_region
      _
    $region21: #{tpu_custom_call.1} parent=1 // pred_fallthru
      _
    // Predicated region
    $region22: #{tpu_custom_call.1} parent=1 // pred_check
      _
    $region23: #{tpu_custom_call.1} parent=1 // pred_check_branch
      %107 = sbr.rel (0) target = $region25
    $region24: #{tpu_custom_call.1} parent=1 // pred_region
      _
    $region25: #{tpu_custom_call.1} parent=1 // pred_fallthru
      _
    // Predicated region
    $region26: #{tpu_custom_call.1} parent=1 // pred_check
      _
    $region27: #{tpu_custom_call.1} parent=1 // pred_check_branch
      %109 = sbr.rel (0) target = $region29
    $region28: #{tpu_custom_call.1} parent=1 // pred_region
      _
    $region29: #{tpu_custom_call.1} parent=1 // pred_fallthru
      _
    // Predicated region
    $region30: #{tpu_custom_call.1} parent=1 // pred_check
      _
    $region31: #{tpu_custom_call.1} parent=1 // pred_check_branch
      %111 = sbr.rel (0) target = $region33
    $region32: #{tpu_custom_call.1} parent=1 // pred_region
      _
    $region33: #{tpu_custom_call.1} parent=1 // pred_fallthru
      _
    // Predicated region
    $region34: #{tpu_custom_call.1} parent=1 // pred_check
      _
    $region35: #{tpu_custom_call.1} parent=1 // pred_check_branch
      %113 = sbr.rel (0) target = $region37
    $region36: #{tpu_custom_call.1} parent=1 // pred_region
      _
    $region37: #{tpu_custom_call.1} parent=1 // pred_fallthru
      _
    // Predicated region
    $region38: #{tpu_custom_call.1} parent=1 // pred_check
      _
    $region39: #{tpu_custom_call.1} parent=1 // pred_check_branch
      %115 = sbr.rel (0) target = $region41
    $region40: #{tpu_custom_call.1} parent=1 // pred_region
      _
    $region41: #{tpu_custom_call.1} parent=1 // pred_fallthru
      _
    // Predicated region
    $region42: #{tpu_custom_call.1} parent=1 // pred_check
      _
    $region43: #{tpu_custom_call.1} parent=1 // pred_check_branch
      %117 = sbr.rel (0) target = $region45
    $region44: #{tpu_custom_call.1} parent=1 // pred_region
      _
    $region45: #{tpu_custom_call.1} parent=1 // pred_fallthru
      _
    // Predicated region
    $region46: #{tpu_custom_call.1} parent=1 // pred_check
      _
    $region47: #{tpu_custom_call.1} parent=1 // pred_check_branch
      %119 = sbr.rel (0) target = $region49
    $region48: #{tpu_custom_call.1} parent=1 // pred_region
      _
    $region49: #{tpu_custom_call.1} parent=1 // pred_fallthru
      _
    // Predicated region
    $region50: #{tpu_custom_call.1} parent=1 // pred_check
      _
    $region51: #{tpu_custom_call.1} parent=1 // pred_check_branch
      %121 = sbr.rel (0) target = $region53
    $region52: #{tpu_custom_call.1} parent=1 // pred_region
      _
    $region53: #{tpu_custom_call.1} parent=1 // pred_fallthru
      _
    // Predicated region
    $region54: #{tpu_custom_call.1} parent=1 // pred_check
      _
    $region55: #{tpu_custom_call.1} parent=1 // pred_check_branch
      %123 = sbr.rel (0) target = $region57
    $region56: #{tpu_custom_call.1} parent=1 // pred_region
      _
    $region57: #{tpu_custom_call.1} parent=1 // pred_fallthru
      _
    // Predicated region
    $region58: #{tpu_custom_call.1} parent=1 // pred_check
      _
    $region59: #{tpu_custom_call.1} parent=1 // pred_check_branch
      %125 = sbr.rel (0) target = $region61
    $region60: #{tpu_custom_call.1} parent=1 // pred_region
      _
    $region61: #{tpu_custom_call.1} parent=1 // pred_fallthru
      _
    // Predicated region
    $region62: #{tpu_custom_call.1} parent=1 // pred_check
      _
    $region63: #{tpu_custom_call.1} parent=1 // pred_check_branch
      %127 = sbr.rel (0) target = $region65
    $region64: #{tpu_custom_call.1} parent=1 // pred_region
      _
    $region65: #{tpu_custom_call.1} parent=1 // pred_fallthru
      _
    // Predicated region
    $region66: #{tpu_custom_call.1} parent=1 // pred_check
      _
    $region67: #{tpu_custom_call.1} parent=1 // pred_check_branch
      %129 = sbr.rel (0) target = $region69
    $region68: #{tpu_custom_call.1} parent=1 // pred_region
      _
    $region69: #{tpu_custom_call.1} parent=1 // pred_fallthru
      _
    // Predicated region
    $region70: #{tpu_custom_call.1} parent=1 // pred_check
      _
    $region71: #{tpu_custom_call.1} parent=1 // pred_check_branch
      %131 = sbr.rel (0) target = $region73
    $region72: #{tpu_custom_call.1} parent=1 // pred_region
      %s133 = ssub.s32 1024, 1024
      %134 = vsyncadd [#allocation9], %s133
      %s135 = sshll.u32 [#allocation8], 4
      %s136 = int_to_ptr.vmem [resolvable:$true] %s135
      %141 = dma.hbm_to_vmem [thread:$0]  %s35, 1024, %s136, [#allocation9], 128, 128, 8
    $region73: #{tpu_custom_call.1} parent=1 // pred_fallthru
      _
    // Predicated region
    $region74: #{tpu_custom_call.1} parent=1 // pred_check
      _
    $region75: #{tpu_custom_call.1} parent=1 // pred_check_branch
      %143 = sbr.rel (0) target = $region77
    $region76: #{tpu_custom_call.1} parent=1 // pred_region
      %s145 = ssub.s32 1024, 1024
      %146 = vsyncadd [#allocation12], %s145
      %s147 = sshll.u32 [#allocation11], 4
      %s148 = int_to_ptr.vmem [resolvable:$true] %s147
      %153 = dma.hbm_to_vmem [thread:$0]  %s37, 1024, %s148, [#allocation12], 128, 128, 8
    $region77: #{tpu_custom_call.1} parent=1 // pred_fallthru
      _
    // Predicated region
    $region78: #{tpu_custom_call.1} parent=1 // pred_check
      _
    $region79: #{tpu_custom_call.1} parent=1 // pred_check_branch
      %155 = sbr.rel (0) target = $region81
    $region80: #{tpu_custom_call.1} parent=1 // pred_region
      %s157 = ssub.s32 1024, 1024
      %158 = vsyncadd [#allocation12], %s157
      %s159 = sshll.u32 [#allocation13], 4
      %s160 = int_to_ptr.vmem [resolvable:$true] %s159
      %165 = dma.hbm_to_vmem [thread:$0]  %s39, 1024, %s160, [#allocation12], 128, 128, 8
    $region81: #{tpu_custom_call.1} parent=1 // pred_fallthru
      _
    // Predicated region
    $region82: #{tpu_custom_call.1} parent=1 // pred_check
      _
    $region83: #{tpu_custom_call.1} parent=1 // pred_check_branch
      %167 = sbr.rel (0) target = $region85
    $region84: #{tpu_custom_call.1} parent=1 // pred_region
      %s169 = ssub.s32 1024, 1024
      %170 = vsyncadd [#allocation15], %s169
      %s171 = sshll.u32 [#allocation14], 4
      %s172 = int_to_ptr.vmem [resolvable:$true] %s171
      %177 = dma.hbm_to_vmem [thread:$0]  %s41, 1024, %s172, [#allocation15], 128, 128, 8
    $region85: #{tpu_custom_call.1} parent=1 // pred_fallthru
      _
    // Predicated region
    $region86: #{tpu_custom_call.1} parent=1 // pred_check
      _
    $region87: #{tpu_custom_call.1} parent=1 // pred_check_branch
      %179 = sbr.rel (0) target = $region89
    $region88: #{tpu_custom_call.1} parent=1 // pred_region
      _
    $region89: #{tpu_custom_call.1} parent=1 // pred_fallthru
      _
    // Predicated region
    $region90: #{tpu_custom_call.1} parent=1 // pred_check
      _
    $region91: #{tpu_custom_call.1} parent=1 // pred_check_branch
      %181 = sbr.rel (0) target = $region93
    $region92: #{tpu_custom_call.1} parent=1 // pred_region
      _
    $region93: #{tpu_custom_call.1} parent=1 // pred_fallthru
      _
    // Predicated region
    $region94: #{tpu_custom_call.1} parent=1 // pred_check
      _
    $region95: #{tpu_custom_call.1} parent=1 // pred_check_branch
      %183 = sbr.rel (0) target = $region97
    $region96: #{tpu_custom_call.1} parent=1 // pred_region
      _
    $region97: #{tpu_custom_call.1} parent=1 // pred_fallthru
      _
    // Predicated region
    $region98: #{tpu_custom_call.1} parent=1 // pred_check
      _
    $region99: #{tpu_custom_call.1} parent=1 // pred_check_branch
      %185 = sbr.rel (0) target = $region101
    $region100: #{tpu_custom_call.1} parent=1 // pred_region
      _
    $region101: #{tpu_custom_call.1} parent=1 // pred_fallthru
      _
    // Predicated region
    $region102: #{tpu_custom_call.1} parent=1 // pred_check
      _
    $region103: #{tpu_custom_call.1} parent=1 // pred_check_branch
      %187 = sbr.rel (0) target = $region105
    $region104: #{tpu_custom_call.1} parent=1 // pred_region
      _
    $region105: #{tpu_custom_call.1} parent=1 // pred_fallthru
      _
    // Predicated region
    $region106: #{tpu_custom_call.1} parent=1 // pred_check
      _
    $region107: #{tpu_custom_call.1} parent=1 // pred_check_branch
      %189 = sbr.rel (0) target = $region109
    $region108: #{tpu_custom_call.1} parent=1 // pred_region
      %s191 = ssub.s32 1024, 1024
      %192 = vsyncadd [#allocation15], %s191
      %s193 = sshll.u32 [#allocation16], 4
      %s194 = int_to_ptr.vmem [resolvable:$true] %s193
      %199 = dma.hbm_to_vmem [thread:$0]  %s53, 1024, %s194, [#allocation15], 256, 256, 16
    $region109: #{tpu_custom_call.1} parent=1 // pred_fallthru
      _
    // Predicated region
    $region110: #{tpu_custom_call.1} parent=1 // pred_check
      _
    $region111: #{tpu_custom_call.1} parent=1 // pred_check_branch
      %201 = sbr.rel (0) target = $region113
    $region112: #{tpu_custom_call.1} parent=1 // pred_region
      _
    $region113: #{tpu_custom_call.1} parent=1 // pred_fallthru
      _
    // Predicated region
    $region114: #{tpu_custom_call.1} parent=1 // pred_check
      _
    $region115: #{tpu_custom_call.1} parent=1 // pred_check_branch
      %203 = sbr.rel (0) target = $region117
    $region116: #{tpu_custom_call.1} parent=1 // pred_region
      _
    $region117: #{tpu_custom_call.1} parent=1 // pred_fallthru
      _
    // Predicated region
    $region118: #{tpu_custom_call.1} parent=1 // pred_check
      _
    $region119: #{tpu_custom_call.1} parent=1 // pred_check_branch
      %205 = sbr.rel (0) target = $region121
    $region120: #{tpu_custom_call.1} parent=1 // pred_region
      _
    $region121: #{tpu_custom_call.1} parent=1 // pred_fallthru
      _
    // Predicated region
    $region122: #{tpu_custom_call.1} parent=1 // pred_check
      _
    $region123: #{tpu_custom_call.1} parent=1 // pred_check_branch
      %207 = sbr.rel (0) target = $region125
    $region124: #{tpu_custom_call.1} parent=1 // pred_region
      _
    $region125: #{tpu_custom_call.1} parent=1 // pred_fallthru
      _
    // Predicated region
    $region126: #{tpu_custom_call.1} parent=1 // pred_check
      _
    $region127: #{tpu_custom_call.1} parent=1 // pred_check_branch
      %209 = sbr.rel (0) target = $region129
    $region128: #{tpu_custom_call.1} parent=1 // pred_region
      _
    $region129: #{tpu_custom_call.1} parent=1 // pred_fallthru
      _
    // Predicated region
    $region130: #{tpu_custom_call.1} parent=1 // pred_check
      _
    $region131: #{tpu_custom_call.1} parent=1 // pred_check_branch
      %211 = sbr.rel (0) target = $region133
    $region132: #{tpu_custom_call.1} parent=1 // pred_region
      %s213 = ssub.s32 1024, 1024
      %214 = vsyncadd [#allocation18], %s213
      %s215 = sshll.u32 [#allocation17], 4
      %s216 = int_to_ptr.vmem [resolvable:$true] %s215
      %221 = dma.hbm_to_vmem [thread:$0]  %s65, 1024, %s216, [#allocation18], 256, 256, 16
    $region133: #{tpu_custom_call.1} parent=1 // pred_fallthru
      _
    // Predicated region
    $region134: #{tpu_custom_call.1} parent=1 // pred_check
      _
    $region135: #{tpu_custom_call.1} parent=1 // pred_check_branch
      %223 = sbr.rel (0) target = $region137
    $region136: #{tpu_custom_call.1} parent=1 // pred_region
      _
    $region137: #{tpu_custom_call.1} parent=1 // pred_fallthru
      _
    // Predicated region
    $region138: #{tpu_custom_call.1} parent=1 // pred_check
      _
    $region139: #{tpu_custom_call.1} parent=1 // pred_check_branch
      %225 = sbr.rel (0) target = $region141
    $region140: #{tpu_custom_call.1} parent=1 // pred_region
      %s227 = ssub.s32 6400, 6400
      %228 = vsyncadd [#allocation18], %s227
      %s229 = sshll.u32 [#allocation19], 4
      %s230 = int_to_ptr.vmem [resolvable:$true] %s229
      %235 = dma.hbm_to_vmem [thread:$0]  %s69, 6400, %s230, [#allocation18], 256, 256, 16
    $region141: #{tpu_custom_call.1} parent=1 // pred_fallthru
      _
    // Predicated region
    $region142: #{tpu_custom_call.1} parent=1 // pred_check
      _
    $region143: #{tpu_custom_call.1} parent=1 // pred_check_branch
      %237 = sbr.rel (0) target = $region145
    $region144: #{tpu_custom_call.1} parent=1 // pred_region
      _
    $region145: #{tpu_custom_call.1} parent=1 // pred_fallthru
      _
    // Predicated region
    $region146: #{tpu_custom_call.1} parent=1 // pred_check
      _
    $region147: #{tpu_custom_call.1} parent=1 // pred_check_branch
      %239 = sbr.rel (0) target = $region149
    $region148: #{tpu_custom_call.1} parent=1 // pred_region
      _
    $region149: #{tpu_custom_call.1} parent=1 // pred_fallthru
      _
    // Predicated region
    $region150: #{tpu_custom_call.1} parent=1 // pred_check
      _
    $region151: #{tpu_custom_call.1} parent=1 // pred_check_branch
      %241 = sbr.rel (0) target = $region153
    $region152: #{tpu_custom_call.1} parent=1 // pred_region
      _
    $region153: #{tpu_custom_call.1} parent=1 // pred_fallthru
      _
    // Predicated region
    $region154: #{tpu_custom_call.1} parent=1 // pred_check
      _
    $region155: #{tpu_custom_call.1} parent=1 // pred_check_branch
      %243 = sbr.rel (0) target = $region157
    $region156: #{tpu_custom_call.1} parent=1 // pred_region
      %244 = dma.done [#allocation9], 1024
    $region157: #{tpu_custom_call.1} parent=1 // pred_fallthru
      _
    // Predicated region
    $region158: #{tpu_custom_call.1} parent=1 // pred_check
      _
    $region159: #{tpu_custom_call.1} parent=1 // pred_check_branch
      %246 = sbr.rel (0) target = $region161
    $region160: #{tpu_custom_call.1} parent=1 // pred_region
      %247 = dma.done [#allocation12], 1024
    $region161: #{tpu_custom_call.1} parent=1 // pred_fallthru
      _
    // Predicated region
    $region162: #{tpu_custom_call.1} parent=1 // pred_check
      _
    $region163: #{tpu_custom_call.1} parent=1 // pred_check_branch
      %249 = sbr.rel (0) target = $region165
    $region164: #{tpu_custom_call.1} parent=1 // pred_region
      %250 = dma.done [#allocation12], 1024
    $region165: #{tpu_custom_call.1} parent=1 // pred_fallthru
      _
    // Predicated region
    $region166: #{tpu_custom_call.1} parent=1 // pred_check
      _
    $region167: #{tpu_custom_call.1} parent=1 // pred_check_branch
      %252 = sbr.rel (0) target = $region169
    $region168: #{tpu_custom_call.1} parent=1 // pred_region
      %253 = dma.done [#allocation15], 1024
    $region169: #{tpu_custom_call.1} parent=1 // pred_fallthru
      _
    // Predicated region
    $region170: #{tpu_custom_call.1} parent=1 // pred_check
      _
    $region171: #{tpu_custom_call.1} parent=1 // pred_check_branch
      %255 = sbr.rel (0) target = $region173
    $region172: #{tpu_custom_call.1} parent=1 // pred_region
      %256 = dma.done [#allocation15], 1024
    $region173: #{tpu_custom_call.1} parent=1 // pred_fallthru
      _
    // Predicated region
    $region174: #{tpu_custom_call.1} parent=1 // pred_check
      _
    $region175: #{tpu_custom_call.1} parent=1 // pred_check_branch
      %258 = sbr.rel (0) target = $region177
    $region176: #{tpu_custom_call.1} parent=1 // pred_region
      %259 = dma.done [#allocation18], 1024
    $region177: #{tpu_custom_call.1} parent=1 // pred_fallthru
      _
    // Predicated region
    $region178: #{tpu_custom_call.1} parent=1 // pred_check
      _
    $region179: #{tpu_custom_call.1} parent=1 // pred_check_branch
      %261 = sbr.rel (0) target = $region181
    $region180: #{tpu_custom_call.1} parent=1 // pred_region
      %262 = dma.done [#allocation18], 6400
    $region181: #{tpu_custom_call.1} parent=1 // pred_fallthru
      _
    %v263 = vlaneseq
    %v264 = vshrl.u32 %v263, 7
    %v265 = vadd.s32 %v264, 8
    %v266 = vadd.s32 %v264, 16
    %v267 = vadd.s32 %v264, 24
    %v268 = vadd.s32 %v264, 32
    %v269 = vadd.s32 %v264, 40
    %v270 = vadd.s32 %v264, 48
    %v271 = vadd.s32 %v264, 56
    %v272 = vadd.s32 %v264, 64
    %v273 = vadd.s32 %v264, 72
    %v274 = vadd.s32 %v264, 80
    %v275 = vadd.s32 %v264, 88
    %v276 = vadd.s32 %v264, 96
    %v277 = vadd.s32 %v264, 104
    %v278 = vadd.s32 %v264, 112
    %v279 = vadd.s32 %v264, 120
    %v280 = vcvt.s32.f32 %v264
    %v281 = vcvt.s32.f32 %v265
    %v282 = vcvt.s32.f32 %v266
    %v283 = vcvt.s32.f32 %v267
    %v284 = vcvt.s32.f32 %v268
    %v285 = vcvt.s32.f32 %v269
    %v286 = vcvt.s32.f32 %v270
    %v287 = vcvt.s32.f32 %v271
    %v288 = vcvt.s32.f32 %v272
    %v289 = vcvt.s32.f32 %v273
    %v290 = vcvt.s32.f32 %v274
    %v291 = vcvt.s32.f32 %v275
    %v292 = vcvt.s32.f32 %v276
    %v293 = vcvt.s32.f32 %v277
    %v294 = vcvt.s32.f32 %v278
    %v295 = vcvt.s32.f32 %v279
    %v296 = vmul.f32 %v280, 0.007874016
    %v297 = vmul.f32 %v281, 0.007874016
    %v298 = vmul.f32 %v282, 0.007874016
    %v299 = vmul.f32 %v283, 0.007874016
    %v300 = vmul.f32 %v284, 0.007874016
    %v301 = vmul.f32 %v285, 0.007874016
    %v302 = vmul.f32 %v286, 0.007874016
    %v303 = vmul.f32 %v287, 0.007874016
    %v304 = vmul.f32 %v288, 0.007874016
    %v305 = vmul.f32 %v289, 0.007874016
    %v306 = vmul.f32 %v290, 0.007874016
    %v307 = vmul.f32 %v291, 0.007874016
    %v308 = vmul.f32 %v292, 0.007874016
    %v309 = vmul.f32 %v293, 0.007874016
    %v310 = vmul.f32 %v294, 0.007874016
    %v311 = vmul.f32 %v295, 0.007874016
    %v312 = vld [vmem:[%s11] sm:$0x1]
    %v314 = vlaneseq
    %v315 = vshrl.u32 %v314, 7
    %v316 = vsub.s32 0, %v315
    %v317 = vrot.slane %v312, %v316
    %v319 = vmul.f32 %v296, %v317
    %v320 = vmul.f32 %v297, %v317
    %v321 = vmul.f32 %v298, %v317
    %v322 = vmul.f32 %v299, %v317
    %v323 = vmul.f32 %v300, %v317
    %v324 = vmul.f32 %v301, %v317
    %v325 = vmul.f32 %v302, %v317
    %v326 = vmul.f32 %v303, %v317
    %v327 = vmul.f32 %v304, %v317
    %v328 = vmul.f32 %v305, %v317
    %v329 = vmul.f32 %v306, %v317
    %v330 = vmul.f32 %v307, %v317
    %v331 = vmul.f32 %v308, %v317
    %v332 = vmul.f32 %v309, %v317
    %v333 = vmul.f32 %v310, %v317
    %v334 = vmul.f32 %v311, %v317
    %v335 = vld [vmem:[%s13] sm:$0x1]
    %v337 = vlaneseq
    %v338 = vshrl.u32 %v337, 7
    %v339 = vsub.s32 0, %v338
    %v340 = vrot.slane %v335, %v339
    %v342 = vadd.f32 %v319, %v340
    %v343 = vadd.f32 %v320, %v340
    %v344 = vadd.f32 %v321, %v340
    %v345 = vadd.f32 %v322, %v340
    %v346 = vadd.f32 %v323, %v340
    %v347 = vadd.f32 %v324, %v340
    %v348 = vadd.f32 %v325, %v340
    %v349 = vadd.f32 %v326, %v340
    %v350 = vadd.f32 %v327, %v340
    %v351 = vadd.f32 %v328, %v340
    %v352 = vadd.f32 %v329, %v340
    %v353 = vadd.f32 %v330, %v340
    %v354 = vadd.f32 %v331, %v340
    %v355 = vadd.f32 %v332, %v340
    %v356 = vadd.f32 %v333, %v340
    %v357 = vadd.f32 %v334, %v340
    %v358 = vlaneseq
    %v359 = vand.u32 %v358, 127
    %vm360 = vcmp.eq.s32.totalorder %v359, 0
    %v361 = vand.u32 2147483647, %v342
    %vm362 = vcmp.le.f32.partialorder %v361, 0.7853982
    %vm363 = vcmp.lt.s32.totalorder %v342, 0
    %v364 = vand.u32 %v342, 2139095040
    %v365 = vshrl.u32 %v364, 23
    %v366 = vsub.s32 %v365, 127
    %v367 = vand.u32 2147483647, %v342
    %v368 = vand.u32 %v367, 8388607
    %v369 = vor.u32 %v368, 8388608
    %v370 = vsub.s32 0, %v369
    %v371 = vadd.s32 %v366, 1
    %vm372 = vcmp.gt.s32.totalorder %v371, 0
    %v373 = vsel %vm372, %v371, 0
    %v374 = vshrl.u32 %v373, 5
    %v375 = vand.u32 %v373, 31
    %v376 = vsub.s32 32, %v375
    %v377 = vshrl.u32 683565275, %v376
    %v378 = vshll.u32 683565275, %v375
    %v379 = vshrl.u32 2475754826, %v376
    %v380 = vor.u32 %v378, %v379
    %v381 = vshll.u32 2475754826, %v375
    %v382 = vshrl.u32 2131351028, %v376
    %v383 = vor.u32 %v381, %v382
    %v384 = vshll.u32 2131351028, %v375
    %v385 = vshrl.u32 2102212464, %v376
    %v386 = vor.u32 %v384, %v385
    %v387 = vshll.u32 2102212464, %v375
    %v388 = vshrl.u32 920167782, %v376
    %v389 = vor.u32 %v387, %v388
    %v390 = vshll.u32 920167782, %v375
    %v391 = vshrl.u32 1326507024, %v376
    %v392 = vor.u32 %v390, %v391
    %vm393 = vcmp.lt.s32.totalorder %v374, 1
    %vm394 = vcmp.lt.s32.totalorder %v374, 2
    %vm395 = vcmp.lt.s32.totalorder %v374, 3
    %vm396 = vcmp.lt.s32.totalorder %v374, 4
    %v397 = vsel %vm393, %v377, %v380
    %v398 = vsel %vm396, %v386, 2102212464
    %v399 = vsel %vm395, %v383, %v398
    %v400 = vsel %vm394, %v397, %v399
    %v401 = vsel %vm393, %v380, %v383
    %v402 = vsel %vm396, %v389, 920167782
    %v403 = vsel %vm395, %v386, %v402
    %v404 = vsel %vm394, %v401, %v403
    %v405 = vsel %vm393, %v383, %v386
    %v406 = vsel %vm396, %v392, 1326507024
    %v407 = vsel %vm395, %v389, %v406
    %v408 = vsel %vm394, %v405, %v407
    %v409 = vshll.u32 %v369, 8
    %v410 = vmul.u32.u64.compose %v409, %v408
    %v411 = vextract.low.u32 %v410
    %v412 = vextract.high.u32 %v410
    %v413 = vmul.u32.u64.compose %v409, %v404
    %v414 = vextract.low.u32 %v413
    %v415 = vextract.high.u32 %v413
    %v416 = vmul.u32 %v409, %v400
    %v417 = vadd.s32 %v412, %v414
    %vm418 = vc.u32 %v412, %v414
    %v419 = vadd.s32 %v415, 1
    %v420 = vsel %vm418, %v419, %v415
    %v421 = vadd.s32 %v416, %v420
    %v422 = vadd.s32 %v421, 536870912
    %v423 = vshrl.u32 %v422, 30
    %v424 = vshll.u32 %v423, 30
    %v425 = vsub.s32 %v421, %v424
    %vm426 = vcmp.lt.s32.totalorder %v425, 0
    %v427 = vsub.s32 0, %v425
    %v428 = vsel %vm426, %v427, %v425
    %v429 = vclz %v428
    %v430 = vsub.s32 %v429, 2
    %vm431 = vcmp.gt.s32.totalorder 0, %v430
    %v432 = vsel %vm431, 0, %v430
    %v433 = vsub.s32 32, %v432
    %v434 = vshll.u32 %v425, %v432
    %v435 = vshrl.u32 %v417, %v433
    %v436 = vor.u32 %v434, %v435
    %v437 = vsub.s32 4294967266, %v432
    %v438 = vadd.s32 %v437, 127
    %v439 = vshll.u32 %v438, 23
    %v440 = vor.u32 4788187, %v439
    %v441 = vand.u32 2147483647, %v440
    %v443 = vcvt.s32.f32 %v436
    %v444 = vmul.f32 %v443, %v441
    %v445 = vxor.u32 %v444, 2147483648
    %v446 = vsel %vm363, %v445, %v444
    %v447 = vsub.s32 4, %v423
    %v448 = vsel %vm363, %v447, %v423
    %v449 = vsel %vm362, %v342, %v446
    %v450 = vsel %vm362, 0, %v448
    %v451 = vcosq.f32.pop %v449
    %v452 = vsinq.f32.pop %v449
    %vm453 = vweird.f32 %v342
    %v454 = vadd.s32 %v450, 3
    %v455 = vand.u32 %v454, 3
    %vm456 = vcmp.lt.s32.totalorder %v455, 2
    %vm457 = vcmp.eq.s32.totalorder %v455, 0
    %v458 = vxor.u32 %v452, 2147483648
    %v459 = vsel %vm457, %v451, %v458
    %vm460 = vcmp.eq.s32.totalorder %v455, 2
    %v461 = vxor.u32 %v451, 2147483648
    %v462 = vsel %vm460, %v461, %v452
    %v463 = vsel %vm456, %v459, %v462
    %v464 = vsel %vm453, nan, %v463
    %v465 = vand.u32 2147483647, %v343
    %vm466 = vcmp.le.f32.partialorder %v465, 0.7853982
    %vm467 = vcmp.lt.s32.totalorder %v343, 0
    %v468 = vand.u32 %v343, 2139095040
    %v469 = vshrl.u32 %v468, 23
    %v470 = vsub.s32 %v469, 127
    %v471 = vand.u32 2147483647, %v343
    %v472 = vand.u32 %v471, 8388607
    %v473 = vor.u32 %v472, 8388608
    %v474 = vsub.s32 0, %v473
    %v475 = vadd.s32 %v470, 1
    %vm476 = vcmp.gt.s32.totalorder %v475, 0
    %v477 = vsel %vm476, %v475, 0
    %v478 = vshrl.u32 %v477, 5
    %v479 = vand.u32 %v477, 31
    %v480 = vsub.s32 32, %v479
    %v481 = vshrl.u32 683565275, %v480
    %v482 = vshll.u32 683565275, %v479
    %v483 = vshrl.u32 2475754826, %v480
    %v484 = vor.u32 %v482, %v483
    %v485 = vshll.u32 2475754826, %v479
    %v486 = vshrl.u32 2131351028, %v480
    %v487 = vor.u32 %v485, %v486
    %v488 = vshll.u32 2131351028, %v479
    %v489 = vshrl.u32 2102212464, %v480
    %v490 = vor.u32 %v488, %v489
    %v491 = vshll.u32 2102212464, %v479
    %v492 = vshrl.u32 920167782, %v480
    %v493 = vor.u32 %v491, %v492
    %v494 = vshll.u32 920167782, %v479
    %v495 = vshrl.u32 1326507024, %v480
    %v496 = vor.u32 %v494, %v495
    %vm497 = vcmp.lt.s32.totalorder %v478, 1
    %vm498 = vcmp.lt.s32.totalorder %v478, 2
    %vm499 = vcmp.lt.s32.totalorder %v478, 3
    %vm500 = vcmp.lt.s32.totalorder %v478, 4
    %v501 = vsel %vm497, %v481, %v484
    %v502 = vsel %vm500, %v490, 2102212464
    %v503 = vsel %vm499, %v487, %v502
    %v504 = vsel %vm498, %v501, %v503
    %v505 = vsel %vm497, %v484, %v487
    %v506 = vsel %vm500, %v493, 920167782
    %v507 = vsel %vm499, %v490, %v506
    %v508 = vsel %vm498, %v505, %v507
    %v509 = vsel %vm497, %v487, %v490
    %v510 = vsel %vm500, %v496, 1326507024
    %v511 = vsel %vm499, %v493, %v510
    %v512 = vsel %vm498, %v509, %v511
    %v513 = vshll.u32 %v473, 8
    %v514 = vmul.u32.u64.compose %v513, %v512
    %v515 = vextract.low.u32 %v514
    %v516 = vextract.high.u32 %v514
    %v517 = vmul.u32.u64.compose %v513, %v508
    %v518 = vextract.low.u32 %v517
    %v519 = vextract.high.u32 %v517
    %v520 = vmul.u32 %v513, %v504
    %v521 = vadd.s32 %v516, %v518
    %vm522 = vc.u32 %v516, %v518
    %v523 = vadd.s32 %v519, 1
    %v524 = vsel %vm522, %v523, %v519
    %v525 = vadd.s32 %v520, %v524
    %v526 = vadd.s32 %v525, 536870912
    %v527 = vshrl.u32 %v526, 30
    %v528 = vshll.u32 %v527, 30
    %v529 = vsub.s32 %v525, %v528
    %vm530 = vcmp.lt.s32.totalorder %v529, 0
    %v531 = vsub.s32 0, %v529
    %v532 = vsel %vm530, %v531, %v529
    %v533 = vclz %v532
    %v534 = vsub.s32 %v533, 2
    %vm535 = vcmp.gt.s32.totalorder 0, %v534
    %v536 = vsel %vm535, 0, %v534
    %v537 = vsub.s32 32, %v536
    %v538 = vshll.u32 %v529, %v536
    %v539 = vshrl.u32 %v521, %v537
    %v540 = vor.u32 %v538, %v539
    %v541 = vsub.s32 4294967266, %v536
    %v542 = vadd.s32 %v541, 127
    %v543 = vshll.u32 %v542, 23
    %v544 = vor.u32 4788187, %v543
    %v545 = vand.u32 2147483647, %v544
    %v547 = vcvt.s32.f32 %v540
    %v548 = vmul.f32 %v547, %v545
    %v549 = vxor.u32 %v548, 2147483648
    %v550 = vsel %vm467, %v549, %v548
    %v551 = vsub.s32 4, %v527
    %v552 = vsel %vm467, %v551, %v527
    %v553 = vsel %vm466, %v343, %v550
    %v554 = vsel %vm466, 0, %v552
    %v555 = vcosq.f32.pop %v553
    %v556 = vsinq.f32.pop %v553
    %vm557 = vweird.f32 %v343
    %v558 = vadd.s32 %v554, 3
    %v559 = vand.u32 %v558, 3
    %vm560 = vcmp.lt.s32.totalorder %v559, 2
    %vm561 = vcmp.eq.s32.totalorder %v559, 0
    %v562 = vxor.u32 %v556, 2147483648
    %v563 = vsel %vm561, %v555, %v562
    %vm564 = vcmp.eq.s32.totalorder %v559, 2
    %v565 = vxor.u32 %v555, 2147483648
    %v566 = vsel %vm564, %v565, %v556
    %v567 = vsel %vm560, %v563, %v566
    %v568 = vsel %vm557, nan, %v567
    %v569 = vand.u32 2147483647, %v344
    %vm570 = vcmp.le.f32.partialorder %v569, 0.7853982
    %vm571 = vcmp.lt.s32.totalorder %v344, 0
    %v572 = vand.u32 %v344, 2139095040
    %v573 = vshrl.u32 %v572, 23
    %v574 = vsub.s32 %v573, 127
    %v575 = vand.u32 2147483647, %v344
    %v576 = vand.u32 %v575, 8388607
    %v577 = vor.u32 %v576, 8388608
    %v578 = vsub.s32 0, %v577
    %v579 = vadd.s32 %v574, 1
    %vm580 = vcmp.gt.s32.totalorder %v579, 0
    %v581 = vsel %vm580, %v579, 0
    %v582 = vshrl.u32 %v581, 5
    %v583 = vand.u32 %v581, 31
    %v584 = vsub.s32 32, %v583
    %v585 = vshrl.u32 683565275, %v584
    %v586 = vshll.u32 683565275, %v583
    %v587 = vshrl.u32 2475754826, %v584
    %v588 = vor.u32 %v586, %v587
    %v589 = vshll.u32 2475754826, %v583
    %v590 = vshrl.u32 2131351028, %v584
    %v591 = vor.u32 %v589, %v590
    %v592 = vshll.u32 2131351028, %v583
    %v593 = vshrl.u32 2102212464, %v584
    %v594 = vor.u32 %v592, %v593
    %v595 = vshll.u32 2102212464, %v583
    %v596 = vshrl.u32 920167782, %v584
    %v597 = vor.u32 %v595, %v596
    %v598 = vshll.u32 920167782, %v583
    %v599 = vshrl.u32 1326507024, %v584
    %v600 = vor.u32 %v598, %v599
    %vm601 = vcmp.lt.s32.totalorder %v582, 1
    %vm602 = vcmp.lt.s32.totalorder %v582, 2
    %vm603 = vcmp.lt.s32.totalorder %v582, 3
    %vm604 = vcmp.lt.s32.totalorder %v582, 4
    %v605 = vsel %vm601, %v585, %v588
    %v606 = vsel %vm604, %v594, 2102212464
    %v607 = vsel %vm603, %v591, %v606
    %v608 = vsel %vm602, %v605, %v607
    %v609 = vsel %vm601, %v588, %v591
    %v610 = vsel %vm604, %v597, 920167782
    %v611 = vsel %vm603, %v594, %v610
    %v612 = vsel %vm602, %v609, %v611
    %v613 = vsel %vm601, %v591, %v594
    %v614 = vsel %vm604, %v600, 1326507024
    %v615 = vsel %vm603, %v597, %v614
    %v616 = vsel %vm602, %v613, %v615
    %v617 = vshll.u32 %v577, 8
    %v618 = vmul.u32.u64.compose %v617, %v616
    %v619 = vextract.low.u32 %v618
    %v620 = vextract.high.u32 %v618
    %v621 = vmul.u32.u64.compose %v617, %v612
    %v622 = vextract.low.u32 %v621
    %v623 = vextract.high.u32 %v621
    %v624 = vmul.u32 %v617, %v608
    %v625 = vadd.s32 %v620, %v622
    %vm626 = vc.u32 %v620, %v622
    %v627 = vadd.s32 %v623, 1
    %v628 = vsel %vm626, %v627, %v623
    %v629 = vadd.s32 %v624, %v628
    %v630 = vadd.s32 %v629, 536870912
    %v631 = vshrl.u32 %v630, 30
    %v632 = vshll.u32 %v631, 30
    %v633 = vsub.s32 %v629, %v632
    %vm634 = vcmp.lt.s32.totalorder %v633, 0
    %v635 = vsub.s32 0, %v633
    %v636 = vsel %vm634, %v635, %v633
    %v637 = vclz %v636
    %v638 = vsub.s32 %v637, 2
    %vm639 = vcmp.gt.s32.totalorder 0, %v638
    %v640 = vsel %vm639, 0, %v638
    %v641 = vsub.s32 32, %v640
    %v642 = vshll.u32 %v633, %v640
    %v643 = vshrl.u32 %v625, %v641
    %v644 = vor.u32 %v642, %v643
    %v645 = vsub.s32 4294967266, %v640
    %v646 = vadd.s32 %v645, 127
    %v647 = vshll.u32 %v646, 23
    %v648 = vor.u32 4788187, %v647
    %v649 = vand.u32 2147483647, %v648
    %v651 = vcvt.s32.f32 %v644
    %v652 = vmul.f32 %v651, %v649
    %v653 = vxor.u32 %v652, 2147483648
    %v654 = vsel %vm571, %v653, %v652
    %v655 = vsub.s32 4, %v631
    %v656 = vsel %vm571, %v655, %v631
    %v657 = vsel %vm570, %v344, %v654
    %v658 = vsel %vm570, 0, %v656
    %v659 = vcosq.f32.pop %v657
    %v660 = vsinq.f32.pop %v657
    %vm661 = vweird.f32 %v344
    %v662 = vadd.s32 %v658, 3
    %v663 = vand.u32 %v662, 3
    %vm664 = vcmp.lt.s32.totalorder %v663, 2
    %vm665 = vcmp.eq.s32.totalorder %v663, 0
    %v666 = vxor.u32 %v660, 2147483648
    %v667 = vsel %vm665, %v659, %v666
    %vm668 = vcmp.eq.s32.totalorder %v663, 2
    %v669 = vxor.u32 %v659, 2147483648
    %v670 = vsel %vm668, %v669, %v660
    %v671 = vsel %vm664, %v667, %v670
    %v672 = vsel %vm661, nan, %v671
    %v673 = vand.u32 2147483647, %v345
    %vm674 = vcmp.le.f32.partialorder %v673, 0.7853982
    %vm675 = vcmp.lt.s32.totalorder %v345, 0
    %v676 = vand.u32 %v345, 2139095040
    %v677 = vshrl.u32 %v676, 23
    %v678 = vsub.s32 %v677, 127
    %v679 = vand.u32 2147483647, %v345
    %v680 = vand.u32 %v679, 8388607
    %v681 = vor.u32 %v680, 8388608
    %v682 = vsub.s32 0, %v681
    %v683 = vadd.s32 %v678, 1
    %vm684 = vcmp.gt.s32.totalorder %v683, 0
    %v685 = vsel %vm684, %v683, 0
    %v686 = vshrl.u32 %v685, 5
    %v687 = vand.u32 %v685, 31
    %v688 = vsub.s32 32, %v687
    %v689 = vshrl.u32 683565275, %v688
    %v690 = vshll.u32 683565275, %v687
    %v691 = vshrl.u32 2475754826, %v688
    %v692 = vor.u32 %v690, %v691
    %v693 = vshll.u32 2475754826, %v687
    %v694 = vshrl.u32 2131351028, %v688
    %v695 = vor.u32 %v693, %v694
    %v696 = vshll.u32 2131351028, %v687
    %v697 = vshrl.u32 2102212464, %v688
    %v698 = vor.u32 %v696, %v697
    %v699 = vshll.u32 2102212464, %v687
    %v700 = vshrl.u32 920167782, %v688
    %v701 = vor.u32 %v699, %v700
    %v702 = vshll.u32 920167782, %v687
    %v703 = vshrl.u32 1326507024, %v688
    %v704 = vor.u32 %v702, %v703
    %vm705 = vcmp.lt.s32.totalorder %v686, 1
    %vm706 = vcmp.lt.s32.totalorder %v686, 2
    %vm707 = vcmp.lt.s32.totalorder %v686, 3
    %vm708 = vcmp.lt.s32.totalorder %v686, 4
    %v709 = vsel %vm705, %v689, %v692
    %v710 = vsel %vm708, %v698, 2102212464
    %v711 = vsel %vm707, %v695, %v710
    %v712 = vsel %vm706, %v709, %v711
    %v713 = vsel %vm705, %v692, %v695
    %v714 = vsel %vm708, %v701, 920167782
    %v715 = vsel %vm707, %v698, %v714
    %v716 = vsel %vm706, %v713, %v715
    %v717 = vsel %vm705, %v695, %v698
    %v718 = vsel %vm708, %v704, 1326507024
    %v719 = vsel %vm707, %v701, %v718
    %v720 = vsel %vm706, %v717, %v719
    %v721 = vshll.u32 %v681, 8
    %v722 = vmul.u32.u64.compose %v721, %v720
    %v723 = vextract.low.u32 %v722
    %v724 = vextract.high.u32 %v722
    %v725 = vmul.u32.u64.compose %v721, %v716
    %v726 = vextract.low.u32 %v725
    %v727 = vextract.high.u32 %v725
    %v728 = vmul.u32 %v721, %v712
    %v729 = vadd.s32 %v724, %v726
    %vm730 = vc.u32 %v724, %v726
    %v731 = vadd.s32 %v727, 1
    %v732 = vsel %vm730, %v731, %v727
    %v733 = vadd.s32 %v728, %v732
    %v734 = vadd.s32 %v733, 536870912
    %v735 = vshrl.u32 %v734, 30
    %v736 = vshll.u32 %v735, 30
    %v737 = vsub.s32 %v733, %v736
    %vm738 = vcmp.lt.s32.totalorder %v737, 0
    %v739 = vsub.s32 0, %v737
    %v740 = vsel %vm738, %v739, %v737
    %v741 = vclz %v740
    %v742 = vsub.s32 %v741, 2
    %vm743 = vcmp.gt.s32.totalorder 0, %v742
    %v744 = vsel %vm743, 0, %v742
    %v745 = vsub.s32 32, %v744
    %v746 = vshll.u32 %v737, %v744
    %v747 = vshrl.u32 %v729, %v745
    %v748 = vor.u32 %v746, %v747
    %v749 = vsub.s32 4294967266, %v744
    %v750 = vadd.s32 %v749, 127
    %v751 = vshll.u32 %v750, 23
    %v752 = vor.u32 4788187, %v751
    %v753 = vand.u32 2147483647, %v752
    %v755 = vcvt.s32.f32 %v748
    %v756 = vmul.f32 %v755, %v753
    %v757 = vxor.u32 %v756, 2147483648
    %v758 = vsel %vm675, %v757, %v756
    %v759 = vsub.s32 4, %v735
    %v760 = vsel %vm675, %v759, %v735
    %v761 = vsel %vm674, %v345, %v758
    %v762 = vsel %vm674, 0, %v760
    %v763 = vcosq.f32.pop %v761
    %v764 = vsinq.f32.pop %v761
    %vm765 = vweird.f32 %v345
    %v766 = vadd.s32 %v762, 3
    %v767 = vand.u32 %v766, 3
    %vm768 = vcmp.lt.s32.totalorder %v767, 2
    %vm769 = vcmp.eq.s32.totalorder %v767, 0
    %v770 = vxor.u32 %v764, 2147483648
    %v771 = vsel %vm769, %v763, %v770
    %vm772 = vcmp.eq.s32.totalorder %v767, 2
    %v773 = vxor.u32 %v763, 2147483648
    %v774 = vsel %vm772, %v773, %v764
    %v775 = vsel %vm768, %v771, %v774
    %v776 = vsel %vm765, nan, %v775
    %v777 = vand.u32 2147483647, %v346
    %vm778 = vcmp.le.f32.partialorder %v777, 0.7853982
    %vm779 = vcmp.lt.s32.totalorder %v346, 0
    %v780 = vand.u32 %v346, 2139095040
    %v781 = vshrl.u32 %v780, 23
    %v782 = vsub.s32 %v781, 127
    %v783 = vand.u32 2147483647, %v346
    %v784 = vand.u32 %v783, 8388607
    %v785 = vor.u32 %v784, 8388608
    %v786 = vsub.s32 0, %v785
    %v787 = vadd.s32 %v782, 1
    %vm788 = vcmp.gt.s32.totalorder %v787, 0
    %v789 = vsel %vm788, %v787, 0
    %v790 = vshrl.u32 %v789, 5
    %v791 = vand.u32 %v789, 31
    %v792 = vsub.s32 32, %v791
    %v793 = vshrl.u32 683565275, %v792
    %v794 = vshll.u32 683565275, %v791
    %v795 = vshrl.u32 2475754826, %v792
    %v796 = vor.u32 %v794, %v795
    %v797 = vshll.u32 2475754826, %v791
    %v798 = vshrl.u32 2131351028, %v792
    %v799 = vor.u32 %v797, %v798
    %v800 = vshll.u32 2131351028, %v791
    %v801 = vshrl.u32 2102212464, %v792
    %v802 = vor.u32 %v800, %v801
    %v803 = vshll.u32 2102212464, %v791
    %v804 = vshrl.u32 920167782, %v792
    %v805 = vor.u32 %v803, %v804
    %v806 = vshll.u32 920167782, %v791
    %v807 = vshrl.u32 1326507024, %v792
    %v808 = vor.u32 %v806, %v807
    %vm809 = vcmp.lt.s32.totalorder %v790, 1
    %vm810 = vcmp.lt.s32.totalorder %v790, 2
    %vm811 = vcmp.lt.s32.totalorder %v790, 3
    %vm812 = vcmp.lt.s32.totalorder %v790, 4
    %v813 = vsel %vm809, %v793, %v796
    %v814 = vsel %vm812, %v802, 2102212464
    %v815 = vsel %vm811, %v799, %v814
    %v816 = vsel %vm810, %v813, %v815
    %v817 = vsel %vm809, %v796, %v799
    %v818 = vsel %vm812, %v805, 920167782
    %v819 = vsel %vm811, %v802, %v818
    %v820 = vsel %vm810, %v817, %v819
    %v821 = vsel %vm809, %v799, %v802
    %v822 = vsel %vm812, %v808, 1326507024
    %v823 = vsel %vm811, %v805, %v822
    %v824 = vsel %vm810, %v821, %v823
    %v825 = vshll.u32 %v785, 8
    %v826 = vmul.u32.u64.compose %v825, %v824
    %v827 = vextract.low.u32 %v826
    %v828 = vextract.high.u32 %v826
    %v829 = vmul.u32.u64.compose %v825, %v820
    %v830 = vextract.low.u32 %v829
    %v831 = vextract.high.u32 %v829
    %v832 = vmul.u32 %v825, %v816
    %v833 = vadd.s32 %v828, %v830
    %vm834 = vc.u32 %v828, %v830
    %v835 = vadd.s32 %v831, 1
    %v836 = vsel %vm834, %v835, %v831
    %v837 = vadd.s32 %v832, %v836
    %v838 = vadd.s32 %v837, 536870912
    %v839 = vshrl.u32 %v838, 30
    %v840 = vshll.u32 %v839, 30
    %v841 = vsub.s32 %v837, %v840
    %vm842 = vcmp.lt.s32.totalorder %v841, 0
    %v843 = vsub.s32 0, %v841
    %v844 = vsel %vm842, %v843, %v841
    %v845 = vclz %v844
    %v846 = vsub.s32 %v845, 2
    %vm847 = vcmp.gt.s32.totalorder 0, %v846
    %v848 = vsel %vm847, 0, %v846
    %v849 = vsub.s32 32, %v848
    %v850 = vshll.u32 %v841, %v848
    %v851 = vshrl.u32 %v833, %v849
    %v852 = vor.u32 %v850, %v851
    %v853 = vsub.s32 4294967266, %v848
    %v854 = vadd.s32 %v853, 127
    %v855 = vshll.u32 %v854, 23
    %v856 = vor.u32 4788187, %v855
    %v857 = vand.u32 2147483647, %v856
    %v859 = vcvt.s32.f32 %v852
    %v860 = vmul.f32 %v859, %v857
    %v861 = vxor.u32 %v860, 2147483648
    %v862 = vsel %vm779, %v861, %v860
    %v863 = vsub.s32 4, %v839
    %v864 = vsel %vm779, %v863, %v839
    %v865 = vsel %vm778, %v346, %v862
    %v866 = vsel %vm778, 0, %v864
    %v867 = vcosq.f32.pop %v865
    %v868 = vsinq.f32.pop %v865
    %vm869 = vweird.f32 %v346
    %v870 = vadd.s32 %v866, 3
    %v871 = vand.u32 %v870, 3
    %vm872 = vcmp.lt.s32.totalorder %v871, 2
    %vm873 = vcmp.eq.s32.totalorder %v871, 0
    %v874 = vxor.u32 %v868, 2147483648
    %v875 = vsel %vm873, %v867, %v874
    %vm876 = vcmp.eq.s32.totalorder %v871, 2
    %v877 = vxor.u32 %v867, 2147483648
    %v878 = vsel %vm876, %v877, %v868
    %v879 = vsel %vm872, %v875, %v878
    %v880 = vsel %vm869, nan, %v879
    %v881 = vand.u32 2147483647, %v347
    %vm882 = vcmp.le.f32.partialorder %v881, 0.7853982
    %vm883 = vcmp.lt.s32.totalorder %v347, 0
    %v884 = vand.u32 %v347, 2139095040
    %v885 = vshrl.u32 %v884, 23
    %v886 = vsub.s32 %v885, 127
    %v887 = vand.u32 2147483647, %v347
    %v888 = vand.u32 %v887, 8388607
    %v889 = vor.u32 %v888, 8388608
    %v890 = vsub.s32 0, %v889
    %v891 = vadd.s32 %v886, 1
    %vm892 = vcmp.gt.s32.totalorder %v891, 0
    %v893 = vsel %vm892, %v891, 0
    %v894 = vshrl.u32 %v893, 5
    %v895 = vand.u32 %v893, 31
    %v896 = vsub.s32 32, %v895
    %v897 = vshrl.u32 683565275, %v896
    %v898 = vshll.u32 683565275, %v895
    %v899 = vshrl.u32 2475754826, %v896
    %v900 = vor.u32 %v898, %v899
    %v901 = vshll.u32 2475754826, %v895
    %v902 = vshrl.u32 2131351028, %v896
    %v903 = vor.u32 %v901, %v902
    %v904 = vshll.u32 2131351028, %v895
    %v905 = vshrl.u32 2102212464, %v896
    %v906 = vor.u32 %v904, %v905
    %v907 = vshll.u32 2102212464, %v895
    %v908 = vshrl.u32 920167782, %v896
    %v909 = vor.u32 %v907, %v908
    %v910 = vshll.u32 920167782, %v895
    %v911 = vshrl.u32 1326507024, %v896
    %v912 = vor.u32 %v910, %v911
    %vm913 = vcmp.lt.s32.totalorder %v894, 1
    %vm914 = vcmp.lt.s32.totalorder %v894, 2
    %vm915 = vcmp.lt.s32.totalorder %v894, 3
    %vm916 = vcmp.lt.s32.totalorder %v894, 4
    %v917 = vsel %vm913, %v897, %v900
    %v918 = vsel %vm916, %v906, 2102212464
    %v919 = vsel %vm915, %v903, %v918
    %v920 = vsel %vm914, %v917, %v919
    %v921 = vsel %vm913, %v900, %v903
    %v922 = vsel %vm916, %v909, 920167782
    %v923 = vsel %vm915, %v906, %v922
    %v924 = vsel %vm914, %v921, %v923
    %v925 = vsel %vm913, %v903, %v906
    %v926 = vsel %vm916, %v912, 1326507024
    %v927 = vsel %vm915, %v909, %v926
    %v928 = vsel %vm914, %v925, %v927
    %v929 = vshll.u32 %v889, 8
    %v930 = vmul.u32.u64.compose %v929, %v928
    %v931 = vextract.low.u32 %v930
    %v932 = vextract.high.u32 %v930
    %v933 = vmul.u32.u64.compose %v929, %v924
    %v934 = vextract.low.u32 %v933
    %v935 = vextract.high.u32 %v933
    %v936 = vmul.u32 %v929, %v920
    %v937 = vadd.s32 %v932, %v934
    %vm938 = vc.u32 %v932, %v934
    %v939 = vadd.s32 %v935, 1
    %v940 = vsel %vm938, %v939, %v935
    %v941 = vadd.s32 %v936, %v940
    %v942 = vadd.s32 %v941, 536870912
    %v943 = vshrl.u32 %v942, 30
    %v944 = vshll.u32 %v943, 30
    %v945 = vsub.s32 %v941, %v944
    %vm946 = vcmp.lt.s32.totalorder %v945, 0
    %v947 = vsub.s32 0, %v945
    %v948 = vsel %vm946, %v947, %v945
    %v949 = vclz %v948
    %v950 = vsub.s32 %v949, 2
    %vm951 = vcmp.gt.s32.totalorder 0, %v950
    %v952 = vsel %vm951, 0, %v950
    %v953 = vsub.s32 32, %v952
    %v954 = vshll.u32 %v945, %v952
    %v955 = vshrl.u32 %v937, %v953
    %v956 = vor.u32 %v954, %v955
    %v957 = vsub.s32 4294967266, %v952
    %v958 = vadd.s32 %v957, 127
    %v959 = vshll.u32 %v958, 23
    %v960 = vor.u32 4788187, %v959
    %v961 = vand.u32 2147483647, %v960
    %v963 = vcvt.s32.f32 %v956
    %v964 = vmul.f32 %v963, %v961
    %v965 = vxor.u32 %v964, 2147483648
    %v966 = vsel %vm883, %v965, %v964
    %v967 = vsub.s32 4, %v943
    %v968 = vsel %vm883, %v967, %v943
    %v969 = vsel %vm882, %v347, %v966
    %v970 = vsel %vm882, 0, %v968
    %v971 = vcosq.f32.pop %v969
    %v972 = vsinq.f32.pop %v969
    %vm973 = vweird.f32 %v347
    %v974 = vadd.s32 %v970, 3
    %v975 = vand.u32 %v974, 3
    %vm976 = vcmp.lt.s32.totalorder %v975, 2
    %vm977 = vcmp.eq.s32.totalorder %v975, 0
    %v978 = vxor.u32 %v972, 2147483648
    %v979 = vsel %vm977, %v971, %v978
    %vm980 = vcmp.eq.s32.totalorder %v975, 2
    %v981 = vxor.u32 %v971, 2147483648
    %v982 = vsel %vm980, %v981, %v972
    %v983 = vsel %vm976, %v979, %v982
    %v984 = vsel %vm973, nan, %v983
    %v985 = vand.u32 2147483647, %v348
    %vm986 = vcmp.le.f32.partialorder %v985, 0.7853982
    %vm987 = vcmp.lt.s32.totalorder %v348, 0
    %v988 = vand.u32 %v348, 2139095040
    %v989 = vshrl.u32 %v988, 23
    %v990 = vsub.s32 %v989, 127
    %v991 = vand.u32 2147483647, %v348
    %v992 = vand.u32 %v991, 8388607
    %v993 = vor.u32 %v992, 8388608
    %v994 = vsub.s32 0, %v993
    %v995 = vadd.s32 %v990, 1
    %vm996 = vcmp.gt.s32.totalorder %v995, 0
    %v997 = vsel %vm996, %v995, 0
    %v998 = vshrl.u32 %v997, 5
    %v999 = vand.u32 %v997, 31
    %v1000 = vsub.s32 32, %v999
    %v1001 = vshrl.u32 683565275, %v1000
    %v1002 = vshll.u32 683565275, %v999
    %v1003 = vshrl.u32 2475754826, %v1000
    %v1004 = vor.u32 %v1002, %v1003
    %v1005 = vshll.u32 2475754826, %v999
    %v1006 = vshrl.u32 2131351028, %v1000
    %v1007 = vor.u32 %v1005, %v1006
    %v1008 = vshll.u32 2131351028, %v999
    %v1009 = vshrl.u32 2102212464, %v1000
    %v1010 = vor.u32 %v1008, %v1009
    %v1011 = vshll.u32 2102212464, %v999
    %v1012 = vshrl.u32 920167782, %v1000
    %v1013 = vor.u32 %v1011, %v1012
    %v1014 = vshll.u32 920167782, %v999
    %v1015 = vshrl.u32 1326507024, %v1000
    %v1016 = vor.u32 %v1014, %v1015
    %vm1017 = vcmp.lt.s32.totalorder %v998, 1
    %vm1018 = vcmp.lt.s32.totalorder %v998, 2
    %vm1019 = vcmp.lt.s32.totalorder %v998, 3
    %vm1020 = vcmp.lt.s32.totalorder %v998, 4
    %v1021 = vsel %vm1017, %v1001, %v1004
    %v1022 = vsel %vm1020, %v1010, 2102212464
    %v1023 = vsel %vm1019, %v1007, %v1022
    %v1024 = vsel %vm1018, %v1021, %v1023
    %v1025 = vsel %vm1017, %v1004, %v1007
    %v1026 = vsel %vm1020, %v1013, 920167782
    %v1027 = vsel %vm1019, %v1010, %v1026
    %v1028 = vsel %vm1018, %v1025, %v1027
    %v1029 = vsel %vm1017, %v1007, %v1010
    %v1030 = vsel %vm1020, %v1016, 1326507024
    %v1031 = vsel %vm1019, %v1013, %v1030
    %v1032 = vsel %vm1018, %v1029, %v1031
    %v1033 = vshll.u32 %v993, 8
    %v1034 = vmul.u32.u64.compose %v1033, %v1032
    %v1035 = vextract.low.u32 %v1034
    %v1036 = vextract.high.u32 %v1034
    %v1037 = vmul.u32.u64.compose %v1033, %v1028
    %v1038 = vextract.low.u32 %v1037
    %v1039 = vextract.high.u32 %v1037
    %v1040 = vmul.u32 %v1033, %v1024
    %v1041 = vadd.s32 %v1036, %v1038
    %vm1042 = vc.u32 %v1036, %v1038
    %v1043 = vadd.s32 %v1039, 1
    %v1044 = vsel %vm1042, %v1043, %v1039
    %v1045 = vadd.s32 %v1040, %v1044
    %v1046 = vadd.s32 %v1045, 536870912
    %v1047 = vshrl.u32 %v1046, 30
    %v1048 = vshll.u32 %v1047, 30
    %v1049 = vsub.s32 %v1045, %v1048
    %vm1050 = vcmp.lt.s32.totalorder %v1049, 0
    %v1051 = vsub.s32 0, %v1049
    %v1052 = vsel %vm1050, %v1051, %v1049
    %v1053 = vclz %v1052
    %v1054 = vsub.s32 %v1053, 2
    %vm1055 = vcmp.gt.s32.totalorder 0, %v1054
    %v1056 = vsel %vm1055, 0, %v1054
    %v1057 = vsub.s32 32, %v1056
    %v1058 = vshll.u32 %v1049, %v1056
    %v1059 = vshrl.u32 %v1041, %v1057
    %v1060 = vor.u32 %v1058, %v1059
    %v1061 = vsub.s32 4294967266, %v1056
    %v1062 = vadd.s32 %v1061, 127
    %v1063 = vshll.u32 %v1062, 23
    %v1064 = vor.u32 4788187, %v1063
    %v1065 = vand.u32 2147483647, %v1064
    %v1067 = vcvt.s32.f32 %v1060
    %v1068 = vmul.f32 %v1067, %v1065
    %v1069 = vxor.u32 %v1068, 2147483648
    %v1070 = vsel %vm987, %v1069, %v1068
    %v1071 = vsub.s32 4, %v1047
    %v1072 = vsel %vm987, %v1071, %v1047
    %v1073 = vsel %vm986, %v348, %v1070
    %v1074 = vsel %vm986, 0, %v1072
    %v1075 = vcosq.f32.pop %v1073
    %v1076 = vsinq.f32.pop %v1073
    %vm1077 = vweird.f32 %v348
    %v1078 = vadd.s32 %v1074, 3
    %v1079 = vand.u32 %v1078, 3
    %vm1080 = vcmp.lt.s32.totalorder %v1079, 2
    %vm1081 = vcmp.eq.s32.totalorder %v1079, 0
    %v1082 = vxor.u32 %v1076, 2147483648
    %v1083 = vsel %vm1081, %v1075, %v1082
    %vm1084 = vcmp.eq.s32.totalorder %v1079, 2
    %v1085 = vxor.u32 %v1075, 2147483648
    %v1086 = vsel %vm1084, %v1085, %v1076
    %v1087 = vsel %vm1080, %v1083, %v1086
    %v1088 = vsel %vm1077, nan, %v1087
    %v1089 = vand.u32 2147483647, %v349
    %vm1090 = vcmp.le.f32.partialorder %v1089, 0.7853982
    %vm1091 = vcmp.lt.s32.totalorder %v349, 0
    %v1092 = vand.u32 %v349, 2139095040
    %v1093 = vshrl.u32 %v1092, 23
    %v1094 = vsub.s32 %v1093, 127
    %v1095 = vand.u32 2147483647, %v349
    %v1096 = vand.u32 %v1095, 8388607
    %v1097 = vor.u32 %v1096, 8388608
    %v1098 = vsub.s32 0, %v1097
    %v1099 = vadd.s32 %v1094, 1
    %vm1100 = vcmp.gt.s32.totalorder %v1099, 0
    %v1101 = vsel %vm1100, %v1099, 0
    %v1102 = vshrl.u32 %v1101, 5
    %v1103 = vand.u32 %v1101, 31
    %v1104 = vsub.s32 32, %v1103
    %v1105 = vshrl.u32 683565275, %v1104
    %v1106 = vshll.u32 683565275, %v1103
    %v1107 = vshrl.u32 2475754826, %v1104
    %v1108 = vor.u32 %v1106, %v1107
    %v1109 = vshll.u32 2475754826, %v1103
    %v1110 = vshrl.u32 2131351028, %v1104
    %v1111 = vor.u32 %v1109, %v1110
    %v1112 = vshll.u32 2131351028, %v1103
    %v1113 = vshrl.u32 2102212464, %v1104
    %v1114 = vor.u32 %v1112, %v1113
    %v1115 = vshll.u32 2102212464, %v1103
    %v1116 = vshrl.u32 920167782, %v1104
    %v1117 = vor.u32 %v1115, %v1116
    %v1118 = vshll.u32 920167782, %v1103
    %v1119 = vshrl.u32 1326507024, %v1104
    %v1120 = vor.u32 %v1118, %v1119
    %vm1121 = vcmp.lt.s32.totalorder %v1102, 1
    %vm1122 = vcmp.lt.s32.totalorder %v1102, 2
    %vm1123 = vcmp.lt.s32.totalorder %v1102, 3
    %vm1124 = vcmp.lt.s32.totalorder %v1102, 4
    %v1125 = vsel %vm1121, %v1105, %v1108
    %v1126 = vsel %vm1124, %v1114, 2102212464
    %v1127 = vsel %vm1123, %v1111, %v1126
    %v1128 = vsel %vm1122, %v1125, %v1127
    %v1129 = vsel %vm1121, %v1108, %v1111
    %v1130 = vsel %vm1124, %v1117, 920167782
    %v1131 = vsel %vm1123, %v1114, %v1130
    %v1132 = vsel %vm1122, %v1129, %v1131
    %v1133 = vsel %vm1121, %v1111, %v1114
    %v1134 = vsel %vm1124, %v1120, 1326507024
    %v1135 = vsel %vm1123, %v1117, %v1134
    %v1136 = vsel %vm1122, %v1133, %v1135
    %v1137 = vshll.u32 %v1097, 8
    %v1138 = vmul.u32.u64.compose %v1137, %v1136
    %v1139 = vextract.low.u32 %v1138
    %v1140 = vextract.high.u32 %v1138
    %v1141 = vmul.u32.u64.compose %v1137, %v1132
    %v1142 = vextract.low.u32 %v1141
    %v1143 = vextract.high.u32 %v1141
    %v1144 = vmul.u32 %v1137, %v1128
    %v1145 = vadd.s32 %v1140, %v1142
    %vm1146 = vc.u32 %v1140, %v1142
    %v1147 = vadd.s32 %v1143, 1
    %v1148 = vsel %vm1146, %v1147, %v1143
    %v1149 = vadd.s32 %v1144, %v1148
    %v1150 = vadd.s32 %v1149, 536870912
    %v1151 = vshrl.u32 %v1150, 30
    %v1152 = vshll.u32 %v1151, 30
    %v1153 = vsub.s32 %v1149, %v1152
    %vm1154 = vcmp.lt.s32.totalorder %v1153, 0
    %v1155 = vsub.s32 0, %v1153
    %v1156 = vsel %vm1154, %v1155, %v1153
    %v1157 = vclz %v1156
    %v1158 = vsub.s32 %v1157, 2
    %vm1159 = vcmp.gt.s32.totalorder 0, %v1158
    %v1160 = vsel %vm1159, 0, %v1158
    %v1161 = vsub.s32 32, %v1160
    %v1162 = vshll.u32 %v1153, %v1160
    %v1163 = vshrl.u32 %v1145, %v1161
    %v1164 = vor.u32 %v1162, %v1163
    %v1165 = vsub.s32 4294967266, %v1160
    %v1166 = vadd.s32 %v1165, 127
    %v1167 = vshll.u32 %v1166, 23
    %v1168 = vor.u32 4788187, %v1167
    %v1169 = vand.u32 2147483647, %v1168
    %v1171 = vcvt.s32.f32 %v1164
    %v1172 = vmul.f32 %v1171, %v1169
    %v1173 = vxor.u32 %v1172, 2147483648
    %v1174 = vsel %vm1091, %v1173, %v1172
    %v1175 = vsub.s32 4, %v1151
    %v1176 = vsel %vm1091, %v1175, %v1151
    %v1177 = vsel %vm1090, %v349, %v1174
    %v1178 = vsel %vm1090, 0, %v1176
    %v1179 = vcosq.f32.pop %v1177
    %v1180 = vsinq.f32.pop %v1177
    %vm1181 = vweird.f32 %v349
    %v1182 = vadd.s32 %v1178, 3
    %v1183 = vand.u32 %v1182, 3
    %vm1184 = vcmp.lt.s32.totalorder %v1183, 2
    %vm1185 = vcmp.eq.s32.totalorder %v1183, 0
    %v1186 = vxor.u32 %v1180, 2147483648
    %v1187 = vsel %vm1185, %v1179, %v1186
    %vm1188 = vcmp.eq.s32.totalorder %v1183, 2
    %v1189 = vxor.u32 %v1179, 2147483648
    %v1190 = vsel %vm1188, %v1189, %v1180
    %v1191 = vsel %vm1184, %v1187, %v1190
    %v1192 = vsel %vm1181, nan, %v1191
    %v1193 = vand.u32 2147483647, %v350
    %vm1194 = vcmp.le.f32.partialorder %v1193, 0.7853982
    %vm1195 = vcmp.lt.s32.totalorder %v350, 0
    %v1196 = vand.u32 %v350, 2139095040
    %v1197 = vshrl.u32 %v1196, 23
    %v1198 = vsub.s32 %v1197, 127
    %v1199 = vand.u32 2147483647, %v350
    %v1200 = vand.u32 %v1199, 8388607
    %v1201 = vor.u32 %v1200, 8388608
    %v1202 = vsub.s32 0, %v1201
    %v1203 = vadd.s32 %v1198, 1
    %vm1204 = vcmp.gt.s32.totalorder %v1203, 0
    %v1205 = vsel %vm1204, %v1203, 0
    %v1206 = vshrl.u32 %v1205, 5
    %v1207 = vand.u32 %v1205, 31
    %v1208 = vsub.s32 32, %v1207
    %v1209 = vshrl.u32 683565275, %v1208
    %v1210 = vshll.u32 683565275, %v1207
    %v1211 = vshrl.u32 2475754826, %v1208
    %v1212 = vor.u32 %v1210, %v1211
    %v1213 = vshll.u32 2475754826, %v1207
    %v1214 = vshrl.u32 2131351028, %v1208
    %v1215 = vor.u32 %v1213, %v1214
    %v1216 = vshll.u32 2131351028, %v1207
    %v1217 = vshrl.u32 2102212464, %v1208
    %v1218 = vor.u32 %v1216, %v1217
    %v1219 = vshll.u32 2102212464, %v1207
    %v1220 = vshrl.u32 920167782, %v1208
    %v1221 = vor.u32 %v1219, %v1220
    %v1222 = vshll.u32 920167782, %v1207
    %v1223 = vshrl.u32 1326507024, %v1208
    %v1224 = vor.u32 %v1222, %v1223
    %vm1225 = vcmp.lt.s32.totalorder %v1206, 1
    %vm1226 = vcmp.lt.s32.totalorder %v1206, 2
    %vm1227 = vcmp.lt.s32.totalorder %v1206, 3
    %vm1228 = vcmp.lt.s32.totalorder %v1206, 4
    %v1229 = vsel %vm1225, %v1209, %v1212
    %v1230 = vsel %vm1228, %v1218, 2102212464
    %v1231 = vsel %vm1227, %v1215, %v1230
    %v1232 = vsel %vm1226, %v1229, %v1231
    %v1233 = vsel %vm1225, %v1212, %v1215
    %v1234 = vsel %vm1228, %v1221, 920167782
    %v1235 = vsel %vm1227, %v1218, %v1234
    %v1236 = vsel %vm1226, %v1233, %v1235
    %v1237 = vsel %vm1225, %v1215, %v1218
    %v1238 = vsel %vm1228, %v1224, 1326507024
    %v1239 = vsel %vm1227, %v1221, %v1238
    %v1240 = vsel %vm1226, %v1237, %v1239
    %v1241 = vshll.u32 %v1201, 8
    %v1242 = vmul.u32.u64.compose %v1241, %v1240
    %v1243 = vextract.low.u32 %v1242
    %v1244 = vextract.high.u32 %v1242
    %v1245 = vmul.u32.u64.compose %v1241, %v1236
    %v1246 = vextract.low.u32 %v1245
    %v1247 = vextract.high.u32 %v1245
    %v1248 = vmul.u32 %v1241, %v1232
    %v1249 = vadd.s32 %v1244, %v1246
    %vm1250 = vc.u32 %v1244, %v1246
    %v1251 = vadd.s32 %v1247, 1
    %v1252 = vsel %vm1250, %v1251, %v1247
    %v1253 = vadd.s32 %v1248, %v1252
    %v1254 = vadd.s32 %v1253, 536870912
    %v1255 = vshrl.u32 %v1254, 30
    %v1256 = vshll.u32 %v1255, 30
    %v1257 = vsub.s32 %v1253, %v1256
    %vm1258 = vcmp.lt.s32.totalorder %v1257, 0
    %v1259 = vsub.s32 0, %v1257
    %v1260 = vsel %vm1258, %v1259, %v1257
    %v1261 = vclz %v1260
    %v1262 = vsub.s32 %v1261, 2
    %vm1263 = vcmp.gt.s32.totalorder 0, %v1262
    %v1264 = vsel %vm1263, 0, %v1262
    %v1265 = vsub.s32 32, %v1264
    %v1266 = vshll.u32 %v1257, %v1264
    %v1267 = vshrl.u32 %v1249, %v1265
    %v1268 = vor.u32 %v1266, %v1267
    %v1269 = vsub.s32 4294967266, %v1264
    %v1270 = vadd.s32 %v1269, 127
    %v1271 = vshll.u32 %v1270, 23
    %v1272 = vor.u32 4788187, %v1271
    %v1273 = vand.u32 2147483647, %v1272
    %v1275 = vcvt.s32.f32 %v1268
    %v1276 = vmul.f32 %v1275, %v1273
    %v1277 = vxor.u32 %v1276, 2147483648
    %v1278 = vsel %vm1195, %v1277, %v1276
    %v1279 = vsub.s32 4, %v1255
    %v1280 = vsel %vm1195, %v1279, %v1255
    %v1281 = vsel %vm1194, %v350, %v1278
    %v1282 = vsel %vm1194, 0, %v1280
    %v1283 = vcosq.f32.pop %v1281
    %v1284 = vsinq.f32.pop %v1281
    %vm1285 = vweird.f32 %v350
    %v1286 = vadd.s32 %v1282, 3
    %v1287 = vand.u32 %v1286, 3
    %vm1288 = vcmp.lt.s32.totalorder %v1287, 2
    %vm1289 = vcmp.eq.s32.totalorder %v1287, 0
    %v1290 = vxor.u32 %v1284, 2147483648
    %v1291 = vsel %vm1289, %v1283, %v1290
    %vm1292 = vcmp.eq.s32.totalorder %v1287, 2
    %v1293 = vxor.u32 %v1283, 2147483648
    %v1294 = vsel %vm1292, %v1293, %v1284
    %v1295 = vsel %vm1288, %v1291, %v1294
    %v1296 = vsel %vm1285, nan, %v1295
    %v1297 = vand.u32 2147483647, %v351
    %vm1298 = vcmp.le.f32.partialorder %v1297, 0.7853982
    %vm1299 = vcmp.lt.s32.totalorder %v351, 0
    %v1300 = vand.u32 %v351, 2139095040
    %v1301 = vshrl.u32 %v1300, 23
    %v1302 = vsub.s32 %v1301, 127
    %v1303 = vand.u32 2147483647, %v351
    %v1304 = vand.u32 %v1303, 8388607
    %v1305 = vor.u32 %v1304, 8388608
    %v1306 = vsub.s32 0, %v1305
    %v1307 = vadd.s32 %v1302, 1
    %vm1308 = vcmp.gt.s32.totalorder %v1307, 0
    %v1309 = vsel %vm1308, %v1307, 0
    %v1310 = vshrl.u32 %v1309, 5
    %v1311 = vand.u32 %v1309, 31
    %v1312 = vsub.s32 32, %v1311
    %v1313 = vshrl.u32 683565275, %v1312
    %v1314 = vshll.u32 683565275, %v1311
    %v1315 = vshrl.u32 2475754826, %v1312
    %v1316 = vor.u32 %v1314, %v1315
    %v1317 = vshll.u32 2475754826, %v1311
    %v1318 = vshrl.u32 2131351028, %v1312
    %v1319 = vor.u32 %v1317, %v1318
    %v1320 = vshll.u32 2131351028, %v1311
    %v1321 = vshrl.u32 2102212464, %v1312
    %v1322 = vor.u32 %v1320, %v1321
    %v1323 = vshll.u32 2102212464, %v1311
    %v1324 = vshrl.u32 920167782, %v1312
    %v1325 = vor.u32 %v1323, %v1324
    %v1326 = vshll.u32 920167782, %v1311
    %v1327 = vshrl.u32 1326507024, %v1312
    %v1328 = vor.u32 %v1326, %v1327
    %vm1329 = vcmp.lt.s32.totalorder %v1310, 1
    %vm1330 = vcmp.lt.s32.totalorder %v1310, 2
    %vm1331 = vcmp.lt.s32.totalorder %v1310, 3
    %vm1332 = vcmp.lt.s32.totalorder %v1310, 4
    %v1333 = vsel %vm1329, %v1313, %v1316
    %v1334 = vsel %vm1332, %v1322, 2102212464
    %v1335 = vsel %vm1331, %v1319, %v1334
    %v1336 = vsel %vm1330, %v1333, %v1335
    %v1337 = vsel %vm1329, %v1316, %v1319
    %v1338 = vsel %vm1332, %v1325, 920167782
    %v1339 = vsel %vm1331, %v1322, %v1338
    %v1340 = vsel %vm1330, %v1337, %v1339
    %v1341 = vsel %vm1329, %v1319, %v1322
    %v1342 = vsel %vm1332, %v1328, 1326507024
    %v1343 = vsel %vm1331, %v1325, %v1342
    %v1344 = vsel %vm1330, %v1341, %v1343
    %v1345 = vshll.u32 %v1305, 8
    %v1346 = vmul.u32.u64.compose %v1345, %v1344
    %v1347 = vextract.low.u32 %v1346
    %v1348 = vextract.high.u32 %v1346
    %v1349 = vmul.u32.u64.compose %v1345, %v1340
    %v1350 = vextract.low.u32 %v1349
    %v1351 = vextract.high.u32 %v1349
    %v1352 = vmul.u32 %v1345, %v1336
    %v1353 = vadd.s32 %v1348, %v1350
    %vm1354 = vc.u32 %v1348, %v1350
    %v1355 = vadd.s32 %v1351, 1
    %v1356 = vsel %vm1354, %v1355, %v1351
    %v1357 = vadd.s32 %v1352, %v1356
    %v1358 = vadd.s32 %v1357, 536870912
    %v1359 = vshrl.u32 %v1358, 30
    %v1360 = vshll.u32 %v1359, 30
    %v1361 = vsub.s32 %v1357, %v1360
    %vm1362 = vcmp.lt.s32.totalorder %v1361, 0
    %v1363 = vsub.s32 0, %v1361
    %v1364 = vsel %vm1362, %v1363, %v1361
    %v1365 = vclz %v1364
    %v1366 = vsub.s32 %v1365, 2
    %vm1367 = vcmp.gt.s32.totalorder 0, %v1366
    %v1368 = vsel %vm1367, 0, %v1366
    %v1369 = vsub.s32 32, %v1368
    %v1370 = vshll.u32 %v1361, %v1368
    %v1371 = vshrl.u32 %v1353, %v1369
    %v1372 = vor.u32 %v1370, %v1371
    %v1373 = vsub.s32 4294967266, %v1368
    %v1374 = vadd.s32 %v1373, 127
    %v1375 = vshll.u32 %v1374, 23
    %v1376 = vor.u32 4788187, %v1375
    %v1377 = vand.u32 2147483647, %v1376
    %v1379 = vcvt.s32.f32 %v1372
    %v1380 = vmul.f32 %v1379, %v1377
    %v1381 = vxor.u32 %v1380, 2147483648
    %v1382 = vsel %vm1299, %v1381, %v1380
    %v1383 = vsub.s32 4, %v1359
    %v1384 = vsel %vm1299, %v1383, %v1359
    %v1385 = vsel %vm1298, %v351, %v1382
    %v1386 = vsel %vm1298, 0, %v1384
    %v1387 = vcosq.f32.pop %v1385
    %v1388 = vsinq.f32.pop %v1385
    %vm1389 = vweird.f32 %v351
    %v1390 = vadd.s32 %v1386, 3
    %v1391 = vand.u32 %v1390, 3
    %vm1392 = vcmp.lt.s32.totalorder %v1391, 2
    %vm1393 = vcmp.eq.s32.totalorder %v1391, 0
    %v1394 = vxor.u32 %v1388, 2147483648
    %v1395 = vsel %vm1393, %v1387, %v1394
    %vm1396 = vcmp.eq.s32.totalorder %v1391, 2
    %v1397 = vxor.u32 %v1387, 2147483648
    %v1398 = vsel %vm1396, %v1397, %v1388
    %v1399 = vsel %vm1392, %v1395, %v1398
    %v1400 = vsel %vm1389, nan, %v1399
    %v1401 = vand.u32 2147483647, %v352
    %vm1402 = vcmp.le.f32.partialorder %v1401, 0.7853982
    %vm1403 = vcmp.lt.s32.totalorder %v352, 0
    %v1404 = vand.u32 %v352, 2139095040
    %v1405 = vshrl.u32 %v1404, 23
    %v1406 = vsub.s32 %v1405, 127
    %v1407 = vand.u32 2147483647, %v352
    %v1408 = vand.u32 %v1407, 8388607
    %v1409 = vor.u32 %v1408, 8388608
    %v1410 = vsub.s32 0, %v1409
    %v1411 = vadd.s32 %v1406, 1
    %vm1412 = vcmp.gt.s32.totalorder %v1411, 0
    %v1413 = vsel %vm1412, %v1411, 0
    %v1414 = vshrl.u32 %v1413, 5
    %v1415 = vand.u32 %v1413, 31
    %v1416 = vsub.s32 32, %v1415
    %v1417 = vshrl.u32 683565275, %v1416
    %v1418 = vshll.u32 683565275, %v1415
    %v1419 = vshrl.u32 2475754826, %v1416
    %v1420 = vor.u32 %v1418, %v1419
    %v1421 = vshll.u32 2475754826, %v1415
    %v1422 = vshrl.u32 2131351028, %v1416
    %v1423 = vor.u32 %v1421, %v1422
    %v1424 = vshll.u32 2131351028, %v1415
    %v1425 = vshrl.u32 2102212464, %v1416
    %v1426 = vor.u32 %v1424, %v1425
    %v1427 = vshll.u32 2102212464, %v1415
    %v1428 = vshrl.u32 920167782, %v1416
    %v1429 = vor.u32 %v1427, %v1428
    %v1430 = vshll.u32 920167782, %v1415
    %v1431 = vshrl.u32 1326507024, %v1416
    %v1432 = vor.u32 %v1430, %v1431
    %vm1433 = vcmp.lt.s32.totalorder %v1414, 1
    %vm1434 = vcmp.lt.s32.totalorder %v1414, 2
    %vm1435 = vcmp.lt.s32.totalorder %v1414, 3
    %vm1436 = vcmp.lt.s32.totalorder %v1414, 4
    %v1437 = vsel %vm1433, %v1417, %v1420
    %v1438 = vsel %vm1436, %v1426, 2102212464
    %v1439 = vsel %vm1435, %v1423, %v1438
    %v1440 = vsel %vm1434, %v1437, %v1439
    %v1441 = vsel %vm1433, %v1420, %v1423
    %v1442 = vsel %vm1436, %v1429, 920167782
    %v1443 = vsel %vm1435, %v1426, %v1442
    %v1444 = vsel %vm1434, %v1441, %v1443
    %v1445 = vsel %vm1433, %v1423, %v1426
    %v1446 = vsel %vm1436, %v1432, 1326507024
    %v1447 = vsel %vm1435, %v1429, %v1446
    %v1448 = vsel %vm1434, %v1445, %v1447
    %v1449 = vshll.u32 %v1409, 8
    %v1450 = vmul.u32.u64.compose %v1449, %v1448
    %v1451 = vextract.low.u32 %v1450
    %v1452 = vextract.high.u32 %v1450
    %v1453 = vmul.u32.u64.compose %v1449, %v1444
    %v1454 = vextract.low.u32 %v1453
    %v1455 = vextract.high.u32 %v1453
    %v1456 = vmul.u32 %v1449, %v1440
    %v1457 = vadd.s32 %v1452, %v1454
    %vm1458 = vc.u32 %v1452, %v1454
    %v1459 = vadd.s32 %v1455, 1
    %v1460 = vsel %vm1458, %v1459, %v1455
    %v1461 = vadd.s32 %v1456, %v1460
    %v1462 = vadd.s32 %v1461, 536870912
    %v1463 = vshrl.u32 %v1462, 30
    %v1464 = vshll.u32 %v1463, 30
    %v1465 = vsub.s32 %v1461, %v1464
    %vm1466 = vcmp.lt.s32.totalorder %v1465, 0
    %v1467 = vsub.s32 0, %v1465
    %v1468 = vsel %vm1466, %v1467, %v1465
    %v1469 = vclz %v1468
    %v1470 = vsub.s32 %v1469, 2
    %vm1471 = vcmp.gt.s32.totalorder 0, %v1470
    %v1472 = vsel %vm1471, 0, %v1470
    %v1473 = vsub.s32 32, %v1472
    %v1474 = vshll.u32 %v1465, %v1472
    %v1475 = vshrl.u32 %v1457, %v1473
    %v1476 = vor.u32 %v1474, %v1475
    %v1477 = vsub.s32 4294967266, %v1472
    %v1478 = vadd.s32 %v1477, 127
    %v1479 = vshll.u32 %v1478, 23
    %v1480 = vor.u32 4788187, %v1479
    %v1481 = vand.u32 2147483647, %v1480
    %v1483 = vcvt.s32.f32 %v1476
    %v1484 = vmul.f32 %v1483, %v1481
    %v1485 = vxor.u32 %v1484, 2147483648
    %v1486 = vsel %vm1403, %v1485, %v1484
    %v1487 = vsub.s32 4, %v1463
    %v1488 = vsel %vm1403, %v1487, %v1463
    %v1489 = vsel %vm1402, %v352, %v1486
    %v1490 = vsel %vm1402, 0, %v1488
    %v1491 = vcosq.f32.pop %v1489
    %v1492 = vsinq.f32.pop %v1489
    %vm1493 = vweird.f32 %v352
    %v1494 = vadd.s32 %v1490, 3
    %v1495 = vand.u32 %v1494, 3
    %vm1496 = vcmp.lt.s32.totalorder %v1495, 2
    %vm1497 = vcmp.eq.s32.totalorder %v1495, 0
    %v1498 = vxor.u32 %v1492, 2147483648
    %v1499 = vsel %vm1497, %v1491, %v1498
    %vm1500 = vcmp.eq.s32.totalorder %v1495, 2
    %v1501 = vxor.u32 %v1491, 2147483648
    %v1502 = vsel %vm1500, %v1501, %v1492
    %v1503 = vsel %vm1496, %v1499, %v1502
    %v1504 = vsel %vm1493, nan, %v1503
    %v1505 = vand.u32 2147483647, %v353
    %vm1506 = vcmp.le.f32.partialorder %v1505, 0.7853982
    %vm1507 = vcmp.lt.s32.totalorder %v353, 0
    %v1508 = vand.u32 %v353, 2139095040
    %v1509 = vshrl.u32 %v1508, 23
    %v1510 = vsub.s32 %v1509, 127
    %v1511 = vand.u32 2147483647, %v353
    %v1512 = vand.u32 %v1511, 8388607
    %v1513 = vor.u32 %v1512, 8388608
    %v1514 = vsub.s32 0, %v1513
    %v1515 = vadd.s32 %v1510, 1
    %vm1516 = vcmp.gt.s32.totalorder %v1515, 0
    %v1517 = vsel %vm1516, %v1515, 0
    %v1518 = vshrl.u32 %v1517, 5
    %v1519 = vand.u32 %v1517, 31
    %v1520 = vsub.s32 32, %v1519
    %v1521 = vshrl.u32 683565275, %v1520
    %v1522 = vshll.u32 683565275, %v1519
    %v1523 = vshrl.u32 2475754826, %v1520
    %v1524 = vor.u32 %v1522, %v1523
    %v1525 = vshll.u32 2475754826, %v1519
    %v1526 = vshrl.u32 2131351028, %v1520
    %v1527 = vor.u32 %v1525, %v1526
    %v1528 = vshll.u32 2131351028, %v1519
    %v1529 = vshrl.u32 2102212464, %v1520
    %v1530 = vor.u32 %v1528, %v1529
    %v1531 = vshll.u32 2102212464, %v1519
    %v1532 = vshrl.u32 920167782, %v1520
    %v1533 = vor.u32 %v1531, %v1532
    %v1534 = vshll.u32 920167782, %v1519
    %v1535 = vshrl.u32 1326507024, %v1520
    %v1536 = vor.u32 %v1534, %v1535
    %vm1537 = vcmp.lt.s32.totalorder %v1518, 1
    %vm1538 = vcmp.lt.s32.totalorder %v1518, 2
    %vm1539 = vcmp.lt.s32.totalorder %v1518, 3
    %vm1540 = vcmp.lt.s32.totalorder %v1518, 4
    %v1541 = vsel %vm1537, %v1521, %v1524
    %v1542 = vsel %vm1540, %v1530, 2102212464
    %v1543 = vsel %vm1539, %v1527, %v1542
    %v1544 = vsel %vm1538, %v1541, %v1543
    %v1545 = vsel %vm1537, %v1524, %v1527
    %v1546 = vsel %vm1540, %v1533, 920167782
    %v1547 = vsel %vm1539, %v1530, %v1546
    %v1548 = vsel %vm1538, %v1545, %v1547
    %v1549 = vsel %vm1537, %v1527, %v1530
    %v1550 = vsel %vm1540, %v1536, 1326507024
    %v1551 = vsel %vm1539, %v1533, %v1550
    %v1552 = vsel %vm1538, %v1549, %v1551
    %v1553 = vshll.u32 %v1513, 8
    %v1554 = vmul.u32.u64.compose %v1553, %v1552
    %v1555 = vextract.low.u32 %v1554
    %v1556 = vextract.high.u32 %v1554
    %v1557 = vmul.u32.u64.compose %v1553, %v1548
    %v1558 = vextract.low.u32 %v1557
    %v1559 = vextract.high.u32 %v1557
    %v1560 = vmul.u32 %v1553, %v1544
    %v1561 = vadd.s32 %v1556, %v1558
    %vm1562 = vc.u32 %v1556, %v1558
    %v1563 = vadd.s32 %v1559, 1
    %v1564 = vsel %vm1562, %v1563, %v1559
    %v1565 = vadd.s32 %v1560, %v1564
    %v1566 = vadd.s32 %v1565, 536870912
    %v1567 = vshrl.u32 %v1566, 30
    %v1568 = vshll.u32 %v1567, 30
    %v1569 = vsub.s32 %v1565, %v1568
    %vm1570 = vcmp.lt.s32.totalorder %v1569, 0
    %v1571 = vsub.s32 0, %v1569
    %v1572 = vsel %vm1570, %v1571, %v1569
    %v1573 = vclz %v1572
    %v1574 = vsub.s32 %v1573, 2
    %vm1575 = vcmp.gt.s32.totalorder 0, %v1574
    %v1576 = vsel %vm1575, 0, %v1574
    %v1577 = vsub.s32 32, %v1576
    %v1578 = vshll.u32 %v1569, %v1576
    %v1579 = vshrl.u32 %v1561, %v1577
    %v1580 = vor.u32 %v1578, %v1579
    %v1581 = vsub.s32 4294967266, %v1576
    %v1582 = vadd.s32 %v1581, 127
    %v1583 = vshll.u32 %v1582, 23
    %v1584 = vor.u32 4788187, %v1583
    %v1585 = vand.u32 2147483647, %v1584
    %v1587 = vcvt.s32.f32 %v1580
    %v1588 = vmul.f32 %v1587, %v1585
    %v1589 = vxor.u32 %v1588, 2147483648
    %v1590 = vsel %vm1507, %v1589, %v1588
    %v1591 = vsub.s32 4, %v1567
    %v1592 = vsel %vm1507, %v1591, %v1567
    %v1593 = vsel %vm1506, %v353, %v1590
    %v1594 = vsel %vm1506, 0, %v1592
    %v1595 = vcosq.f32.pop %v1593
    %v1596 = vsinq.f32.pop %v1593
    %vm1597 = vweird.f32 %v353
    %v1598 = vadd.s32 %v1594, 3
    %v1599 = vand.u32 %v1598, 3
    %vm1600 = vcmp.lt.s32.totalorder %v1599, 2
    %vm1601 = vcmp.eq.s32.totalorder %v1599, 0
    %v1602 = vxor.u32 %v1596, 2147483648
    %v1603 = vsel %vm1601, %v1595, %v1602
    %vm1604 = vcmp.eq.s32.totalorder %v1599, 2
    %v1605 = vxor.u32 %v1595, 2147483648
    %v1606 = vsel %vm1604, %v1605, %v1596
    %v1607 = vsel %vm1600, %v1603, %v1606
    %v1608 = vsel %vm1597, nan, %v1607
    %v1609 = vand.u32 2147483647, %v354
    %vm1610 = vcmp.le.f32.partialorder %v1609, 0.7853982
    %vm1611 = vcmp.lt.s32.totalorder %v354, 0
    %v1612 = vand.u32 %v354, 2139095040
    %v1613 = vshrl.u32 %v1612, 23
    %v1614 = vsub.s32 %v1613, 127
    %v1615 = vand.u32 2147483647, %v354
    %v1616 = vand.u32 %v1615, 8388607
    %v1617 = vor.u32 %v1616, 8388608
    %v1618 = vsub.s32 0, %v1617
    %v1619 = vadd.s32 %v1614, 1
    %vm1620 = vcmp.gt.s32.totalorder %v1619, 0
    %v1621 = vsel %vm1620, %v1619, 0
    %v1622 = vshrl.u32 %v1621, 5
    %v1623 = vand.u32 %v1621, 31
    %v1624 = vsub.s32 32, %v1623
    %v1625 = vshrl.u32 683565275, %v1624
    %v1626 = vshll.u32 683565275, %v1623
    %v1627 = vshrl.u32 2475754826, %v1624
    %v1628 = vor.u32 %v1626, %v1627
    %v1629 = vshll.u32 2475754826, %v1623
    %v1630 = vshrl.u32 2131351028, %v1624
    %v1631 = vor.u32 %v1629, %v1630
    %v1632 = vshll.u32 2131351028, %v1623
    %v1633 = vshrl.u32 2102212464, %v1624
    %v1634 = vor.u32 %v1632, %v1633
    %v1635 = vshll.u32 2102212464, %v1623
    %v1636 = vshrl.u32 920167782, %v1624
    %v1637 = vor.u32 %v1635, %v1636
    %v1638 = vshll.u32 920167782, %v1623
    %v1639 = vshrl.u32 1326507024, %v1624
    %v1640 = vor.u32 %v1638, %v1639
    %vm1641 = vcmp.lt.s32.totalorder %v1622, 1
    %vm1642 = vcmp.lt.s32.totalorder %v1622, 2
    %vm1643 = vcmp.lt.s32.totalorder %v1622, 3
    %vm1644 = vcmp.lt.s32.totalorder %v1622, 4
    %v1645 = vsel %vm1641, %v1625, %v1628
    %v1646 = vsel %vm1644, %v1634, 2102212464
    %v1647 = vsel %vm1643, %v1631, %v1646
    %v1648 = vsel %vm1642, %v1645, %v1647
    %v1649 = vsel %vm1641, %v1628, %v1631
    %v1650 = vsel %vm1644, %v1637, 920167782
    %v1651 = vsel %vm1643, %v1634, %v1650
    %v1652 = vsel %vm1642, %v1649, %v1651
    %v1653 = vsel %vm1641, %v1631, %v1634
    %v1654 = vsel %vm1644, %v1640, 1326507024
    %v1655 = vsel %vm1643, %v1637, %v1654
    %v1656 = vsel %vm1642, %v1653, %v1655
    %v1657 = vshll.u32 %v1617, 8
    %v1658 = vmul.u32.u64.compose %v1657, %v1656
    %v1659 = vextract.low.u32 %v1658
    %v1660 = vextract.high.u32 %v1658
    %v1661 = vmul.u32.u64.compose %v1657, %v1652
    %v1662 = vextract.low.u32 %v1661
    %v1663 = vextract.high.u32 %v1661
    %v1664 = vmul.u32 %v1657, %v1648
    %v1665 = vadd.s32 %v1660, %v1662
    %vm1666 = vc.u32 %v1660, %v1662
    %v1667 = vadd.s32 %v1663, 1
    %v1668 = vsel %vm1666, %v1667, %v1663
    %v1669 = vadd.s32 %v1664, %v1668
    %v1670 = vadd.s32 %v1669, 536870912
    %v1671 = vshrl.u32 %v1670, 30
    %v1672 = vshll.u32 %v1671, 30
    %v1673 = vsub.s32 %v1669, %v1672
    %vm1674 = vcmp.lt.s32.totalorder %v1673, 0
    %v1675 = vsub.s32 0, %v1673
    %v1676 = vsel %vm1674, %v1675, %v1673
    %v1677 = vclz %v1676
    %v1678 = vsub.s32 %v1677, 2
    %vm1679 = vcmp.gt.s32.totalorder 0, %v1678
    %v1680 = vsel %vm1679, 0, %v1678
    %v1681 = vsub.s32 32, %v1680
    %v1682 = vshll.u32 %v1673, %v1680
    %v1683 = vshrl.u32 %v1665, %v1681
    %v1684 = vor.u32 %v1682, %v1683
    %v1685 = vsub.s32 4294967266, %v1680
    %v1686 = vadd.s32 %v1685, 127
    %v1687 = vshll.u32 %v1686, 23
    %v1688 = vor.u32 4788187, %v1687
    %v1689 = vand.u32 2147483647, %v1688
    %v1691 = vcvt.s32.f32 %v1684
    %v1692 = vmul.f32 %v1691, %v1689
    %v1693 = vxor.u32 %v1692, 2147483648
    %v1694 = vsel %vm1611, %v1693, %v1692
    %v1695 = vsub.s32 4, %v1671
    %v1696 = vsel %vm1611, %v1695, %v1671
    %v1697 = vsel %vm1610, %v354, %v1694
    %v1698 = vsel %vm1610, 0, %v1696
    %v1699 = vcosq.f32.pop %v1697
    %v1700 = vsinq.f32.pop %v1697
    %vm1701 = vweird.f32 %v354
    %v1702 = vadd.s32 %v1698, 3
    %v1703 = vand.u32 %v1702, 3
    %vm1704 = vcmp.lt.s32.totalorder %v1703, 2
    %vm1705 = vcmp.eq.s32.totalorder %v1703, 0
    %v1706 = vxor.u32 %v1700, 2147483648
    %v1707 = vsel %vm1705, %v1699, %v1706
    %vm1708 = vcmp.eq.s32.totalorder %v1703, 2
    %v1709 = vxor.u32 %v1699, 2147483648
    %v1710 = vsel %vm1708, %v1709, %v1700
    %v1711 = vsel %vm1704, %v1707, %v1710
    %v1712 = vsel %vm1701, nan, %v1711
    %v1713 = vand.u32 2147483647, %v355
    %vm1714 = vcmp.le.f32.partialorder %v1713, 0.7853982
    %vm1715 = vcmp.lt.s32.totalorder %v355, 0
    %v1716 = vand.u32 %v355, 2139095040
    %v1717 = vshrl.u32 %v1716, 23
    %v1718 = vsub.s32 %v1717, 127
    %v1719 = vand.u32 2147483647, %v355
    %v1720 = vand.u32 %v1719, 8388607
    %v1721 = vor.u32 %v1720, 8388608
    %v1722 = vsub.s32 0, %v1721
    %v1723 = vadd.s32 %v1718, 1
    %vm1724 = vcmp.gt.s32.totalorder %v1723, 0
    %v1725 = vsel %vm1724, %v1723, 0
    %v1726 = vshrl.u32 %v1725, 5
    %v1727 = vand.u32 %v1725, 31
    %v1728 = vsub.s32 32, %v1727
    %v1729 = vshrl.u32 683565275, %v1728
    %v1730 = vshll.u32 683565275, %v1727
    %v1731 = vshrl.u32 2475754826, %v1728
    %v1732 = vor.u32 %v1730, %v1731
    %v1733 = vshll.u32 2475754826, %v1727
    %v1734 = vshrl.u32 2131351028, %v1728
    %v1735 = vor.u32 %v1733, %v1734
    %v1736 = vshll.u32 2131351028, %v1727
    %v1737 = vshrl.u32 2102212464, %v1728
    %v1738 = vor.u32 %v1736, %v1737
    %v1739 = vshll.u32 2102212464, %v1727
    %v1740 = vshrl.u32 920167782, %v1728
    %v1741 = vor.u32 %v1739, %v1740
    %v1742 = vshll.u32 920167782, %v1727
    %v1743 = vshrl.u32 1326507024, %v1728
    %v1744 = vor.u32 %v1742, %v1743
    %vm1745 = vcmp.lt.s32.totalorder %v1726, 1
    %vm1746 = vcmp.lt.s32.totalorder %v1726, 2
    %vm1747 = vcmp.lt.s32.totalorder %v1726, 3
    %vm1748 = vcmp.lt.s32.totalorder %v1726, 4
    %v1749 = vsel %vm1745, %v1729, %v1732
    %v1750 = vsel %vm1748, %v1738, 2102212464
    %v1751 = vsel %vm1747, %v1735, %v1750
    %v1752 = vsel %vm1746, %v1749, %v1751
    %v1753 = vsel %vm1745, %v1732, %v1735
    %v1754 = vsel %vm1748, %v1741, 920167782
    %v1755 = vsel %vm1747, %v1738, %v1754
    %v1756 = vsel %vm1746, %v1753, %v1755
    %v1757 = vsel %vm1745, %v1735, %v1738
    %v1758 = vsel %vm1748, %v1744, 1326507024
    %v1759 = vsel %vm1747, %v1741, %v1758
    %v1760 = vsel %vm1746, %v1757, %v1759
    %v1761 = vshll.u32 %v1721, 8
    %v1762 = vmul.u32.u64.compose %v1761, %v1760
    %v1763 = vextract.low.u32 %v1762
    %v1764 = vextract.high.u32 %v1762
    %v1765 = vmul.u32.u64.compose %v1761, %v1756
    %v1766 = vextract.low.u32 %v1765
    %v1767 = vextract.high.u32 %v1765
    %v1768 = vmul.u32 %v1761, %v1752
    %v1769 = vadd.s32 %v1764, %v1766
    %vm1770 = vc.u32 %v1764, %v1766
    %v1771 = vadd.s32 %v1767, 1
    %v1772 = vsel %vm1770, %v1771, %v1767
    %v1773 = vadd.s32 %v1768, %v1772
    %v1774 = vadd.s32 %v1773, 536870912
    %v1775 = vshrl.u32 %v1774, 30
    %v1776 = vshll.u32 %v1775, 30
    %v1777 = vsub.s32 %v1773, %v1776
    %vm1778 = vcmp.lt.s32.totalorder %v1777, 0
    %v1779 = vsub.s32 0, %v1777
    %v1780 = vsel %vm1778, %v1779, %v1777
    %v1781 = vclz %v1780
    %v1782 = vsub.s32 %v1781, 2
    %vm1783 = vcmp.gt.s32.totalorder 0, %v1782
    %v1784 = vsel %vm1783, 0, %v1782
    %v1785 = vsub.s32 32, %v1784
    %v1786 = vshll.u32 %v1777, %v1784
    %v1787 = vshrl.u32 %v1769, %v1785
    %v1788 = vor.u32 %v1786, %v1787
    %v1789 = vsub.s32 4294967266, %v1784
    %v1790 = vadd.s32 %v1789, 127
    %v1791 = vshll.u32 %v1790, 23
    %v1792 = vor.u32 4788187, %v1791
    %v1793 = vand.u32 2147483647, %v1792
    %v1795 = vcvt.s32.f32 %v1788
    %v1796 = vmul.f32 %v1795, %v1793
    %v1797 = vxor.u32 %v1796, 2147483648
    %v1798 = vsel %vm1715, %v1797, %v1796
    %v1799 = vsub.s32 4, %v1775
    %v1800 = vsel %vm1715, %v1799, %v1775
    %v1801 = vsel %vm1714, %v355, %v1798
    %v1802 = vsel %vm1714, 0, %v1800
    %v1803 = vcosq.f32.pop %v1801
    %v1804 = vsinq.f32.pop %v1801
    %vm1805 = vweird.f32 %v355
    %v1806 = vadd.s32 %v1802, 3
    %v1807 = vand.u32 %v1806, 3
    %vm1808 = vcmp.lt.s32.totalorder %v1807, 2
    %vm1809 = vcmp.eq.s32.totalorder %v1807, 0
    %v1810 = vxor.u32 %v1804, 2147483648
    %v1811 = vsel %vm1809, %v1803, %v1810
    %vm1812 = vcmp.eq.s32.totalorder %v1807, 2
    %v1813 = vxor.u32 %v1803, 2147483648
    %v1814 = vsel %vm1812, %v1813, %v1804
    %v1815 = vsel %vm1808, %v1811, %v1814
    %v1816 = vsel %vm1805, nan, %v1815
    %v1817 = vand.u32 2147483647, %v356
    %vm1818 = vcmp.le.f32.partialorder %v1817, 0.7853982
    %vm1819 = vcmp.lt.s32.totalorder %v356, 0
    %v1820 = vand.u32 %v356, 2139095040
    %v1821 = vshrl.u32 %v1820, 23
    %v1822 = vsub.s32 %v1821, 127
    %v1823 = vand.u32 2147483647, %v356
    %v1824 = vand.u32 %v1823, 8388607
    %v1825 = vor.u32 %v1824, 8388608
    %v1826 = vsub.s32 0, %v1825
    %v1827 = vadd.s32 %v1822, 1
    %vm1828 = vcmp.gt.s32.totalorder %v1827, 0
    %v1829 = vsel %vm1828, %v1827, 0
    %v1830 = vshrl.u32 %v1829, 5
    %v1831 = vand.u32 %v1829, 31
    %v1832 = vsub.s32 32, %v1831
    %v1833 = vshrl.u32 683565275, %v1832
    %v1834 = vshll.u32 683565275, %v1831
    %v1835 = vshrl.u32 2475754826, %v1832
    %v1836 = vor.u32 %v1834, %v1835
    %v1837 = vshll.u32 2475754826, %v1831
    %v1838 = vshrl.u32 2131351028, %v1832
    %v1839 = vor.u32 %v1837, %v1838
    %v1840 = vshll.u32 2131351028, %v1831
    %v1841 = vshrl.u32 2102212464, %v1832
    %v1842 = vor.u32 %v1840, %v1841
    %v1843 = vshll.u32 2102212464, %v1831
    %v1844 = vshrl.u32 920167782, %v1832
    %v1845 = vor.u32 %v1843, %v1844
    %v1846 = vshll.u32 920167782, %v1831
    %v1847 = vshrl.u32 1326507024, %v1832
    %v1848 = vor.u32 %v1846, %v1847
    %vm1849 = vcmp.lt.s32.totalorder %v1830, 1
    %vm1850 = vcmp.lt.s32.totalorder %v1830, 2
    %vm1851 = vcmp.lt.s32.totalorder %v1830, 3
    %vm1852 = vcmp.lt.s32.totalorder %v1830, 4
    %v1853 = vsel %vm1849, %v1833, %v1836
    %v1854 = vsel %vm1852, %v1842, 2102212464
    %v1855 = vsel %vm1851, %v1839, %v1854
    %v1856 = vsel %vm1850, %v1853, %v1855
    %v1857 = vsel %vm1849, %v1836, %v1839
    %v1858 = vsel %vm1852, %v1845, 920167782
    %v1859 = vsel %vm1851, %v1842, %v1858
    %v1860 = vsel %vm1850, %v1857, %v1859
    %v1861 = vsel %vm1849, %v1839, %v1842
    %v1862 = vsel %vm1852, %v1848, 1326507024
    %v1863 = vsel %vm1851, %v1845, %v1862
    %v1864 = vsel %vm1850, %v1861, %v1863
    %v1865 = vshll.u32 %v1825, 8
    %v1866 = vmul.u32.u64.compose %v1865, %v1864
    %v1867 = vextract.low.u32 %v1866
    %v1868 = vextract.high.u32 %v1866
    %v1869 = vmul.u32.u64.compose %v1865, %v1860
    %v1870 = vextract.low.u32 %v1869
    %v1871 = vextract.high.u32 %v1869
    %v1872 = vmul.u32 %v1865, %v1856
    %v1873 = vadd.s32 %v1868, %v1870
    %vm1874 = vc.u32 %v1868, %v1870
    %v1875 = vadd.s32 %v1871, 1
    %v1876 = vsel %vm1874, %v1875, %v1871
    %v1877 = vadd.s32 %v1872, %v1876
    %v1878 = vadd.s32 %v1877, 536870912
    %v1879 = vshrl.u32 %v1878, 30
    %v1880 = vshll.u32 %v1879, 30
    %v1881 = vsub.s32 %v1877, %v1880
    %vm1882 = vcmp.lt.s32.totalorder %v1881, 0
    %v1883 = vsub.s32 0, %v1881
    %v1884 = vsel %vm1882, %v1883, %v1881
    %v1885 = vclz %v1884
    %v1886 = vsub.s32 %v1885, 2
    %vm1887 = vcmp.gt.s32.totalorder 0, %v1886
    %v1888 = vsel %vm1887, 0, %v1886
    %v1889 = vsub.s32 32, %v1888
    %v1890 = vshll.u32 %v1881, %v1888
    %v1891 = vshrl.u32 %v1873, %v1889
    %v1892 = vor.u32 %v1890, %v1891
    %v1893 = vsub.s32 4294967266, %v1888
    %v1894 = vadd.s32 %v1893, 127
    %v1895 = vshll.u32 %v1894, 23
    %v1896 = vor.u32 4788187, %v1895
    %v1897 = vand.u32 2147483647, %v1896
    %v1899 = vcvt.s32.f32 %v1892
    %v1900 = vmul.f32 %v1899, %v1897
    %v1901 = vxor.u32 %v1900, 2147483648
    %v1902 = vsel %vm1819, %v1901, %v1900
    %v1903 = vsub.s32 4, %v1879
    %v1904 = vsel %vm1819, %v1903, %v1879
    %v1905 = vsel %vm1818, %v356, %v1902
    %v1906 = vsel %vm1818, 0, %v1904
    %v1907 = vcosq.f32.pop %v1905
    %v1908 = vsinq.f32.pop %v1905
    %vm1909 = vweird.f32 %v356
    %v1910 = vadd.s32 %v1906, 3
    %v1911 = vand.u32 %v1910, 3
    %vm1912 = vcmp.lt.s32.totalorder %v1911, 2
    %vm1913 = vcmp.eq.s32.totalorder %v1911, 0
    %v1914 = vxor.u32 %v1908, 2147483648
    %v1915 = vsel %vm1913, %v1907, %v1914
    %vm1916 = vcmp.eq.s32.totalorder %v1911, 2
    %v1917 = vxor.u32 %v1907, 2147483648
    %v1918 = vsel %vm1916, %v1917, %v1908
    %v1919 = vsel %vm1912, %v1915, %v1918
    %v1920 = vsel %vm1909, nan, %v1919
    %v1921 = vand.u32 2147483647, %v357
    %vm1922 = vcmp.le.f32.partialorder %v1921, 0.7853982
    %vm1923 = vcmp.lt.s32.totalorder %v357, 0
    %v1924 = vand.u32 %v357, 2139095040
    %v1925 = vshrl.u32 %v1924, 23
    %v1926 = vsub.s32 %v1925, 127
    %v1927 = vand.u32 2147483647, %v357
    %v1928 = vand.u32 %v1927, 8388607
    %v1929 = vor.u32 %v1928, 8388608
    %v1930 = vsub.s32 0, %v1929
    %v1931 = vadd.s32 %v1926, 1
    %vm1932 = vcmp.gt.s32.totalorder %v1931, 0
    %v1933 = vsel %vm1932, %v1931, 0
    %v1934 = vshrl.u32 %v1933, 5
    %v1935 = vand.u32 %v1933, 31
    %v1936 = vsub.s32 32, %v1935
    %v1937 = vshrl.u32 683565275, %v1936
    %v1938 = vshll.u32 683565275, %v1935
    %v1939 = vshrl.u32 2475754826, %v1936
    %v1940 = vor.u32 %v1938, %v1939
    %v1941 = vshll.u32 2475754826, %v1935
    %v1942 = vshrl.u32 2131351028, %v1936
    %v1943 = vor.u32 %v1941, %v1942
    %v1944 = vshll.u32 2131351028, %v1935
    %v1945 = vshrl.u32 2102212464, %v1936
    %v1946 = vor.u32 %v1944, %v1945
    %v1947 = vshll.u32 2102212464, %v1935
    %v1948 = vshrl.u32 920167782, %v1936
    %v1949 = vor.u32 %v1947, %v1948
    %v1950 = vshll.u32 920167782, %v1935
    %v1951 = vshrl.u32 1326507024, %v1936
    %v1952 = vor.u32 %v1950, %v1951
    %vm1953 = vcmp.lt.s32.totalorder %v1934, 1
    %vm1954 = vcmp.lt.s32.totalorder %v1934, 2
    %vm1955 = vcmp.lt.s32.totalorder %v1934, 3
    %vm1956 = vcmp.lt.s32.totalorder %v1934, 4
    %v1957 = vsel %vm1953, %v1937, %v1940
    %v1958 = vsel %vm1956, %v1946, 2102212464
    %v1959 = vsel %vm1955, %v1943, %v1958
    %v1960 = vsel %vm1954, %v1957, %v1959
    %v1961 = vsel %vm1953, %v1940, %v1943
    %v1962 = vsel %vm1956, %v1949, 920167782
    %v1963 = vsel %vm1955, %v1946, %v1962
    %v1964 = vsel %vm1954, %v1961, %v1963
    %v1965 = vsel %vm1953, %v1943, %v1946
    %v1966 = vsel %vm1956, %v1952, 1326507024
    %v1967 = vsel %vm1955, %v1949, %v1966
    %v1968 = vsel %vm1954, %v1965, %v1967
    %v1969 = vshll.u32 %v1929, 8
    %v1970 = vmul.u32.u64.compose %v1969, %v1968
    %v1971 = vextract.low.u32 %v1970
    %v1972 = vextract.high.u32 %v1970
    %v1973 = vmul.u32.u64.compose %v1969, %v1964
    %v1974 = vextract.low.u32 %v1973
    %v1975 = vextract.high.u32 %v1973
    %v1976 = vmul.u32 %v1969, %v1960
    %v1977 = vadd.s32 %v1972, %v1974
    %vm1978 = vc.u32 %v1972, %v1974
    %v1979 = vadd.s32 %v1975, 1
    %v1980 = vsel %vm1978, %v1979, %v1975
    %v1981 = vadd.s32 %v1976, %v1980
    %v1982 = vadd.s32 %v1981, 536870912
    %v1983 = vshrl.u32 %v1982, 30
    %v1984 = vshll.u32 %v1983, 30
    %v1985 = vsub.s32 %v1981, %v1984
    %vm1986 = vcmp.lt.s32.totalorder %v1985, 0
    %v1987 = vsub.s32 0, %v1985
    %v1988 = vsel %vm1986, %v1987, %v1985
    %v1989 = vclz %v1988
    %v1990 = vsub.s32 %v1989, 2
    %vm1991 = vcmp.gt.s32.totalorder 0, %v1990
    %v1992 = vsel %vm1991, 0, %v1990
    %v1993 = vsub.s32 32, %v1992
    %v1994 = vshll.u32 %v1985, %v1992
    %v1995 = vshrl.u32 %v1977, %v1993
    %v1996 = vor.u32 %v1994, %v1995
    %v1997 = vsub.s32 4294967266, %v1992
    %v1998 = vadd.s32 %v1997, 127
    %v1999 = vshll.u32 %v1998, 23
    %v2000 = vor.u32 4788187, %v1999
    %v2001 = vand.u32 2147483647, %v2000
    %v2003 = vcvt.s32.f32 %v1996
    %v2004 = vmul.f32 %v2003, %v2001
    %v2005 = vxor.u32 %v2004, 2147483648
    %v2006 = vsel %vm1923, %v2005, %v2004
    %v2007 = vsub.s32 4, %v1983
    %v2008 = vsel %vm1923, %v2007, %v1983
    %v2009 = vsel %vm1922, %v357, %v2006
    %v2010 = vsel %vm1922, 0, %v2008
    %v2011 = vcosq.f32.pop %v2009
    %v2012 = vsinq.f32.pop %v2009
    %vm2013 = vweird.f32 %v357
    %v2014 = vadd.s32 %v2010, 3
    %v2015 = vand.u32 %v2014, 3
    %vm2016 = vcmp.lt.s32.totalorder %v2015, 2
    %vm2017 = vcmp.eq.s32.totalorder %v2015, 0
    %v2018 = vxor.u32 %v2012, 2147483648
    %v2019 = vsel %vm2017, %v2011, %v2018
    %vm2020 = vcmp.eq.s32.totalorder %v2015, 2
    %v2021 = vxor.u32 %v2011, 2147483648
    %v2022 = vsel %vm2020, %v2021, %v2012
    %v2023 = vsel %vm2016, %v2019, %v2022
    %v2024 = vsel %vm2013, nan, %v2023
    %v2025 = vsel %vm360, %v342, %v464
    %v2026 = vsel %vm360, %v343, %v568
    %v2027 = vsel %vm360, %v344, %v672
    %v2028 = vsel %vm360, %v345, %v776
    %v2029 = vsel %vm360, %v346, %v880
    %v2030 = vsel %vm360, %v347, %v984
    %v2031 = vsel %vm360, %v348, %v1088
    %v2032 = vsel %vm360, %v349, %v1192
    %v2033 = vsel %vm360, %v350, %v1296
    %v2034 = vsel %vm360, %v351, %v1400
    %v2035 = vsel %vm360, %v352, %v1504
    %v2036 = vsel %vm360, %v353, %v1608
    %v2037 = vsel %vm360, %v354, %v1712
    %v2038 = vsel %vm360, %v355, %v1816
    %v2039 = vsel %vm360, %v356, %v1920
    %v2040 = vsel %vm360, %v357, %v2024
    %v2041 = vld [vmem:[%s19] sm:$0xf]
    %v2042 = vld [vmem:[%s21] sm:$0x1]
    %v2044 = vlaneseq
    %v2045 = vshrl.u32 %v2044, 7
    %v2046 = vsub.s32 0, %v2045
    %v2047 = vrot.slane %v2042, %v2046
    %vm2049 = vcmask 31744
    %v2051 = vsel %vm2049, %v2025, 0
    %v2054 = vsel %vm2049, %v2026, 0
    %v2057 = vsel %vm2049, %v2027, 0
    %v2060 = vsel %vm2049, %v2028, 0
    %v2063 = vsel %vm2049, %v2029, 0
    %v2066 = vsel %vm2049, %v2030, 0
    %v2069 = vsel %vm2049, %v2031, 0
    %v2072 = vsel %vm2049, %v2032, 0
    %v2075 = vsel %vm2049, %v2033, 0
    %v2078 = vsel %vm2049, %v2034, 0
    %v2081 = vsel %vm2049, %v2035, 0
    %v2084 = vsel %vm2049, %v2036, 0
    %v2087 = vsel %vm2049, %v2037, 0
    %v2090 = vsel %vm2049, %v2038, 0
    %v2093 = vsel %vm2049, %v2039, 0
    %v2096 = vsel %vm2049, %v2040, 0
    %vm2098 = vcmask 1043456
    %v2100 = vsel %vm2098, %v2041, 0
    %2102 = vmatprep.subr.mxu0 0.0
    %2103 = vmatpush1.msra.mxu0 %v2100
    %2104 = vmatprep.subr.mxu0 0.0
    %2105 = vmatpush1.msra.mxu0 0.0
    %2106 = vmatprep.subr.mxu0 0.0
    %2107 = vmatpush1.msra.mxu0 0.0
    %2108 = vmatprep.subr.mxu0 0.0
    %2109 = vmatpush1.msra.mxu0 0.0
    %2110 = vmatprep.subr.mxu0 0.0
    %2111 = vmatpush1.msra.mxu0 0.0
    %2112 = vmatprep.subr.mxu0 0.0
    %2113 = vmatpush1.msra.mxu0 0.0
    %2114 = vmatprep.subr.mxu0 0.0
    %2115 = vmatpush1.msra.mxu0 0.0
    %2116 = vmatprep.subr.mxu0 0.0
    %2117 = vmatpush1.msra.mxu0 0.0
    %2118 = vmatprep.subr.mxu0 0.0
    %2119 = vmatpush1.msra.mxu0 0.0
    %2120 = vmatprep.subr.mxu0 0.0
    %2121 = vmatpush1.msra.mxu0 0.0
    %2122 = vmatprep.subr.mxu0 0.0
    %2123 = vmatpush1.msra.mxu0 0.0
    %2124 = vmatprep.subr.mxu0 0.0
    %2125 = vmatpush1.msra.mxu0 0.0
    %2126 = vmatprep.subr.mxu0 0.0
    %2127 = vmatpush1.msra.mxu0 0.0
    %2128 = vmatprep.subr.mxu0 0.0
    %2129 = vmatpush1.msra.mxu0 0.0
    %2130 = vmatprep.subr.mxu0 0.0
    %2131 = vmatpush1.msra.mxu0 0.0
    %2132 = vmatprep.subr.mxu0 0.0
    %2133 = vmatpush1.msra.mxu0 0.0
    %2134 = vmatprep.subr.mxu0 0.0
    %2135 = vmatpush1.msra.mxu0 0.0
    %2136 = vmatprep.subr.mxu0 0.0
    %2137 = vmatpush1.msra.mxu0 0.0
    %2138 = vmatprep.subr.mxu0 0.0
    %2139 = vmatpush1.msra.mxu0 0.0
    %2140 = vmatprep.subr.mxu0 0.0
    %2141 = vmatpush1.msra.mxu0 0.0
    %2142 = vmatprep.subr.mxu0 0.0
    %2143 = vmatpush1.msra.mxu0 0.0
    %2144 = vmatprep.subr.mxu0 0.0
    %2145 = vmatpush1.msra.mxu0 0.0
    %2146 = vmatprep.subr.mxu0 0.0
    %2147 = vmatpush1.msra.mxu0 0.0
    %2148 = vmatprep.subr.mxu0 0.0
    %2149 = vmatpush1.msra.mxu0 0.0
    %2150 = vmatprep.subr.mxu0 0.0
    %2151 = vmatpush1.msra.mxu0 0.0
    %2152 = vmatprep.subr.mxu0 0.0
    %2153 = vmatpush1.msra.mxu0 0.0
    %2154 = vmatprep.subr.mxu0 0.0
    %2155 = vmatpush1.msra.mxu0 0.0
    %2156 = vmatprep.subr.mxu0 0.0
    %2157 = vmatpush1.msra.mxu0 0.0
    %2158 = vmatprep.subr.mxu0 0.0
    %2159 = vmatpush1.msra.mxu0 0.0
    %2160 = vmatprep.subr.mxu0 0.0
    %2161 = vmatpush1.msra.mxu0 0.0
    %2162 = vmatprep.subr.mxu0 0.0
    %2163 = vmatpush1.msra.mxu0 0.0
    %2164 = vmatprep.subr.mxu0 0.0
    %2165 = vmatpush1.msra.mxu0 0.0
    %2166 = vmatprep.mubr.f32.mxu0 0.0
    %2167 = vmatmul.mubr.f32.gmra.mrb[0].mxu0 %v2051
    %v2168 = vpop.f32.mrb[0].mxu0
    %v2169 = vadd.f32 %v2047, %v2168
    %v2170 = vpop.f32.mrb[0].mxu0
    %2171 = vmatprep.mubr.f32.mxu0 0.0
    %2172 = vmatmul.mubr.f32.gmra.mrb[0].mxu0 %v2054
    %v2173 = vpop.f32.mrb[0].mxu0
    %v2174 = vadd.f32 %v2047, %v2173
    %v2175 = vpop.f32.mrb[0].mxu0
    %2176 = vmatprep.mubr.f32.mxu0 0.0
    %2177 = vmatmul.mubr.f32.gmra.mrb[0].mxu0 %v2057
    %v2178 = vpop.f32.mrb[0].mxu0
    %v2179 = vadd.f32 %v2047, %v2178
    %v2180 = vpop.f32.mrb[0].mxu0
    %2181 = vmatprep.mubr.f32.mxu0 0.0
    %2182 = vmatmul.mubr.f32.gmra.mrb[0].mxu0 %v2060
    %v2183 = vpop.f32.mrb[0].mxu0
    %v2184 = vadd.f32 %v2047, %v2183
    %v2185 = vpop.f32.mrb[0].mxu0
    %2186 = vmatprep.mubr.f32.mxu0 0.0
    %2187 = vmatmul.mubr.f32.gmra.mrb[0].mxu0 %v2063
    %v2188 = vpop.f32.mrb[0].mxu0
    %v2189 = vadd.f32 %v2047, %v2188
    %v2190 = vpop.f32.mrb[0].mxu0
    %2191 = vmatprep.mubr.f32.mxu0 0.0
    %2192 = vmatmul.mubr.f32.gmra.mrb[0].mxu0 %v2066
    %v2193 = vpop.f32.mrb[0].mxu0
    %v2194 = vadd.f32 %v2047, %v2193
    %v2195 = vpop.f32.mrb[0].mxu0
    %2196 = vmatprep.mubr.f32.mxu0 0.0
    %2197 = vmatmul.mubr.f32.gmra.mrb[0].mxu0 %v2069
    %v2198 = vpop.f32.mrb[0].mxu0
    %v2199 = vadd.f32 %v2047, %v2198
    %v2200 = vpop.f32.mrb[0].mxu0
    %2201 = vmatprep.mubr.f32.mxu0 0.0
    %2202 = vmatmul.mubr.f32.gmra.mrb[0].mxu0 %v2072
    %v2203 = vpop.f32.mrb[0].mxu0
    %v2204 = vadd.f32 %v2047, %v2203
    %v2205 = vpop.f32.mrb[0].mxu0
    %2206 = vmatprep.mubr.f32.mxu0 0.0
    %2207 = vmatmul.mubr.f32.gmra.mrb[0].mxu0 %v2075
    %v2208 = vpop.f32.mrb[0].mxu0
    %v2209 = vadd.f32 %v2047, %v2208
    %v2210 = vpop.f32.mrb[0].mxu0
    %2211 = vmatprep.mubr.f32.mxu0 0.0
    %2212 = vmatmul.mubr.f32.gmra.mrb[0].mxu0 %v2078
    %v2213 = vpop.f32.mrb[0].mxu0
    %v2214 = vadd.f32 %v2047, %v2213
    %v2215 = vpop.f32.mrb[0].mxu0
    %2216 = vmatprep.mubr.f32.mxu0 0.0
    %2217 = vmatmul.mubr.f32.gmra.mrb[0].mxu0 %v2081
    %v2218 = vpop.f32.mrb[0].mxu0
    %v2219 = vadd.f32 %v2047, %v2218
    %v2220 = vpop.f32.mrb[0].mxu0
    %2221 = vmatprep.mubr.f32.mxu0 0.0
    %2222 = vmatmul.mubr.f32.gmra.mrb[0].mxu0 %v2084
    %v2223 = vpop.f32.mrb[0].mxu0
    %v2224 = vadd.f32 %v2047, %v2223
    %v2225 = vpop.f32.mrb[0].mxu0
    %2226 = vmatprep.mubr.f32.mxu0 0.0
    %2227 = vmatmul.mubr.f32.gmra.mrb[0].mxu0 %v2087
    %v2228 = vpop.f32.mrb[0].mxu0
    %v2229 = vadd.f32 %v2047, %v2228
    %v2230 = vpop.f32.mrb[0].mxu0
    %2231 = vmatprep.mubr.f32.mxu0 0.0
    %2232 = vmatmul.mubr.f32.gmra.mrb[0].mxu0 %v2090
    %v2233 = vpop.f32.mrb[0].mxu0
    %v2234 = vadd.f32 %v2047, %v2233
    %v2235 = vpop.f32.mrb[0].mxu0
    %2236 = vmatprep.mubr.f32.mxu0 0.0
    %2237 = vmatmul.mubr.f32.gmra.mrb[0].mxu0 %v2093
    %v2238 = vpop.f32.mrb[0].mxu0
    %v2239 = vadd.f32 %v2047, %v2238
    %v2240 = vpop.f32.mrb[0].mxu0
    %2241 = vmatprep.mubr.f32.mxu0 0.0
    %2242 = vmatmul.mubr.f32.gmra.mrb[0].mxu0 %v2096
    %v2243 = vpop.f32.mrb[0].mxu0
    %v2244 = vadd.f32 %v2047, %v2243
    %v2245 = vpop.f32.mrb[0].mxu0
    %2246 = vdwg.mxu0
    %v2247 = vld [vmem:[%s15] sm:$0xf]
    %v2248 = vld [vmem:[%s17] sm:$0xf]
    %v2249 = vld [vmem:[%s23] sm:$0xf]
    %v2250 = vld [vmem:[%s25] sm:$0xf]
    %v2251 = vld [vmem:[%s27] sm:$0x3]
    %v2252 = vld [vmem:[%s29] sm:$0x1]
    %vm2253 = vcmp.eq.s32.totalorder %v264, 0
    %v2254 = vld [vmem:[%s1] sm:$0x1]
    %v2255 = vmul.f32 %v2254, 2.2918313
    %2257 = vset.pattern.permute.xlu0 0
    %2258 = vperm.xlu0 %2257, %v2247
    %v2259 = vpop.permute.xlu0 %2258
    %v2261 = vlaneseq
    %v2262 = vshrl.u32 %v2261, 7
    %v2263 = vsub.s32 0, %v2262
    %v2264 = vrot.slane %v2255, %v2263
    %v2265 = vmul.f32 %v2259, %v2264
    %2267 = vset.pattern.permute.xlu0 0
    %2268 = vperm.xlu0 %2267, %v2248
    %v2269 = vpop.permute.xlu0 %2268
    %v2271 = vadd.f32 %v2265, %v2269
    %v2272 = vand.u32 2147483647, %v2271
    %vm2273 = vcmp.le.f32.partialorder %v2272, 0.7853982
    %vm2274 = vcmp.lt.s32.totalorder %v2271, 0
    %v2275 = vand.u32 %v2271, 2139095040
    %v2276 = vshrl.u32 %v2275, 23
    %v2277 = vsub.s32 %v2276, 127
    %v2278 = vand.u32 2147483647, %v2271
    %v2279 = vand.u32 %v2278, 8388607
    %v2280 = vor.u32 %v2279, 8388608
    %v2281 = vsub.s32 0, %v2280
    %v2282 = vadd.s32 %v2277, 1
    %vm2283 = vcmp.gt.s32.totalorder %v2282, 0
    %v2284 = vsel %vm2283, %v2282, 0
    %v2285 = vshrl.u32 %v2284, 5
    %v2286 = vand.u32 %v2284, 31
    %v2287 = vsub.s32 32, %v2286
    %v2288 = vshrl.u32 683565275, %v2287
    %v2289 = vshll.u32 683565275, %v2286
    %v2290 = vshrl.u32 2475754826, %v2287
    %v2291 = vor.u32 %v2289, %v2290
    %v2292 = vshll.u32 2475754826, %v2286
    %v2293 = vshrl.u32 2131351028, %v2287
    %v2294 = vor.u32 %v2292, %v2293
    %v2295 = vshll.u32 2131351028, %v2286
    %v2296 = vshrl.u32 2102212464, %v2287
    %v2297 = vor.u32 %v2295, %v2296
    %v2298 = vshll.u32 2102212464, %v2286
    %v2299 = vshrl.u32 920167782, %v2287
    %v2300 = vor.u32 %v2298, %v2299
    %v2301 = vshll.u32 920167782, %v2286
    %v2302 = vshrl.u32 1326507024, %v2287
    %v2303 = vor.u32 %v2301, %v2302
    %vm2304 = vcmp.lt.s32.totalorder %v2285, 1
    %vm2305 = vcmp.lt.s32.totalorder %v2285, 2
    %vm2306 = vcmp.lt.s32.totalorder %v2285, 3
    %vm2307 = vcmp.lt.s32.totalorder %v2285, 4
    %v2308 = vsel %vm2304, %v2288, %v2291
    %v2309 = vsel %vm2307, %v2297, 2102212464
    %v2310 = vsel %vm2306, %v2294, %v2309
    %v2311 = vsel %vm2305, %v2308, %v2310
    %v2312 = vsel %vm2304, %v2291, %v2294
    %v2313 = vsel %vm2307, %v2300, 920167782
    %v2314 = vsel %vm2306, %v2297, %v2313
    %v2315 = vsel %vm2305, %v2312, %v2314
    %v2316 = vsel %vm2304, %v2294, %v2297
    %v2317 = vsel %vm2307, %v2303, 1326507024
    %v2318 = vsel %vm2306, %v2300, %v2317
    %v2319 = vsel %vm2305, %v2316, %v2318
    %v2320 = vshll.u32 %v2280, 8
    %v2321 = vmul.u32.u64.compose %v2320, %v2319
    %v2322 = vextract.low.u32 %v2321
    %v2323 = vextract.high.u32 %v2321
    %v2324 = vmul.u32.u64.compose %v2320, %v2315
    %v2325 = vextract.low.u32 %v2324
    %v2326 = vextract.high.u32 %v2324
    %v2327 = vmul.u32 %v2320, %v2311
    %v2328 = vadd.s32 %v2323, %v2325
    %vm2329 = vc.u32 %v2323, %v2325
    %v2330 = vadd.s32 %v2326, 1
    %v2331 = vsel %vm2329, %v2330, %v2326
    %v2332 = vadd.s32 %v2327, %v2331
    %v2333 = vadd.s32 %v2332, 536870912
    %v2334 = vshrl.u32 %v2333, 30
    %v2335 = vshll.u32 %v2334, 30
    %v2336 = vsub.s32 %v2332, %v2335
    %vm2337 = vcmp.lt.s32.totalorder %v2336, 0
    %v2338 = vsub.s32 0, %v2336
    %v2339 = vsel %vm2337, %v2338, %v2336
    %v2340 = vclz %v2339
    %v2341 = vsub.s32 %v2340, 2
    %vm2342 = vcmp.gt.s32.totalorder 0, %v2341
    %v2343 = vsel %vm2342, 0, %v2341
    %v2344 = vsub.s32 32, %v2343
    %v2345 = vshll.u32 %v2336, %v2343
    %v2346 = vshrl.u32 %v2328, %v2344
    %v2347 = vor.u32 %v2345, %v2346
    %v2348 = vsub.s32 4294967266, %v2343
    %v2349 = vadd.s32 %v2348, 127
    %v2350 = vshll.u32 %v2349, 23
    %v2351 = vor.u32 4788187, %v2350
    %v2352 = vand.u32 2147483647, %v2351
    %v2354 = vcvt.s32.f32 %v2347
    %v2355 = vmul.f32 %v2354, %v2352
    %v2356 = vxor.u32 %v2355, 2147483648
    %v2357 = vsel %vm2274, %v2356, %v2355
    %v2358 = vsub.s32 4, %v2334
    %v2359 = vsel %vm2274, %v2358, %v2334
    %v2360 = vsel %vm2273, %v2271, %v2357
    %v2361 = vsel %vm2273, 0, %v2359
    %v2362 = vcosq.f32.pop %v2360
    %v2363 = vsinq.f32.pop %v2360
    %vm2364 = vweird.f32 %v2271
    %v2365 = vadd.s32 %v2361, 3
    %v2366 = vand.u32 %v2365, 3
    %vm2367 = vcmp.lt.s32.totalorder %v2366, 2
    %vm2368 = vcmp.eq.s32.totalorder %v2366, 0
    %v2369 = vxor.u32 %v2363, 2147483648
    %v2370 = vsel %vm2368, %v2362, %v2369
    %vm2371 = vcmp.eq.s32.totalorder %v2366, 2
    %v2372 = vxor.u32 %v2362, 2147483648
    %v2373 = vsel %vm2371, %v2372, %v2363
    %v2374 = vsel %vm2367, %v2370, %v2373
    %v2375 = vsel %vm2364, nan, %v2374
    %v2376 = vsel %vm2253, %v2271, %v2375
    %2378 = vset.pattern.permute.xlu0 0
    %2379 = vperm.xlu0 %2378, %v2250
    %v2380 = vpop.permute.xlu0 %2379
    %v2383 = vsel %vm2049, %v2249, 0
    %v2386 = vsel %vm2098, %v2376, 0
    %2388 = vmatprep.subr.mxu0 0.0
    %2389 = vmatpush1.msra.mxu0 %v2386
    %2390 = vmatprep.subr.mxu0 0.0
    %2391 = vmatpush1.msra.mxu0 0.0
    %2392 = vmatprep.subr.mxu0 0.0
    %2393 = vmatpush1.msra.mxu0 0.0
    %2394 = vmatprep.subr.mxu0 0.0
    %2395 = vmatpush1.msra.mxu0 0.0
    %2396 = vmatprep.subr.mxu0 0.0
    %2397 = vmatpush1.msra.mxu0 0.0
    %2398 = vmatprep.subr.mxu0 0.0
    %2399 = vmatpush1.msra.mxu0 0.0
    %2400 = vmatprep.subr.mxu0 0.0
    %2401 = vmatpush1.msra.mxu0 0.0
    %2402 = vmatprep.subr.mxu0 0.0
    %2403 = vmatpush1.msra.mxu0 0.0
    %2404 = vmatprep.subr.mxu0 0.0
    %2405 = vmatpush1.msra.mxu0 0.0
    %2406 = vmatprep.subr.mxu0 0.0
    %2407 = vmatpush1.msra.mxu0 0.0
    %2408 = vmatprep.subr.mxu0 0.0
    %2409 = vmatpush1.msra.mxu0 0.0
    %2410 = vmatprep.subr.mxu0 0.0
    %2411 = vmatpush1.msra.mxu0 0.0
    %2412 = vmatprep.subr.mxu0 0.0
    %2413 = vmatpush1.msra.mxu0 0.0
    %2414 = vmatprep.subr.mxu0 0.0
    %2415 = vmatpush1.msra.mxu0 0.0
    %2416 = vmatprep.subr.mxu0 0.0
    %2417 = vmatpush1.msra.mxu0 0.0
    %2418 = vmatprep.subr.mxu0 0.0
    %2419 = vmatpush1.msra.mxu0 0.0
    %2420 = vmatprep.subr.mxu0 0.0
    %2421 = vmatpush1.msra.mxu0 0.0
    %2422 = vmatprep.subr.mxu0 0.0
    %2423 = vmatpush1.msra.mxu0 0.0
    %2424 = vmatprep.subr.mxu0 0.0
    %2425 = vmatpush1.msra.mxu0 0.0
    %2426 = vmatprep.subr.mxu0 0.0
    %2427 = vmatpush1.msra.mxu0 0.0
    %2428 = vmatprep.subr.mxu0 0.0
    %2429 = vmatpush1.msra.mxu0 0.0
    %2430 = vmatprep.subr.mxu0 0.0
    %2431 = vmatpush1.msra.mxu0 0.0
    %2432 = vmatprep.subr.mxu0 0.0
    %2433 = vmatpush1.msra.mxu0 0.0
    %2434 = vmatprep.subr.mxu0 0.0
    %2435 = vmatpush1.msra.mxu0 0.0
    %2436 = vmatprep.subr.mxu0 0.0
    %2437 = vmatpush1.msra.mxu0 0.0
    %2438 = vmatprep.subr.mxu0 0.0
    %2439 = vmatpush1.msra.mxu0 0.0
    %2440 = vmatprep.subr.mxu0 0.0
    %2441 = vmatpush1.msra.mxu0 0.0
    %2442 = vmatprep.subr.mxu0 0.0
    %2443 = vmatpush1.msra.mxu0 0.0
    %2444 = vmatprep.subr.mxu0 0.0
    %2445 = vmatpush1.msra.mxu0 0.0
    %2446 = vmatprep.subr.mxu0 0.0
    %2447 = vmatpush1.msra.mxu0 0.0
    %2448 = vmatprep.subr.mxu0 0.0
    %2449 = vmatpush1.msra.mxu0 0.0
    %2450 = vmatprep.subr.mxu0 0.0
    %2451 = vmatpush1.msra.mxu0 0.0
    %2452 = vmatprep.mubr.f32.mxu0 0.0
    %2453 = vmatmul.mubr.f32.gmra.mrb[0].mxu0 %v2383
    %v2454 = vpop.f32.mrb[0].mxu0
    %v2455 = vadd.f32 %v2380, %v2454
    %v2456 = vpop.f32.mrb[0].mxu0
    %2457 = vdwg.mxu0
    %v2459 = vsel %vm2049, %v2169, 0
    %v2462 = vsel %vm2049, %v2174, 0
    %v2465 = vsel %vm2049, %v2179, 0
    %v2468 = vsel %vm2049, %v2184, 0
    %v2471 = vsel %vm2049, %v2189, 0
    %v2474 = vsel %vm2049, %v2194, 0
    %v2477 = vsel %vm2049, %v2199, 0
    %v2480 = vsel %vm2049, %v2204, 0
    %v2483 = vsel %vm2049, %v2209, 0
    %v2486 = vsel %vm2049, %v2214, 0
    %v2489 = vsel %vm2049, %v2219, 0
    %v2492 = vsel %vm2049, %v2224, 0
    %v2495 = vsel %vm2049, %v2229, 0
    %v2498 = vsel %vm2049, %v2234, 0
    %v2501 = vsel %vm2049, %v2239, 0
    %v2504 = vsel %vm2049, %v2244, 0
    %v2507 = vsel %vm2098, %v2455, 0
    %2509 = vmatprep.subr.mxu0 0.0
    %2510 = vmatpush1.msra.mxu0 %v2507
    %2511 = vmatprep.subr.mxu0 0.0
    %2512 = vmatpush1.msra.mxu0 0.0
    %2513 = vmatprep.subr.mxu0 0.0
    %2514 = vmatpush1.msra.mxu0 0.0
    %2515 = vmatprep.subr.mxu0 0.0
    %2516 = vmatpush1.msra.mxu0 0.0
    %2517 = vmatprep.subr.mxu0 0.0
    %2518 = vmatpush1.msra.mxu0 0.0
    %2519 = vmatprep.subr.mxu0 0.0
    %2520 = vmatpush1.msra.mxu0 0.0
    %2521 = vmatprep.subr.mxu0 0.0
    %2522 = vmatpush1.msra.mxu0 0.0
    %2523 = vmatprep.subr.mxu0 0.0
    %2524 = vmatpush1.msra.mxu0 0.0
    %2525 = vmatprep.subr.mxu0 0.0
    %2526 = vmatpush1.msra.mxu0 0.0
    %2527 = vmatprep.subr.mxu0 0.0
    %2528 = vmatpush1.msra.mxu0 0.0
    %2529 = vmatprep.subr.mxu0 0.0
    %2530 = vmatpush1.msra.mxu0 0.0
    %2531 = vmatprep.subr.mxu0 0.0
    %2532 = vmatpush1.msra.mxu0 0.0
    %2533 = vmatprep.subr.mxu0 0.0
    %2534 = vmatpush1.msra.mxu0 0.0
    %2535 = vmatprep.subr.mxu0 0.0
    %2536 = vmatpush1.msra.mxu0 0.0
    %2537 = vmatprep.subr.mxu0 0.0
    %2538 = vmatpush1.msra.mxu0 0.0
    %2539 = vmatprep.subr.mxu0 0.0
    %2540 = vmatpush1.msra.mxu0 0.0
    %2541 = vmatprep.subr.mxu0 0.0
    %2542 = vmatpush1.msra.mxu0 0.0
    %2543 = vmatprep.subr.mxu0 0.0
    %2544 = vmatpush1.msra.mxu0 0.0
    %2545 = vmatprep.subr.mxu0 0.0
    %2546 = vmatpush1.msra.mxu0 0.0
    %2547 = vmatprep.subr.mxu0 0.0
    %2548 = vmatpush1.msra.mxu0 0.0
    %2549 = vmatprep.subr.mxu0 0.0
    %2550 = vmatpush1.msra.mxu0 0.0
    %2551 = vmatprep.subr.mxu0 0.0
    %2552 = vmatpush1.msra.mxu0 0.0
    %2553 = vmatprep.subr.mxu0 0.0
    %2554 = vmatpush1.msra.mxu0 0.0
    %2555 = vmatprep.subr.mxu0 0.0
    %2556 = vmatpush1.msra.mxu0 0.0
    %2557 = vmatprep.subr.mxu0 0.0
    %2558 = vmatpush1.msra.mxu0 0.0
    %2559 = vmatprep.subr.mxu0 0.0
    %2560 = vmatpush1.msra.mxu0 0.0
    %2561 = vmatprep.subr.mxu0 0.0
    %2562 = vmatpush1.msra.mxu0 0.0
    %2563 = vmatprep.subr.mxu0 0.0
    %2564 = vmatpush1.msra.mxu0 0.0
    %2565 = vmatprep.subr.mxu0 0.0
    %2566 = vmatpush1.msra.mxu0 0.0
    %2567 = vmatprep.subr.mxu0 0.0
    %2568 = vmatpush1.msra.mxu0 0.0
    %2569 = vmatprep.subr.mxu0 0.0
    %2570 = vmatpush1.msra.mxu0 0.0
    %2571 = vmatprep.subr.mxu0 0.0
    %2572 = vmatpush1.msra.mxu0 0.0
    %2573 = vmatprep.mubr.f32.mxu0 0.0
    %2574 = vmatmul.mubr.f32.gmra.mrb[0].mxu0 %v2459
    %v2575 = vpop.f32.mrb[0].mxu0
    %v2576 = vadd.f32 0.0, %v2575
    %v2577 = vpop.f32.mrb[0].mxu0
    %2578 = vmatprep.mubr.f32.mxu0 0.0
    %2579 = vmatmul.mubr.f32.gmra.mrb[0].mxu0 %v2462
    %v2580 = vpop.f32.mrb[0].mxu0
    %v2581 = vadd.f32 0.0, %v2580
    %v2582 = vpop.f32.mrb[0].mxu0
    %2583 = vmatprep.mubr.f32.mxu0 0.0
    %2584 = vmatmul.mubr.f32.gmra.mrb[0].mxu0 %v2465
    %v2585 = vpop.f32.mrb[0].mxu0
    %v2586 = vadd.f32 0.0, %v2585
    %v2587 = vpop.f32.mrb[0].mxu0
    %2588 = vmatprep.mubr.f32.mxu0 0.0
    %2589 = vmatmul.mubr.f32.gmra.mrb[0].mxu0 %v2468
    %v2590 = vpop.f32.mrb[0].mxu0
    %v2591 = vadd.f32 0.0, %v2590
    %v2592 = vpop.f32.mrb[0].mxu0
    %2593 = vmatprep.mubr.f32.mxu0 0.0
    %2594 = vmatmul.mubr.f32.gmra.mrb[0].mxu0 %v2471
    %v2595 = vpop.f32.mrb[0].mxu0
    %v2596 = vadd.f32 0.0, %v2595
    %v2597 = vpop.f32.mrb[0].mxu0
    %2598 = vmatprep.mubr.f32.mxu0 0.0
    %2599 = vmatmul.mubr.f32.gmra.mrb[0].mxu0 %v2474
    %v2600 = vpop.f32.mrb[0].mxu0
    %v2601 = vadd.f32 0.0, %v2600
    %v2602 = vpop.f32.mrb[0].mxu0
    %2603 = vmatprep.mubr.f32.mxu0 0.0
    %2604 = vmatmul.mubr.f32.gmra.mrb[0].mxu0 %v2477
    %v2605 = vpop.f32.mrb[0].mxu0
    %v2606 = vadd.f32 0.0, %v2605
    %v2607 = vpop.f32.mrb[0].mxu0
    %2608 = vmatprep.mubr.f32.mxu0 0.0
    %2609 = vmatmul.mubr.f32.gmra.mrb[0].mxu0 %v2480
    %v2610 = vpop.f32.mrb[0].mxu0
    %v2611 = vadd.f32 0.0, %v2610
    %v2612 = vpop.f32.mrb[0].mxu0
    %2613 = vmatprep.mubr.f32.mxu0 0.0
    %2614 = vmatmul.mubr.f32.gmra.mrb[0].mxu0 %v2483
    %v2615 = vpop.f32.mrb[0].mxu0
    %v2616 = vadd.f32 0.0, %v2615
    %v2617 = vpop.f32.mrb[0].mxu0
    %2618 = vmatprep.mubr.f32.mxu0 0.0
    %2619 = vmatmul.mubr.f32.gmra.mrb[0].mxu0 %v2486
    %v2620 = vpop.f32.mrb[0].mxu0
    %v2621 = vadd.f32 0.0, %v2620
    %v2622 = vpop.f32.mrb[0].mxu0
    %2623 = vmatprep.mubr.f32.mxu0 0.0
    %2624 = vmatmul.mubr.f32.gmra.mrb[0].mxu0 %v2489
    %v2625 = vpop.f32.mrb[0].mxu0
    %v2626 = vadd.f32 0.0, %v2625
    %v2627 = vpop.f32.mrb[0].mxu0
    %2628 = vmatprep.mubr.f32.mxu0 0.0
    %2629 = vmatmul.mubr.f32.gmra.mrb[0].mxu0 %v2492
    %v2630 = vpop.f32.mrb[0].mxu0
    %v2631 = vadd.f32 0.0, %v2630
    %v2632 = vpop.f32.mrb[0].mxu0
    %2633 = vmatprep.mubr.f32.mxu0 0.0
    %2634 = vmatmul.mubr.f32.gmra.mrb[0].mxu0 %v2495
    %v2635 = vpop.f32.mrb[0].mxu0
    %v2636 = vadd.f32 0.0, %v2635
    %v2637 = vpop.f32.mrb[0].mxu0
    %2638 = vmatprep.mubr.f32.mxu0 0.0
    %2639 = vmatmul.mubr.f32.gmra.mrb[0].mxu0 %v2498
    %v2640 = vpop.f32.mrb[0].mxu0
    %v2641 = vadd.f32 0.0, %v2640
    %v2642 = vpop.f32.mrb[0].mxu0
    %2643 = vmatprep.mubr.f32.mxu0 0.0
    %2644 = vmatmul.mubr.f32.gmra.mrb[0].mxu0 %v2501
    %v2645 = vpop.f32.mrb[0].mxu0
    %v2646 = vadd.f32 0.0, %v2645
    %v2647 = vpop.f32.mrb[0].mxu0
    %2648 = vmatprep.mubr.f32.mxu0 0.0
    %2649 = vmatmul.mubr.f32.gmra.mrb[0].mxu0 %v2504
    %v2650 = vpop.f32.mrb[0].mxu0
    %v2651 = vadd.f32 0.0, %v2650
    %v2652 = vpop.f32.mrb[0].mxu0
    %2653 = vdwg.mxu0
    %v2654 = vmul.f32 %v2576, 0.5
    %v2655 = vmul.f32 %v2581, 0.5
    %v2656 = vmul.f32 %v2586, 0.5
    %v2657 = vmul.f32 %v2591, 0.5
    %v2658 = vmul.f32 %v2596, 0.5
    %v2659 = vmul.f32 %v2601, 0.5
    %v2660 = vmul.f32 %v2606, 0.5
    %v2661 = vmul.f32 %v2611, 0.5
    %v2662 = vmul.f32 %v2616, 0.5
    %v2663 = vmul.f32 %v2621, 0.5
    %v2664 = vmul.f32 %v2626, 0.5
    %v2665 = vmul.f32 %v2631, 0.5
    %v2666 = vmul.f32 %v2636, 0.5
    %v2667 = vmul.f32 %v2641, 0.5
    %v2668 = vmul.f32 %v2646, 0.5
    %v2669 = vmul.f32 %v2651, 0.5
    %v2670 = vld [vmem:[%s3] sm:$0x1]
    %vm2671 = vcmp.eq.f32.partialorder %v2670, 0.0
    %v2672 = vsel %vm2671, 1, 0
    %v2673 = vlaneseq
    %v2674 = vshrl.u32 %v2673, 7
    %v2675 = vsub.s32 0, %v2674
    %v2676 = vrot.slane %v2672, %v2675
    %vm2677 = vcmp.eq.s32.totalorder %v2676, 1
    %v2678 = vsel %vm2677, -1e+09, %v2654
    %v2679 = vsel %vm2677, -1e+09, %v2655
    %v2680 = vsel %vm2677, -1e+09, %v2656
    %v2681 = vsel %vm2677, -1e+09, %v2657
    %v2682 = vsel %vm2677, -1e+09, %v2658
    %v2683 = vsel %vm2677, -1e+09, %v2659
    %v2684 = vsel %vm2677, -1e+09, %v2660
    %v2685 = vsel %vm2677, -1e+09, %v2661
    %v2686 = vsel %vm2677, -1e+09, %v2662
    %v2687 = vsel %vm2677, -1e+09, %v2663
    %v2688 = vsel %vm2677, -1e+09, %v2664
    %v2689 = vsel %vm2677, -1e+09, %v2665
    %v2690 = vsel %vm2677, -1e+09, %v2666
    %v2691 = vsel %vm2677, -1e+09, %v2667
    %v2692 = vsel %vm2677, -1e+09, %v2668
    %v2693 = vsel %vm2677, -1e+09, %v2669
    %vm2694 = vcmask 64512
    %v2695 = vsel %vm2694, %v2678, -inf
    %2696 = vmax.xlane.f32.xlu0 %v2695
    %v2697 = vpop.xlane.xlu0 %2696
    %v2698 = vsel %vm2694, %v2679, -inf
    %2699 = vmax.xlane.f32.xlu0 %v2698
    %v2700 = vpop.xlane.xlu0 %2699
    %v2701 = vsel %vm2694, %v2680, -inf
    %2702 = vmax.xlane.f32.xlu0 %v2701
    %v2703 = vpop.xlane.xlu0 %2702
    %v2704 = vsel %vm2694, %v2681, -inf
    %2705 = vmax.xlane.f32.xlu0 %v2704
    %v2706 = vpop.xlane.xlu0 %2705
    %v2707 = vsel %vm2694, %v2682, -inf
    %2708 = vmax.xlane.f32.xlu0 %v2707
    %v2709 = vpop.xlane.xlu0 %2708
    %v2710 = vsel %vm2694, %v2683, -inf
    %2711 = vmax.xlane.f32.xlu0 %v2710
    %v2712 = vpop.xlane.xlu0 %2711
    %v2713 = vsel %vm2694, %v2684, -inf
    %2714 = vmax.xlane.f32.xlu0 %v2713
    %v2715 = vpop.xlane.xlu0 %2714
    %v2716 = vsel %vm2694, %v2685, -inf
    %2717 = vmax.xlane.f32.xlu0 %v2716
    %v2718 = vpop.xlane.xlu0 %2717
    %v2719 = vsel %vm2694, %v2686, -inf
    %2720 = vmax.xlane.f32.xlu0 %v2719
    %v2721 = vpop.xlane.xlu0 %2720
    %v2722 = vsel %vm2694, %v2687, -inf
    %2723 = vmax.xlane.f32.xlu0 %v2722
    %v2724 = vpop.xlane.xlu0 %2723
    %v2725 = vsel %vm2694, %v2688, -inf
    %2726 = vmax.xlane.f32.xlu0 %v2725
    %v2727 = vpop.xlane.xlu0 %2726
    %v2728 = vsel %vm2694, %v2689, -inf
    %2729 = vmax.xlane.f32.xlu0 %v2728
    %v2730 = vpop.xlane.xlu0 %2729
    %v2731 = vsel %vm2694, %v2690, -inf
    %2732 = vmax.xlane.f32.xlu0 %v2731
    %v2733 = vpop.xlane.xlu0 %2732
    %v2734 = vsel %vm2694, %v2691, -inf
    %2735 = vmax.xlane.f32.xlu0 %v2734
    %v2736 = vpop.xlane.xlu0 %2735
    %v2737 = vsel %vm2694, %v2692, -inf
    %2738 = vmax.xlane.f32.xlu0 %v2737
    %v2739 = vpop.xlane.xlu0 %2738
    %v2740 = vsel %vm2694, %v2693, -inf
    %2741 = vmax.xlane.f32.xlu0 %v2740
    %v2742 = vpop.xlane.xlu0 %2741
    %v2743 = vsub.f32 %v2678, %v2697
    %v2744 = vsub.f32 %v2679, %v2700
    %v2745 = vsub.f32 %v2680, %v2703
    %v2746 = vsub.f32 %v2681, %v2706
    %v2747 = vsub.f32 %v2682, %v2709
    %v2748 = vsub.f32 %v2683, %v2712
    %v2749 = vsub.f32 %v2684, %v2715
    %v2750 = vsub.f32 %v2685, %v2718
    %v2751 = vsub.f32 %v2686, %v2721
    %v2752 = vsub.f32 %v2687, %v2724
    %v2753 = vsub.f32 %v2688, %v2727
    %v2754 = vsub.f32 %v2689, %v2730
    %v2755 = vsub.f32 %v2690, %v2733
    %v2756 = vsub.f32 %v2691, %v2736
    %v2757 = vsub.f32 %v2692, %v2739
    %v2758 = vsub.f32 %v2693, %v2742
    %v2759 = vmul.f32 %v2743, 1.442695
    %v2760 = vpow.pop %v2759
    %v2761 = vmul.f32 %v2744, 1.442695
    %v2762 = vpow.pop %v2761
    %v2763 = vmul.f32 %v2745, 1.442695
    %v2764 = vpow.pop %v2763
    %v2765 = vmul.f32 %v2746, 1.442695
    %v2766 = vpow.pop %v2765
    %v2767 = vmul.f32 %v2747, 1.442695
    %v2768 = vpow.pop %v2767
    %v2769 = vmul.f32 %v2748, 1.442695
    %v2770 = vpow.pop %v2769
    %v2771 = vmul.f32 %v2749, 1.442695
    %v2772 = vpow.pop %v2771
    %v2773 = vmul.f32 %v2750, 1.442695
    %v2774 = vpow.pop %v2773
    %v2775 = vmul.f32 %v2751, 1.442695
    %v2776 = vpow.pop %v2775
    %v2777 = vmul.f32 %v2752, 1.442695
    %v2778 = vpow.pop %v2777
    %v2779 = vmul.f32 %v2753, 1.442695
    %v2780 = vpow.pop %v2779
    %v2781 = vmul.f32 %v2754, 1.442695
    %v2782 = vpow.pop %v2781
    %v2783 = vmul.f32 %v2755, 1.442695
    %v2784 = vpow.pop %v2783
    %v2785 = vmul.f32 %v2756, 1.442695
    %v2786 = vpow.pop %v2785
    %v2787 = vmul.f32 %v2757, 1.442695
    %v2788 = vpow.pop %v2787
    %v2789 = vmul.f32 %v2758, 1.442695
    %v2790 = vpow.pop %v2789
    %v2791 = vsel %vm2694, %v2760, 0.0
    %2792 = vadd.xlane.f32.xlu0 %v2791
    %v2793 = vpop.xlane.xlu0 %2792
    %v2794 = vsel %vm2694, %v2762, 0.0
    %2795 = vadd.xlane.f32.xlu0 %v2794
    %v2796 = vpop.xlane.xlu0 %2795
    %v2797 = vsel %vm2694, %v2764, 0.0
    %2798 = vadd.xlane.f32.xlu0 %v2797
    %v2799 = vpop.xlane.xlu0 %2798
    %v2800 = vsel %vm2694, %v2766, 0.0
    %2801 = vadd.xlane.f32.xlu0 %v2800
    %v2802 = vpop.xlane.xlu0 %2801
    %v2803 = vsel %vm2694, %v2768, 0.0
    %2804 = vadd.xlane.f32.xlu0 %v2803
    %v2805 = vpop.xlane.xlu0 %2804
    %v2806 = vsel %vm2694, %v2770, 0.0
    %2807 = vadd.xlane.f32.xlu0 %v2806
    %v2808 = vpop.xlane.xlu0 %2807
    %v2809 = vsel %vm2694, %v2772, 0.0
    %2810 = vadd.xlane.f32.xlu0 %v2809
    %v2811 = vpop.xlane.xlu0 %2810
    %v2812 = vsel %vm2694, %v2774, 0.0
    %2813 = vadd.xlane.f32.xlu0 %v2812
    %v2814 = vpop.xlane.xlu0 %2813
    %v2815 = vsel %vm2694, %v2776, 0.0
    %2816 = vadd.xlane.f32.xlu0 %v2815
    %v2817 = vpop.xlane.xlu0 %2816
    %v2818 = vsel %vm2694, %v2778, 0.0
    %2819 = vadd.xlane.f32.xlu0 %v2818
    %v2820 = vpop.xlane.xlu0 %2819
    %v2821 = vsel %vm2694, %v2780, 0.0
    %2822 = vadd.xlane.f32.xlu0 %v2821
    %v2823 = vpop.xlane.xlu0 %2822
    %v2824 = vsel %vm2694, %v2782, 0.0
    %2825 = vadd.xlane.f32.xlu0 %v2824
    %v2826 = vpop.xlane.xlu0 %2825
    %v2827 = vsel %vm2694, %v2784, 0.0
    %2828 = vadd.xlane.f32.xlu0 %v2827
    %v2829 = vpop.xlane.xlu0 %2828
    %v2830 = vsel %vm2694, %v2786, 0.0
    %2831 = vadd.xlane.f32.xlu0 %v2830
    %v2832 = vpop.xlane.xlu0 %2831
    %v2833 = vsel %vm2694, %v2788, 0.0
    %2834 = vadd.xlane.f32.xlu0 %v2833
    %v2835 = vpop.xlane.xlu0 %2834
    %v2836 = vsel %vm2694, %v2790, 0.0
    %2837 = vadd.xlane.f32.xlu0 %v2836
    %v2838 = vpop.xlane.xlu0 %2837
    %v2839 = vrcp.pop %v2793
    %v2840 = vrcp.pop %v2796
    %v2841 = vrcp.pop %v2799
    %v2842 = vrcp.pop %v2802
    %v2843 = vrcp.pop %v2805
    %v2844 = vrcp.pop %v2808
    %v2845 = vrcp.pop %v2811
    %v2846 = vrcp.pop %v2814
    %v2847 = vrcp.pop %v2817
    %v2848 = vrcp.pop %v2820
    %v2849 = vrcp.pop %v2823
    %v2850 = vrcp.pop %v2826
    %v2851 = vrcp.pop %v2829
    %v2852 = vrcp.pop %v2832
    %v2853 = vrcp.pop %v2835
    %v2854 = vrcp.pop %v2838
    %v2855 = vmul.f32 %v2760, %v2839
    %v2856 = vmul.f32 %v2762, %v2840
    %v2857 = vmul.f32 %v2764, %v2841
    %v2858 = vmul.f32 %v2766, %v2842
    %v2859 = vmul.f32 %v2768, %v2843
    %v2860 = vmul.f32 %v2770, %v2844
    %v2861 = vmul.f32 %v2772, %v2845
    %v2862 = vmul.f32 %v2774, %v2846
    %v2863 = vmul.f32 %v2776, %v2847
    %v2864 = vmul.f32 %v2778, %v2848
    %v2865 = vmul.f32 %v2780, %v2849
    %v2866 = vmul.f32 %v2782, %v2850
    %v2867 = vmul.f32 %v2784, %v2851
    %v2868 = vmul.f32 %v2786, %v2852
    %v2869 = vmul.f32 %v2788, %v2853
    %v2870 = vmul.f32 %v2790, %v2854
    %v2871 = vld [vmem:[%s5] sm:$0xff]
    %v2872 = vld [vmem:[%s7] sm:$0xff]
    %2874 = vset.pattern.permute.xlu0 0
    %2875 = vperm.xlu0 %2874, %v2871
    %v2876 = vpop.permute.xlu0 %2875
    %v2878 = vlaneseq
    %v2879 = vshrl.u32 %v2878, 7
    %v2880 = vsub.s32 0, %v2879
    %v2881 = vrot.slane %v2251, %v2880
    %v2882 = vmul.f32 %v2876, %v2881
    %2884 = vset.pattern.permute.xlu0 0
    %2885 = vperm.xlu0 %2884, %v2872
    %v2886 = vpop.permute.xlu0 %2885
    %v2888 = vlaneseq
    %v2889 = vshrl.u32 %v2888, 7
    %v2890 = vsub.s32 1, %v2889
    %v2891 = vrot.slane %v2251, %v2890
    %v2892 = vmul.f32 %v2886, %v2891
    %v2893 = vadd.f32 %v2882, %v2892
    %v2895 = vlaneseq
    %v2896 = vshrl.u32 %v2895, 7
    %v2897 = vsub.s32 0, %v2896
    %v2898 = vrot.slane %v2252, %v2897
    %v2901 = vsel %vm2694, %v2855, 0
    %v2904 = vsel %vm2694, %v2856, 0
    %v2907 = vsel %vm2694, %v2857, 0
    %v2910 = vsel %vm2694, %v2858, 0
    %v2913 = vsel %vm2694, %v2859, 0
    %v2916 = vsel %vm2694, %v2860, 0
    %v2919 = vsel %vm2694, %v2861, 0
    %v2922 = vsel %vm2694, %v2862, 0
    %v2925 = vsel %vm2694, %v2863, 0
    %v2928 = vsel %vm2694, %v2864, 0
    %v2931 = vsel %vm2694, %v2865, 0
    %v2934 = vsel %vm2694, %v2866, 0
    %v2937 = vsel %vm2694, %v2867, 0
    %v2940 = vsel %vm2694, %v2868, 0
    %v2943 = vsel %vm2694, %v2869, 0
    %v2946 = vsel %vm2694, %v2870, 0
    %2948 = vmatprep.subr.mxu0 0.0
    %2949 = vmatpush1.msra.mxu0 %v2893
    %2950 = vmatprep.subr.mxu0 0.0
    %2951 = vmatpush1.msra.mxu0 0.0
    %2952 = vmatprep.subr.mxu0 0.0
    %2953 = vmatpush1.msra.mxu0 0.0
    %2954 = vmatprep.subr.mxu0 0.0
    %2955 = vmatpush1.msra.mxu0 0.0
    %2956 = vmatprep.subr.mxu0 0.0
    %2957 = vmatpush1.msra.mxu0 0.0
    %2958 = vmatprep.subr.mxu0 0.0
    %2959 = vmatpush1.msra.mxu0 0.0
    %2960 = vmatprep.subr.mxu0 0.0
    %2961 = vmatpush1.msra.mxu0 0.0
    %2962 = vmatprep.subr.mxu0 0.0
    %2963 = vmatpush1.msra.mxu0 0.0
    %2964 = vmatprep.subr.mxu0 0.0
    %2965 = vmatpush1.msra.mxu0 0.0
    %2966 = vmatprep.subr.mxu0 0.0
    %2967 = vmatpush1.msra.mxu0 0.0
    %2968 = vmatprep.subr.mxu0 0.0
    %2969 = vmatpush1.msra.mxu0 0.0
    %2970 = vmatprep.subr.mxu0 0.0
    %2971 = vmatpush1.msra.mxu0 0.0
    %2972 = vmatprep.subr.mxu0 0.0
    %2973 = vmatpush1.msra.mxu0 0.0
    %2974 = vmatprep.subr.mxu0 0.0
    %2975 = vmatpush1.msra.mxu0 0.0
    %2976 = vmatprep.subr.mxu0 0.0
    %2977 = vmatpush1.msra.mxu0 0.0
    %2978 = vmatprep.subr.mxu0 0.0
    %2979 = vmatpush1.msra.mxu0 0.0
    %2980 = vmatprep.subr.mxu0 0.0
    %2981 = vmatpush1.msra.mxu0 0.0
    %2982 = vmatprep.subr.mxu0 0.0
    %2983 = vmatpush1.msra.mxu0 0.0
    %2984 = vmatprep.subr.mxu0 0.0
    %2985 = vmatpush1.msra.mxu0 0.0
    %2986 = vmatprep.subr.mxu0 0.0
    %2987 = vmatpush1.msra.mxu0 0.0
    %2988 = vmatprep.subr.mxu0 0.0
    %2989 = vmatpush1.msra.mxu0 0.0
    %2990 = vmatprep.subr.mxu0 0.0
    %2991 = vmatpush1.msra.mxu0 0.0
    %2992 = vmatprep.subr.mxu0 0.0
    %2993 = vmatpush1.msra.mxu0 0.0
    %2994 = vmatprep.subr.mxu0 0.0
    %2995 = vmatpush1.msra.mxu0 0.0
    %2996 = vmatprep.subr.mxu0 0.0
    %2997 = vmatpush1.msra.mxu0 0.0
    %2998 = vmatprep.subr.mxu0 0.0
    %2999 = vmatpush1.msra.mxu0 0.0
    %3000 = vmatprep.subr.mxu0 0.0
    %3001 = vmatpush1.msra.mxu0 0.0
    %3002 = vmatprep.subr.mxu0 0.0
    %3003 = vmatpush1.msra.mxu0 0.0
    %3004 = vmatprep.subr.mxu0 0.0
    %3005 = vmatpush1.msra.mxu0 0.0
    %3006 = vmatprep.subr.mxu0 0.0
    %3007 = vmatpush1.msra.mxu0 0.0
    %3008 = vmatprep.subr.mxu0 0.0
    %3009 = vmatpush1.msra.mxu0 0.0
    %3010 = vmatprep.subr.mxu0 0.0
    %3011 = vmatpush1.msra.mxu0 0.0
    %3012 = vmatprep.mubr.f32.mxu0 0.0
    %3013 = vmatmul.mubr.f32.gmra.mrb[0].mxu0 %v2901
    %v3014 = vpop.f32.mrb[0].mxu0
    %v3015 = vadd.f32 %v2898, %v3014
    %v3016 = vpop.f32.mrb[0].mxu0
    %3017 = vmatprep.mubr.f32.mxu0 0.0
    %3018 = vmatmul.mubr.f32.gmra.mrb[0].mxu0 %v2904
    %v3019 = vpop.f32.mrb[0].mxu0
    %v3020 = vadd.f32 %v2898, %v3019
    %v3021 = vpop.f32.mrb[0].mxu0
    %3022 = vmatprep.mubr.f32.mxu0 0.0
    %3023 = vmatmul.mubr.f32.gmra.mrb[0].mxu0 %v2907
    %v3024 = vpop.f32.mrb[0].mxu0
    %v3025 = vadd.f32 %v2898, %v3024
    %v3026 = vpop.f32.mrb[0].mxu0
    %3027 = vmatprep.mubr.f32.mxu0 0.0
    %3028 = vmatmul.mubr.f32.gmra.mrb[0].mxu0 %v2910
    %v3029 = vpop.f32.mrb[0].mxu0
    %v3030 = vadd.f32 %v2898, %v3029
    %v3031 = vpop.f32.mrb[0].mxu0
    %3032 = vmatprep.mubr.f32.mxu0 0.0
    %3033 = vmatmul.mubr.f32.gmra.mrb[0].mxu0 %v2913
    %v3034 = vpop.f32.mrb[0].mxu0
    %v3035 = vadd.f32 %v2898, %v3034
    %v3036 = vpop.f32.mrb[0].mxu0
    %3037 = vmatprep.mubr.f32.mxu0 0.0
    %3038 = vmatmul.mubr.f32.gmra.mrb[0].mxu0 %v2916
    %v3039 = vpop.f32.mrb[0].mxu0
    %v3040 = vadd.f32 %v2898, %v3039
    %v3041 = vpop.f32.mrb[0].mxu0
    %3042 = vmatprep.mubr.f32.mxu0 0.0
    %3043 = vmatmul.mubr.f32.gmra.mrb[0].mxu0 %v2919
    %v3044 = vpop.f32.mrb[0].mxu0
    %v3045 = vadd.f32 %v2898, %v3044
    %v3046 = vpop.f32.mrb[0].mxu0
    %3047 = vmatprep.mubr.f32.mxu0 0.0
    %3048 = vmatmul.mubr.f32.gmra.mrb[0].mxu0 %v2922
    %v3049 = vpop.f32.mrb[0].mxu0
    %v3050 = vadd.f32 %v2898, %v3049
    %v3051 = vpop.f32.mrb[0].mxu0
    %3052 = vmatprep.mubr.f32.mxu0 0.0
    %3053 = vmatmul.mubr.f32.gmra.mrb[0].mxu0 %v2925
    %v3054 = vpop.f32.mrb[0].mxu0
    %v3055 = vadd.f32 %v2898, %v3054
    %v3056 = vpop.f32.mrb[0].mxu0
    %3057 = vmatprep.mubr.f32.mxu0 0.0
    %3058 = vmatmul.mubr.f32.gmra.mrb[0].mxu0 %v2928
    %v3059 = vpop.f32.mrb[0].mxu0
    %v3060 = vadd.f32 %v2898, %v3059
    %v3061 = vpop.f32.mrb[0].mxu0
    %3062 = vmatprep.mubr.f32.mxu0 0.0
    %3063 = vmatmul.mubr.f32.gmra.mrb[0].mxu0 %v2931
    %v3064 = vpop.f32.mrb[0].mxu0
    %v3065 = vadd.f32 %v2898, %v3064
    %v3066 = vpop.f32.mrb[0].mxu0
    %3067 = vmatprep.mubr.f32.mxu0 0.0
    %3068 = vmatmul.mubr.f32.gmra.mrb[0].mxu0 %v2934
    %v3069 = vpop.f32.mrb[0].mxu0
    %v3070 = vadd.f32 %v2898, %v3069
    %v3071 = vpop.f32.mrb[0].mxu0
    %3072 = vmatprep.mubr.f32.mxu0 0.0
    %3073 = vmatmul.mubr.f32.gmra.mrb[0].mxu0 %v2937
    %v3074 = vpop.f32.mrb[0].mxu0
    %v3075 = vadd.f32 %v2898, %v3074
    %v3076 = vpop.f32.mrb[0].mxu0
    %3077 = vmatprep.mubr.f32.mxu0 0.0
    %3078 = vmatmul.mubr.f32.gmra.mrb[0].mxu0 %v2940
    %v3079 = vpop.f32.mrb[0].mxu0
    %v3080 = vadd.f32 %v2898, %v3079
    %v3081 = vpop.f32.mrb[0].mxu0
    %3082 = vmatprep.mubr.f32.mxu0 0.0
    %3083 = vmatmul.mubr.f32.gmra.mrb[0].mxu0 %v2943
    %v3084 = vpop.f32.mrb[0].mxu0
    %v3085 = vadd.f32 %v2898, %v3084
    %v3086 = vpop.f32.mrb[0].mxu0
    %3087 = vmatprep.mubr.f32.mxu0 0.0
    %3088 = vmatmul.mubr.f32.gmra.mrb[0].mxu0 %v2946
    %v3089 = vpop.f32.mrb[0].mxu0
    %v3090 = vadd.f32 %v2898, %v3089
    %v3091 = vpop.f32.mrb[0].mxu0
    %3092 = vdwg.mxu0
    %v3093 = vld [vmem:[%s1 + $0x1] sm:$0x1]
    %v3094 = vmul.f32 %v3093, 2.2918313
    %v3095 = vlaneseq
    %v3096 = vshrl.u32 %v3095, 7
    %v3097 = vsub.s32 0, %v3096
    %v3098 = vrot.slane %v3094, %v3097
    %v3099 = vmul.f32 %v2259, %v3098
    %v3100 = vadd.f32 %v3099, %v2269
    %v3101 = vand.u32 2147483647, %v3100
    %vm3102 = vcmp.le.f32.partialorder %v3101, 0.7853982
    %vm3103 = vcmp.lt.s32.totalorder %v3100, 0
    %v3104 = vand.u32 %v3100, 2139095040
    %v3105 = vshrl.u32 %v3104, 23
    %v3106 = vsub.s32 %v3105, 127
    %v3107 = vand.u32 2147483647, %v3100
    %v3108 = vand.u32 %v3107, 8388607
    %v3109 = vor.u32 %v3108, 8388608
    %v3110 = vsub.s32 0, %v3109
    %v3111 = vadd.s32 %v3106, 1
    %vm3112 = vcmp.gt.s32.totalorder %v3111, 0
    %v3113 = vsel %vm3112, %v3111, 0
    %v3114 = vshrl.u32 %v3113, 5
    %v3115 = vand.u32 %v3113, 31
    %v3116 = vsub.s32 32, %v3115
    %v3117 = vshrl.u32 683565275, %v3116
    %v3118 = vshll.u32 683565275, %v3115
    %v3119 = vshrl.u32 2475754826, %v3116
    %v3120 = vor.u32 %v3118, %v3119
    %v3121 = vshll.u32 2475754826, %v3115
    %v3122 = vshrl.u32 2131351028, %v3116
    %v3123 = vor.u32 %v3121, %v3122
    %v3124 = vshll.u32 2131351028, %v3115
    %v3125 = vshrl.u32 2102212464, %v3116
    %v3126 = vor.u32 %v3124, %v3125
    %v3127 = vshll.u32 2102212464, %v3115
    %v3128 = vshrl.u32 920167782, %v3116
    %v3129 = vor.u32 %v3127, %v3128
    %v3130 = vshll.u32 920167782, %v3115
    %v3131 = vshrl.u32 1326507024, %v3116
    %v3132 = vor.u32 %v3130, %v3131
    %vm3133 = vcmp.lt.s32.totalorder %v3114, 1
    %vm3134 = vcmp.lt.s32.totalorder %v3114, 2
    %vm3135 = vcmp.lt.s32.totalorder %v3114, 3
    %vm3136 = vcmp.lt.s32.totalorder %v3114, 4
    %v3137 = vsel %vm3133, %v3117, %v3120
    %v3138 = vsel %vm3136, %v3126, 2102212464
    %v3139 = vsel %vm3135, %v3123, %v3138
    %v3140 = vsel %vm3134, %v3137, %v3139
    %v3141 = vsel %vm3133, %v3120, %v3123
    %v3142 = vsel %vm3136, %v3129, 920167782
    %v3143 = vsel %vm3135, %v3126, %v3142
    %v3144 = vsel %vm3134, %v3141, %v3143
    %v3145 = vsel %vm3133, %v3123, %v3126
    %v3146 = vsel %vm3136, %v3132, 1326507024
    %v3147 = vsel %vm3135, %v3129, %v3146
    %v3148 = vsel %vm3134, %v3145, %v3147
    %v3149 = vshll.u32 %v3109, 8
    %v3150 = vmul.u32.u64.compose %v3149, %v3148
    %v3151 = vextract.low.u32 %v3150
    %v3152 = vextract.high.u32 %v3150
    %v3153 = vmul.u32.u64.compose %v3149, %v3144
    %v3154 = vextract.low.u32 %v3153
    %v3155 = vextract.high.u32 %v3153
    %v3156 = vmul.u32 %v3149, %v3140
    %v3157 = vadd.s32 %v3152, %v3154
    %vm3158 = vc.u32 %v3152, %v3154
    %v3159 = vadd.s32 %v3155, 1
    %v3160 = vsel %vm3158, %v3159, %v3155
    %v3161 = vadd.s32 %v3156, %v3160
    %v3162 = vadd.s32 %v3161, 536870912
    %v3163 = vshrl.u32 %v3162, 30
    %v3164 = vshll.u32 %v3163, 30
    %v3165 = vsub.s32 %v3161, %v3164
    %vm3166 = vcmp.lt.s32.totalorder %v3165, 0
    %v3167 = vsub.s32 0, %v3165
    %v3168 = vsel %vm3166, %v3167, %v3165
    %v3169 = vclz %v3168
    %v3170 = vsub.s32 %v3169, 2
    %vm3171 = vcmp.gt.s32.totalorder 0, %v3170
    %v3172 = vsel %vm3171, 0, %v3170
    %v3173 = vsub.s32 32, %v3172
    %v3174 = vshll.u32 %v3165, %v3172
    %v3175 = vshrl.u32 %v3157, %v3173
    %v3176 = vor.u32 %v3174, %v3175
    %v3177 = vsub.s32 4294967266, %v3172
    %v3178 = vadd.s32 %v3177, 127
    %v3179 = vshll.u32 %v3178, 23
    %v3180 = vor.u32 4788187, %v3179
    %v3181 = vand.u32 2147483647, %v3180
    %v3183 = vcvt.s32.f32 %v3176
    %v3184 = vmul.f32 %v3183, %v3181
    %v3185 = vxor.u32 %v3184, 2147483648
    %v3186 = vsel %vm3103, %v3185, %v3184
    %v3187 = vsub.s32 4, %v3163
    %v3188 = vsel %vm3103, %v3187, %v3163
    %v3189 = vsel %vm3102, %v3100, %v3186
    %v3190 = vsel %vm3102, 0, %v3188
    %v3191 = vcosq.f32.pop %v3189
    %v3192 = vsinq.f32.pop %v3189
    %vm3193 = vweird.f32 %v3100
    %v3194 = vadd.s32 %v3190, 3
    %v3195 = vand.u32 %v3194, 3
    %vm3196 = vcmp.lt.s32.totalorder %v3195, 2
    %vm3197 = vcmp.eq.s32.totalorder %v3195, 0
    %v3198 = vxor.u32 %v3192, 2147483648
    %v3199 = vsel %vm3197, %v3191, %v3198
    %vm3200 = vcmp.eq.s32.totalorder %v3195, 2
    %v3201 = vxor.u32 %v3191, 2147483648
    %v3202 = vsel %vm3200, %v3201, %v3192
    %v3203 = vsel %vm3196, %v3199, %v3202
    %v3204 = vsel %vm3193, nan, %v3203
    %v3205 = vsel %vm2253, %v3100, %v3204
    %v3207 = vsel %vm2098, %v3205, 0
    %3209 = vmatprep.subr.mxu0 0.0
    %3210 = vmatpush1.msra.mxu0 %v3207
    %3211 = vmatprep.subr.mxu0 0.0
    %3212 = vmatpush1.msra.mxu0 0.0
    %3213 = vmatprep.subr.mxu0 0.0
    %3214 = vmatpush1.msra.mxu0 0.0
    %3215 = vmatprep.subr.mxu0 0.0
    %3216 = vmatpush1.msra.mxu0 0.0
    %3217 = vmatprep.subr.mxu0 0.0
    %3218 = vmatpush1.msra.mxu0 0.0
    %3219 = vmatprep.subr.mxu0 0.0
    %3220 = vmatpush1.msra.mxu0 0.0
    %3221 = vmatprep.subr.mxu0 0.0
    %3222 = vmatpush1.msra.mxu0 0.0
    %3223 = vmatprep.subr.mxu0 0.0
    %3224 = vmatpush1.msra.mxu0 0.0
    %3225 = vmatprep.subr.mxu0 0.0
    %3226 = vmatpush1.msra.mxu0 0.0
    %3227 = vmatprep.subr.mxu0 0.0
    %3228 = vmatpush1.msra.mxu0 0.0
    %3229 = vmatprep.subr.mxu0 0.0
    %3230 = vmatpush1.msra.mxu0 0.0
    %3231 = vmatprep.subr.mxu0 0.0
    %3232 = vmatpush1.msra.mxu0 0.0
    %3233 = vmatprep.subr.mxu0 0.0
    %3234 = vmatpush1.msra.mxu0 0.0
    %3235 = vmatprep.subr.mxu0 0.0
    %3236 = vmatpush1.msra.mxu0 0.0
    %3237 = vmatprep.subr.mxu0 0.0
    %3238 = vmatpush1.msra.mxu0 0.0
    %3239 = vmatprep.subr.mxu0 0.0
    %3240 = vmatpush1.msra.mxu0 0.0
    %3241 = vmatprep.subr.mxu0 0.0
    %3242 = vmatpush1.msra.mxu0 0.0
    %3243 = vmatprep.subr.mxu0 0.0
    %3244 = vmatpush1.msra.mxu0 0.0
    %3245 = vmatprep.subr.mxu0 0.0
    %3246 = vmatpush1.msra.mxu0 0.0
    %3247 = vmatprep.subr.mxu0 0.0
    %3248 = vmatpush1.msra.mxu0 0.0
    %3249 = vmatprep.subr.mxu0 0.0
    %3250 = vmatpush1.msra.mxu0 0.0
    %3251 = vmatprep.subr.mxu0 0.0
    %3252 = vmatpush1.msra.mxu0 0.0
    %3253 = vmatprep.subr.mxu0 0.0
    %3254 = vmatpush1.msra.mxu0 0.0
    %3255 = vmatprep.subr.mxu0 0.0
    %3256 = vmatpush1.msra.mxu0 0.0
    %3257 = vmatprep.subr.mxu0 0.0
    %3258 = vmatpush1.msra.mxu0 0.0
    %3259 = vmatprep.subr.mxu0 0.0
    %3260 = vmatpush1.msra.mxu0 0.0
    %3261 = vmatprep.subr.mxu0 0.0
    %3262 = vmatpush1.msra.mxu0 0.0
    %3263 = vmatprep.subr.mxu0 0.0
    %3264 = vmatpush1.msra.mxu0 0.0
    %3265 = vmatprep.subr.mxu0 0.0
    %3266 = vmatpush1.msra.mxu0 0.0
    %3267 = vmatprep.subr.mxu0 0.0
    %3268 = vmatpush1.msra.mxu0 0.0
    %3269 = vmatprep.subr.mxu0 0.0
    %3270 = vmatpush1.msra.mxu0 0.0
    %3271 = vmatprep.subr.mxu0 0.0
    %3272 = vmatpush1.msra.mxu0 0.0
    %3273 = vmatprep.mubr.f32.mxu0 0.0
    %3274 = vmatmul.mubr.f32.gmra.mrb[0].mxu0 %v2383
    %v3275 = vpop.f32.mrb[0].mxu0
    %v3276 = vadd.f32 %v2380, %v3275
    %v3277 = vpop.f32.mrb[0].mxu0
    %3278 = vdwg.mxu0
    %v3280 = vsel %vm2098, %v3276, 0
    %3282 = vmatprep.subr.mxu0 0.0
    %3283 = vmatpush1.msra.mxu0 %v3280
    %3284 = vmatprep.subr.mxu0 0.0
    %3285 = vmatpush1.msra.mxu0 0.0
    %3286 = vmatprep.subr.mxu0 0.0
    %3287 = vmatpush1.msra.mxu0 0.0
    %3288 = vmatprep.subr.mxu0 0.0
    %3289 = vmatpush1.msra.mxu0 0.0
    %3290 = vmatprep.subr.mxu0 0.0
    %3291 = vmatpush1.msra.mxu0 0.0
    %3292 = vmatprep.subr.mxu0 0.0
    %3293 = vmatpush1.msra.mxu0 0.0
    %3294 = vmatprep.subr.mxu0 0.0
    %3295 = vmatpush1.msra.mxu0 0.0
    %3296 = vmatprep.subr.mxu0 0.0
    %3297 = vmatpush1.msra.mxu0 0.0
    %3298 = vmatprep.subr.mxu0 0.0
    %3299 = vmatpush1.msra.mxu0 0.0
    %3300 = vmatprep.subr.mxu0 0.0
    %3301 = vmatpush1.msra.mxu0 0.0
    %3302 = vmatprep.subr.mxu0 0.0
    %3303 = vmatpush1.msra.mxu0 0.0
    %3304 = vmatprep.subr.mxu0 0.0
    %3305 = vmatpush1.msra.mxu0 0.0
    %3306 = vmatprep.subr.mxu0 0.0
    %3307 = vmatpush1.msra.mxu0 0.0
    %3308 = vmatprep.subr.mxu0 0.0
    %3309 = vmatpush1.msra.mxu0 0.0
    %3310 = vmatprep.subr.mxu0 0.0
    %3311 = vmatpush1.msra.mxu0 0.0
    %3312 = vmatprep.subr.mxu0 0.0
    %3313 = vmatpush1.msra.mxu0 0.0
    %3314 = vmatprep.subr.mxu0 0.0
    %3315 = vmatpush1.msra.mxu0 0.0
    %3316 = vmatprep.subr.mxu0 0.0
    %3317 = vmatpush1.msra.mxu0 0.0
    %3318 = vmatprep.subr.mxu0 0.0
    %3319 = vmatpush1.msra.mxu0 0.0
    %3320 = vmatprep.subr.mxu0 0.0
    %3321 = vmatpush1.msra.mxu0 0.0
    %3322 = vmatprep.subr.mxu0 0.0
    %3323 = vmatpush1.msra.mxu0 0.0
    %3324 = vmatprep.subr.mxu0 0.0
    %3325 = vmatpush1.msra.mxu0 0.0
    %3326 = vmatprep.subr.mxu0 0.0
    %3327 = vmatpush1.msra.mxu0 0.0
    %3328 = vmatprep.subr.mxu0 0.0
    %3329 = vmatpush1.msra.mxu0 0.0
    %3330 = vmatprep.subr.mxu0 0.0
    %3331 = vmatpush1.msra.mxu0 0.0
    %3332 = vmatprep.subr.mxu0 0.0
    %3333 = vmatpush1.msra.mxu0 0.0
    %3334 = vmatprep.subr.mxu0 0.0
    %3335 = vmatpush1.msra.mxu0 0.0
    %3336 = vmatprep.subr.mxu0 0.0
    %3337 = vmatpush1.msra.mxu0 0.0
    %3338 = vmatprep.subr.mxu0 0.0
    %3339 = vmatpush1.msra.mxu0 0.0
    %3340 = vmatprep.subr.mxu0 0.0
    %3341 = vmatpush1.msra.mxu0 0.0
    %3342 = vmatprep.subr.mxu0 0.0
    %3343 = vmatpush1.msra.mxu0 0.0
    %3344 = vmatprep.subr.mxu0 0.0
    %3345 = vmatpush1.msra.mxu0 0.0
    %3346 = vmatprep.mubr.f32.mxu0 0.0
    %3347 = vmatmul.mubr.f32.gmra.mrb[0].mxu0 %v2459
    %v3348 = vpop.f32.mrb[0].mxu0
    %v3349 = vadd.f32 0.0, %v3348
    %v3350 = vpop.f32.mrb[0].mxu0
    %3351 = vmatprep.mubr.f32.mxu0 0.0
    %3352 = vmatmul.mubr.f32.gmra.mrb[0].mxu0 %v2462
    %v3353 = vpop.f32.mrb[0].mxu0
    %v3354 = vadd.f32 0.0, %v3353
    %v3355 = vpop.f32.mrb[0].mxu0
    %3356 = vmatprep.mubr.f32.mxu0 0.0
    %3357 = vmatmul.mubr.f32.gmra.mrb[0].mxu0 %v2465
    %v3358 = vpop.f32.mrb[0].mxu0
    %v3359 = vadd.f32 0.0, %v3358
    %v3360 = vpop.f32.mrb[0].mxu0
    %3361 = vmatprep.mubr.f32.mxu0 0.0
    %3362 = vmatmul.mubr.f32.gmra.mrb[0].mxu0 %v2468
    %v3363 = vpop.f32.mrb[0].mxu0
    %v3364 = vadd.f32 0.0, %v3363
    %v3365 = vpop.f32.mrb[0].mxu0
    %3366 = vmatprep.mubr.f32.mxu0 0.0
    %3367 = vmatmul.mubr.f32.gmra.mrb[0].mxu0 %v2471
    %v3368 = vpop.f32.mrb[0].mxu0
    %v3369 = vadd.f32 0.0, %v3368
    %v3370 = vpop.f32.mrb[0].mxu0
    %3371 = vmatprep.mubr.f32.mxu0 0.0
    %3372 = vmatmul.mubr.f32.gmra.mrb[0].mxu0 %v2474
    %v3373 = vpop.f32.mrb[0].mxu0
    %v3374 = vadd.f32 0.0, %v3373
    %v3375 = vpop.f32.mrb[0].mxu0
    %3376 = vmatprep.mubr.f32.mxu0 0.0
    %3377 = vmatmul.mubr.f32.gmra.mrb[0].mxu0 %v2477
    %v3378 = vpop.f32.mrb[0].mxu0
    %v3379 = vadd.f32 0.0, %v3378
    %v3380 = vpop.f32.mrb[0].mxu0
    %3381 = vmatprep.mubr.f32.mxu0 0.0
    %3382 = vmatmul.mubr.f32.gmra.mrb[0].mxu0 %v2480
    %v3383 = vpop.f32.mrb[0].mxu0
    %v3384 = vadd.f32 0.0, %v3383
    %v3385 = vpop.f32.mrb[0].mxu0
    %3386 = vmatprep.mubr.f32.mxu0 0.0
    %3387 = vmatmul.mubr.f32.gmra.mrb[0].mxu0 %v2483
    %v3388 = vpop.f32.mrb[0].mxu0
    %v3389 = vadd.f32 0.0, %v3388
    %v3390 = vpop.f32.mrb[0].mxu0
    %3391 = vmatprep.mubr.f32.mxu0 0.0
    %3392 = vmatmul.mubr.f32.gmra.mrb[0].mxu0 %v2486
    %v3393 = vpop.f32.mrb[0].mxu0
    %v3394 = vadd.f32 0.0, %v3393
    %v3395 = vpop.f32.mrb[0].mxu0
    %3396 = vmatprep.mubr.f32.mxu0 0.0
    %3397 = vmatmul.mubr.f32.gmra.mrb[0].mxu0 %v2489
    %v3398 = vpop.f32.mrb[0].mxu0
    %v3399 = vadd.f32 0.0, %v3398
    %v3400 = vpop.f32.mrb[0].mxu0
    %3401 = vmatprep.mubr.f32.mxu0 0.0
    %3402 = vmatmul.mubr.f32.gmra.mrb[0].mxu0 %v2492
    %v3403 = vpop.f32.mrb[0].mxu0
    %v3404 = vadd.f32 0.0, %v3403
    %v3405 = vpop.f32.mrb[0].mxu0
    %3406 = vmatprep.mubr.f32.mxu0 0.0
    %3407 = vmatmul.mubr.f32.gmra.mrb[0].mxu0 %v2495
    %v3408 = vpop.f32.mrb[0].mxu0
    %v3409 = vadd.f32 0.0, %v3408
    %v3410 = vpop.f32.mrb[0].mxu0
    %3411 = vmatprep.mubr.f32.mxu0 0.0
    %3412 = vmatmul.mubr.f32.gmra.mrb[0].mxu0 %v2498
    %v3413 = vpop.f32.mrb[0].mxu0
    %v3414 = vadd.f32 0.0, %v3413
    %v3415 = vpop.f32.mrb[0].mxu0
    %3416 = vmatprep.mubr.f32.mxu0 0.0
    %3417 = vmatmul.mubr.f32.gmra.mrb[0].mxu0 %v2501
    %v3418 = vpop.f32.mrb[0].mxu0
    %v3419 = vadd.f32 0.0, %v3418
    %v3420 = vpop.f32.mrb[0].mxu0
    %3421 = vmatprep.mubr.f32.mxu0 0.0
    %3422 = vmatmul.mubr.f32.gmra.mrb[0].mxu0 %v2504
    %v3423 = vpop.f32.mrb[0].mxu0
    %v3424 = vadd.f32 0.0, %v3423
    %v3425 = vpop.f32.mrb[0].mxu0
    %3426 = vdwg.mxu0
    %v3427 = vmul.f32 %v3349, 0.5
    %v3428 = vmul.f32 %v3354, 0.5
    %v3429 = vmul.f32 %v3359, 0.5
    %v3430 = vmul.f32 %v3364, 0.5
    %v3431 = vmul.f32 %v3369, 0.5
    %v3432 = vmul.f32 %v3374, 0.5
    %v3433 = vmul.f32 %v3379, 0.5
    %v3434 = vmul.f32 %v3384, 0.5
    %v3435 = vmul.f32 %v3389, 0.5
    %v3436 = vmul.f32 %v3394, 0.5
    %v3437 = vmul.f32 %v3399, 0.5
    %v3438 = vmul.f32 %v3404, 0.5
    %v3439 = vmul.f32 %v3409, 0.5
    %v3440 = vmul.f32 %v3414, 0.5
    %v3441 = vmul.f32 %v3419, 0.5
    %v3442 = vmul.f32 %v3424, 0.5
    %v3443 = vld [vmem:[%s3 + $0x1] sm:$0x1]
    %vm3444 = vcmp.eq.f32.partialorder %v3443, 0.0
    %v3445 = vsel %vm3444, 1, 0
    %v3446 = vlaneseq
    %v3447 = vshrl.u32 %v3446, 7
    %v3448 = vsub.s32 0, %v3447
    %v3449 = vrot.slane %v3445, %v3448
    %vm3450 = vcmp.eq.s32.totalorder %v3449, 1
    %v3451 = vsel %vm3450, -1e+09, %v3427
    %v3452 = vsel %vm3450, -1e+09, %v3428
    %v3453 = vsel %vm3450, -1e+09, %v3429
    %v3454 = vsel %vm3450, -1e+09, %v3430
    %v3455 = vsel %vm3450, -1e+09, %v3431
    %v3456 = vsel %vm3450, -1e+09, %v3432
    %v3457 = vsel %vm3450, -1e+09, %v3433
    %v3458 = vsel %vm3450, -1e+09, %v3434
    %v3459 = vsel %vm3450, -1e+09, %v3435
    %v3460 = vsel %vm3450, -1e+09, %v3436
    %v3461 = vsel %vm3450, -1e+09, %v3437
    %v3462 = vsel %vm3450, -1e+09, %v3438
    %v3463 = vsel %vm3450, -1e+09, %v3439
    %v3464 = vsel %vm3450, -1e+09, %v3440
    %v3465 = vsel %vm3450, -1e+09, %v3441
    %v3466 = vsel %vm3450, -1e+09, %v3442
    %v3467 = vsel %vm2694, %v3451, -inf
    %3468 = vmax.xlane.f32.xlu0 %v3467
    %v3469 = vpop.xlane.xlu0 %3468
    %v3470 = vsel %vm2694, %v3452, -inf
    %3471 = vmax.xlane.f32.xlu0 %v3470
    %v3472 = vpop.xlane.xlu0 %3471
    %v3473 = vsel %vm2694, %v3453, -inf
    %3474 = vmax.xlane.f32.xlu0 %v3473
    %v3475 = vpop.xlane.xlu0 %3474
    %v3476 = vsel %vm2694, %v3454, -inf
    %3477 = vmax.xlane.f32.xlu0 %v3476
    %v3478 = vpop.xlane.xlu0 %3477
    %v3479 = vsel %vm2694, %v3455, -inf
    %3480 = vmax.xlane.f32.xlu0 %v3479
    %v3481 = vpop.xlane.xlu0 %3480
    %v3482 = vsel %vm2694, %v3456, -inf
    %3483 = vmax.xlane.f32.xlu0 %v3482
    %v3484 = vpop.xlane.xlu0 %3483
    %v3485 = vsel %vm2694, %v3457, -inf
    %3486 = vmax.xlane.f32.xlu0 %v3485
    %v3487 = vpop.xlane.xlu0 %3486
    %v3488 = vsel %vm2694, %v3458, -inf
    %3489 = vmax.xlane.f32.xlu0 %v3488
    %v3490 = vpop.xlane.xlu0 %3489
    %v3491 = vsel %vm2694, %v3459, -inf
    %3492 = vmax.xlane.f32.xlu0 %v3491
    %v3493 = vpop.xlane.xlu0 %3492
    %v3494 = vsel %vm2694, %v3460, -inf
    %3495 = vmax.xlane.f32.xlu0 %v3494
    %v3496 = vpop.xlane.xlu0 %3495
    %v3497 = vsel %vm2694, %v3461, -inf
    %3498 = vmax.xlane.f32.xlu0 %v3497
    %v3499 = vpop.xlane.xlu0 %3498
    %v3500 = vsel %vm2694, %v3462, -inf
    %3501 = vmax.xlane.f32.xlu0 %v3500
    %v3502 = vpop.xlane.xlu0 %3501
    %v3503 = vsel %vm2694, %v3463, -inf
    %3504 = vmax.xlane.f32.xlu0 %v3503
    %v3505 = vpop.xlane.xlu0 %3504
    %v3506 = vsel %vm2694, %v3464, -inf
    %3507 = vmax.xlane.f32.xlu0 %v3506
    %v3508 = vpop.xlane.xlu0 %3507
    %v3509 = vsel %vm2694, %v3465, -inf
    %3510 = vmax.xlane.f32.xlu0 %v3509
    %v3511 = vpop.xlane.xlu0 %3510
    %v3512 = vsel %vm2694, %v3466, -inf
    %3513 = vmax.xlane.f32.xlu0 %v3512
    %v3514 = vpop.xlane.xlu0 %3513
    %v3515 = vsub.f32 %v3451, %v3469
    %v3516 = vsub.f32 %v3452, %v3472
    %v3517 = vsub.f32 %v3453, %v3475
    %v3518 = vsub.f32 %v3454, %v3478
    %v3519 = vsub.f32 %v3455, %v3481
    %v3520 = vsub.f32 %v3456, %v3484
    %v3521 = vsub.f32 %v3457, %v3487
    %v3522 = vsub.f32 %v3458, %v3490
    %v3523 = vsub.f32 %v3459, %v3493
    %v3524 = vsub.f32 %v3460, %v3496
    %v3525 = vsub.f32 %v3461, %v3499
    %v3526 = vsub.f32 %v3462, %v3502
    %v3527 = vsub.f32 %v3463, %v3505
    %v3528 = vsub.f32 %v3464, %v3508
    %v3529 = vsub.f32 %v3465, %v3511
    %v3530 = vsub.f32 %v3466, %v3514
    %v3531 = vmul.f32 %v3515, 1.442695
    %v3532 = vpow.pop %v3531
    %v3533 = vmul.f32 %v3516, 1.442695
    %v3534 = vpow.pop %v3533
    %v3535 = vmul.f32 %v3517, 1.442695
    %v3536 = vpow.pop %v3535
    %v3537 = vmul.f32 %v3518, 1.442695
    %v3538 = vpow.pop %v3537
    %v3539 = vmul.f32 %v3519, 1.442695
    %v3540 = vpow.pop %v3539
    %v3541 = vmul.f32 %v3520, 1.442695
    %v3542 = vpow.pop %v3541
    %v3543 = vmul.f32 %v3521, 1.442695
    %v3544 = vpow.pop %v3543
    %v3545 = vmul.f32 %v3522, 1.442695
    %v3546 = vpow.pop %v3545
    %v3547 = vmul.f32 %v3523, 1.442695
    %v3548 = vpow.pop %v3547
    %v3549 = vmul.f32 %v3524, 1.442695
    %v3550 = vpow.pop %v3549
    %v3551 = vmul.f32 %v3525, 1.442695
    %v3552 = vpow.pop %v3551
    %v3553 = vmul.f32 %v3526, 1.442695
    %v3554 = vpow.pop %v3553
    %v3555 = vmul.f32 %v3527, 1.442695
    %v3556 = vpow.pop %v3555
    %v3557 = vmul.f32 %v3528, 1.442695
    %v3558 = vpow.pop %v3557
    %v3559 = vmul.f32 %v3529, 1.442695
    %v3560 = vpow.pop %v3559
    %v3561 = vmul.f32 %v3530, 1.442695
    %v3562 = vpow.pop %v3561
    %v3563 = vsel %vm2694, %v3532, 0.0
    %3564 = vadd.xlane.f32.xlu0 %v3563
    %v3565 = vpop.xlane.xlu0 %3564
    %v3566 = vsel %vm2694, %v3534, 0.0
    %3567 = vadd.xlane.f32.xlu0 %v3566
    %v3568 = vpop.xlane.xlu0 %3567
    %v3569 = vsel %vm2694, %v3536, 0.0
    %3570 = vadd.xlane.f32.xlu0 %v3569
    %v3571 = vpop.xlane.xlu0 %3570
    %v3572 = vsel %vm2694, %v3538, 0.0
    %3573 = vadd.xlane.f32.xlu0 %v3572
    %v3574 = vpop.xlane.xlu0 %3573
    %v3575 = vsel %vm2694, %v3540, 0.0
    %3576 = vadd.xlane.f32.xlu0 %v3575
    %v3577 = vpop.xlane.xlu0 %3576
    %v3578 = vsel %vm2694, %v3542, 0.0
    %3579 = vadd.xlane.f32.xlu0 %v3578
    %v3580 = vpop.xlane.xlu0 %3579
    %v3581 = vsel %vm2694, %v3544, 0.0
    %3582 = vadd.xlane.f32.xlu0 %v3581
    %v3583 = vpop.xlane.xlu0 %3582
    %v3584 = vsel %vm2694, %v3546, 0.0
    %3585 = vadd.xlane.f32.xlu0 %v3584
    %v3586 = vpop.xlane.xlu0 %3585
    %v3587 = vsel %vm2694, %v3548, 0.0
    %3588 = vadd.xlane.f32.xlu0 %v3587
    %v3589 = vpop.xlane.xlu0 %3588
    %v3590 = vsel %vm2694, %v3550, 0.0
    %3591 = vadd.xlane.f32.xlu0 %v3590
    %v3592 = vpop.xlane.xlu0 %3591
    %v3593 = vsel %vm2694, %v3552, 0.0
    %3594 = vadd.xlane.f32.xlu0 %v3593
    %v3595 = vpop.xlane.xlu0 %3594
    %v3596 = vsel %vm2694, %v3554, 0.0
    %3597 = vadd.xlane.f32.xlu0 %v3596
    %v3598 = vpop.xlane.xlu0 %3597
    %v3599 = vsel %vm2694, %v3556, 0.0
    %3600 = vadd.xlane.f32.xlu0 %v3599
    %v3601 = vpop.xlane.xlu0 %3600
    %v3602 = vsel %vm2694, %v3558, 0.0
    %3603 = vadd.xlane.f32.xlu0 %v3602
    %v3604 = vpop.xlane.xlu0 %3603
    %v3605 = vsel %vm2694, %v3560, 0.0
    %3606 = vadd.xlane.f32.xlu0 %v3605
    %v3607 = vpop.xlane.xlu0 %3606
    %v3608 = vsel %vm2694, %v3562, 0.0
    %3609 = vadd.xlane.f32.xlu0 %v3608
    %v3610 = vpop.xlane.xlu0 %3609
    %v3611 = vrcp.pop %v3565
    %v3612 = vrcp.pop %v3568
    %v3613 = vrcp.pop %v3571
    %v3614 = vrcp.pop %v3574
    %v3615 = vrcp.pop %v3577
    %v3616 = vrcp.pop %v3580
    %v3617 = vrcp.pop %v3583
    %v3618 = vrcp.pop %v3586
    %v3619 = vrcp.pop %v3589
    %v3620 = vrcp.pop %v3592
    %v3621 = vrcp.pop %v3595
    %v3622 = vrcp.pop %v3598
    %v3623 = vrcp.pop %v3601
    %v3624 = vrcp.pop %v3604
    %v3625 = vrcp.pop %v3607
    %v3626 = vrcp.pop %v3610
    %v3627 = vmul.f32 %v3532, %v3611
    %v3628 = vmul.f32 %v3534, %v3612
    %v3629 = vmul.f32 %v3536, %v3613
    %v3630 = vmul.f32 %v3538, %v3614
    %v3631 = vmul.f32 %v3540, %v3615
    %v3632 = vmul.f32 %v3542, %v3616
    %v3633 = vmul.f32 %v3544, %v3617
    %v3634 = vmul.f32 %v3546, %v3618
    %v3635 = vmul.f32 %v3548, %v3619
    %v3636 = vmul.f32 %v3550, %v3620
    %v3637 = vmul.f32 %v3552, %v3621
    %v3638 = vmul.f32 %v3554, %v3622
    %v3639 = vmul.f32 %v3556, %v3623
    %v3640 = vmul.f32 %v3558, %v3624
    %v3641 = vmul.f32 %v3560, %v3625
    %v3642 = vmul.f32 %v3562, %v3626
    %v3643 = vld [vmem:[%s5 + $0x8] sm:$0xff]
    %v3644 = vld [vmem:[%s7 + $0x8] sm:$0xff]
    %3646 = vset.pattern.permute.xlu0 0
    %3647 = vperm.xlu0 %3646, %v3643
    %v3648 = vpop.permute.xlu0 %3647
    %v3650 = vmul.f32 %v3648, %v2881
    %3652 = vset.pattern.permute.xlu0 0
    %3653 = vperm.xlu0 %3652, %v3644
    %v3654 = vpop.permute.xlu0 %3653
    %v3656 = vmul.f32 %v3654, %v2891
    %v3657 = vadd.f32 %v3650, %v3656
    %v3659 = vsel %vm2694, %v3627, 0
    %v3662 = vsel %vm2694, %v3628, 0
    %v3665 = vsel %vm2694, %v3629, 0
    %v3668 = vsel %vm2694, %v3630, 0
    %v3671 = vsel %vm2694, %v3631, 0
    %v3674 = vsel %vm2694, %v3632, 0
    %v3677 = vsel %vm2694, %v3633, 0
    %v3680 = vsel %vm2694, %v3634, 0
    %v3683 = vsel %vm2694, %v3635, 0
    %v3686 = vsel %vm2694, %v3636, 0
    %v3689 = vsel %vm2694, %v3637, 0
    %v3692 = vsel %vm2694, %v3638, 0
    %v3695 = vsel %vm2694, %v3639, 0
    %v3698 = vsel %vm2694, %v3640, 0
    %v3701 = vsel %vm2694, %v3641, 0
    %v3704 = vsel %vm2694, %v3642, 0
    %3706 = vmatprep.subr.mxu0 0.0
    %3707 = vmatpush1.msra.mxu0 %v3657
    %3708 = vmatprep.subr.mxu0 0.0
    %3709 = vmatpush1.msra.mxu0 0.0
    %3710 = vmatprep.subr.mxu0 0.0
    %3711 = vmatpush1.msra.mxu0 0.0
    %3712 = vmatprep.subr.mxu0 0.0
    %3713 = vmatpush1.msra.mxu0 0.0
    %3714 = vmatprep.subr.mxu0 0.0
    %3715 = vmatpush1.msra.mxu0 0.0
    %3716 = vmatprep.subr.mxu0 0.0
    %3717 = vmatpush1.msra.mxu0 0.0
    %3718 = vmatprep.subr.mxu0 0.0
    %3719 = vmatpush1.msra.mxu0 0.0
    %3720 = vmatprep.subr.mxu0 0.0
    %3721 = vmatpush1.msra.mxu0 0.0
    %3722 = vmatprep.subr.mxu0 0.0
    %3723 = vmatpush1.msra.mxu0 0.0
    %3724 = vmatprep.subr.mxu0 0.0
    %3725 = vmatpush1.msra.mxu0 0.0
    %3726 = vmatprep.subr.mxu0 0.0
    %3727 = vmatpush1.msra.mxu0 0.0
    %3728 = vmatprep.subr.mxu0 0.0
    %3729 = vmatpush1.msra.mxu0 0.0
    %3730 = vmatprep.subr.mxu0 0.0
    %3731 = vmatpush1.msra.mxu0 0.0
    %3732 = vmatprep.subr.mxu0 0.0
    %3733 = vmatpush1.msra.mxu0 0.0
    %3734 = vmatprep.subr.mxu0 0.0
    %3735 = vmatpush1.msra.mxu0 0.0
    %3736 = vmatprep.subr.mxu0 0.0
    %3737 = vmatpush1.msra.mxu0 0.0
    %3738 = vmatprep.subr.mxu0 0.0
    %3739 = vmatpush1.msra.mxu0 0.0
    %3740 = vmatprep.subr.mxu0 0.0
    %3741 = vmatpush1.msra.mxu0 0.0
    %3742 = vmatprep.subr.mxu0 0.0
    %3743 = vmatpush1.msra.mxu0 0.0
    %3744 = vmatprep.subr.mxu0 0.0
    %3745 = vmatpush1.msra.mxu0 0.0
    %3746 = vmatprep.subr.mxu0 0.0
    %3747 = vmatpush1.msra.mxu0 0.0
    %3748 = vmatprep.subr.mxu0 0.0
    %3749 = vmatpush1.msra.mxu0 0.0
    %3750 = vmatprep.subr.mxu0 0.0
    %3751 = vmatpush1.msra.mxu0 0.0
    %3752 = vmatprep.subr.mxu0 0.0
    %3753 = vmatpush1.msra.mxu0 0.0
    %3754 = vmatprep.subr.mxu0 0.0
    %3755 = vmatpush1.msra.mxu0 0.0
    %3756 = vmatprep.subr.mxu0 0.0
    %3757 = vmatpush1.msra.mxu0 0.0
    %3758 = vmatprep.subr.mxu0 0.0
    %3759 = vmatpush1.msra.mxu0 0.0
    %3760 = vmatprep.subr.mxu0 0.0
    %3761 = vmatpush1.msra.mxu0 0.0
    %3762 = vmatprep.subr.mxu0 0.0
    %3763 = vmatpush1.msra.mxu0 0.0
    %3764 = vmatprep.subr.mxu0 0.0
    %3765 = vmatpush1.msra.mxu0 0.0
    %3766 = vmatprep.subr.mxu0 0.0
    %3767 = vmatpush1.msra.mxu0 0.0
    %3768 = vmatprep.subr.mxu0 0.0
    %3769 = vmatpush1.msra.mxu0 0.0
    %3770 = vmatprep.mubr.f32.mxu0 0.0
    %3771 = vmatmul.mubr.f32.gmra.mrb[0].mxu0 %v3659
    %v3772 = vpop.f32.mrb[0].mxu0
    %v3773 = vadd.f32 %v2898, %v3772
    %v3774 = vpop.f32.mrb[0].mxu0
    %3775 = vmatprep.mubr.f32.mxu0 0.0
    %3776 = vmatmul.mubr.f32.gmra.mrb[0].mxu0 %v3662
    %v3777 = vpop.f32.mrb[0].mxu0
    %v3778 = vadd.f32 %v2898, %v3777
    %v3779 = vpop.f32.mrb[0].mxu0
    %3780 = vmatprep.mubr.f32.mxu0 0.0
    %3781 = vmatmul.mubr.f32.gmra.mrb[0].mxu0 %v3665
    %v3782 = vpop.f32.mrb[0].mxu0
    %v3783 = vadd.f32 %v2898, %v3782
    %v3784 = vpop.f32.mrb[0].mxu0
    %3785 = vmatprep.mubr.f32.mxu0 0.0
    %3786 = vmatmul.mubr.f32.gmra.mrb[0].mxu0 %v3668
    %v3787 = vpop.f32.mrb[0].mxu0
    %v3788 = vadd.f32 %v2898, %v3787
    %v3789 = vpop.f32.mrb[0].mxu0
    %3790 = vmatprep.mubr.f32.mxu0 0.0
    %3791 = vmatmul.mubr.f32.gmra.mrb[0].mxu0 %v3671
    %v3792 = vpop.f32.mrb[0].mxu0
    %v3793 = vadd.f32 %v2898, %v3792
    %v3794 = vpop.f32.mrb[0].mxu0
    %3795 = vmatprep.mubr.f32.mxu0 0.0
    %3796 = vmatmul.mubr.f32.gmra.mrb[0].mxu0 %v3674
    %v3797 = vpop.f32.mrb[0].mxu0
    %v3798 = vadd.f32 %v2898, %v3797
    %v3799 = vpop.f32.mrb[0].mxu0
    %3800 = vmatprep.mubr.f32.mxu0 0.0
    %3801 = vmatmul.mubr.f32.gmra.mrb[0].mxu0 %v3677
    %v3802 = vpop.f32.mrb[0].mxu0
    %v3803 = vadd.f32 %v2898, %v3802
    %v3804 = vpop.f32.mrb[0].mxu0
    %3805 = vmatprep.mubr.f32.mxu0 0.0
    %3806 = vmatmul.mubr.f32.gmra.mrb[0].mxu0 %v3680
    %v3807 = vpop.f32.mrb[0].mxu0
    %v3808 = vadd.f32 %v2898, %v3807
    %v3809 = vpop.f32.mrb[0].mxu0
    %3810 = vmatprep.mubr.f32.mxu0 0.0
    %3811 = vmatmul.mubr.f32.gmra.mrb[0].mxu0 %v3683
    %v3812 = vpop.f32.mrb[0].mxu0
    %v3813 = vadd.f32 %v2898, %v3812
    %v3814 = vpop.f32.mrb[0].mxu0
    %3815 = vmatprep.mubr.f32.mxu0 0.0
    %3816 = vmatmul.mubr.f32.gmra.mrb[0].mxu0 %v3686
    %v3817 = vpop.f32.mrb[0].mxu0
    %v3818 = vadd.f32 %v2898, %v3817
    %v3819 = vpop.f32.mrb[0].mxu0
    %3820 = vmatprep.mubr.f32.mxu0 0.0
    %3821 = vmatmul.mubr.f32.gmra.mrb[0].mxu0 %v3689
    %v3822 = vpop.f32.mrb[0].mxu0
    %v3823 = vadd.f32 %v2898, %v3822
    %v3824 = vpop.f32.mrb[0].mxu0
    %3825 = vmatprep.mubr.f32.mxu0 0.0
    %3826 = vmatmul.mubr.f32.gmra.mrb[0].mxu0 %v3692
    %v3827 = vpop.f32.mrb[0].mxu0
    %v3828 = vadd.f32 %v2898, %v3827
    %v3829 = vpop.f32.mrb[0].mxu0
    %3830 = vmatprep.mubr.f32.mxu0 0.0
    %3831 = vmatmul.mubr.f32.gmra.mrb[0].mxu0 %v3695
    %v3832 = vpop.f32.mrb[0].mxu0
    %v3833 = vadd.f32 %v2898, %v3832
    %v3834 = vpop.f32.mrb[0].mxu0
    %3835 = vmatprep.mubr.f32.mxu0 0.0
    %3836 = vmatmul.mubr.f32.gmra.mrb[0].mxu0 %v3698
    %v3837 = vpop.f32.mrb[0].mxu0
    %v3838 = vadd.f32 %v2898, %v3837
    %v3839 = vpop.f32.mrb[0].mxu0
    %3840 = vmatprep.mubr.f32.mxu0 0.0
    %3841 = vmatmul.mubr.f32.gmra.mrb[0].mxu0 %v3701
    %v3842 = vpop.f32.mrb[0].mxu0
    %v3843 = vadd.f32 %v2898, %v3842
    %v3844 = vpop.f32.mrb[0].mxu0
    %3845 = vmatprep.mubr.f32.mxu0 0.0
    %3846 = vmatmul.mubr.f32.gmra.mrb[0].mxu0 %v3704
    %v3847 = vpop.f32.mrb[0].mxu0
    %v3848 = vadd.f32 %v2898, %v3847
    %v3849 = vpop.f32.mrb[0].mxu0
    %3850 = vdwg.mxu0
    %3867 = vrot.lane.b32.xlu0 %v3773, 32
    %v3868 = vpop.permute.xlu0 %3867
    %3869 = vrot.lane.b32.xlu0 %v3778, 32
    %v3870 = vpop.permute.xlu0 %3869
    %3871 = vrot.lane.b32.xlu0 %v3783, 32
    %v3872 = vpop.permute.xlu0 %3871
    %3873 = vrot.lane.b32.xlu0 %v3788, 32
    %v3874 = vpop.permute.xlu0 %3873
    %3875 = vrot.lane.b32.xlu0 %v3793, 32
    %v3876 = vpop.permute.xlu0 %3875
    %3877 = vrot.lane.b32.xlu0 %v3798, 32
    %v3878 = vpop.permute.xlu0 %3877
    %3879 = vrot.lane.b32.xlu0 %v3803, 32
    %v3880 = vpop.permute.xlu0 %3879
    %3881 = vrot.lane.b32.xlu0 %v3808, 32
    %v3882 = vpop.permute.xlu0 %3881
    %3883 = vrot.lane.b32.xlu0 %v3813, 32
    %v3884 = vpop.permute.xlu0 %3883
    %3885 = vrot.lane.b32.xlu0 %v3818, 32
    %v3886 = vpop.permute.xlu0 %3885
    %3887 = vrot.lane.b32.xlu0 %v3823, 32
    %v3888 = vpop.permute.xlu0 %3887
    %3889 = vrot.lane.b32.xlu0 %v3828, 32
    %v3890 = vpop.permute.xlu0 %3889
    %3891 = vrot.lane.b32.xlu0 %v3833, 32
    %v3892 = vpop.permute.xlu0 %3891
    %3893 = vrot.lane.b32.xlu0 %v3838, 32
    %v3894 = vpop.permute.xlu0 %3893
    %3895 = vrot.lane.b32.xlu0 %v3843, 32
    %v3896 = vpop.permute.xlu0 %3895
    %3897 = vrot.lane.b32.xlu0 %v3848, 32
    %v3898 = vpop.permute.xlu0 %3897
    %vm3915 = vcmask 261120
    %v3916 = vsel %vm3915, %v3015, %v3868
    %v3917 = vsel %vm3915, %v3020, %v3870
    %v3918 = vsel %vm3915, %v3025, %v3872
    %v3919 = vsel %vm3915, %v3030, %v3874
    %v3920 = vsel %vm3915, %v3035, %v3876
    %v3921 = vsel %vm3915, %v3040, %v3878
    %v3922 = vsel %vm3915, %v3045, %v3880
    %v3923 = vsel %vm3915, %v3050, %v3882
    %v3924 = vsel %vm3915, %v3055, %v3884
    %v3925 = vsel %vm3915, %v3060, %v3886
    %v3926 = vsel %vm3915, %v3065, %v3888
    %v3927 = vsel %vm3915, %v3070, %v3890
    %v3928 = vsel %vm3915, %v3075, %v3892
    %v3929 = vsel %vm3915, %v3080, %v3894
    %v3930 = vsel %vm3915, %v3085, %v3896
    %v3931 = vsel %vm3915, %v3090, %v3898
    %v3932 = vld [vmem:[%s31] sm:$0xff]
    %v3933 = vld [vmem:[%s31 + $0x8] sm:$0xff]
    %v3934 = vld [vmem:[%s31 + $0x10] sm:$0xff]
    %v3935 = vld [vmem:[%s31 + $0x18] sm:$0xff]
    %v3936 = vld [vmem:[%s31 + $0x20] sm:$0xff]
    %v3937 = vld [vmem:[%s31 + $0x28] sm:$0xff]
    %v3938 = vld [vmem:[%s31 + $0x30] sm:$0xff]
    %v3939 = vld [vmem:[%s31 + $0x38] sm:$0xff]
    %v3940 = vld [vmem:[%s43] sm:$0x1]
    %v3942 = vlaneseq
    %v3943 = vshrl.u32 %v3942, 7
    %v3944 = vsub.s32 0, %v3943
    %v3945 = vrot.slane %v3940, %v3944
    %vm3947 = vcmask 523264
    %v3949 = vsel %vm3947, %v3916, 0
    %v3952 = vsel %vm3947, %v3917, 0
    %v3955 = vsel %vm3947, %v3918, 0
    %v3958 = vsel %vm3947, %v3919, 0
    %v3961 = vsel %vm3947, %v3920, 0
    %v3964 = vsel %vm3947, %v3921, 0
    %v3967 = vsel %vm3947, %v3922, 0
    %v3970 = vsel %vm3947, %v3923, 0
    %v3973 = vsel %vm3947, %v3924, 0
    %v3976 = vsel %vm3947, %v3925, 0
    %v3979 = vsel %vm3947, %v3926, 0
    %v3982 = vsel %vm3947, %v3927, 0
    %v3985 = vsel %vm3947, %v3928, 0
    %v3988 = vsel %vm3947, %v3929, 0
    %v3991 = vsel %vm3947, %v3930, 0
    %v3994 = vsel %vm3947, %v3931, 0
    %3996 = vmatprep.subr.mxu0 0.0
    %3997 = vmatpush1.msra.mxu0 %v3932
    %3998 = vmatprep.subr.mxu0 0.0
    %3999 = vmatpush1.msra.mxu0 %v3933
    %4000 = vmatprep.subr.mxu0 0.0
    %4001 = vmatpush1.msra.mxu0 %v3934
    %4002 = vmatprep.subr.mxu0 0.0
    %4003 = vmatpush1.msra.mxu0 %v3935
    %4004 = vmatprep.subr.mxu0 0.0
    %4005 = vmatpush1.msra.mxu0 %v3936
    %4006 = vmatprep.subr.mxu0 0.0
    %4007 = vmatpush1.msra.mxu0 %v3937
    %4008 = vmatprep.subr.mxu0 0.0
    %4009 = vmatpush1.msra.mxu0 %v3938
    %4010 = vmatprep.subr.mxu0 0.0
    %4011 = vmatpush1.msra.mxu0 %v3939
    %4012 = vmatprep.subr.mxu0 0.0
    %4013 = vmatpush1.msra.mxu0 0.0
    %4014 = vmatprep.subr.mxu0 0.0
    %4015 = vmatpush1.msra.mxu0 0.0
    %4016 = vmatprep.subr.mxu0 0.0
    %4017 = vmatpush1.msra.mxu0 0.0
    %4018 = vmatprep.subr.mxu0 0.0
    %4019 = vmatpush1.msra.mxu0 0.0
    %4020 = vmatprep.subr.mxu0 0.0
    %4021 = vmatpush1.msra.mxu0 0.0
    %4022 = vmatprep.subr.mxu0 0.0
    %4023 = vmatpush1.msra.mxu0 0.0
    %4024 = vmatprep.subr.mxu0 0.0
    %4025 = vmatpush1.msra.mxu0 0.0
    %4026 = vmatprep.subr.mxu0 0.0
    %4027 = vmatpush1.msra.mxu0 0.0
    %4028 = vmatprep.subr.mxu0 0.0
    %4029 = vmatpush1.msra.mxu0 0.0
    %4030 = vmatprep.subr.mxu0 0.0
    %4031 = vmatpush1.msra.mxu0 0.0
    %4032 = vmatprep.subr.mxu0 0.0
    %4033 = vmatpush1.msra.mxu0 0.0
    %4034 = vmatprep.subr.mxu0 0.0
    %4035 = vmatpush1.msra.mxu0 0.0
    %4036 = vmatprep.subr.mxu0 0.0
    %4037 = vmatpush1.msra.mxu0 0.0
    %4038 = vmatprep.subr.mxu0 0.0
    %4039 = vmatpush1.msra.mxu0 0.0
    %4040 = vmatprep.subr.mxu0 0.0
    %4041 = vmatpush1.msra.mxu0 0.0
    %4042 = vmatprep.subr.mxu0 0.0
    %4043 = vmatpush1.msra.mxu0 0.0
    %4044 = vmatprep.subr.mxu0 0.0
    %4045 = vmatpush1.msra.mxu0 0.0
    %4046 = vmatprep.subr.mxu0 0.0
    %4047 = vmatpush1.msra.mxu0 0.0
    %4048 = vmatprep.subr.mxu0 0.0
    %4049 = vmatpush1.msra.mxu0 0.0
    %4050 = vmatprep.subr.mxu0 0.0
    %4051 = vmatpush1.msra.mxu0 0.0
    %4052 = vmatprep.subr.mxu0 0.0
    %4053 = vmatpush1.msra.mxu0 0.0
    %4054 = vmatprep.subr.mxu0 0.0
    %4055 = vmatpush1.msra.mxu0 0.0
    %4056 = vmatprep.subr.mxu0 0.0
    %4057 = vmatpush1.msra.mxu0 0.0
    %4058 = vmatprep.subr.mxu0 0.0
    %4059 = vmatpush1.msra.mxu0 0.0
    %4060 = vmatprep.mubr.f32.mxu0 0.0
    %4061 = vmatmul.mubr.f32.gmra.mrb[0].mxu0 %v3949
    %v4062 = vpop.f32.mrb[0].mxu0
    %v4063 = vadd.f32 %v3945, %v4062
    %v4064 = vpop.f32.mrb[0].mxu0
    %4065 = vmatprep.mubr.f32.mxu0 0.0
    %4066 = vmatmul.mubr.f32.gmra.mrb[0].mxu0 %v3952
    %v4067 = vpop.f32.mrb[0].mxu0
    %v4068 = vadd.f32 %v3945, %v4067
    %v4069 = vpop.f32.mrb[0].mxu0
    %4070 = vmatprep.mubr.f32.mxu0 0.0
    %4071 = vmatmul.mubr.f32.gmra.mrb[0].mxu0 %v3955
    %v4072 = vpop.f32.mrb[0].mxu0
    %v4073 = vadd.f32 %v3945, %v4072
    %v4074 = vpop.f32.mrb[0].mxu0
    %4075 = vmatprep.mubr.f32.mxu0 0.0
    %4076 = vmatmul.mubr.f32.gmra.mrb[0].mxu0 %v3958
    %v4077 = vpop.f32.mrb[0].mxu0
    %v4078 = vadd.f32 %v3945, %v4077
    %v4079 = vpop.f32.mrb[0].mxu0
    %4080 = vmatprep.mubr.f32.mxu0 0.0
    %4081 = vmatmul.mubr.f32.gmra.mrb[0].mxu0 %v3961
    %v4082 = vpop.f32.mrb[0].mxu0
    %v4083 = vadd.f32 %v3945, %v4082
    %v4084 = vpop.f32.mrb[0].mxu0
    %4085 = vmatprep.mubr.f32.mxu0 0.0
    %4086 = vmatmul.mubr.f32.gmra.mrb[0].mxu0 %v3964
    %v4087 = vpop.f32.mrb[0].mxu0
    %v4088 = vadd.f32 %v3945, %v4087
    %v4089 = vpop.f32.mrb[0].mxu0
    %4090 = vmatprep.mubr.f32.mxu0 0.0
    %4091 = vmatmul.mubr.f32.gmra.mrb[0].mxu0 %v3967
    %v4092 = vpop.f32.mrb[0].mxu0
    %v4093 = vadd.f32 %v3945, %v4092
    %v4094 = vpop.f32.mrb[0].mxu0
    %4095 = vmatprep.mubr.f32.mxu0 0.0
    %4096 = vmatmul.mubr.f32.gmra.mrb[0].mxu0 %v3970
    %v4097 = vpop.f32.mrb[0].mxu0
    %v4098 = vadd.f32 %v3945, %v4097
    %v4099 = vpop.f32.mrb[0].mxu0
    %4100 = vmatprep.mubr.f32.mxu0 0.0
    %4101 = vmatmul.mubr.f32.gmra.mrb[0].mxu0 %v3973
    %v4102 = vpop.f32.mrb[0].mxu0
    %v4103 = vadd.f32 %v3945, %v4102
    %v4104 = vpop.f32.mrb[0].mxu0
    %4105 = vmatprep.mubr.f32.mxu0 0.0
    %4106 = vmatmul.mubr.f32.gmra.mrb[0].mxu0 %v3976
    %v4107 = vpop.f32.mrb[0].mxu0
    %v4108 = vadd.f32 %v3945, %v4107
    %v4109 = vpop.f32.mrb[0].mxu0
    %4110 = vmatprep.mubr.f32.mxu0 0.0
    %4111 = vmatmul.mubr.f32.gmra.mrb[0].mxu0 %v3979
    %v4112 = vpop.f32.mrb[0].mxu0
    %v4113 = vadd.f32 %v3945, %v4112
    %v4114 = vpop.f32.mrb[0].mxu0
    %4115 = vmatprep.mubr.f32.mxu0 0.0
    %4116 = vmatmul.mubr.f32.gmra.mrb[0].mxu0 %v3982
    %v4117 = vpop.f32.mrb[0].mxu0
    %v4118 = vadd.f32 %v3945, %v4117
    %v4119 = vpop.f32.mrb[0].mxu0
    %4120 = vmatprep.mubr.f32.mxu0 0.0
    %4121 = vmatmul.mubr.f32.gmra.mrb[0].mxu0 %v3985
    %v4122 = vpop.f32.mrb[0].mxu0
    %v4123 = vadd.f32 %v3945, %v4122
    %v4124 = vpop.f32.mrb[0].mxu0
    %4125 = vmatprep.mubr.f32.mxu0 0.0
    %4126 = vmatmul.mubr.f32.gmra.mrb[0].mxu0 %v3988
    %v4127 = vpop.f32.mrb[0].mxu0
    %v4128 = vadd.f32 %v3945, %v4127
    %v4129 = vpop.f32.mrb[0].mxu0
    %4130 = vmatprep.mubr.f32.mxu0 0.0
    %4131 = vmatmul.mubr.f32.gmra.mrb[0].mxu0 %v3991
    %v4132 = vpop.f32.mrb[0].mxu0
    %v4133 = vadd.f32 %v3945, %v4132
    %v4134 = vpop.f32.mrb[0].mxu0
    %4135 = vmatprep.mubr.f32.mxu0 0.0
    %4136 = vmatmul.mubr.f32.gmra.mrb[0].mxu0 %v3994
    %v4137 = vpop.f32.mrb[0].mxu0
    %v4138 = vadd.f32 %v3945, %v4137
    %v4139 = vpop.f32.mrb[0].mxu0
    %4140 = vdwg.mxu0
    %4141 = vst.msk [vmem:[#allocation2] sm:$0xff] %vm3947, %v4063
    %4142 = vst.msk [vmem:[#allocation2 + $0x8] sm:$0xff] %vm3947, %v4068
    %4143 = vst.msk [vmem:[#allocation2 + $0x10] sm:$0xff] %vm3947, %v4073
    %4144 = vst.msk [vmem:[#allocation2 + $0x18] sm:$0xff] %vm3947, %v4078
    %4145 = vst.msk [vmem:[#allocation2 + $0x20] sm:$0xff] %vm3947, %v4083
    %4146 = vst.msk [vmem:[#allocation2 + $0x28] sm:$0xff] %vm3947, %v4088
    %4147 = vst.msk [vmem:[#allocation2 + $0x30] sm:$0xff] %vm3947, %v4093
    %4148 = vst.msk [vmem:[#allocation2 + $0x38] sm:$0xff] %vm3947, %v4098
    %4149 = vst.msk [vmem:[#allocation2 + $0x40] sm:$0xff] %vm3947, %v4103
    %4150 = vst.msk [vmem:[#allocation2 + $0x48] sm:$0xff] %vm3947, %v4108
    %4151 = vst.msk [vmem:[#allocation2 + $0x50] sm:$0xff] %vm3947, %v4113
    %4152 = vst.msk [vmem:[#allocation2 + $0x58] sm:$0xff] %vm3947, %v4118
    %4153 = vst.msk [vmem:[#allocation2 + $0x60] sm:$0xff] %vm3947, %v4123
    %4154 = vst.msk [vmem:[#allocation2 + $0x68] sm:$0xff] %vm3947, %v4128
    %4155 = vst.msk [vmem:[#allocation2 + $0x70] sm:$0xff] %vm3947, %v4133
    %4156 = vst.msk [vmem:[#allocation2 + $0x78] sm:$0xff] %vm3947, %v4138
    %v4157 = vld [vmem:[%s33] sm:$0xff]
    %v4158 = vld [vmem:[%s33 + $0x8] sm:$0xff]
    %v4159 = vld [vmem:[%s33 + $0x10] sm:$0xff]
    %v4160 = vld [vmem:[%s33 + $0x18] sm:$0xff]
    %v4161 = vld [vmem:[%s33 + $0x20] sm:$0xff]
    %v4162 = vld [vmem:[%s33 + $0x28] sm:$0xff]
    %v4163 = vld [vmem:[%s33 + $0x30] sm:$0xff]
    %v4164 = vld [vmem:[%s33 + $0x38] sm:$0xff]
    %v4165 = vld [vmem:[%s45] sm:$0x1]
    %v4167 = vlaneseq
    %v4168 = vshrl.u32 %v4167, 7
    %v4169 = vsub.s32 0, %v4168
    %v4170 = vrot.slane %v4165, %v4169
    %4172 = vmatprep.subr.mxu0 0.0
    %4173 = vmatpush1.msra.mxu0 %v4157
    %4174 = vmatprep.subr.mxu0 0.0
    %4175 = vmatpush1.msra.mxu0 %v4158
    %4176 = vmatprep.subr.mxu0 0.0
    %4177 = vmatpush1.msra.mxu0 %v4159
    %4178 = vmatprep.subr.mxu0 0.0
    %4179 = vmatpush1.msra.mxu0 %v4160
    %4180 = vmatprep.subr.mxu0 0.0
    %4181 = vmatpush1.msra.mxu0 %v4161
    %4182 = vmatprep.subr.mxu0 0.0
    %4183 = vmatpush1.msra.mxu0 %v4162
    %4184 = vmatprep.subr.mxu0 0.0
    %4185 = vmatpush1.msra.mxu0 %v4163
    %4186 = vmatprep.subr.mxu0 0.0
    %4187 = vmatpush1.msra.mxu0 %v4164
    %4188 = vmatprep.subr.mxu0 0.0
    %4189 = vmatpush1.msra.mxu0 0.0
    %4190 = vmatprep.subr.mxu0 0.0
    %4191 = vmatpush1.msra.mxu0 0.0
    %4192 = vmatprep.subr.mxu0 0.0
    %4193 = vmatpush1.msra.mxu0 0.0
    %4194 = vmatprep.subr.mxu0 0.0
    %4195 = vmatpush1.msra.mxu0 0.0
    %4196 = vmatprep.subr.mxu0 0.0
    %4197 = vmatpush1.msra.mxu0 0.0
    %4198 = vmatprep.subr.mxu0 0.0
    %4199 = vmatpush1.msra.mxu0 0.0
    %4200 = vmatprep.subr.mxu0 0.0
    %4201 = vmatpush1.msra.mxu0 0.0
    %4202 = vmatprep.subr.mxu0 0.0
    %4203 = vmatpush1.msra.mxu0 0.0
    %4204 = vmatprep.subr.mxu0 0.0
    %4205 = vmatpush1.msra.mxu0 0.0
    %4206 = vmatprep.subr.mxu0 0.0
    %4207 = vmatpush1.msra.mxu0 0.0
    %4208 = vmatprep.subr.mxu0 0.0
    %4209 = vmatpush1.msra.mxu0 0.0
    %4210 = vmatprep.subr.mxu0 0.0
    %4211 = vmatpush1.msra.mxu0 0.0
    %4212 = vmatprep.subr.mxu0 0.0
    %4213 = vmatpush1.msra.mxu0 0.0
    %4214 = vmatprep.subr.mxu0 0.0
    %4215 = vmatpush1.msra.mxu0 0.0
    %4216 = vmatprep.subr.mxu0 0.0
    %4217 = vmatpush1.msra.mxu0 0.0
    %4218 = vmatprep.subr.mxu0 0.0
    %4219 = vmatpush1.msra.mxu0 0.0
    %4220 = vmatprep.subr.mxu0 0.0
    %4221 = vmatpush1.msra.mxu0 0.0
    %4222 = vmatprep.subr.mxu0 0.0
    %4223 = vmatpush1.msra.mxu0 0.0
    %4224 = vmatprep.subr.mxu0 0.0
    %4225 = vmatpush1.msra.mxu0 0.0
    %4226 = vmatprep.subr.mxu0 0.0
    %4227 = vmatpush1.msra.mxu0 0.0
    %4228 = vmatprep.subr.mxu0 0.0
    %4229 = vmatpush1.msra.mxu0 0.0
    %4230 = vmatprep.subr.mxu0 0.0
    %4231 = vmatpush1.msra.mxu0 0.0
    %4232 = vmatprep.subr.mxu0 0.0
    %4233 = vmatpush1.msra.mxu0 0.0
    %4234 = vmatprep.subr.mxu0 0.0
    %4235 = vmatpush1.msra.mxu0 0.0
    %4236 = vmatprep.mubr.f32.mxu0 0.0
    %4237 = vmatmul.mubr.f32.gmra.mrb[0].mxu0 %v3949
    %v4238 = vpop.f32.mrb[0].mxu0
    %v4239 = vadd.f32 %v4170, %v4238
    %v4240 = vpop.f32.mrb[0].mxu0
    %4241 = vmatprep.mubr.f32.mxu0 0.0
    %4242 = vmatmul.mubr.f32.gmra.mrb[0].mxu0 %v3952
    %v4243 = vpop.f32.mrb[0].mxu0
    %v4244 = vadd.f32 %v4170, %v4243
    %v4245 = vpop.f32.mrb[0].mxu0
    %4246 = vmatprep.mubr.f32.mxu0 0.0
    %4247 = vmatmul.mubr.f32.gmra.mrb[0].mxu0 %v3955
    %v4248 = vpop.f32.mrb[0].mxu0
    %v4249 = vadd.f32 %v4170, %v4248
    %v4250 = vpop.f32.mrb[0].mxu0
    %4251 = vmatprep.mubr.f32.mxu0 0.0
    %4252 = vmatmul.mubr.f32.gmra.mrb[0].mxu0 %v3958
    %v4253 = vpop.f32.mrb[0].mxu0
    %v4254 = vadd.f32 %v4170, %v4253
    %v4255 = vpop.f32.mrb[0].mxu0
    %4256 = vmatprep.mubr.f32.mxu0 0.0
    %4257 = vmatmul.mubr.f32.gmra.mrb[0].mxu0 %v3961
    %v4258 = vpop.f32.mrb[0].mxu0
    %v4259 = vadd.f32 %v4170, %v4258
    %v4260 = vpop.f32.mrb[0].mxu0
    %4261 = vmatprep.mubr.f32.mxu0 0.0
    %4262 = vmatmul.mubr.f32.gmra.mrb[0].mxu0 %v3964
    %v4263 = vpop.f32.mrb[0].mxu0
    %v4264 = vadd.f32 %v4170, %v4263
    %v4265 = vpop.f32.mrb[0].mxu0
    %4266 = vmatprep.mubr.f32.mxu0 0.0
    %4267 = vmatmul.mubr.f32.gmra.mrb[0].mxu0 %v3967
    %v4268 = vpop.f32.mrb[0].mxu0
    %v4269 = vadd.f32 %v4170, %v4268
    %v4270 = vpop.f32.mrb[0].mxu0
    %4271 = vmatprep.mubr.f32.mxu0 0.0
    %4272 = vmatmul.mubr.f32.gmra.mrb[0].mxu0 %v3970
    %v4273 = vpop.f32.mrb[0].mxu0
    %v4274 = vadd.f32 %v4170, %v4273
    %v4275 = vpop.f32.mrb[0].mxu0
    %4276 = vmatprep.mubr.f32.mxu0 0.0
    %4277 = vmatmul.mubr.f32.gmra.mrb[0].mxu0 %v3973
    %v4278 = vpop.f32.mrb[0].mxu0
    %v4279 = vadd.f32 %v4170, %v4278
    %v4280 = vpop.f32.mrb[0].mxu0
    %4281 = vmatprep.mubr.f32.mxu0 0.0
    %4282 = vmatmul.mubr.f32.gmra.mrb[0].mxu0 %v3976
    %v4283 = vpop.f32.mrb[0].mxu0
    %v4284 = vadd.f32 %v4170, %v4283
    %v4285 = vpop.f32.mrb[0].mxu0
    %4286 = vmatprep.mubr.f32.mxu0 0.0
    %4287 = vmatmul.mubr.f32.gmra.mrb[0].mxu0 %v3979
    %v4288 = vpop.f32.mrb[0].mxu0
    %v4289 = vadd.f32 %v4170, %v4288
    %v4290 = vpop.f32.mrb[0].mxu0
    %4291 = vmatprep.mubr.f32.mxu0 0.0
    %4292 = vmatmul.mubr.f32.gmra.mrb[0].mxu0 %v3982
    %v4293 = vpop.f32.mrb[0].mxu0
    %v4294 = vadd.f32 %v4170, %v4293
    %v4295 = vpop.f32.mrb[0].mxu0
    %4296 = vmatprep.mubr.f32.mxu0 0.0
    %4297 = vmatmul.mubr.f32.gmra.mrb[0].mxu0 %v3985
    %v4298 = vpop.f32.mrb[0].mxu0
    %v4299 = vadd.f32 %v4170, %v4298
    %v4300 = vpop.f32.mrb[0].mxu0
    %4301 = vmatprep.mubr.f32.mxu0 0.0
    %4302 = vmatmul.mubr.f32.gmra.mrb[0].mxu0 %v3988
    %v4303 = vpop.f32.mrb[0].mxu0
    %v4304 = vadd.f32 %v4170, %v4303
    %v4305 = vpop.f32.mrb[0].mxu0
    %4306 = vmatprep.mubr.f32.mxu0 0.0
    %4307 = vmatmul.mubr.f32.gmra.mrb[0].mxu0 %v3991
    %v4308 = vpop.f32.mrb[0].mxu0
    %v4309 = vadd.f32 %v4170, %v4308
    %v4310 = vpop.f32.mrb[0].mxu0
    %4311 = vmatprep.mubr.f32.mxu0 0.0
    %4312 = vmatmul.mubr.f32.gmra.mrb[0].mxu0 %v3994
    %v4313 = vpop.f32.mrb[0].mxu0
    %v4314 = vadd.f32 %v4170, %v4313
    %v4315 = vpop.f32.mrb[0].mxu0
    %4316 = vdwg.mxu0
    %4317 = vst.msk [vmem:[#allocation3] sm:$0xff] %vm3947, %v4239
    %4318 = vst.msk [vmem:[#allocation3 + $0x8] sm:$0xff] %vm3947, %v4244
    %4319 = vst.msk [vmem:[#allocation3 + $0x10] sm:$0xff] %vm3947, %v4249
    %4320 = vst.msk [vmem:[#allocation3 + $0x18] sm:$0xff] %vm3947, %v4254
    %4321 = vst.msk [vmem:[#allocation3 + $0x20] sm:$0xff] %vm3947, %v4259
    %4322 = vst.msk [vmem:[#allocation3 + $0x28] sm:$0xff] %vm3947, %v4264
    %4323 = vst.msk [vmem:[#allocation3 + $0x30] sm:$0xff] %vm3947, %v4269
    %4324 = vst.msk [vmem:[#allocation3 + $0x38] sm:$0xff] %vm3947, %v4274
    %4325 = vst.msk [vmem:[#allocation3 + $0x40] sm:$0xff] %vm3947, %v4279
    %4326 = vst.msk [vmem:[#allocation3 + $0x48] sm:$0xff] %vm3947, %v4284
    %4327 = vst.msk [vmem:[#allocation3 + $0x50] sm:$0xff] %vm3947, %v4289
    %4328 = vst.msk [vmem:[#allocation3 + $0x58] sm:$0xff] %vm3947, %v4294
    %4329 = vst.msk [vmem:[#allocation3 + $0x60] sm:$0xff] %vm3947, %v4299
    %4330 = vst.msk [vmem:[#allocation3 + $0x68] sm:$0xff] %vm3947, %v4304
    %4331 = vst.msk [vmem:[#allocation3 + $0x70] sm:$0xff] %vm3947, %v4309
    %4332 = vst.msk [vmem:[#allocation3 + $0x78] sm:$0xff] %vm3947, %v4314
    %v4333 = vld [vmem:[#allocation8] sm:$0xff]
    %v4334 = vld [vmem:[#allocation8 + $0x8] sm:$0xff]
    %v4335 = vld [vmem:[#allocation8 + $0x10] sm:$0xff]
    %v4336 = vld [vmem:[#allocation8 + $0x18] sm:$0xff]
    %v4337 = vld [vmem:[#allocation8 + $0x20] sm:$0xff]
    %v4338 = vld [vmem:[#allocation8 + $0x28] sm:$0xff]
    %v4339 = vld [vmem:[#allocation8 + $0x30] sm:$0xff]
    %v4340 = vld [vmem:[#allocation8 + $0x38] sm:$0xff]
    %v4341 = vld [vmem:[%s47] sm:$0x1]
    %v4343 = vlaneseq
    %v4344 = vshrl.u32 %v4343, 7
    %v4345 = vsub.s32 0, %v4344
    %v4346 = vrot.slane %v4341, %v4345
    %4348 = vmatprep.subr.mxu0 0.0
    %4349 = vmatpush1.msra.mxu0 %v4333
    %4350 = vmatprep.subr.mxu0 0.0
    %4351 = vmatpush1.msra.mxu0 %v4334
    %4352 = vmatprep.subr.mxu0 0.0
    %4353 = vmatpush1.msra.mxu0 %v4335
    %4354 = vmatprep.subr.mxu0 0.0
    %4355 = vmatpush1.msra.mxu0 %v4336
    %4356 = vmatprep.subr.mxu0 0.0
    %4357 = vmatpush1.msra.mxu0 %v4337
    %4358 = vmatprep.subr.mxu0 0.0
    %4359 = vmatpush1.msra.mxu0 %v4338
    %4360 = vmatprep.subr.mxu0 0.0
    %4361 = vmatpush1.msra.mxu0 %v4339
    %4362 = vmatprep.subr.mxu0 0.0
    %4363 = vmatpush1.msra.mxu0 %v4340
    %4364 = vmatprep.subr.mxu0 0.0
    %4365 = vmatpush1.msra.mxu0 0.0
    %4366 = vmatprep.subr.mxu0 0.0
    %4367 = vmatpush1.msra.mxu0 0.0
    %4368 = vmatprep.subr.mxu0 0.0
    %4369 = vmatpush1.msra.mxu0 0.0
    %4370 = vmatprep.subr.mxu0 0.0
    %4371 = vmatpush1.msra.mxu0 0.0
    %4372 = vmatprep.subr.mxu0 0.0
    %4373 = vmatpush1.msra.mxu0 0.0
    %4374 = vmatprep.subr.mxu0 0.0
    %4375 = vmatpush1.msra.mxu0 0.0
    %4376 = vmatprep.subr.mxu0 0.0
    %4377 = vmatpush1.msra.mxu0 0.0
    %4378 = vmatprep.subr.mxu0 0.0
    %4379 = vmatpush1.msra.mxu0 0.0
    %4380 = vmatprep.subr.mxu0 0.0
    %4381 = vmatpush1.msra.mxu0 0.0
    %4382 = vmatprep.subr.mxu0 0.0
    %4383 = vmatpush1.msra.mxu0 0.0
    %4384 = vmatprep.subr.mxu0 0.0
    %4385 = vmatpush1.msra.mxu0 0.0
    %4386 = vmatprep.subr.mxu0 0.0
    %4387 = vmatpush1.msra.mxu0 0.0
    %4388 = vmatprep.subr.mxu0 0.0
    %4389 = vmatpush1.msra.mxu0 0.0
    %4390 = vmatprep.subr.mxu0 0.0
    %4391 = vmatpush1.msra.mxu0 0.0
    %4392 = vmatprep.subr.mxu0 0.0
    %4393 = vmatpush1.msra.mxu0 0.0
    %4394 = vmatprep.subr.mxu0 0.0
    %4395 = vmatpush1.msra.mxu0 0.0
    %4396 = vmatprep.subr.mxu0 0.0
    %4397 = vmatpush1.msra.mxu0 0.0
    %4398 = vmatprep.subr.mxu0 0.0
    %4399 = vmatpush1.msra.mxu0 0.0
    %4400 = vmatprep.subr.mxu0 0.0
    %4401 = vmatpush1.msra.mxu0 0.0
    %4402 = vmatprep.subr.mxu0 0.0
    %4403 = vmatpush1.msra.mxu0 0.0
    %4404 = vmatprep.subr.mxu0 0.0
    %4405 = vmatpush1.msra.mxu0 0.0
    %4406 = vmatprep.subr.mxu0 0.0
    %4407 = vmatpush1.msra.mxu0 0.0
    %4408 = vmatprep.subr.mxu0 0.0
    %4409 = vmatpush1.msra.mxu0 0.0
    %4410 = vmatprep.subr.mxu0 0.0
    %4411 = vmatpush1.msra.mxu0 0.0
    %4412 = vmatprep.mubr.f32.mxu0 0.0
    %4413 = vmatmul.mubr.f32.gmra.mrb[0].mxu0 %v3949
    %v4414 = vpop.f32.mrb[0].mxu0
    %v4415 = vadd.f32 %v4346, %v4414
    %v4416 = vpop.f32.mrb[0].mxu0
    %4417 = vmatprep.mubr.f32.mxu0 0.0
    %4418 = vmatmul.mubr.f32.gmra.mrb[0].mxu0 %v3952
    %v4419 = vpop.f32.mrb[0].mxu0
    %v4420 = vadd.f32 %v4346, %v4419
    %v4421 = vpop.f32.mrb[0].mxu0
    %4422 = vmatprep.mubr.f32.mxu0 0.0
    %4423 = vmatmul.mubr.f32.gmra.mrb[0].mxu0 %v3955
    %v4424 = vpop.f32.mrb[0].mxu0
    %v4425 = vadd.f32 %v4346, %v4424
    %v4426 = vpop.f32.mrb[0].mxu0
    %4427 = vmatprep.mubr.f32.mxu0 0.0
    %4428 = vmatmul.mubr.f32.gmra.mrb[0].mxu0 %v3958
    %v4429 = vpop.f32.mrb[0].mxu0
    %v4430 = vadd.f32 %v4346, %v4429
    %v4431 = vpop.f32.mrb[0].mxu0
    %4432 = vmatprep.mubr.f32.mxu0 0.0
    %4433 = vmatmul.mubr.f32.gmra.mrb[0].mxu0 %v3961
    %v4434 = vpop.f32.mrb[0].mxu0
    %v4435 = vadd.f32 %v4346, %v4434
    %v4436 = vpop.f32.mrb[0].mxu0
    %4437 = vmatprep.mubr.f32.mxu0 0.0
    %4438 = vmatmul.mubr.f32.gmra.mrb[0].mxu0 %v3964
    %v4439 = vpop.f32.mrb[0].mxu0
    %v4440 = vadd.f32 %v4346, %v4439
    %v4441 = vpop.f32.mrb[0].mxu0
    %4442 = vmatprep.mubr.f32.mxu0 0.0
    %4443 = vmatmul.mubr.f32.gmra.mrb[0].mxu0 %v3967
    %v4444 = vpop.f32.mrb[0].mxu0
    %v4445 = vadd.f32 %v4346, %v4444
    %v4446 = vpop.f32.mrb[0].mxu0
    %4447 = vmatprep.mubr.f32.mxu0 0.0
    %4448 = vmatmul.mubr.f32.gmra.mrb[0].mxu0 %v3970
    %v4449 = vpop.f32.mrb[0].mxu0
    %v4450 = vadd.f32 %v4346, %v4449
    %v4451 = vpop.f32.mrb[0].mxu0
    %4452 = vmatprep.mubr.f32.mxu0 0.0
    %4453 = vmatmul.mubr.f32.gmra.mrb[0].mxu0 %v3973
    %v4454 = vpop.f32.mrb[0].mxu0
    %v4455 = vadd.f32 %v4346, %v4454
    %v4456 = vpop.f32.mrb[0].mxu0
    %4457 = vmatprep.mubr.f32.mxu0 0.0
    %4458 = vmatmul.mubr.f32.gmra.mrb[0].mxu0 %v3976
    %v4459 = vpop.f32.mrb[0].mxu0
    %v4460 = vadd.f32 %v4346, %v4459
    %v4461 = vpop.f32.mrb[0].mxu0
    %4462 = vmatprep.mubr.f32.mxu0 0.0
    %4463 = vmatmul.mubr.f32.gmra.mrb[0].mxu0 %v3979
    %v4464 = vpop.f32.mrb[0].mxu0
    %v4465 = vadd.f32 %v4346, %v4464
    %v4466 = vpop.f32.mrb[0].mxu0
    %4467 = vmatprep.mubr.f32.mxu0 0.0
    %4468 = vmatmul.mubr.f32.gmra.mrb[0].mxu0 %v3982
    %v4469 = vpop.f32.mrb[0].mxu0
    %v4470 = vadd.f32 %v4346, %v4469
    %v4471 = vpop.f32.mrb[0].mxu0
    %4472 = vmatprep.mubr.f32.mxu0 0.0
    %4473 = vmatmul.mubr.f32.gmra.mrb[0].mxu0 %v3985
    %v4474 = vpop.f32.mrb[0].mxu0
    %v4475 = vadd.f32 %v4346, %v4474
    %v4476 = vpop.f32.mrb[0].mxu0
    %4477 = vmatprep.mubr.f32.mxu0 0.0
    %4478 = vmatmul.mubr.f32.gmra.mrb[0].mxu0 %v3988
    %v4479 = vpop.f32.mrb[0].mxu0
    %v4480 = vadd.f32 %v4346, %v4479
    %v4481 = vpop.f32.mrb[0].mxu0
    %4482 = vmatprep.mubr.f32.mxu0 0.0
    %4483 = vmatmul.mubr.f32.gmra.mrb[0].mxu0 %v3991
    %v4484 = vpop.f32.mrb[0].mxu0
    %v4485 = vadd.f32 %v4346, %v4484
    %v4486 = vpop.f32.mrb[0].mxu0
    %4487 = vmatprep.mubr.f32.mxu0 0.0
    %4488 = vmatmul.mubr.f32.gmra.mrb[0].mxu0 %v3994
    %v4489 = vpop.f32.mrb[0].mxu0
    %v4490 = vadd.f32 %v4346, %v4489
    %v4491 = vpop.f32.mrb[0].mxu0
    %4492 = vdwg.mxu0
    %4493 = vst.msk [vmem:[#allocation4] sm:$0xff] %vm3947, %v4415
    %4494 = vst.msk [vmem:[#allocation4 + $0x8] sm:$0xff] %vm3947, %v4420
    %4495 = vst.msk [vmem:[#allocation4 + $0x10] sm:$0xff] %vm3947, %v4425
    %4496 = vst.msk [vmem:[#allocation4 + $0x18] sm:$0xff] %vm3947, %v4430
    %4497 = vst.msk [vmem:[#allocation4 + $0x20] sm:$0xff] %vm3947, %v4435
    %4498 = vst.msk [vmem:[#allocation4 + $0x28] sm:$0xff] %vm3947, %v4440
    %4499 = vst.msk [vmem:[#allocation4 + $0x30] sm:$0xff] %vm3947, %v4445
    %4500 = vst.msk [vmem:[#allocation4 + $0x38] sm:$0xff] %vm3947, %v4450
    %4501 = vst.msk [vmem:[#allocation4 + $0x40] sm:$0xff] %vm3947, %v4455
    %4502 = vst.msk [vmem:[#allocation4 + $0x48] sm:$0xff] %vm3947, %v4460
    %4503 = vst.msk [vmem:[#allocation4 + $0x50] sm:$0xff] %vm3947, %v4465
    %4504 = vst.msk [vmem:[#allocation4 + $0x58] sm:$0xff] %vm3947, %v4470
    %4505 = vst.msk [vmem:[#allocation4 + $0x60] sm:$0xff] %vm3947, %v4475
    %4506 = vst.msk [vmem:[#allocation4 + $0x68] sm:$0xff] %vm3947, %v4480
    %4507 = vst.msk [vmem:[#allocation4 + $0x70] sm:$0xff] %vm3947, %v4485
    %4508 = vst.msk [vmem:[#allocation4 + $0x78] sm:$0xff] %vm3947, %v4490
    %v4509 = vld [vmem:[#allocation11] sm:$0xff]
    %v4510 = vld [vmem:[#allocation11 + $0x8] sm:$0xff]
    %v4511 = vld [vmem:[#allocation11 + $0x10] sm:$0xff]
    %v4512 = vld [vmem:[#allocation11 + $0x18] sm:$0xff]
    %v4513 = vld [vmem:[#allocation11 + $0x20] sm:$0xff]
    %v4514 = vld [vmem:[#allocation11 + $0x28] sm:$0xff]
    %v4515 = vld [vmem:[#allocation11 + $0x30] sm:$0xff]
    %v4516 = vld [vmem:[#allocation11 + $0x38] sm:$0xff]
    %v4517 = vld [vmem:[#allocation13] sm:$0xff]
    %v4518 = vld [vmem:[#allocation13 + $0x8] sm:$0xff]
    %v4519 = vld [vmem:[#allocation13 + $0x10] sm:$0xff]
    %v4520 = vld [vmem:[#allocation13 + $0x18] sm:$0xff]
    %v4521 = vld [vmem:[#allocation13 + $0x20] sm:$0xff]
    %v4522 = vld [vmem:[#allocation13 + $0x28] sm:$0xff]
    %v4523 = vld [vmem:[#allocation13 + $0x30] sm:$0xff]
    %v4524 = vld [vmem:[#allocation13 + $0x38] sm:$0xff]
    %v4525 = vld [vmem:[#allocation14] sm:$0xff]
    %v4526 = vld [vmem:[#allocation14 + $0x8] sm:$0xff]
    %v4527 = vld [vmem:[#allocation14 + $0x10] sm:$0xff]
    %v4528 = vld [vmem:[#allocation14 + $0x18] sm:$0xff]
    %v4529 = vld [vmem:[#allocation14 + $0x20] sm:$0xff]
    %v4530 = vld [vmem:[#allocation14 + $0x28] sm:$0xff]
    %v4531 = vld [vmem:[#allocation14 + $0x30] sm:$0xff]
    %v4532 = vld [vmem:[#allocation14 + $0x38] sm:$0xff]
    %v4533 = vld [vmem:[%s49] sm:$0x1]
    loop: start=0, step=1, limit=16
    $region182: #{tpu_custom_call.1} parent=1 // loop_pre_header
      _
    $region183: #{tpu_custom_call.1} parent=1 // loop_header
      %s4535 = sphi 0, %s4539
      %p4536 = scmp.ge.s32.totalorder %s4535, 16
      %v4540 = vphi 0.0, %v6504
    $region184: #{tpu_custom_call.1} parent=1 // loop_header_branch
      %4538 = sbr.rel (%p4536) target = $region188
    $region185: #{tpu_custom_call.1} parent=1 // loop_body
      %s4541 = smul.u32 %s4535, 8
      %s4542 = scalar_lea.vmem [#allocation2], %s4541
      %v4543 = vld [vmem:[%s4542] sm:$0xff]
      %s4544 = scalar_lea.vmem [#allocation3], %s4541
      %v4545 = vld [vmem:[%s4544] sm:$0xff]
      %s4546 = scalar_lea.vmem [#allocation4], %s4541
      %v4547 = vld [vmem:[%s4546] sm:$0xff]
      %v4549 = vrot.slane %v4540, 7
      %v4550 = vsel %vm3947, %v4549, 0
      %4552 = vmatprep.subr.mxu0 0.0
      %4553 = vmatpush1.msra.mxu0 %v4509
      %4554 = vmatprep.subr.mxu0 0.0
      %4555 = vmatpush1.msra.mxu0 %v4510
      %4556 = vmatprep.subr.mxu0 0.0
      %4557 = vmatpush1.msra.mxu0 %v4511
      %4558 = vmatprep.subr.mxu0 0.0
      %4559 = vmatpush1.msra.mxu0 %v4512
      %4560 = vmatprep.subr.mxu0 0.0
      %4561 = vmatpush1.msra.mxu0 %v4513
      %4562 = vmatprep.subr.mxu0 0.0
      %4563 = vmatpush1.msra.mxu0 %v4514
      %4564 = vmatprep.subr.mxu0 0.0
      %4565 = vmatpush1.msra.mxu0 %v4515
      %4566 = vmatprep.subr.mxu0 0.0
      %4567 = vmatpush1.msra.mxu0 %v4516
      %4568 = vmatprep.subr.mxu0 0.0
      %4569 = vmatpush1.msra.mxu0 0.0
      %4570 = vmatprep.subr.mxu0 0.0
      %4571 = vmatpush1.msra.mxu0 0.0
      %4572 = vmatprep.subr.mxu0 0.0
      %4573 = vmatpush1.msra.mxu0 0.0
      %4574 = vmatprep.subr.mxu0 0.0
      %4575 = vmatpush1.msra.mxu0 0.0
      %4576 = vmatprep.subr.mxu0 0.0
      %4577 = vmatpush1.msra.mxu0 0.0
      %4578 = vmatprep.subr.mxu0 0.0
      %4579 = vmatpush1.msra.mxu0 0.0
      %4580 = vmatprep.subr.mxu0 0.0
      %4581 = vmatpush1.msra.mxu0 0.0
      %4582 = vmatprep.subr.mxu0 0.0
      %4583 = vmatpush1.msra.mxu0 0.0
      %4584 = vmatprep.subr.mxu0 0.0
      %4585 = vmatpush1.msra.mxu0 0.0
      %4586 = vmatprep.subr.mxu0 0.0
      %4587 = vmatpush1.msra.mxu0 0.0
      %4588 = vmatprep.subr.mxu0 0.0
      %4589 = vmatpush1.msra.mxu0 0.0
      %4590 = vmatprep.subr.mxu0 0.0
      %4591 = vmatpush1.msra.mxu0 0.0
      %4592 = vmatprep.subr.mxu0 0.0
      %4593 = vmatpush1.msra.mxu0 0.0
      %4594 = vmatprep.subr.mxu0 0.0
      %4595 = vmatpush1.msra.mxu0 0.0
      %4596 = vmatprep.subr.mxu0 0.0
      %4597 = vmatpush1.msra.mxu0 0.0
      %4598 = vmatprep.subr.mxu0 0.0
      %4599 = vmatpush1.msra.mxu0 0.0
      %4600 = vmatprep.subr.mxu0 0.0
      %4601 = vmatpush1.msra.mxu0 0.0
      %4602 = vmatprep.subr.mxu0 0.0
      %4603 = vmatpush1.msra.mxu0 0.0
      %4604 = vmatprep.subr.mxu0 0.0
      %4605 = vmatpush1.msra.mxu0 0.0
      %4606 = vmatprep.subr.mxu0 0.0
      %4607 = vmatpush1.msra.mxu0 0.0
      %4608 = vmatprep.subr.mxu0 0.0
      %4609 = vmatpush1.msra.mxu0 0.0
      %4610 = vmatprep.subr.mxu0 0.0
      %4611 = vmatpush1.msra.mxu0 0.0
      %4612 = vmatprep.subr.mxu0 0.0
      %4613 = vmatpush1.msra.mxu0 0.0
      %4614 = vmatprep.subr.mxu0 0.0
      %4615 = vmatpush1.msra.mxu0 0.0
      %4616 = vmatprep.mubr.f32.mxu0 0.0
      %4617 = vmatmul.mubr.f32.gmra.mrb[0].mxu0 %v4550
      %v4618 = vpop.f32.mrb[0].mxu0
      %v4619 = vadd.f32 0.0, %v4618
      %v4620 = vpop.f32.mrb[0].mxu0
      %4621 = vdwg.mxu0
      %4622 = vmatprep.subr.mxu0 0.0
      %4623 = vmatpush1.msra.mxu0 %v4517
      %4624 = vmatprep.subr.mxu0 0.0
      %4625 = vmatpush1.msra.mxu0 %v4518
      %4626 = vmatprep.subr.mxu0 0.0
      %4627 = vmatpush1.msra.mxu0 %v4519
      %4628 = vmatprep.subr.mxu0 0.0
      %4629 = vmatpush1.msra.mxu0 %v4520
      %4630 = vmatprep.subr.mxu0 0.0
      %4631 = vmatpush1.msra.mxu0 %v4521
      %4632 = vmatprep.subr.mxu0 0.0
      %4633 = vmatpush1.msra.mxu0 %v4522
      %4634 = vmatprep.subr.mxu0 0.0
      %4635 = vmatpush1.msra.mxu0 %v4523
      %4636 = vmatprep.subr.mxu0 0.0
      %4637 = vmatpush1.msra.mxu0 %v4524
      %4638 = vmatprep.subr.mxu0 0.0
      %4639 = vmatpush1.msra.mxu0 0.0
      %4640 = vmatprep.subr.mxu0 0.0
      %4641 = vmatpush1.msra.mxu0 0.0
      %4642 = vmatprep.subr.mxu0 0.0
      %4643 = vmatpush1.msra.mxu0 0.0
      %4644 = vmatprep.subr.mxu0 0.0
      %4645 = vmatpush1.msra.mxu0 0.0
      %4646 = vmatprep.subr.mxu0 0.0
      %4647 = vmatpush1.msra.mxu0 0.0
      %4648 = vmatprep.subr.mxu0 0.0
      %4649 = vmatpush1.msra.mxu0 0.0
      %4650 = vmatprep.subr.mxu0 0.0
      %4651 = vmatpush1.msra.mxu0 0.0
      %4652 = vmatprep.subr.mxu0 0.0
      %4653 = vmatpush1.msra.mxu0 0.0
      %4654 = vmatprep.subr.mxu0 0.0
      %4655 = vmatpush1.msra.mxu0 0.0
      %4656 = vmatprep.subr.mxu0 0.0
      %4657 = vmatpush1.msra.mxu0 0.0
      %4658 = vmatprep.subr.mxu0 0.0
      %4659 = vmatpush1.msra.mxu0 0.0
      %4660 = vmatprep.subr.mxu0 0.0
      %4661 = vmatpush1.msra.mxu0 0.0
      %4662 = vmatprep.subr.mxu0 0.0
      %4663 = vmatpush1.msra.mxu0 0.0
      %4664 = vmatprep.subr.mxu0 0.0
      %4665 = vmatpush1.msra.mxu0 0.0
      %4666 = vmatprep.subr.mxu0 0.0
      %4667 = vmatpush1.msra.mxu0 0.0
      %4668 = vmatprep.subr.mxu0 0.0
      %4669 = vmatpush1.msra.mxu0 0.0
      %4670 = vmatprep.subr.mxu0 0.0
      %4671 = vmatpush1.msra.mxu0 0.0
      %4672 = vmatprep.subr.mxu0 0.0
      %4673 = vmatpush1.msra.mxu0 0.0
      %4674 = vmatprep.subr.mxu0 0.0
      %4675 = vmatpush1.msra.mxu0 0.0
      %4676 = vmatprep.subr.mxu0 0.0
      %4677 = vmatpush1.msra.mxu0 0.0
      %4678 = vmatprep.subr.mxu0 0.0
      %4679 = vmatpush1.msra.mxu0 0.0
      %4680 = vmatprep.subr.mxu0 0.0
      %4681 = vmatpush1.msra.mxu0 0.0
      %4682 = vmatprep.subr.mxu0 0.0
      %4683 = vmatpush1.msra.mxu0 0.0
      %4684 = vmatprep.subr.mxu0 0.0
      %4685 = vmatpush1.msra.mxu0 0.0
      %4686 = vmatprep.mubr.f32.mxu0 0.0
      %4687 = vmatmul.mubr.f32.gmra.mrb[0].mxu0 %v4550
      %v4688 = vpop.f32.mrb[0].mxu0
      %v4689 = vadd.f32 0.0, %v4688
      %v4690 = vpop.f32.mrb[0].mxu0
      %4691 = vdwg.mxu0
      %4692 = vmatprep.subr.mxu0 0.0
      %4693 = vmatpush1.msra.mxu0 %v4525
      %4694 = vmatprep.subr.mxu0 0.0
      %4695 = vmatpush1.msra.mxu0 %v4526
      %4696 = vmatprep.subr.mxu0 0.0
      %4697 = vmatpush1.msra.mxu0 %v4527
      %4698 = vmatprep.subr.mxu0 0.0
      %4699 = vmatpush1.msra.mxu0 %v4528
      %4700 = vmatprep.subr.mxu0 0.0
      %4701 = vmatpush1.msra.mxu0 %v4529
      %4702 = vmatprep.subr.mxu0 0.0
      %4703 = vmatpush1.msra.mxu0 %v4530
      %4704 = vmatprep.subr.mxu0 0.0
      %4705 = vmatpush1.msra.mxu0 %v4531
      %4706 = vmatprep.subr.mxu0 0.0
      %4707 = vmatpush1.msra.mxu0 %v4532
      %4708 = vmatprep.subr.mxu0 0.0
      %4709 = vmatpush1.msra.mxu0 0.0
      %4710 = vmatprep.subr.mxu0 0.0
      %4711 = vmatpush1.msra.mxu0 0.0
      %4712 = vmatprep.subr.mxu0 0.0
      %4713 = vmatpush1.msra.mxu0 0.0
      %4714 = vmatprep.subr.mxu0 0.0
      %4715 = vmatpush1.msra.mxu0 0.0
      %4716 = vmatprep.subr.mxu0 0.0
      %4717 = vmatpush1.msra.mxu0 0.0
      %4718 = vmatprep.subr.mxu0 0.0
      %4719 = vmatpush1.msra.mxu0 0.0
      %4720 = vmatprep.subr.mxu0 0.0
      %4721 = vmatpush1.msra.mxu0 0.0
      %4722 = vmatprep.subr.mxu0 0.0
      %4723 = vmatpush1.msra.mxu0 0.0
      %4724 = vmatprep.subr.mxu0 0.0
      %4725 = vmatpush1.msra.mxu0 0.0
      %4726 = vmatprep.subr.mxu0 0.0
      %4727 = vmatpush1.msra.mxu0 0.0
      %4728 = vmatprep.subr.mxu0 0.0
      %4729 = vmatpush1.msra.mxu0 0.0
      %4730 = vmatprep.subr.mxu0 0.0
      %4731 = vmatpush1.msra.mxu0 0.0
      %4732 = vmatprep.subr.mxu0 0.0
      %4733 = vmatpush1.msra.mxu0 0.0
      %4734 = vmatprep.subr.mxu0 0.0
      %4735 = vmatpush1.msra.mxu0 0.0
      %4736 = vmatprep.subr.mxu0 0.0
      %4737 = vmatpush1.msra.mxu0 0.0
      %4738 = vmatprep.subr.mxu0 0.0
      %4739 = vmatpush1.msra.mxu0 0.0
      %4740 = vmatprep.subr.mxu0 0.0
      %4741 = vmatpush1.msra.mxu0 0.0
      %4742 = vmatprep.subr.mxu0 0.0
      %4743 = vmatpush1.msra.mxu0 0.0
      %4744 = vmatprep.subr.mxu0 0.0
      %4745 = vmatpush1.msra.mxu0 0.0
      %4746 = vmatprep.subr.mxu0 0.0
      %4747 = vmatpush1.msra.mxu0 0.0
      %4748 = vmatprep.subr.mxu0 0.0
      %4749 = vmatpush1.msra.mxu0 0.0
      %4750 = vmatprep.subr.mxu0 0.0
      %4751 = vmatpush1.msra.mxu0 0.0
      %4752 = vmatprep.subr.mxu0 0.0
      %4753 = vmatpush1.msra.mxu0 0.0
      %4754 = vmatprep.subr.mxu0 0.0
      %4755 = vmatpush1.msra.mxu0 0.0
      %4756 = vmatprep.mubr.f32.mxu0 0.0
      %4757 = vmatmul.mubr.f32.gmra.mrb[0].mxu0 %v4550
      %v4758 = vpop.f32.mrb[0].mxu0
      %v4759 = vadd.f32 %v4533, %v4758
      %v4760 = vpop.f32.mrb[0].mxu0
      %4761 = vdwg.mxu0
      %v4762 = vadd.f32 %v4543, %v4619
      %v4763 = vxor.u32 %v4762, 2147483648
      %v4764 = vmul.f32 %v4763, 1.442695
      %v4765 = vpow.pop %v4764
      %v4766 = vadd.f32 %v4765, 1.0
      %v4767 = vrcp.pop %v4766
      %v4768 = vmul.f32 1.0, %v4767
      %v4769 = vadd.f32 %v4545, %v4689
      %v4770 = vxor.u32 %v4769, 2147483648
      %v4771 = vmul.f32 %v4770, 1.442695
      %v4772 = vpow.pop %v4771
      %v4773 = vadd.f32 %v4772, 1.0
      %v4774 = vrcp.pop %v4773
      %v4775 = vmul.f32 1.0, %v4774
      %v4776 = vmul.f32 %v4768, %v4759
      %v4777 = vadd.f32 %v4547, %v4776
      %v4778 = vtanh.pop %v4777
      %v4779 = vsub.f32 1.0, %v4775
      %v4780 = vmul.f32 %v4779, %v4778
      %v4782 = vmul.f32 %v4775, %v4549
      %v4783 = vadd.f32 %v4780, %v4782
      %v4785 = vsel %vm3947, %v4783, 0
      %4787 = vmatprep.subr.mxu0 0.0
      %4788 = vmatpush1.msra.mxu0 %v4509
      %4789 = vmatprep.subr.mxu0 0.0
      %4790 = vmatpush1.msra.mxu0 %v4510
      %4791 = vmatprep.subr.mxu0 0.0
      %4792 = vmatpush1.msra.mxu0 %v4511
      %4793 = vmatprep.subr.mxu0 0.0
      %4794 = vmatpush1.msra.mxu0 %v4512
      %4795 = vmatprep.subr.mxu0 0.0
      %4796 = vmatpush1.msra.mxu0 %v4513
      %4797 = vmatprep.subr.mxu0 0.0
      %4798 = vmatpush1.msra.mxu0 %v4514
      %4799 = vmatprep.subr.mxu0 0.0
      %4800 = vmatpush1.msra.mxu0 %v4515
      %4801 = vmatprep.subr.mxu0 0.0
      %4802 = vmatpush1.msra.mxu0 %v4516
      %4803 = vmatprep.subr.mxu0 0.0
      %4804 = vmatpush1.msra.mxu0 0.0
      %4805 = vmatprep.subr.mxu0 0.0
      %4806 = vmatpush1.msra.mxu0 0.0
      %4807 = vmatprep.subr.mxu0 0.0
      %4808 = vmatpush1.msra.mxu0 0.0
      %4809 = vmatprep.subr.mxu0 0.0
      %4810 = vmatpush1.msra.mxu0 0.0
      %4811 = vmatprep.subr.mxu0 0.0
      %4812 = vmatpush1.msra.mxu0 0.0
      %4813 = vmatprep.subr.mxu0 0.0
      %4814 = vmatpush1.msra.mxu0 0.0
      %4815 = vmatprep.subr.mxu0 0.0
      %4816 = vmatpush1.msra.mxu0 0.0
      %4817 = vmatprep.subr.mxu0 0.0
      %4818 = vmatpush1.msra.mxu0 0.0
      %4819 = vmatprep.subr.mxu0 0.0
      %4820 = vmatpush1.msra.mxu0 0.0
      %4821 = vmatprep.subr.mxu0 0.0
      %4822 = vmatpush1.msra.mxu0 0.0
      %4823 = vmatprep.subr.mxu0 0.0
      %4824 = vmatpush1.msra.mxu0 0.0
      %4825 = vmatprep.subr.mxu0 0.0
      %4826 = vmatpush1.msra.mxu0 0.0
      %4827 = vmatprep.subr.mxu0 0.0
      %4828 = vmatpush1.msra.mxu0 0.0
      %4829 = vmatprep.subr.mxu0 0.0
      %4830 = vmatpush1.msra.mxu0 0.0
      %4831 = vmatprep.subr.mxu0 0.0
      %4832 = vmatpush1.msra.mxu0 0.0
      %4833 = vmatprep.subr.mxu0 0.0
      %4834 = vmatpush1.msra.mxu0 0.0
      %4835 = vmatprep.subr.mxu0 0.0
      %4836 = vmatpush1.msra.mxu0 0.0
      %4837 = vmatprep.subr.mxu0 0.0
      %4838 = vmatpush1.msra.mxu0 0.0
      %4839 = vmatprep.subr.mxu0 0.0
      %4840 = vmatpush1.msra.mxu0 0.0
      %4841 = vmatprep.subr.mxu0 0.0
      %4842 = vmatpush1.msra.mxu0 0.0
      %4843 = vmatprep.subr.mxu0 0.0
      %4844 = vmatpush1.msra.mxu0 0.0
      %4845 = vmatprep.subr.mxu0 0.0
      %4846 = vmatpush1.msra.mxu0 0.0
      %4847 = vmatprep.subr.mxu0 0.0
      %4848 = vmatpush1.msra.mxu0 0.0
      %4849 = vmatprep.subr.mxu0 0.0
      %4850 = vmatpush1.msra.mxu0 0.0
      %4851 = vmatprep.mubr.f32.mxu0 0.0
      %4852 = vmatmul.mubr.f32.gmra.mrb[0].mxu0 %v4785
      %v4853 = vpop.f32.mrb[0].mxu0
      %v4854 = vadd.f32 0.0, %v4853
      %v4855 = vpop.f32.mrb[0].mxu0
      %4856 = vdwg.mxu0
      %4857 = vmatprep.subr.mxu0 0.0
      %4858 = vmatpush1.msra.mxu0 %v4517
      %4859 = vmatprep.subr.mxu0 0.0
      %4860 = vmatpush1.msra.mxu0 %v4518
      %4861 = vmatprep.subr.mxu0 0.0
      %4862 = vmatpush1.msra.mxu0 %v4519
      %4863 = vmatprep.subr.mxu0 0.0
      %4864 = vmatpush1.msra.mxu0 %v4520
      %4865 = vmatprep.subr.mxu0 0.0
      %4866 = vmatpush1.msra.mxu0 %v4521
      %4867 = vmatprep.subr.mxu0 0.0
      %4868 = vmatpush1.msra.mxu0 %v4522
      %4869 = vmatprep.subr.mxu0 0.0
      %4870 = vmatpush1.msra.mxu0 %v4523
      %4871 = vmatprep.subr.mxu0 0.0
      %4872 = vmatpush1.msra.mxu0 %v4524
      %4873 = vmatprep.subr.mxu0 0.0
      %4874 = vmatpush1.msra.mxu0 0.0
      %4875 = vmatprep.subr.mxu0 0.0
      %4876 = vmatpush1.msra.mxu0 0.0
      %4877 = vmatprep.subr.mxu0 0.0
      %4878 = vmatpush1.msra.mxu0 0.0
      %4879 = vmatprep.subr.mxu0 0.0
      %4880 = vmatpush1.msra.mxu0 0.0
      %4881 = vmatprep.subr.mxu0 0.0
      %4882 = vmatpush1.msra.mxu0 0.0
      %4883 = vmatprep.subr.mxu0 0.0
      %4884 = vmatpush1.msra.mxu0 0.0
      %4885 = vmatprep.subr.mxu0 0.0
      %4886 = vmatpush1.msra.mxu0 0.0
      %4887 = vmatprep.subr.mxu0 0.0
      %4888 = vmatpush1.msra.mxu0 0.0
      %4889 = vmatprep.subr.mxu0 0.0
      %4890 = vmatpush1.msra.mxu0 0.0
      %4891 = vmatprep.subr.mxu0 0.0
      %4892 = vmatpush1.msra.mxu0 0.0
      %4893 = vmatprep.subr.mxu0 0.0
      %4894 = vmatpush1.msra.mxu0 0.0
      %4895 = vmatprep.subr.mxu0 0.0
      %4896 = vmatpush1.msra.mxu0 0.0
      %4897 = vmatprep.subr.mxu0 0.0
      %4898 = vmatpush1.msra.mxu0 0.0
      %4899 = vmatprep.subr.mxu0 0.0
      %4900 = vmatpush1.msra.mxu0 0.0
      %4901 = vmatprep.subr.mxu0 0.0
      %4902 = vmatpush1.msra.mxu0 0.0
      %4903 = vmatprep.subr.mxu0 0.0
      %4904 = vmatpush1.msra.mxu0 0.0
      %4905 = vmatprep.subr.mxu0 0.0
      %4906 = vmatpush1.msra.mxu0 0.0
      %4907 = vmatprep.subr.mxu0 0.0
      %4908 = vmatpush1.msra.mxu0 0.0
      %4909 = vmatprep.subr.mxu0 0.0
      %4910 = vmatpush1.msra.mxu0 0.0
      %4911 = vmatprep.subr.mxu0 0.0
      %4912 = vmatpush1.msra.mxu0 0.0
      %4913 = vmatprep.subr.mxu0 0.0
      %4914 = vmatpush1.msra.mxu0 0.0
      %4915 = vmatprep.subr.mxu0 0.0
      %4916 = vmatpush1.msra.mxu0 0.0
      %4917 = vmatprep.subr.mxu0 0.0
      %4918 = vmatpush1.msra.mxu0 0.0
      %4919 = vmatprep.subr.mxu0 0.0
      %4920 = vmatpush1.msra.mxu0 0.0
      %4921 = vmatprep.mubr.f32.mxu0 0.0
      %4922 = vmatmul.mubr.f32.gmra.mrb[0].mxu0 %v4785
      %v4923 = vpop.f32.mrb[0].mxu0
      %v4924 = vadd.f32 0.0, %v4923
      %v4925 = vpop.f32.mrb[0].mxu0
      %4926 = vdwg.mxu0
      %4927 = vmatprep.subr.mxu0 0.0
      %4928 = vmatpush1.msra.mxu0 %v4525
      %4929 = vmatprep.subr.mxu0 0.0
      %4930 = vmatpush1.msra.mxu0 %v4526
      %4931 = vmatprep.subr.mxu0 0.0
      %4932 = vmatpush1.msra.mxu0 %v4527
      %4933 = vmatprep.subr.mxu0 0.0
      %4934 = vmatpush1.msra.mxu0 %v4528
      %4935 = vmatprep.subr.mxu0 0.0
      %4936 = vmatpush1.msra.mxu0 %v4529
      %4937 = vmatprep.subr.mxu0 0.0
      %4938 = vmatpush1.msra.mxu0 %v4530
      %4939 = vmatprep.subr.mxu0 0.0
      %4940 = vmatpush1.msra.mxu0 %v4531
      %4941 = vmatprep.subr.mxu0 0.0
      %4942 = vmatpush1.msra.mxu0 %v4532
      %4943 = vmatprep.subr.mxu0 0.0
      %4944 = vmatpush1.msra.mxu0 0.0
      %4945 = vmatprep.subr.mxu0 0.0
      %4946 = vmatpush1.msra.mxu0 0.0
      %4947 = vmatprep.subr.mxu0 0.0
      %4948 = vmatpush1.msra.mxu0 0.0
      %4949 = vmatprep.subr.mxu0 0.0
      %4950 = vmatpush1.msra.mxu0 0.0
      %4951 = vmatprep.subr.mxu0 0.0
      %4952 = vmatpush1.msra.mxu0 0.0
      %4953 = vmatprep.subr.mxu0 0.0
      %4954 = vmatpush1.msra.mxu0 0.0
      %4955 = vmatprep.subr.mxu0 0.0
      %4956 = vmatpush1.msra.mxu0 0.0
      %4957 = vmatprep.subr.mxu0 0.0
      %4958 = vmatpush1.msra.mxu0 0.0
      %4959 = vmatprep.subr.mxu0 0.0
      %4960 = vmatpush1.msra.mxu0 0.0
      %4961 = vmatprep.subr.mxu0 0.0
      %4962 = vmatpush1.msra.mxu0 0.0
      %4963 = vmatprep.subr.mxu0 0.0
      %4964 = vmatpush1.msra.mxu0 0.0
      %4965 = vmatprep.subr.mxu0 0.0
      %4966 = vmatpush1.msra.mxu0 0.0
      %4967 = vmatprep.subr.mxu0 0.0
      %4968 = vmatpush1.msra.mxu0 0.0
      %4969 = vmatprep.subr.mxu0 0.0
      %4970 = vmatpush1.msra.mxu0 0.0
      %4971 = vmatprep.subr.mxu0 0.0
      %4972 = vmatpush1.msra.mxu0 0.0
      %4973 = vmatprep.subr.mxu0 0.0
      %4974 = vmatpush1.msra.mxu0 0.0
      %4975 = vmatprep.subr.mxu0 0.0
      %4976 = vmatpush1.msra.mxu0 0.0
      %4977 = vmatprep.subr.mxu0 0.0
      %4978 = vmatpush1.msra.mxu0 0.0
      %4979 = vmatprep.subr.mxu0 0.0
      %4980 = vmatpush1.msra.mxu0 0.0
      %4981 = vmatprep.subr.mxu0 0.0
      %4982 = vmatpush1.msra.mxu0 0.0
      %4983 = vmatprep.subr.mxu0 0.0
      %4984 = vmatpush1.msra.mxu0 0.0
      %4985 = vmatprep.subr.mxu0 0.0
      %4986 = vmatpush1.msra.mxu0 0.0
      %4987 = vmatprep.subr.mxu0 0.0
      %4988 = vmatpush1.msra.mxu0 0.0
      %4989 = vmatprep.subr.mxu0 0.0
      %4990 = vmatpush1.msra.mxu0 0.0
      %4991 = vmatprep.mubr.f32.mxu0 0.0
      %4992 = vmatmul.mubr.f32.gmra.mrb[0].mxu0 %v4785
      %v4993 = vpop.f32.mrb[0].mxu0
      %v4994 = vadd.f32 %v4533, %v4993
      %v4995 = vpop.f32.mrb[0].mxu0
      %4996 = vdwg.mxu0
      %v4998 = vrot.slane %v4854, 7
      %v5000 = vadd.f32 %v4543, %v4998
      %v5001 = vxor.u32 %v5000, 2147483648
      %v5002 = vmul.f32 %v5001, 1.442695
      %v5003 = vpow.pop %v5002
      %v5004 = vadd.f32 %v5003, 1.0
      %v5005 = vrcp.pop %v5004
      %v5006 = vmul.f32 1.0, %v5005
      %v5008 = vrot.slane %v4924, 7
      %v5010 = vadd.f32 %v4545, %v5008
      %v5011 = vxor.u32 %v5010, 2147483648
      %v5012 = vmul.f32 %v5011, 1.442695
      %v5013 = vpow.pop %v5012
      %v5014 = vadd.f32 %v5013, 1.0
      %v5015 = vrcp.pop %v5014
      %v5016 = vmul.f32 1.0, %v5015
      %v5018 = vrot.slane %v4994, 7
      %v5020 = vmul.f32 %v5006, %v5018
      %v5021 = vadd.f32 %v4547, %v5020
      %v5022 = vtanh.pop %v5021
      %v5023 = vsub.f32 1.0, %v5016
      %v5024 = vmul.f32 %v5023, %v5022
      %v5025 = vrot.slane %v4783, 7
      %v5027 = vmul.f32 %v5016, %v5025
      %v5028 = vadd.f32 %v5024, %v5027
      %v5030 = vrot.slane %v5028, 1
      %v5031 = vsel %vm3947, %v5030, 0
      %5033 = vmatprep.subr.mxu0 0.0
      %5034 = vmatpush1.msra.mxu0 %v4509
      %5035 = vmatprep.subr.mxu0 0.0
      %5036 = vmatpush1.msra.mxu0 %v4510
      %5037 = vmatprep.subr.mxu0 0.0
      %5038 = vmatpush1.msra.mxu0 %v4511
      %5039 = vmatprep.subr.mxu0 0.0
      %5040 = vmatpush1.msra.mxu0 %v4512
      %5041 = vmatprep.subr.mxu0 0.0
      %5042 = vmatpush1.msra.mxu0 %v4513
      %5043 = vmatprep.subr.mxu0 0.0
      %5044 = vmatpush1.msra.mxu0 %v4514
      %5045 = vmatprep.subr.mxu0 0.0
      %5046 = vmatpush1.msra.mxu0 %v4515
      %5047 = vmatprep.subr.mxu0 0.0
      %5048 = vmatpush1.msra.mxu0 %v4516
      %5049 = vmatprep.subr.mxu0 0.0
      %5050 = vmatpush1.msra.mxu0 0.0
      %5051 = vmatprep.subr.mxu0 0.0
      %5052 = vmatpush1.msra.mxu0 0.0
      %5053 = vmatprep.subr.mxu0 0.0
      %5054 = vmatpush1.msra.mxu0 0.0
      %5055 = vmatprep.subr.mxu0 0.0
      %5056 = vmatpush1.msra.mxu0 0.0
      %5057 = vmatprep.subr.mxu0 0.0
      %5058 = vmatpush1.msra.mxu0 0.0
      %5059 = vmatprep.subr.mxu0 0.0
      %5060 = vmatpush1.msra.mxu0 0.0
      %5061 = vmatprep.subr.mxu0 0.0
      %5062 = vmatpush1.msra.mxu0 0.0
      %5063 = vmatprep.subr.mxu0 0.0
      %5064 = vmatpush1.msra.mxu0 0.0
      %5065 = vmatprep.subr.mxu0 0.0
      %5066 = vmatpush1.msra.mxu0 0.0
      %5067 = vmatprep.subr.mxu0 0.0
      %5068 = vmatpush1.msra.mxu0 0.0
      %5069 = vmatprep.subr.mxu0 0.0
      %5070 = vmatpush1.msra.mxu0 0.0
      %5071 = vmatprep.subr.mxu0 0.0
      %5072 = vmatpush1.msra.mxu0 0.0
      %5073 = vmatprep.subr.mxu0 0.0
      %5074 = vmatpush1.msra.mxu0 0.0
      %5075 = vmatprep.subr.mxu0 0.0
      %5076 = vmatpush1.msra.mxu0 0.0
      %5077 = vmatprep.subr.mxu0 0.0
      %5078 = vmatpush1.msra.mxu0 0.0
      %5079 = vmatprep.subr.mxu0 0.0
      %5080 = vmatpush1.msra.mxu0 0.0
      %5081 = vmatprep.subr.mxu0 0.0
      %5082 = vmatpush1.msra.mxu0 0.0
      %5083 = vmatprep.subr.mxu0 0.0
      %5084 = vmatpush1.msra.mxu0 0.0
      %5085 = vmatprep.subr.mxu0 0.0
      %5086 = vmatpush1.msra.mxu0 0.0
      %5087 = vmatprep.subr.mxu0 0.0
      %5088 = vmatpush1.msra.mxu0 0.0
      %5089 = vmatprep.subr.mxu0 0.0
      %5090 = vmatpush1.msra.mxu0 0.0
      %5091 = vmatprep.subr.mxu0 0.0
      %5092 = vmatpush1.msra.mxu0 0.0
      %5093 = vmatprep.subr.mxu0 0.0
      %5094 = vmatpush1.msra.mxu0 0.0
      %5095 = vmatprep.subr.mxu0 0.0
      %5096 = vmatpush1.msra.mxu0 0.0
      %5097 = vmatprep.mubr.f32.mxu0 0.0
      %5098 = vmatmul.mubr.f32.gmra.mrb[0].mxu0 %v5031
      %v5099 = vpop.f32.mrb[0].mxu0
      %v5100 = vadd.f32 0.0, %v5099
      %v5101 = vpop.f32.mrb[0].mxu0
      %5102 = vdwg.mxu0
      %5103 = vmatprep.subr.mxu0 0.0
      %5104 = vmatpush1.msra.mxu0 %v4517
      %5105 = vmatprep.subr.mxu0 0.0
      %5106 = vmatpush1.msra.mxu0 %v4518
      %5107 = vmatprep.subr.mxu0 0.0
      %5108 = vmatpush1.msra.mxu0 %v4519
      %5109 = vmatprep.subr.mxu0 0.0
      %5110 = vmatpush1.msra.mxu0 %v4520
      %5111 = vmatprep.subr.mxu0 0.0
      %5112 = vmatpush1.msra.mxu0 %v4521
      %5113 = vmatprep.subr.mxu0 0.0
      %5114 = vmatpush1.msra.mxu0 %v4522
      %5115 = vmatprep.subr.mxu0 0.0
      %5116 = vmatpush1.msra.mxu0 %v4523
      %5117 = vmatprep.subr.mxu0 0.0
      %5118 = vmatpush1.msra.mxu0 %v4524
      %5119 = vmatprep.subr.mxu0 0.0
      %5120 = vmatpush1.msra.mxu0 0.0
      %5121 = vmatprep.subr.mxu0 0.0
      %5122 = vmatpush1.msra.mxu0 0.0
      %5123 = vmatprep.subr.mxu0 0.0
      %5124 = vmatpush1.msra.mxu0 0.0
      %5125 = vmatprep.subr.mxu0 0.0
      %5126 = vmatpush1.msra.mxu0 0.0
      %5127 = vmatprep.subr.mxu0 0.0
      %5128 = vmatpush1.msra.mxu0 0.0
      %5129 = vmatprep.subr.mxu0 0.0
      %5130 = vmatpush1.msra.mxu0 0.0
      %5131 = vmatprep.subr.mxu0 0.0
      %5132 = vmatpush1.msra.mxu0 0.0
      %5133 = vmatprep.subr.mxu0 0.0
      %5134 = vmatpush1.msra.mxu0 0.0
      %5135 = vmatprep.subr.mxu0 0.0
      %5136 = vmatpush1.msra.mxu0 0.0
      %5137 = vmatprep.subr.mxu0 0.0
      %5138 = vmatpush1.msra.mxu0 0.0
      %5139 = vmatprep.subr.mxu0 0.0
      %5140 = vmatpush1.msra.mxu0 0.0
      %5141 = vmatprep.subr.mxu0 0.0
      %5142 = vmatpush1.msra.mxu0 0.0
      %5143 = vmatprep.subr.mxu0 0.0
      %5144 = vmatpush1.msra.mxu0 0.0
      %5145 = vmatprep.subr.mxu0 0.0
      %5146 = vmatpush1.msra.mxu0 0.0
      %5147 = vmatprep.subr.mxu0 0.0
      %5148 = vmatpush1.msra.mxu0 0.0
      %5149 = vmatprep.subr.mxu0 0.0
      %5150 = vmatpush1.msra.mxu0 0.0
      %5151 = vmatprep.subr.mxu0 0.0
      %5152 = vmatpush1.msra.mxu0 0.0
      %5153 = vmatprep.subr.mxu0 0.0
      %5154 = vmatpush1.msra.mxu0 0.0
      %5155 = vmatprep.subr.mxu0 0.0
      %5156 = vmatpush1.msra.mxu0 0.0
      %5157 = vmatprep.subr.mxu0 0.0
      %5158 = vmatpush1.msra.mxu0 0.0
      %5159 = vmatprep.subr.mxu0 0.0
      %5160 = vmatpush1.msra.mxu0 0.0
      %5161 = vmatprep.subr.mxu0 0.0
      %5162 = vmatpush1.msra.mxu0 0.0
      %5163 = vmatprep.subr.mxu0 0.0
      %5164 = vmatpush1.msra.mxu0 0.0
      %5165 = vmatprep.subr.mxu0 0.0
      %5166 = vmatpush1.msra.mxu0 0.0
      %5167 = vmatprep.mubr.f32.mxu0 0.0
      %5168 = vmatmul.mubr.f32.gmra.mrb[0].mxu0 %v5031
      %v5169 = vpop.f32.mrb[0].mxu0
      %v5170 = vadd.f32 0.0, %v5169
      %v5171 = vpop.f32.mrb[0].mxu0
      %5172 = vdwg.mxu0
      %5173 = vmatprep.subr.mxu0 0.0
      %5174 = vmatpush1.msra.mxu0 %v4525
      %5175 = vmatprep.subr.mxu0 0.0
      %5176 = vmatpush1.msra.mxu0 %v4526
      %5177 = vmatprep.subr.mxu0 0.0
      %5178 = vmatpush1.msra.mxu0 %v4527
      %5179 = vmatprep.subr.mxu0 0.0
      %5180 = vmatpush1.msra.mxu0 %v4528
      %5181 = vmatprep.subr.mxu0 0.0
      %5182 = vmatpush1.msra.mxu0 %v4529
      %5183 = vmatprep.subr.mxu0 0.0
      %5184 = vmatpush1.msra.mxu0 %v4530
      %5185 = vmatprep.subr.mxu0 0.0
      %5186 = vmatpush1.msra.mxu0 %v4531
      %5187 = vmatprep.subr.mxu0 0.0
      %5188 = vmatpush1.msra.mxu0 %v4532
      %5189 = vmatprep.subr.mxu0 0.0
      %5190 = vmatpush1.msra.mxu0 0.0
      %5191 = vmatprep.subr.mxu0 0.0
      %5192 = vmatpush1.msra.mxu0 0.0
      %5193 = vmatprep.subr.mxu0 0.0
      %5194 = vmatpush1.msra.mxu0 0.0
      %5195 = vmatprep.subr.mxu0 0.0
      %5196 = vmatpush1.msra.mxu0 0.0
      %5197 = vmatprep.subr.mxu0 0.0
      %5198 = vmatpush1.msra.mxu0 0.0
      %5199 = vmatprep.subr.mxu0 0.0
      %5200 = vmatpush1.msra.mxu0 0.0
      %5201 = vmatprep.subr.mxu0 0.0
      %5202 = vmatpush1.msra.mxu0 0.0
      %5203 = vmatprep.subr.mxu0 0.0
      %5204 = vmatpush1.msra.mxu0 0.0
      %5205 = vmatprep.subr.mxu0 0.0
      %5206 = vmatpush1.msra.mxu0 0.0
      %5207 = vmatprep.subr.mxu0 0.0
      %5208 = vmatpush1.msra.mxu0 0.0
      %5209 = vmatprep.subr.mxu0 0.0
      %5210 = vmatpush1.msra.mxu0 0.0
      %5211 = vmatprep.subr.mxu0 0.0
      %5212 = vmatpush1.msra.mxu0 0.0
      %5213 = vmatprep.subr.mxu0 0.0
      %5214 = vmatpush1.msra.mxu0 0.0
      %5215 = vmatprep.subr.mxu0 0.0
      %5216 = vmatpush1.msra.mxu0 0.0
      %5217 = vmatprep.subr.mxu0 0.0
      %5218 = vmatpush1.msra.mxu0 0.0
      %5219 = vmatprep.subr.mxu0 0.0
      %5220 = vmatpush1.msra.mxu0 0.0
      %5221 = vmatprep.subr.mxu0 0.0
      %5222 = vmatpush1.msra.mxu0 0.0
      %5223 = vmatprep.subr.mxu0 0.0
      %5224 = vmatpush1.msra.mxu0 0.0
      %5225 = vmatprep.subr.mxu0 0.0
      %5226 = vmatpush1.msra.mxu0 0.0
      %5227 = vmatprep.subr.mxu0 0.0
      %5228 = vmatpush1.msra.mxu0 0.0
      %5229 = vmatprep.subr.mxu0 0.0
      %5230 = vmatpush1.msra.mxu0 0.0
      %5231 = vmatprep.subr.mxu0 0.0
      %5232 = vmatpush1.msra.mxu0 0.0
      %5233 = vmatprep.subr.mxu0 0.0
      %5234 = vmatpush1.msra.mxu0 0.0
      %5235 = vmatprep.subr.mxu0 0.0
      %5236 = vmatpush1.msra.mxu0 0.0
      %5237 = vmatprep.mubr.f32.mxu0 0.0
      %5238 = vmatmul.mubr.f32.gmra.mrb[0].mxu0 %v5031
      %v5239 = vpop.f32.mrb[0].mxu0
      %v5240 = vadd.f32 %v4533, %v5239
      %v5241 = vpop.f32.mrb[0].mxu0
      %5242 = vdwg.mxu0
      %v5244 = vrot.slane %v5100, 6
      %v5246 = vadd.f32 %v4543, %v5244
      %v5247 = vxor.u32 %v5246, 2147483648
      %v5248 = vmul.f32 %v5247, 1.442695
      %v5249 = vpow.pop %v5248
      %v5250 = vadd.f32 %v5249, 1.0
      %v5251 = vrcp.pop %v5250
      %v5252 = vmul.f32 1.0, %v5251
      %v5254 = vrot.slane %v5170, 6
      %v5256 = vadd.f32 %v4545, %v5254
      %v5257 = vxor.u32 %v5256, 2147483648
      %v5258 = vmul.f32 %v5257, 1.442695
      %v5259 = vpow.pop %v5258
      %v5260 = vadd.f32 %v5259, 1.0
      %v5261 = vrcp.pop %v5260
      %v5262 = vmul.f32 1.0, %v5261
      %v5264 = vrot.slane %v5240, 6
      %v5266 = vmul.f32 %v5252, %v5264
      %v5267 = vadd.f32 %v4547, %v5266
      %v5268 = vtanh.pop %v5267
      %v5269 = vsub.f32 1.0, %v5262
      %v5270 = vmul.f32 %v5269, %v5268
      %v5271 = vrot.slane %v5028, 7
      %v5273 = vmul.f32 %v5262, %v5271
      %v5274 = vadd.f32 %v5270, %v5273
      %v5276 = vrot.slane %v5274, 2
      %v5277 = vsel %vm3947, %v5276, 0
      %5279 = vmatprep.subr.mxu0 0.0
      %5280 = vmatpush1.msra.mxu0 %v4509
      %5281 = vmatprep.subr.mxu0 0.0
      %5282 = vmatpush1.msra.mxu0 %v4510
      %5283 = vmatprep.subr.mxu0 0.0
      %5284 = vmatpush1.msra.mxu0 %v4511
      %5285 = vmatprep.subr.mxu0 0.0
      %5286 = vmatpush1.msra.mxu0 %v4512
      %5287 = vmatprep.subr.mxu0 0.0
      %5288 = vmatpush1.msra.mxu0 %v4513
      %5289 = vmatprep.subr.mxu0 0.0
      %5290 = vmatpush1.msra.mxu0 %v4514
      %5291 = vmatprep.subr.mxu0 0.0
      %5292 = vmatpush1.msra.mxu0 %v4515
      %5293 = vmatprep.subr.mxu0 0.0
      %5294 = vmatpush1.msra.mxu0 %v4516
      %5295 = vmatprep.subr.mxu0 0.0
      %5296 = vmatpush1.msra.mxu0 0.0
      %5297 = vmatprep.subr.mxu0 0.0
      %5298 = vmatpush1.msra.mxu0 0.0
      %5299 = vmatprep.subr.mxu0 0.0
      %5300 = vmatpush1.msra.mxu0 0.0
      %5301 = vmatprep.subr.mxu0 0.0
      %5302 = vmatpush1.msra.mxu0 0.0
      %5303 = vmatprep.subr.mxu0 0.0
      %5304 = vmatpush1.msra.mxu0 0.0
      %5305 = vmatprep.subr.mxu0 0.0
      %5306 = vmatpush1.msra.mxu0 0.0
      %5307 = vmatprep.subr.mxu0 0.0
      %5308 = vmatpush1.msra.mxu0 0.0
      %5309 = vmatprep.subr.mxu0 0.0
      %5310 = vmatpush1.msra.mxu0 0.0
      %5311 = vmatprep.subr.mxu0 0.0
      %5312 = vmatpush1.msra.mxu0 0.0
      %5313 = vmatprep.subr.mxu0 0.0
      %5314 = vmatpush1.msra.mxu0 0.0
      %5315 = vmatprep.subr.mxu0 0.0
      %5316 = vmatpush1.msra.mxu0 0.0
      %5317 = vmatprep.subr.mxu0 0.0
      %5318 = vmatpush1.msra.mxu0 0.0
      %5319 = vmatprep.subr.mxu0 0.0
      %5320 = vmatpush1.msra.mxu0 0.0
      %5321 = vmatprep.subr.mxu0 0.0
      %5322 = vmatpush1.msra.mxu0 0.0
      %5323 = vmatprep.subr.mxu0 0.0
      %5324 = vmatpush1.msra.mxu0 0.0
      %5325 = vmatprep.subr.mxu0 0.0
      %5326 = vmatpush1.msra.mxu0 0.0
      %5327 = vmatprep.subr.mxu0 0.0
      %5328 = vmatpush1.msra.mxu0 0.0
      %5329 = vmatprep.subr.mxu0 0.0
      %5330 = vmatpush1.msra.mxu0 0.0
      %5331 = vmatprep.subr.mxu0 0.0
      %5332 = vmatpush1.msra.mxu0 0.0
      %5333 = vmatprep.subr.mxu0 0.0
      %5334 = vmatpush1.msra.mxu0 0.0
      %5335 = vmatprep.subr.mxu0 0.0
      %5336 = vmatpush1.msra.mxu0 0.0
      %5337 = vmatprep.subr.mxu0 0.0
      %5338 = vmatpush1.msra.mxu0 0.0
      %5339 = vmatprep.subr.mxu0 0.0
      %5340 = vmatpush1.msra.mxu0 0.0
      %5341 = vmatprep.subr.mxu0 0.0
      %5342 = vmatpush1.msra.mxu0 0.0
      %5343 = vmatprep.mubr.f32.mxu0 0.0
      %5344 = vmatmul.mubr.f32.gmra.mrb[0].mxu0 %v5277
      %v5345 = vpop.f32.mrb[0].mxu0
      %v5346 = vadd.f32 0.0, %v5345
      %v5347 = vpop.f32.mrb[0].mxu0
      %5348 = vdwg.mxu0
      %5349 = vmatprep.subr.mxu0 0.0
      %5350 = vmatpush1.msra.mxu0 %v4517
      %5351 = vmatprep.subr.mxu0 0.0
      %5352 = vmatpush1.msra.mxu0 %v4518
      %5353 = vmatprep.subr.mxu0 0.0
      %5354 = vmatpush1.msra.mxu0 %v4519
      %5355 = vmatprep.subr.mxu0 0.0
      %5356 = vmatpush1.msra.mxu0 %v4520
      %5357 = vmatprep.subr.mxu0 0.0
      %5358 = vmatpush1.msra.mxu0 %v4521
      %5359 = vmatprep.subr.mxu0 0.0
      %5360 = vmatpush1.msra.mxu0 %v4522
      %5361 = vmatprep.subr.mxu0 0.0
      %5362 = vmatpush1.msra.mxu0 %v4523
      %5363 = vmatprep.subr.mxu0 0.0
      %5364 = vmatpush1.msra.mxu0 %v4524
      %5365 = vmatprep.subr.mxu0 0.0
      %5366 = vmatpush1.msra.mxu0 0.0
      %5367 = vmatprep.subr.mxu0 0.0
      %5368 = vmatpush1.msra.mxu0 0.0
      %5369 = vmatprep.subr.mxu0 0.0
      %5370 = vmatpush1.msra.mxu0 0.0
      %5371 = vmatprep.subr.mxu0 0.0
      %5372 = vmatpush1.msra.mxu0 0.0
      %5373 = vmatprep.subr.mxu0 0.0
      %5374 = vmatpush1.msra.mxu0 0.0
      %5375 = vmatprep.subr.mxu0 0.0
      %5376 = vmatpush1.msra.mxu0 0.0
      %5377 = vmatprep.subr.mxu0 0.0
      %5378 = vmatpush1.msra.mxu0 0.0
      %5379 = vmatprep.subr.mxu0 0.0
      %5380 = vmatpush1.msra.mxu0 0.0
      %5381 = vmatprep.subr.mxu0 0.0
      %5382 = vmatpush1.msra.mxu0 0.0
      %5383 = vmatprep.subr.mxu0 0.0
      %5384 = vmatpush1.msra.mxu0 0.0
      %5385 = vmatprep.subr.mxu0 0.0
      %5386 = vmatpush1.msra.mxu0 0.0
      %5387 = vmatprep.subr.mxu0 0.0
      %5388 = vmatpush1.msra.mxu0 0.0
      %5389 = vmatprep.subr.mxu0 0.0
      %5390 = vmatpush1.msra.mxu0 0.0
      %5391 = vmatprep.subr.mxu0 0.0
      %5392 = vmatpush1.msra.mxu0 0.0
      %5393 = vmatprep.subr.mxu0 0.0
      %5394 = vmatpush1.msra.mxu0 0.0
      %5395 = vmatprep.subr.mxu0 0.0
      %5396 = vmatpush1.msra.mxu0 0.0
      %5397 = vmatprep.subr.mxu0 0.0
      %5398 = vmatpush1.msra.mxu0 0.0
      %5399 = vmatprep.subr.mxu0 0.0
      %5400 = vmatpush1.msra.mxu0 0.0
      %5401 = vmatprep.subr.mxu0 0.0
      %5402 = vmatpush1.msra.mxu0 0.0
      %5403 = vmatprep.subr.mxu0 0.0
      %5404 = vmatpush1.msra.mxu0 0.0
      %5405 = vmatprep.subr.mxu0 0.0
      %5406 = vmatpush1.msra.mxu0 0.0
      %5407 = vmatprep.subr.mxu0 0.0
      %5408 = vmatpush1.msra.mxu0 0.0
      %5409 = vmatprep.subr.mxu0 0.0
      %5410 = vmatpush1.msra.mxu0 0.0
      %5411 = vmatprep.subr.mxu0 0.0
      %5412 = vmatpush1.msra.mxu0 0.0
      %5413 = vmatprep.mubr.f32.mxu0 0.0
      %5414 = vmatmul.mubr.f32.gmra.mrb[0].mxu0 %v5277
      %v5415 = vpop.f32.mrb[0].mxu0
      %v5416 = vadd.f32 0.0, %v5415
      %v5417 = vpop.f32.mrb[0].mxu0
      %5418 = vdwg.mxu0
      %5419 = vmatprep.subr.mxu0 0.0
      %5420 = vmatpush1.msra.mxu0 %v4525
      %5421 = vmatprep.subr.mxu0 0.0
      %5422 = vmatpush1.msra.mxu0 %v4526
      %5423 = vmatprep.subr.mxu0 0.0
      %5424 = vmatpush1.msra.mxu0 %v4527
      %5425 = vmatprep.subr.mxu0 0.0
      %5426 = vmatpush1.msra.mxu0 %v4528
      %5427 = vmatprep.subr.mxu0 0.0
      %5428 = vmatpush1.msra.mxu0 %v4529
      %5429 = vmatprep.subr.mxu0 0.0
      %5430 = vmatpush1.msra.mxu0 %v4530
      %5431 = vmatprep.subr.mxu0 0.0
      %5432 = vmatpush1.msra.mxu0 %v4531
      %5433 = vmatprep.subr.mxu0 0.0
      %5434 = vmatpush1.msra.mxu0 %v4532
      %5435 = vmatprep.subr.mxu0 0.0
      %5436 = vmatpush1.msra.mxu0 0.0
      %5437 = vmatprep.subr.mxu0 0.0
      %5438 = vmatpush1.msra.mxu0 0.0
      %5439 = vmatprep.subr.mxu0 0.0
      %5440 = vmatpush1.msra.mxu0 0.0
      %5441 = vmatprep.subr.mxu0 0.0
      %5442 = vmatpush1.msra.mxu0 0.0
      %5443 = vmatprep.subr.mxu0 0.0
      %5444 = vmatpush1.msra.mxu0 0.0
      %5445 = vmatprep.subr.mxu0 0.0
      %5446 = vmatpush1.msra.mxu0 0.0
      %5447 = vmatprep.subr.mxu0 0.0
      %5448 = vmatpush1.msra.mxu0 0.0
      %5449 = vmatprep.subr.mxu0 0.0
      %5450 = vmatpush1.msra.mxu0 0.0
      %5451 = vmatprep.subr.mxu0 0.0
      %5452 = vmatpush1.msra.mxu0 0.0
      %5453 = vmatprep.subr.mxu0 0.0
      %5454 = vmatpush1.msra.mxu0 0.0
      %5455 = vmatprep.subr.mxu0 0.0
      %5456 = vmatpush1.msra.mxu0 0.0
      %5457 = vmatprep.subr.mxu0 0.0
      %5458 = vmatpush1.msra.mxu0 0.0
      %5459 = vmatprep.subr.mxu0 0.0
      %5460 = vmatpush1.msra.mxu0 0.0
      %5461 = vmatprep.subr.mxu0 0.0
      %5462 = vmatpush1.msra.mxu0 0.0
      %5463 = vmatprep.subr.mxu0 0.0
      %5464 = vmatpush1.msra.mxu0 0.0
      %5465 = vmatprep.subr.mxu0 0.0
      %5466 = vmatpush1.msra.mxu0 0.0
      %5467 = vmatprep.subr.mxu0 0.0
      %5468 = vmatpush1.msra.mxu0 0.0
      %5469 = vmatprep.subr.mxu0 0.0
      %5470 = vmatpush1.msra.mxu0 0.0
      %5471 = vmatprep.subr.mxu0 0.0
      %5472 = vmatpush1.msra.mxu0 0.0
      %5473 = vmatprep.subr.mxu0 0.0
      %5474 = vmatpush1.msra.mxu0 0.0
      %5475 = vmatprep.subr.mxu0 0.0
      %5476 = vmatpush1.msra.mxu0 0.0
      %5477 = vmatprep.subr.mxu0 0.0
      %5478 = vmatpush1.msra.mxu0 0.0
      %5479 = vmatprep.subr.mxu0 0.0
      %5480 = vmatpush1.msra.mxu0 0.0
      %5481 = vmatprep.subr.mxu0 0.0
      %5482 = vmatpush1.msra.mxu0 0.0
      %5483 = vmatprep.mubr.f32.mxu0 0.0
      %5484 = vmatmul.mubr.f32.gmra.mrb[0].mxu0 %v5277
      %v5485 = vpop.f32.mrb[0].mxu0
      %v5486 = vadd.f32 %v4533, %v5485
      %v5487 = vpop.f32.mrb[0].mxu0
      %5488 = vdwg.mxu0
      %v5490 = vrot.slane %v5346, 5
      %v5492 = vadd.f32 %v4543, %v5490
      %v5493 = vxor.u32 %v5492, 2147483648
      %v5494 = vmul.f32 %v5493, 1.442695
      %v5495 = vpow.pop %v5494
      %v5496 = vadd.f32 %v5495, 1.0
      %v5497 = vrcp.pop %v5496
      %v5498 = vmul.f32 1.0, %v5497
      %v5500 = vrot.slane %v5416, 5
      %v5502 = vadd.f32 %v4545, %v5500
      %v5503 = vxor.u32 %v5502, 2147483648
      %v5504 = vmul.f32 %v5503, 1.442695
      %v5505 = vpow.pop %v5504
      %v5506 = vadd.f32 %v5505, 1.0
      %v5507 = vrcp.pop %v5506
      %v5508 = vmul.f32 1.0, %v5507
      %v5510 = vrot.slane %v5486, 5
      %v5512 = vmul.f32 %v5498, %v5510
      %v5513 = vadd.f32 %v4547, %v5512
      %v5514 = vtanh.pop %v5513
      %v5515 = vsub.f32 1.0, %v5508
      %v5516 = vmul.f32 %v5515, %v5514
      %v5517 = vrot.slane %v5274, 7
      %v5519 = vmul.f32 %v5508, %v5517
      %v5520 = vadd.f32 %v5516, %v5519
      %v5522 = vrot.slane %v5520, 3
      %v5523 = vsel %vm3947, %v5522, 0
      %5525 = vmatprep.subr.mxu0 0.0
      %5526 = vmatpush1.msra.mxu0 %v4509
      %5527 = vmatprep.subr.mxu0 0.0
      %5528 = vmatpush1.msra.mxu0 %v4510
      %5529 = vmatprep.subr.mxu0 0.0
      %5530 = vmatpush1.msra.mxu0 %v4511
      %5531 = vmatprep.subr.mxu0 0.0
      %5532 = vmatpush1.msra.mxu0 %v4512
      %5533 = vmatprep.subr.mxu0 0.0
      %5534 = vmatpush1.msra.mxu0 %v4513
      %5535 = vmatprep.subr.mxu0 0.0
      %5536 = vmatpush1.msra.mxu0 %v4514
      %5537 = vmatprep.subr.mxu0 0.0
      %5538 = vmatpush1.msra.mxu0 %v4515
      %5539 = vmatprep.subr.mxu0 0.0
      %5540 = vmatpush1.msra.mxu0 %v4516
      %5541 = vmatprep.subr.mxu0 0.0
      %5542 = vmatpush1.msra.mxu0 0.0
      %5543 = vmatprep.subr.mxu0 0.0
      %5544 = vmatpush1.msra.mxu0 0.0
      %5545 = vmatprep.subr.mxu0 0.0
      %5546 = vmatpush1.msra.mxu0 0.0
      %5547 = vmatprep.subr.mxu0 0.0
      %5548 = vmatpush1.msra.mxu0 0.0
      %5549 = vmatprep.subr.mxu0 0.0
      %5550 = vmatpush1.msra.mxu0 0.0
      %5551 = vmatprep.subr.mxu0 0.0
      %5552 = vmatpush1.msra.mxu0 0.0
      %5553 = vmatprep.subr.mxu0 0.0
      %5554 = vmatpush1.msra.mxu0 0.0
      %5555 = vmatprep.subr.mxu0 0.0
      %5556 = vmatpush1.msra.mxu0 0.0
      %5557 = vmatprep.subr.mxu0 0.0
      %5558 = vmatpush1.msra.mxu0 0.0
      %5559 = vmatprep.subr.mxu0 0.0
      %5560 = vmatpush1.msra.mxu0 0.0
      %5561 = vmatprep.subr.mxu0 0.0
      %5562 = vmatpush1.msra.mxu0 0.0
      %5563 = vmatprep.subr.mxu0 0.0
      %5564 = vmatpush1.msra.mxu0 0.0
      %5565 = vmatprep.subr.mxu0 0.0
      %5566 = vmatpush1.msra.mxu0 0.0
      %5567 = vmatprep.subr.mxu0 0.0
      %5568 = vmatpush1.msra.mxu0 0.0
      %5569 = vmatprep.subr.mxu0 0.0
      %5570 = vmatpush1.msra.mxu0 0.0
      %5571 = vmatprep.subr.mxu0 0.0
      %5572 = vmatpush1.msra.mxu0 0.0
      %5573 = vmatprep.subr.mxu0 0.0
      %5574 = vmatpush1.msra.mxu0 0.0
      %5575 = vmatprep.subr.mxu0 0.0
      %5576 = vmatpush1.msra.mxu0 0.0
      %5577 = vmatprep.subr.mxu0 0.0
      %5578 = vmatpush1.msra.mxu0 0.0
      %5579 = vmatprep.subr.mxu0 0.0
      %5580 = vmatpush1.msra.mxu0 0.0
      %5581 = vmatprep.subr.mxu0 0.0
      %5582 = vmatpush1.msra.mxu0 0.0
      %5583 = vmatprep.subr.mxu0 0.0
      %5584 = vmatpush1.msra.mxu0 0.0
      %5585 = vmatprep.subr.mxu0 0.0
      %5586 = vmatpush1.msra.mxu0 0.0
      %5587 = vmatprep.subr.mxu0 0.0
      %5588 = vmatpush1.msra.mxu0 0.0
      %5589 = vmatprep.mubr.f32.mxu0 0.0
      %5590 = vmatmul.mubr.f32.gmra.mrb[0].mxu0 %v5523
      %v5591 = vpop.f32.mrb[0].mxu0
      %v5592 = vadd.f32 0.0, %v5591
      %v5593 = vpop.f32.mrb[0].mxu0
      %5594 = vdwg.mxu0
      %5595 = vmatprep.subr.mxu0 0.0
      %5596 = vmatpush1.msra.mxu0 %v4517
      %5597 = vmatprep.subr.mxu0 0.0
      %5598 = vmatpush1.msra.mxu0 %v4518
      %5599 = vmatprep.subr.mxu0 0.0
      %5600 = vmatpush1.msra.mxu0 %v4519
      %5601 = vmatprep.subr.mxu0 0.0
      %5602 = vmatpush1.msra.mxu0 %v4520
      %5603 = vmatprep.subr.mxu0 0.0
      %5604 = vmatpush1.msra.mxu0 %v4521
      %5605 = vmatprep.subr.mxu0 0.0
      %5606 = vmatpush1.msra.mxu0 %v4522
      %5607 = vmatprep.subr.mxu0 0.0
      %5608 = vmatpush1.msra.mxu0 %v4523
      %5609 = vmatprep.subr.mxu0 0.0
      %5610 = vmatpush1.msra.mxu0 %v4524
      %5611 = vmatprep.subr.mxu0 0.0
      %5612 = vmatpush1.msra.mxu0 0.0
      %5613 = vmatprep.subr.mxu0 0.0
      %5614 = vmatpush1.msra.mxu0 0.0
      %5615 = vmatprep.subr.mxu0 0.0
      %5616 = vmatpush1.msra.mxu0 0.0
      %5617 = vmatprep.subr.mxu0 0.0
      %5618 = vmatpush1.msra.mxu0 0.0
      %5619 = vmatprep.subr.mxu0 0.0
      %5620 = vmatpush1.msra.mxu0 0.0
      %5621 = vmatprep.subr.mxu0 0.0
      %5622 = vmatpush1.msra.mxu0 0.0
      %5623 = vmatprep.subr.mxu0 0.0
      %5624 = vmatpush1.msra.mxu0 0.0
      %5625 = vmatprep.subr.mxu0 0.0
      %5626 = vmatpush1.msra.mxu0 0.0
      %5627 = vmatprep.subr.mxu0 0.0
      %5628 = vmatpush1.msra.mxu0 0.0
      %5629 = vmatprep.subr.mxu0 0.0
      %5630 = vmatpush1.msra.mxu0 0.0
      %5631 = vmatprep.subr.mxu0 0.0
      %5632 = vmatpush1.msra.mxu0 0.0
      %5633 = vmatprep.subr.mxu0 0.0
      %5634 = vmatpush1.msra.mxu0 0.0
      %5635 = vmatprep.subr.mxu0 0.0
      %5636 = vmatpush1.msra.mxu0 0.0
      %5637 = vmatprep.subr.mxu0 0.0
      %5638 = vmatpush1.msra.mxu0 0.0
      %5639 = vmatprep.subr.mxu0 0.0
      %5640 = vmatpush1.msra.mxu0 0.0
      %5641 = vmatprep.subr.mxu0 0.0
      %5642 = vmatpush1.msra.mxu0 0.0
      %5643 = vmatprep.subr.mxu0 0.0
      %5644 = vmatpush1.msra.mxu0 0.0
      %5645 = vmatprep.subr.mxu0 0.0
      %5646 = vmatpush1.msra.mxu0 0.0
      %5647 = vmatprep.subr.mxu0 0.0
      %5648 = vmatpush1.msra.mxu0 0.0
      %5649 = vmatprep.subr.mxu0 0.0
      %5650 = vmatpush1.msra.mxu0 0.0
      %5651 = vmatprep.subr.mxu0 0.0
      %5652 = vmatpush1.msra.mxu0 0.0
      %5653 = vmatprep.subr.mxu0 0.0
      %5654 = vmatpush1.msra.mxu0 0.0
      %5655 = vmatprep.subr.mxu0 0.0
      %5656 = vmatpush1.msra.mxu0 0.0
      %5657 = vmatprep.subr.mxu0 0.0
      %5658 = vmatpush1.msra.mxu0 0.0
      %5659 = vmatprep.mubr.f32.mxu0 0.0
      %5660 = vmatmul.mubr.f32.gmra.mrb[0].mxu0 %v5523
      %v5661 = vpop.f32.mrb[0].mxu0
      %v5662 = vadd.f32 0.0, %v5661
      %v5663 = vpop.f32.mrb[0].mxu0
      %5664 = vdwg.mxu0
      %5665 = vmatprep.subr.mxu0 0.0
      %5666 = vmatpush1.msra.mxu0 %v4525
      %5667 = vmatprep.subr.mxu0 0.0
      %5668 = vmatpush1.msra.mxu0 %v4526
      %5669 = vmatprep.subr.mxu0 0.0
      %5670 = vmatpush1.msra.mxu0 %v4527
      %5671 = vmatprep.subr.mxu0 0.0
      %5672 = vmatpush1.msra.mxu0 %v4528
      %5673 = vmatprep.subr.mxu0 0.0
      %5674 = vmatpush1.msra.mxu0 %v4529
      %5675 = vmatprep.subr.mxu0 0.0
      %5676 = vmatpush1.msra.mxu0 %v4530
      %5677 = vmatprep.subr.mxu0 0.0
      %5678 = vmatpush1.msra.mxu0 %v4531
      %5679 = vmatprep.subr.mxu0 0.0
      %5680 = vmatpush1.msra.mxu0 %v4532
      %5681 = vmatprep.subr.mxu0 0.0
      %5682 = vmatpush1.msra.mxu0 0.0
      %5683 = vmatprep.subr.mxu0 0.0
      %5684 = vmatpush1.msra.mxu0 0.0
      %5685 = vmatprep.subr.mxu0 0.0
      %5686 = vmatpush1.msra.mxu0 0.0
      %5687 = vmatprep.subr.mxu0 0.0
      %5688 = vmatpush1.msra.mxu0 0.0
      %5689 = vmatprep.subr.mxu0 0.0
      %5690 = vmatpush1.msra.mxu0 0.0
      %5691 = vmatprep.subr.mxu0 0.0
      %5692 = vmatpush1.msra.mxu0 0.0
      %5693 = vmatprep.subr.mxu0 0.0
      %5694 = vmatpush1.msra.mxu0 0.0
      %5695 = vmatprep.subr.mxu0 0.0
      %5696 = vmatpush1.msra.mxu0 0.0
      %5697 = vmatprep.subr.mxu0 0.0
      %5698 = vmatpush1.msra.mxu0 0.0
      %5699 = vmatprep.subr.mxu0 0.0
      %5700 = vmatpush1.msra.mxu0 0.0
      %5701 = vmatprep.subr.mxu0 0.0
      %5702 = vmatpush1.msra.mxu0 0.0
      %5703 = vmatprep.subr.mxu0 0.0
      %5704 = vmatpush1.msra.mxu0 0.0
      %5705 = vmatprep.subr.mxu0 0.0
      %5706 = vmatpush1.msra.mxu0 0.0
      %5707 = vmatprep.subr.mxu0 0.0
      %5708 = vmatpush1.msra.mxu0 0.0
      %5709 = vmatprep.subr.mxu0 0.0
      %5710 = vmatpush1.msra.mxu0 0.0
      %5711 = vmatprep.subr.mxu0 0.0
      %5712 = vmatpush1.msra.mxu0 0.0
      %5713 = vmatprep.subr.mxu0 0.0
      %5714 = vmatpush1.msra.mxu0 0.0
      %5715 = vmatprep.subr.mxu0 0.0
      %5716 = vmatpush1.msra.mxu0 0.0
      %5717 = vmatprep.subr.mxu0 0.0
      %5718 = vmatpush1.msra.mxu0 0.0
      %5719 = vmatprep.subr.mxu0 0.0
      %5720 = vmatpush1.msra.mxu0 0.0
      %5721 = vmatprep.subr.mxu0 0.0
      %5722 = vmatpush1.msra.mxu0 0.0
      %5723 = vmatprep.subr.mxu0 0.0
      %5724 = vmatpush1.msra.mxu0 0.0
      %5725 = vmatprep.subr.mxu0 0.0
      %5726 = vmatpush1.msra.mxu0 0.0
      %5727 = vmatprep.subr.mxu0 0.0
      %5728 = vmatpush1.msra.mxu0 0.0
      %5729 = vmatprep.mubr.f32.mxu0 0.0
      %5730 = vmatmul.mubr.f32.gmra.mrb[0].mxu0 %v5523
      %v5731 = vpop.f32.mrb[0].mxu0
      %v5732 = vadd.f32 %v4533, %v5731
      %v5733 = vpop.f32.mrb[0].mxu0
      %5734 = vdwg.mxu0
      %v5736 = vrot.slane %v5592, 4
      %v5738 = vadd.f32 %v4543, %v5736
      %v5739 = vxor.u32 %v5738, 2147483648
      %v5740 = vmul.f32 %v5739, 1.442695
      %v5741 = vpow.pop %v5740
      %v5742 = vadd.f32 %v5741, 1.0
      %v5743 = vrcp.pop %v5742
      %v5744 = vmul.f32 1.0, %v5743
      %v5746 = vrot.slane %v5662, 4
      %v5748 = vadd.f32 %v4545, %v5746
      %v5749 = vxor.u32 %v5748, 2147483648
      %v5750 = vmul.f32 %v5749, 1.442695
      %v5751 = vpow.pop %v5750
      %v5752 = vadd.f32 %v5751, 1.0
      %v5753 = vrcp.pop %v5752
      %v5754 = vmul.f32 1.0, %v5753
      %v5756 = vrot.slane %v5732, 4
      %v5758 = vmul.f32 %v5744, %v5756
      %v5759 = vadd.f32 %v4547, %v5758
      %v5760 = vtanh.pop %v5759
      %v5761 = vsub.f32 1.0, %v5754
      %v5762 = vmul.f32 %v5761, %v5760
      %v5763 = vrot.slane %v5520, 7
      %v5765 = vmul.f32 %v5754, %v5763
      %v5766 = vadd.f32 %v5762, %v5765
      %v5768 = vrot.slane %v5766, 4
      %v5769 = vsel %vm3947, %v5768, 0
      %5771 = vmatprep.subr.mxu0 0.0
      %5772 = vmatpush1.msra.mxu0 %v4509
      %5773 = vmatprep.subr.mxu0 0.0
      %5774 = vmatpush1.msra.mxu0 %v4510
      %5775 = vmatprep.subr.mxu0 0.0
      %5776 = vmatpush1.msra.mxu0 %v4511
      %5777 = vmatprep.subr.mxu0 0.0
      %5778 = vmatpush1.msra.mxu0 %v4512
      %5779 = vmatprep.subr.mxu0 0.0
      %5780 = vmatpush1.msra.mxu0 %v4513
      %5781 = vmatprep.subr.mxu0 0.0
      %5782 = vmatpush1.msra.mxu0 %v4514
      %5783 = vmatprep.subr.mxu0 0.0
      %5784 = vmatpush1.msra.mxu0 %v4515
      %5785 = vmatprep.subr.mxu0 0.0
      %5786 = vmatpush1.msra.mxu0 %v4516
      %5787 = vmatprep.subr.mxu0 0.0
      %5788 = vmatpush1.msra.mxu0 0.0
      %5789 = vmatprep.subr.mxu0 0.0
      %5790 = vmatpush1.msra.mxu0 0.0
      %5791 = vmatprep.subr.mxu0 0.0
      %5792 = vmatpush1.msra.mxu0 0.0
      %5793 = vmatprep.subr.mxu0 0.0
      %5794 = vmatpush1.msra.mxu0 0.0
      %5795 = vmatprep.subr.mxu0 0.0
      %5796 = vmatpush1.msra.mxu0 0.0
      %5797 = vmatprep.subr.mxu0 0.0
      %5798 = vmatpush1.msra.mxu0 0.0
      %5799 = vmatprep.subr.mxu0 0.0
      %5800 = vmatpush1.msra.mxu0 0.0
      %5801 = vmatprep.subr.mxu0 0.0
      %5802 = vmatpush1.msra.mxu0 0.0
      %5803 = vmatprep.subr.mxu0 0.0
      %5804 = vmatpush1.msra.mxu0 0.0
      %5805 = vmatprep.subr.mxu0 0.0
      %5806 = vmatpush1.msra.mxu0 0.0
      %5807 = vmatprep.subr.mxu0 0.0
      %5808 = vmatpush1.msra.mxu0 0.0
      %5809 = vmatprep.subr.mxu0 0.0
      %5810 = vmatpush1.msra.mxu0 0.0
      %5811 = vmatprep.subr.mxu0 0.0
      %5812 = vmatpush1.msra.mxu0 0.0
      %5813 = vmatprep.subr.mxu0 0.0
      %5814 = vmatpush1.msra.mxu0 0.0
      %5815 = vmatprep.subr.mxu0 0.0
      %5816 = vmatpush1.msra.mxu0 0.0
      %5817 = vmatprep.subr.mxu0 0.0
      %5818 = vmatpush1.msra.mxu0 0.0
      %5819 = vmatprep.subr.mxu0 0.0
      %5820 = vmatpush1.msra.mxu0 0.0
      %5821 = vmatprep.subr.mxu0 0.0
      %5822 = vmatpush1.msra.mxu0 0.0
      %5823 = vmatprep.subr.mxu0 0.0
      %5824 = vmatpush1.msra.mxu0 0.0
      %5825 = vmatprep.subr.mxu0 0.0
      %5826 = vmatpush1.msra.mxu0 0.0
      %5827 = vmatprep.subr.mxu0 0.0
      %5828 = vmatpush1.msra.mxu0 0.0
      %5829 = vmatprep.subr.mxu0 0.0
      %5830 = vmatpush1.msra.mxu0 0.0
      %5831 = vmatprep.subr.mxu0 0.0
      %5832 = vmatpush1.msra.mxu0 0.0
      %5833 = vmatprep.subr.mxu0 0.0
      %5834 = vmatpush1.msra.mxu0 0.0
      %5835 = vmatprep.mubr.f32.mxu0 0.0
      %5836 = vmatmul.mubr.f32.gmra.mrb[0].mxu0 %v5769
      %v5837 = vpop.f32.mrb[0].mxu0
      %v5838 = vadd.f32 0.0, %v5837
      %v5839 = vpop.f32.mrb[0].mxu0
      %5840 = vdwg.mxu0
      %5841 = vmatprep.subr.mxu0 0.0
      %5842 = vmatpush1.msra.mxu0 %v4517
      %5843 = vmatprep.subr.mxu0 0.0
      %5844 = vmatpush1.msra.mxu0 %v4518
      %5845 = vmatprep.subr.mxu0 0.0
      %5846 = vmatpush1.msra.mxu0 %v4519
      %5847 = vmatprep.subr.mxu0 0.0
      %5848 = vmatpush1.msra.mxu0 %v4520
      %5849 = vmatprep.subr.mxu0 0.0
      %5850 = vmatpush1.msra.mxu0 %v4521
      %5851 = vmatprep.subr.mxu0 0.0
      %5852 = vmatpush1.msra.mxu0 %v4522
      %5853 = vmatprep.subr.mxu0 0.0
      %5854 = vmatpush1.msra.mxu0 %v4523
      %5855 = vmatprep.subr.mxu0 0.0
      %5856 = vmatpush1.msra.mxu0 %v4524
      %5857 = vmatprep.subr.mxu0 0.0
      %5858 = vmatpush1.msra.mxu0 0.0
      %5859 = vmatprep.subr.mxu0 0.0
      %5860 = vmatpush1.msra.mxu0 0.0
      %5861 = vmatprep.subr.mxu0 0.0
      %5862 = vmatpush1.msra.mxu0 0.0
      %5863 = vmatprep.subr.mxu0 0.0
      %5864 = vmatpush1.msra.mxu0 0.0
      %5865 = vmatprep.subr.mxu0 0.0
      %5866 = vmatpush1.msra.mxu0 0.0
      %5867 = vmatprep.subr.mxu0 0.0
      %5868 = vmatpush1.msra.mxu0 0.0
      %5869 = vmatprep.subr.mxu0 0.0
      %5870 = vmatpush1.msra.mxu0 0.0
      %5871 = vmatprep.subr.mxu0 0.0
      %5872 = vmatpush1.msra.mxu0 0.0
      %5873 = vmatprep.subr.mxu0 0.0
      %5874 = vmatpush1.msra.mxu0 0.0
      %5875 = vmatprep.subr.mxu0 0.0
      %5876 = vmatpush1.msra.mxu0 0.0
      %5877 = vmatprep.subr.mxu0 0.0
      %5878 = vmatpush1.msra.mxu0 0.0
      %5879 = vmatprep.subr.mxu0 0.0
      %5880 = vmatpush1.msra.mxu0 0.0
      %5881 = vmatprep.subr.mxu0 0.0
      %5882 = vmatpush1.msra.mxu0 0.0
      %5883 = vmatprep.subr.mxu0 0.0
      %5884 = vmatpush1.msra.mxu0 0.0
      %5885 = vmatprep.subr.mxu0 0.0
      %5886 = vmatpush1.msra.mxu0 0.0
      %5887 = vmatprep.subr.mxu0 0.0
      %5888 = vmatpush1.msra.mxu0 0.0
      %5889 = vmatprep.subr.mxu0 0.0
      %5890 = vmatpush1.msra.mxu0 0.0
      %5891 = vmatprep.subr.mxu0 0.0
      %5892 = vmatpush1.msra.mxu0 0.0
      %5893 = vmatprep.subr.mxu0 0.0
      %5894 = vmatpush1.msra.mxu0 0.0
      %5895 = vmatprep.subr.mxu0 0.0
      %5896 = vmatpush1.msra.mxu0 0.0
      %5897 = vmatprep.subr.mxu0 0.0
      %5898 = vmatpush1.msra.mxu0 0.0
      %5899 = vmatprep.subr.mxu0 0.0
      %5900 = vmatpush1.msra.mxu0 0.0
      %5901 = vmatprep.subr.mxu0 0.0
      %5902 = vmatpush1.msra.mxu0 0.0
      %5903 = vmatprep.subr.mxu0 0.0
      %5904 = vmatpush1.msra.mxu0 0.0
      %5905 = vmatprep.mubr.f32.mxu0 0.0
      %5906 = vmatmul.mubr.f32.gmra.mrb[0].mxu0 %v5769
      %v5907 = vpop.f32.mrb[0].mxu0
      %v5908 = vadd.f32 0.0, %v5907
      %v5909 = vpop.f32.mrb[0].mxu0
      %5910 = vdwg.mxu0
      %5911 = vmatprep.subr.mxu0 0.0
      %5912 = vmatpush1.msra.mxu0 %v4525
      %5913 = vmatprep.subr.mxu0 0.0
      %5914 = vmatpush1.msra.mxu0 %v4526
      %5915 = vmatprep.subr.mxu0 0.0
      %5916 = vmatpush1.msra.mxu0 %v4527
      %5917 = vmatprep.subr.mxu0 0.0
      %5918 = vmatpush1.msra.mxu0 %v4528
      %5919 = vmatprep.subr.mxu0 0.0
      %5920 = vmatpush1.msra.mxu0 %v4529
      %5921 = vmatprep.subr.mxu0 0.0
      %5922 = vmatpush1.msra.mxu0 %v4530
      %5923 = vmatprep.subr.mxu0 0.0
      %5924 = vmatpush1.msra.mxu0 %v4531
      %5925 = vmatprep.subr.mxu0 0.0
      %5926 = vmatpush1.msra.mxu0 %v4532
      %5927 = vmatprep.subr.mxu0 0.0
      %5928 = vmatpush1.msra.mxu0 0.0
      %5929 = vmatprep.subr.mxu0 0.0
      %5930 = vmatpush1.msra.mxu0 0.0
      %5931 = vmatprep.subr.mxu0 0.0
      %5932 = vmatpush1.msra.mxu0 0.0
      %5933 = vmatprep.subr.mxu0 0.0
      %5934 = vmatpush1.msra.mxu0 0.0
      %5935 = vmatprep.subr.mxu0 0.0
      %5936 = vmatpush1.msra.mxu0 0.0
      %5937 = vmatprep.subr.mxu0 0.0
      %5938 = vmatpush1.msra.mxu0 0.0
      %5939 = vmatprep.subr.mxu0 0.0
      %5940 = vmatpush1.msra.mxu0 0.0
      %5941 = vmatprep.subr.mxu0 0.0
      %5942 = vmatpush1.msra.mxu0 0.0
      %5943 = vmatprep.subr.mxu0 0.0
      %5944 = vmatpush1.msra.mxu0 0.0
      %5945 = vmatprep.subr.mxu0 0.0
      %5946 = vmatpush1.msra.mxu0 0.0
      %5947 = vmatprep.subr.mxu0 0.0
      %5948 = vmatpush1.msra.mxu0 0.0
      %5949 = vmatprep.subr.mxu0 0.0
      %5950 = vmatpush1.msra.mxu0 0.0
      %5951 = vmatprep.subr.mxu0 0.0
      %5952 = vmatpush1.msra.mxu0 0.0
      %5953 = vmatprep.subr.mxu0 0.0
      %5954 = vmatpush1.msra.mxu0 0.0
      %5955 = vmatprep.subr.mxu0 0.0
      %5956 = vmatpush1.msra.mxu0 0.0
      %5957 = vmatprep.subr.mxu0 0.0
      %5958 = vmatpush1.msra.mxu0 0.0
      %5959 = vmatprep.subr.mxu0 0.0
      %5960 = vmatpush1.msra.mxu0 0.0
      %5961 = vmatprep.subr.mxu0 0.0
      %5962 = vmatpush1.msra.mxu0 0.0
      %5963 = vmatprep.subr.mxu0 0.0
      %5964 = vmatpush1.msra.mxu0 0.0
      %5965 = vmatprep.subr.mxu0 0.0
      %5966 = vmatpush1.msra.mxu0 0.0
      %5967 = vmatprep.subr.mxu0 0.0
      %5968 = vmatpush1.msra.mxu0 0.0
      %5969 = vmatprep.subr.mxu0 0.0
      %5970 = vmatpush1.msra.mxu0 0.0
      %5971 = vmatprep.subr.mxu0 0.0
      %5972 = vmatpush1.msra.mxu0 0.0
      %5973 = vmatprep.subr.mxu0 0.0
      %5974 = vmatpush1.msra.mxu0 0.0
      %5975 = vmatprep.mubr.f32.mxu0 0.0
      %5976 = vmatmul.mubr.f32.gmra.mrb[0].mxu0 %v5769
      %v5977 = vpop.f32.mrb[0].mxu0
      %v5978 = vadd.f32 %v4533, %v5977
      %v5979 = vpop.f32.mrb[0].mxu0
      %5980 = vdwg.mxu0
      %v5982 = vrot.slane %v5838, 3
      %v5984 = vadd.f32 %v4543, %v5982
      %v5985 = vxor.u32 %v5984, 2147483648
      %v5986 = vmul.f32 %v5985, 1.442695
      %v5987 = vpow.pop %v5986
      %v5988 = vadd.f32 %v5987, 1.0
      %v5989 = vrcp.pop %v5988
      %v5990 = vmul.f32 1.0, %v5989
      %v5992 = vrot.slane %v5908, 3
      %v5994 = vadd.f32 %v4545, %v5992
      %v5995 = vxor.u32 %v5994, 2147483648
      %v5996 = vmul.f32 %v5995, 1.442695
      %v5997 = vpow.pop %v5996
      %v5998 = vadd.f32 %v5997, 1.0
      %v5999 = vrcp.pop %v5998
      %v6000 = vmul.f32 1.0, %v5999
      %v6002 = vrot.slane %v5978, 3
      %v6004 = vmul.f32 %v5990, %v6002
      %v6005 = vadd.f32 %v4547, %v6004
      %v6006 = vtanh.pop %v6005
      %v6007 = vsub.f32 1.0, %v6000
      %v6008 = vmul.f32 %v6007, %v6006
      %v6009 = vrot.slane %v5766, 7
      %v6011 = vmul.f32 %v6000, %v6009
      %v6012 = vadd.f32 %v6008, %v6011
      %v6014 = vrot.slane %v6012, 5
      %v6015 = vsel %vm3947, %v6014, 0
      %6017 = vmatprep.subr.mxu0 0.0
      %6018 = vmatpush1.msra.mxu0 %v4509
      %6019 = vmatprep.subr.mxu0 0.0
      %6020 = vmatpush1.msra.mxu0 %v4510
      %6021 = vmatprep.subr.mxu0 0.0
      %6022 = vmatpush1.msra.mxu0 %v4511
      %6023 = vmatprep.subr.mxu0 0.0
      %6024 = vmatpush1.msra.mxu0 %v4512
      %6025 = vmatprep.subr.mxu0 0.0
      %6026 = vmatpush1.msra.mxu0 %v4513
      %6027 = vmatprep.subr.mxu0 0.0
      %6028 = vmatpush1.msra.mxu0 %v4514
      %6029 = vmatprep.subr.mxu0 0.0
      %6030 = vmatpush1.msra.mxu0 %v4515
      %6031 = vmatprep.subr.mxu0 0.0
      %6032 = vmatpush1.msra.mxu0 %v4516
      %6033 = vmatprep.subr.mxu0 0.0
      %6034 = vmatpush1.msra.mxu0 0.0
      %6035 = vmatprep.subr.mxu0 0.0
      %6036 = vmatpush1.msra.mxu0 0.0
      %6037 = vmatprep.subr.mxu0 0.0
      %6038 = vmatpush1.msra.mxu0 0.0
      %6039 = vmatprep.subr.mxu0 0.0
      %6040 = vmatpush1.msra.mxu0 0.0
      %6041 = vmatprep.subr.mxu0 0.0
      %6042 = vmatpush1.msra.mxu0 0.0
      %6043 = vmatprep.subr.mxu0 0.0
      %6044 = vmatpush1.msra.mxu0 0.0
      %6045 = vmatprep.subr.mxu0 0.0
      %6046 = vmatpush1.msra.mxu0 0.0
      %6047 = vmatprep.subr.mxu0 0.0
      %6048 = vmatpush1.msra.mxu0 0.0
      %6049 = vmatprep.subr.mxu0 0.0
      %6050 = vmatpush1.msra.mxu0 0.0
      %6051 = vmatprep.subr.mxu0 0.0
      %6052 = vmatpush1.msra.mxu0 0.0
      %6053 = vmatprep.subr.mxu0 0.0
      %6054 = vmatpush1.msra.mxu0 0.0
      %6055 = vmatprep.subr.mxu0 0.0
      %6056 = vmatpush1.msra.mxu0 0.0
      %6057 = vmatprep.subr.mxu0 0.0
      %6058 = vmatpush1.msra.mxu0 0.0
      %6059 = vmatprep.subr.mxu0 0.0
      %6060 = vmatpush1.msra.mxu0 0.0
      %6061 = vmatprep.subr.mxu0 0.0
      %6062 = vmatpush1.msra.mxu0 0.0
      %6063 = vmatprep.subr.mxu0 0.0
      %6064 = vmatpush1.msra.mxu0 0.0
      %6065 = vmatprep.subr.mxu0 0.0
      %6066 = vmatpush1.msra.mxu0 0.0
      %6067 = vmatprep.subr.mxu0 0.0
      %6068 = vmatpush1.msra.mxu0 0.0
      %6069 = vmatprep.subr.mxu0 0.0
      %6070 = vmatpush1.msra.mxu0 0.0
      %6071 = vmatprep.subr.mxu0 0.0
      %6072 = vmatpush1.msra.mxu0 0.0
      %6073 = vmatprep.subr.mxu0 0.0
      %6074 = vmatpush1.msra.mxu0 0.0
      %6075 = vmatprep.subr.mxu0 0.0
      %6076 = vmatpush1.msra.mxu0 0.0
      %6077 = vmatprep.subr.mxu0 0.0
      %6078 = vmatpush1.msra.mxu0 0.0
      %6079 = vmatprep.subr.mxu0 0.0
      %6080 = vmatpush1.msra.mxu0 0.0
      %6081 = vmatprep.mubr.f32.mxu0 0.0
      %6082 = vmatmul.mubr.f32.gmra.mrb[0].mxu0 %v6015
      %v6083 = vpop.f32.mrb[0].mxu0
      %v6084 = vadd.f32 0.0, %v6083
      %v6085 = vpop.f32.mrb[0].mxu0
      %6086 = vdwg.mxu0
      %6087 = vmatprep.subr.mxu0 0.0
      %6088 = vmatpush1.msra.mxu0 %v4517
      %6089 = vmatprep.subr.mxu0 0.0
      %6090 = vmatpush1.msra.mxu0 %v4518
      %6091 = vmatprep.subr.mxu0 0.0
      %6092 = vmatpush1.msra.mxu0 %v4519
      %6093 = vmatprep.subr.mxu0 0.0
      %6094 = vmatpush1.msra.mxu0 %v4520
      %6095 = vmatprep.subr.mxu0 0.0
      %6096 = vmatpush1.msra.mxu0 %v4521
      %6097 = vmatprep.subr.mxu0 0.0
      %6098 = vmatpush1.msra.mxu0 %v4522
      %6099 = vmatprep.subr.mxu0 0.0
      %6100 = vmatpush1.msra.mxu0 %v4523
      %6101 = vmatprep.subr.mxu0 0.0
      %6102 = vmatpush1.msra.mxu0 %v4524
      %6103 = vmatprep.subr.mxu0 0.0
      %6104 = vmatpush1.msra.mxu0 0.0
      %6105 = vmatprep.subr.mxu0 0.0
      %6106 = vmatpush1.msra.mxu0 0.0
      %6107 = vmatprep.subr.mxu0 0.0
      %6108 = vmatpush1.msra.mxu0 0.0
      %6109 = vmatprep.subr.mxu0 0.0
      %6110 = vmatpush1.msra.mxu0 0.0
      %6111 = vmatprep.subr.mxu0 0.0
      %6112 = vmatpush1.msra.mxu0 0.0
      %6113 = vmatprep.subr.mxu0 0.0
      %6114 = vmatpush1.msra.mxu0 0.0
      %6115 = vmatprep.subr.mxu0 0.0
      %6116 = vmatpush1.msra.mxu0 0.0
      %6117 = vmatprep.subr.mxu0 0.0
      %6118 = vmatpush1.msra.mxu0 0.0
      %6119 = vmatprep.subr.mxu0 0.0
      %6120 = vmatpush1.msra.mxu0 0.0
      %6121 = vmatprep.subr.mxu0 0.0
      %6122 = vmatpush1.msra.mxu0 0.0
      %6123 = vmatprep.subr.mxu0 0.0
      %6124 = vmatpush1.msra.mxu0 0.0
      %6125 = vmatprep.subr.mxu0 0.0
      %6126 = vmatpush1.msra.mxu0 0.0
      %6127 = vmatprep.subr.mxu0 0.0
      %6128 = vmatpush1.msra.mxu0 0.0
      %6129 = vmatprep.subr.mxu0 0.0
      %6130 = vmatpush1.msra.mxu0 0.0
      %6131 = vmatprep.subr.mxu0 0.0
      %6132 = vmatpush1.msra.mxu0 0.0
      %6133 = vmatprep.subr.mxu0 0.0
      %6134 = vmatpush1.msra.mxu0 0.0
      %6135 = vmatprep.subr.mxu0 0.0
      %6136 = vmatpush1.msra.mxu0 0.0
      %6137 = vmatprep.subr.mxu0 0.0
      %6138 = vmatpush1.msra.mxu0 0.0
      %6139 = vmatprep.subr.mxu0 0.0
      %6140 = vmatpush1.msra.mxu0 0.0
      %6141 = vmatprep.subr.mxu0 0.0
      %6142 = vmatpush1.msra.mxu0 0.0
      %6143 = vmatprep.subr.mxu0 0.0
      %6144 = vmatpush1.msra.mxu0 0.0
      %6145 = vmatprep.subr.mxu0 0.0
      %6146 = vmatpush1.msra.mxu0 0.0
      %6147 = vmatprep.subr.mxu0 0.0
      %6148 = vmatpush1.msra.mxu0 0.0
      %6149 = vmatprep.subr.mxu0 0.0
      %6150 = vmatpush1.msra.mxu0 0.0
      %6151 = vmatprep.mubr.f32.mxu0 0.0
      %6152 = vmatmul.mubr.f32.gmra.mrb[0].mxu0 %v6015
      %v6153 = vpop.f32.mrb[0].mxu0
      %v6154 = vadd.f32 0.0, %v6153
      %v6155 = vpop.f32.mrb[0].mxu0
      %6156 = vdwg.mxu0
      %6157 = vmatprep.subr.mxu0 0.0
      %6158 = vmatpush1.msra.mxu0 %v4525
      %6159 = vmatprep.subr.mxu0 0.0
      %6160 = vmatpush1.msra.mxu0 %v4526
      %6161 = vmatprep.subr.mxu0 0.0
      %6162 = vmatpush1.msra.mxu0 %v4527
      %6163 = vmatprep.subr.mxu0 0.0
      %6164 = vmatpush1.msra.mxu0 %v4528
      %6165 = vmatprep.subr.mxu0 0.0
      %6166 = vmatpush1.msra.mxu0 %v4529
      %6167 = vmatprep.subr.mxu0 0.0
      %6168 = vmatpush1.msra.mxu0 %v4530
      %6169 = vmatprep.subr.mxu0 0.0
      %6170 = vmatpush1.msra.mxu0 %v4531
      %6171 = vmatprep.subr.mxu0 0.0
      %6172 = vmatpush1.msra.mxu0 %v4532
      %6173 = vmatprep.subr.mxu0 0.0
      %6174 = vmatpush1.msra.mxu0 0.0
      %6175 = vmatprep.subr.mxu0 0.0
      %6176 = vmatpush1.msra.mxu0 0.0
      %6177 = vmatprep.subr.mxu0 0.0
      %6178 = vmatpush1.msra.mxu0 0.0
      %6179 = vmatprep.subr.mxu0 0.0
      %6180 = vmatpush1.msra.mxu0 0.0
      %6181 = vmatprep.subr.mxu0 0.0
      %6182 = vmatpush1.msra.mxu0 0.0
      %6183 = vmatprep.subr.mxu0 0.0
      %6184 = vmatpush1.msra.mxu0 0.0
      %6185 = vmatprep.subr.mxu0 0.0
      %6186 = vmatpush1.msra.mxu0 0.0
      %6187 = vmatprep.subr.mxu0 0.0
      %6188 = vmatpush1.msra.mxu0 0.0
      %6189 = vmatprep.subr.mxu0 0.0
      %6190 = vmatpush1.msra.mxu0 0.0
      %6191 = vmatprep.subr.mxu0 0.0
      %6192 = vmatpush1.msra.mxu0 0.0
      %6193 = vmatprep.subr.mxu0 0.0
      %6194 = vmatpush1.msra.mxu0 0.0
      %6195 = vmatprep.subr.mxu0 0.0
      %6196 = vmatpush1.msra.mxu0 0.0
      %6197 = vmatprep.subr.mxu0 0.0
      %6198 = vmatpush1.msra.mxu0 0.0
      %6199 = vmatprep.subr.mxu0 0.0
      %6200 = vmatpush1.msra.mxu0 0.0
      %6201 = vmatprep.subr.mxu0 0.0
      %6202 = vmatpush1.msra.mxu0 0.0
      %6203 = vmatprep.subr.mxu0 0.0
      %6204 = vmatpush1.msra.mxu0 0.0
      %6205 = vmatprep.subr.mxu0 0.0
      %6206 = vmatpush1.msra.mxu0 0.0
      %6207 = vmatprep.subr.mxu0 0.0
      %6208 = vmatpush1.msra.mxu0 0.0
      %6209 = vmatprep.subr.mxu0 0.0
      %6210 = vmatpush1.msra.mxu0 0.0
      %6211 = vmatprep.subr.mxu0 0.0
      %6212 = vmatpush1.msra.mxu0 0.0
      %6213 = vmatprep.subr.mxu0 0.0
      %6214 = vmatpush1.msra.mxu0 0.0
      %6215 = vmatprep.subr.mxu0 0.0
      %6216 = vmatpush1.msra.mxu0 0.0
      %6217 = vmatprep.subr.mxu0 0.0
      %6218 = vmatpush1.msra.mxu0 0.0
      %6219 = vmatprep.subr.mxu0 0.0
      %6220 = vmatpush1.msra.mxu0 0.0
      %6221 = vmatprep.mubr.f32.mxu0 0.0
      %6222 = vmatmul.mubr.f32.gmra.mrb[0].mxu0 %v6015
      %v6223 = vpop.f32.mrb[0].mxu0
      %v6224 = vadd.f32 %v4533, %v6223
      %v6225 = vpop.f32.mrb[0].mxu0
      %6226 = vdwg.mxu0
      %v6228 = vrot.slane %v6084, 2
      %v6230 = vadd.f32 %v4543, %v6228
      %v6231 = vxor.u32 %v6230, 2147483648
      %v6232 = vmul.f32 %v6231, 1.442695
      %v6233 = vpow.pop %v6232
      %v6234 = vadd.f32 %v6233, 1.0
      %v6235 = vrcp.pop %v6234
      %v6236 = vmul.f32 1.0, %v6235
      %v6238 = vrot.slane %v6154, 2
      %v6240 = vadd.f32 %v4545, %v6238
      %v6241 = vxor.u32 %v6240, 2147483648
      %v6242 = vmul.f32 %v6241, 1.442695
      %v6243 = vpow.pop %v6242
      %v6244 = vadd.f32 %v6243, 1.0
      %v6245 = vrcp.pop %v6244
      %v6246 = vmul.f32 1.0, %v6245
      %v6248 = vrot.slane %v6224, 2
      %v6250 = vmul.f32 %v6236, %v6248
      %v6251 = vadd.f32 %v4547, %v6250
      %v6252 = vtanh.pop %v6251
      %v6253 = vsub.f32 1.0, %v6246
      %v6254 = vmul.f32 %v6253, %v6252
      %v6255 = vrot.slane %v6012, 7
      %v6257 = vmul.f32 %v6246, %v6255
      %v6258 = vadd.f32 %v6254, %v6257
      %v6260 = vrot.slane %v6258, 6
      %v6261 = vsel %vm3947, %v6260, 0
      %6263 = vmatprep.subr.mxu0 0.0
      %6264 = vmatpush1.msra.mxu0 %v4509
      %6265 = vmatprep.subr.mxu0 0.0
      %6266 = vmatpush1.msra.mxu0 %v4510
      %6267 = vmatprep.subr.mxu0 0.0
      %6268 = vmatpush1.msra.mxu0 %v4511
      %6269 = vmatprep.subr.mxu0 0.0
      %6270 = vmatpush1.msra.mxu0 %v4512
      %6271 = vmatprep.subr.mxu0 0.0
      %6272 = vmatpush1.msra.mxu0 %v4513
      %6273 = vmatprep.subr.mxu0 0.0
      %6274 = vmatpush1.msra.mxu0 %v4514
      %6275 = vmatprep.subr.mxu0 0.0
      %6276 = vmatpush1.msra.mxu0 %v4515
      %6277 = vmatprep.subr.mxu0 0.0
      %6278 = vmatpush1.msra.mxu0 %v4516
      %6279 = vmatprep.subr.mxu0 0.0
      %6280 = vmatpush1.msra.mxu0 0.0
      %6281 = vmatprep.subr.mxu0 0.0
      %6282 = vmatpush1.msra.mxu0 0.0
      %6283 = vmatprep.subr.mxu0 0.0
      %6284 = vmatpush1.msra.mxu0 0.0
      %6285 = vmatprep.subr.mxu0 0.0
      %6286 = vmatpush1.msra.mxu0 0.0
      %6287 = vmatprep.subr.mxu0 0.0
      %6288 = vmatpush1.msra.mxu0 0.0
      %6289 = vmatprep.subr.mxu0 0.0
      %6290 = vmatpush1.msra.mxu0 0.0
      %6291 = vmatprep.subr.mxu0 0.0
      %6292 = vmatpush1.msra.mxu0 0.0
      %6293 = vmatprep.subr.mxu0 0.0
      %6294 = vmatpush1.msra.mxu0 0.0
      %6295 = vmatprep.subr.mxu0 0.0
      %6296 = vmatpush1.msra.mxu0 0.0
      %6297 = vmatprep.subr.mxu0 0.0
      %6298 = vmatpush1.msra.mxu0 0.0
      %6299 = vmatprep.subr.mxu0 0.0
      %6300 = vmatpush1.msra.mxu0 0.0
      %6301 = vmatprep.subr.mxu0 0.0
      %6302 = vmatpush1.msra.mxu0 0.0
      %6303 = vmatprep.subr.mxu0 0.0
      %6304 = vmatpush1.msra.mxu0 0.0
      %6305 = vmatprep.subr.mxu0 0.0
      %6306 = vmatpush1.msra.mxu0 0.0
      %6307 = vmatprep.subr.mxu0 0.0
      %6308 = vmatpush1.msra.mxu0 0.0
      %6309 = vmatprep.subr.mxu0 0.0
      %6310 = vmatpush1.msra.mxu0 0.0
      %6311 = vmatprep.subr.mxu0 0.0
      %6312 = vmatpush1.msra.mxu0 0.0
      %6313 = vmatprep.subr.mxu0 0.0
      %6314 = vmatpush1.msra.mxu0 0.0
      %6315 = vmatprep.subr.mxu0 0.0
      %6316 = vmatpush1.msra.mxu0 0.0
      %6317 = vmatprep.subr.mxu0 0.0
      %6318 = vmatpush1.msra.mxu0 0.0
      %6319 = vmatprep.subr.mxu0 0.0
      %6320 = vmatpush1.msra.mxu0 0.0
      %6321 = vmatprep.subr.mxu0 0.0
      %6322 = vmatpush1.msra.mxu0 0.0
      %6323 = vmatprep.subr.mxu0 0.0
      %6324 = vmatpush1.msra.mxu0 0.0
      %6325 = vmatprep.subr.mxu0 0.0
      %6326 = vmatpush1.msra.mxu0 0.0
      %6327 = vmatprep.mubr.f32.mxu0 0.0
      %6328 = vmatmul.mubr.f32.gmra.mrb[0].mxu0 %v6261
      %v6329 = vpop.f32.mrb[0].mxu0
      %v6330 = vadd.f32 0.0, %v6329
      %v6331 = vpop.f32.mrb[0].mxu0
      %6332 = vdwg.mxu0
      %6333 = vmatprep.subr.mxu0 0.0
      %6334 = vmatpush1.msra.mxu0 %v4517
      %6335 = vmatprep.subr.mxu0 0.0
      %6336 = vmatpush1.msra.mxu0 %v4518
      %6337 = vmatprep.subr.mxu0 0.0
      %6338 = vmatpush1.msra.mxu0 %v4519
      %6339 = vmatprep.subr.mxu0 0.0
      %6340 = vmatpush1.msra.mxu0 %v4520
      %6341 = vmatprep.subr.mxu0 0.0
      %6342 = vmatpush1.msra.mxu0 %v4521
      %6343 = vmatprep.subr.mxu0 0.0
      %6344 = vmatpush1.msra.mxu0 %v4522
      %6345 = vmatprep.subr.mxu0 0.0
      %6346 = vmatpush1.msra.mxu0 %v4523
      %6347 = vmatprep.subr.mxu0 0.0
      %6348 = vmatpush1.msra.mxu0 %v4524
      %6349 = vmatprep.subr.mxu0 0.0
      %6350 = vmatpush1.msra.mxu0 0.0
      %6351 = vmatprep.subr.mxu0 0.0
      %6352 = vmatpush1.msra.mxu0 0.0
      %6353 = vmatprep.subr.mxu0 0.0
      %6354 = vmatpush1.msra.mxu0 0.0
      %6355 = vmatprep.subr.mxu0 0.0
      %6356 = vmatpush1.msra.mxu0 0.0
      %6357 = vmatprep.subr.mxu0 0.0
      %6358 = vmatpush1.msra.mxu0 0.0
      %6359 = vmatprep.subr.mxu0 0.0
      %6360 = vmatpush1.msra.mxu0 0.0
      %6361 = vmatprep.subr.mxu0 0.0
      %6362 = vmatpush1.msra.mxu0 0.0
      %6363 = vmatprep.subr.mxu0 0.0
      %6364 = vmatpush1.msra.mxu0 0.0
      %6365 = vmatprep.subr.mxu0 0.0
      %6366 = vmatpush1.msra.mxu0 0.0
      %6367 = vmatprep.subr.mxu0 0.0
      %6368 = vmatpush1.msra.mxu0 0.0
      %6369 = vmatprep.subr.mxu0 0.0
      %6370 = vmatpush1.msra.mxu0 0.0
      %6371 = vmatprep.subr.mxu0 0.0
      %6372 = vmatpush1.msra.mxu0 0.0
      %6373 = vmatprep.subr.mxu0 0.0
      %6374 = vmatpush1.msra.mxu0 0.0
      %6375 = vmatprep.subr.mxu0 0.0
      %6376 = vmatpush1.msra.mxu0 0.0
      %6377 = vmatprep.subr.mxu0 0.0
      %6378 = vmatpush1.msra.mxu0 0.0
      %6379 = vmatprep.subr.mxu0 0.0
      %6380 = vmatpush1.msra.mxu0 0.0
      %6381 = vmatprep.subr.mxu0 0.0
      %6382 = vmatpush1.msra.mxu0 0.0
      %6383 = vmatprep.subr.mxu0 0.0
      %6384 = vmatpush1.msra.mxu0 0.0
      %6385 = vmatprep.subr.mxu0 0.0
      %6386 = vmatpush1.msra.mxu0 0.0
      %6387 = vmatprep.subr.mxu0 0.0
      %6388 = vmatpush1.msra.mxu0 0.0
      %6389 = vmatprep.subr.mxu0 0.0
      %6390 = vmatpush1.msra.mxu0 0.0
      %6391 = vmatprep.subr.mxu0 0.0
      %6392 = vmatpush1.msra.mxu0 0.0
      %6393 = vmatprep.subr.mxu0 0.0
      %6394 = vmatpush1.msra.mxu0 0.0
      %6395 = vmatprep.subr.mxu0 0.0
      %6396 = vmatpush1.msra.mxu0 0.0
      %6397 = vmatprep.mubr.f32.mxu0 0.0
      %6398 = vmatmul.mubr.f32.gmra.mrb[0].mxu0 %v6261
      %v6399 = vpop.f32.mrb[0].mxu0
      %v6400 = vadd.f32 0.0, %v6399
      %v6401 = vpop.f32.mrb[0].mxu0
      %6402 = vdwg.mxu0
      %6403 = vmatprep.subr.mxu0 0.0
      %6404 = vmatpush1.msra.mxu0 %v4525
      %6405 = vmatprep.subr.mxu0 0.0
      %6406 = vmatpush1.msra.mxu0 %v4526
      %6407 = vmatprep.subr.mxu0 0.0
      %6408 = vmatpush1.msra.mxu0 %v4527
      %6409 = vmatprep.subr.mxu0 0.0
      %6410 = vmatpush1.msra.mxu0 %v4528
      %6411 = vmatprep.subr.mxu0 0.0
      %6412 = vmatpush1.msra.mxu0 %v4529
      %6413 = vmatprep.subr.mxu0 0.0
      %6414 = vmatpush1.msra.mxu0 %v4530
      %6415 = vmatprep.subr.mxu0 0.0
      %6416 = vmatpush1.msra.mxu0 %v4531
      %6417 = vmatprep.subr.mxu0 0.0
      %6418 = vmatpush1.msra.mxu0 %v4532
      %6419 = vmatprep.subr.mxu0 0.0
      %6420 = vmatpush1.msra.mxu0 0.0
      %6421 = vmatprep.subr.mxu0 0.0
      %6422 = vmatpush1.msra.mxu0 0.0
      %6423 = vmatprep.subr.mxu0 0.0
      %6424 = vmatpush1.msra.mxu0 0.0
      %6425 = vmatprep.subr.mxu0 0.0
      %6426 = vmatpush1.msra.mxu0 0.0
      %6427 = vmatprep.subr.mxu0 0.0
      %6428 = vmatpush1.msra.mxu0 0.0
      %6429 = vmatprep.subr.mxu0 0.0
      %6430 = vmatpush1.msra.mxu0 0.0
      %6431 = vmatprep.subr.mxu0 0.0
      %6432 = vmatpush1.msra.mxu0 0.0
      %6433 = vmatprep.subr.mxu0 0.0
      %6434 = vmatpush1.msra.mxu0 0.0
      %6435 = vmatprep.subr.mxu0 0.0
      %6436 = vmatpush1.msra.mxu0 0.0
      %6437 = vmatprep.subr.mxu0 0.0
      %6438 = vmatpush1.msra.mxu0 0.0
      %6439 = vmatprep.subr.mxu0 0.0
      %6440 = vmatpush1.msra.mxu0 0.0
      %6441 = vmatprep.subr.mxu0 0.0
      %6442 = vmatpush1.msra.mxu0 0.0
      %6443 = vmatprep.subr.mxu0 0.0
      %6444 = vmatpush1.msra.mxu0 0.0
      %6445 = vmatprep.subr.mxu0 0.0
      %6446 = vmatpush1.msra.mxu0 0.0
      %6447 = vmatprep.subr.mxu0 0.0
      %6448 = vmatpush1.msra.mxu0 0.0
      %6449 = vmatprep.subr.mxu0 0.0
      %6450 = vmatpush1.msra.mxu0 0.0
      %6451 = vmatprep.subr.mxu0 0.0
      %6452 = vmatpush1.msra.mxu0 0.0
      %6453 = vmatprep.subr.mxu0 0.0
      %6454 = vmatpush1.msra.mxu0 0.0
      %6455 = vmatprep.subr.mxu0 0.0
      %6456 = vmatpush1.msra.mxu0 0.0
      %6457 = vmatprep.subr.mxu0 0.0
      %6458 = vmatpush1.msra.mxu0 0.0
      %6459 = vmatprep.subr.mxu0 0.0
      %6460 = vmatpush1.msra.mxu0 0.0
      %6461 = vmatprep.subr.mxu0 0.0
      %6462 = vmatpush1.msra.mxu0 0.0
      %6463 = vmatprep.subr.mxu0 0.0
      %6464 = vmatpush1.msra.mxu0 0.0
      %6465 = vmatprep.subr.mxu0 0.0
      %6466 = vmatpush1.msra.mxu0 0.0
      %6467 = vmatprep.mubr.f32.mxu0 0.0
      %6468 = vmatmul.mubr.f32.gmra.mrb[0].mxu0 %v6261
      %v6469 = vpop.f32.mrb[0].mxu0
      %v6470 = vadd.f32 %v4533, %v6469
      %v6471 = vpop.f32.mrb[0].mxu0
      %6472 = vdwg.mxu0
      %v6474 = vrot.slane %v6330, 1
      %v6476 = vadd.f32 %v4543, %v6474
      %v6477 = vxor.u32 %v6476, 2147483648
      %v6478 = vmul.f32 %v6477, 1.442695
      %v6479 = vpow.pop %v6478
      %v6480 = vadd.f32 %v6479, 1.0
      %v6481 = vrcp.pop %v6480
      %v6482 = vmul.f32 1.0, %v6481
      %v6484 = vrot.slane %v6400, 1
      %v6486 = vadd.f32 %v4545, %v6484
      %v6487 = vxor.u32 %v6486, 2147483648
      %v6488 = vmul.f32 %v6487, 1.442695
      %v6489 = vpow.pop %v6488
      %v6490 = vadd.f32 %v6489, 1.0
      %v6491 = vrcp.pop %v6490
      %v6492 = vmul.f32 1.0, %v6491
      %v6494 = vrot.slane %v6470, 1
      %v6496 = vmul.f32 %v6482, %v6494
      %v6497 = vadd.f32 %v4547, %v6496
      %v6498 = vtanh.pop %v6497
      %v6499 = vsub.f32 1.0, %v6492
      %v6500 = vmul.f32 %v6499, %v6498
      %v6501 = vrot.slane %v6258, 7
      %v6503 = vmul.f32 %v6492, %v6501
      %v6504 = vadd.f32 %v6500, %v6503
      %vm6505 = vcmask 1040384
      %v6506 = vsel %vm6505, %v4783, %v5028
      %vm6507 = vcmask 1041408
      %v6508 = vsel %vm6507, %v6506, %v5274
      %vm6509 = vcmask 1042432
      %v6510 = vsel %vm6509, %v6508, %v5520
      %v6511 = vsel %vm2098, %v6510, %v5766
      %vm6512 = vcmask 1044480
      %v6513 = vsel %vm6512, %v6511, %v6012
      %vm6514 = vcmask 1045504
      %v6515 = vsel %vm6514, %v6513, %v6258
      %vm6516 = vcmask 1046528
      %v6517 = vsel %vm6516, %v6515, %v6504
      %s6518 = scalar_lea.vmem [#allocation5], %s4541
      %6519 = vst.msk [vmem:[%s6518] sm:$0xff] %vm3947, %v6517
    $region186: #{tpu_custom_call.1} parent=1 // loop_footer
      %s4539 = sadd.s32 1, %s4535
    $region187: #{tpu_custom_call.1} parent=1 // loop_footer_branch
      %4534 = sbr.rel target = $region183
    $region188: #{tpu_custom_call.1} parent=1 // loop_exit
      _
    %v6520 = vld [vmem:[#allocation5] sm:$0xff]
    %v6521 = vld [vmem:[#allocation5 + $0x8] sm:$0xff]
    %v6522 = vld [vmem:[#allocation5 + $0x10] sm:$0xff]
    %v6523 = vld [vmem:[#allocation5 + $0x18] sm:$0xff]
    %v6524 = vld [vmem:[#allocation5 + $0x20] sm:$0xff]
    %v6525 = vld [vmem:[#allocation5 + $0x28] sm:$0xff]
    %v6526 = vld [vmem:[#allocation5 + $0x30] sm:$0xff]
    %v6527 = vld [vmem:[#allocation5 + $0x38] sm:$0xff]
    %v6528 = vld [vmem:[#allocation5 + $0x40] sm:$0xff]
    %v6529 = vld [vmem:[#allocation5 + $0x48] sm:$0xff]
    %v6530 = vld [vmem:[#allocation5 + $0x50] sm:$0xff]
    %v6531 = vld [vmem:[#allocation5 + $0x58] sm:$0xff]
    %v6532 = vld [vmem:[#allocation5 + $0x60] sm:$0xff]
    %v6533 = vld [vmem:[#allocation5 + $0x68] sm:$0xff]
    %v6534 = vld [vmem:[#allocation5 + $0x70] sm:$0xff]
    %v6535 = vld [vmem:[#allocation5 + $0x78] sm:$0xff]
    %v6536 = vld [vmem:[%s51] sm:$0x3]
    %v6538 = vsel %vm3915, %v6536, 0
    %v6541 = vsel %vm3915, %v6520, 0
    %v6544 = vsel %vm3915, %v6521, 0
    %v6547 = vsel %vm3915, %v6522, 0
    %v6550 = vsel %vm3915, %v6523, 0
    %v6553 = vsel %vm3915, %v6524, 0
    %v6556 = vsel %vm3915, %v6525, 0
    %v6559 = vsel %vm3915, %v6526, 0
    %v6562 = vsel %vm3915, %v6527, 0
    %v6565 = vsel %vm3915, %v6528, 0
    %v6568 = vsel %vm3915, %v6529, 0
    %v6571 = vsel %vm3915, %v6530, 0
    %v6574 = vsel %vm3915, %v6531, 0
    %v6577 = vsel %vm3915, %v6532, 0
    %v6580 = vsel %vm3915, %v6533, 0
    %v6583 = vsel %vm3915, %v6534, 0
    %v6586 = vsel %vm3915, %v6535, 0
    %6588 = vmatprep.subr.mxu0 0.0
    %6589 = vmatpush1.xpose.msra.mxu0 %v6541
    %6590 = vmatprep.subr.mxu0 0.0
    %6591 = vmatpush1.xpose.msra.mxu0 %v6544
    %6592 = vmatprep.subr.mxu0 0.0
    %6593 = vmatpush1.xpose.msra.mxu0 %v6547
    %6594 = vmatprep.subr.mxu0 0.0
    %6595 = vmatpush1.xpose.msra.mxu0 %v6550
    %6596 = vmatprep.subr.mxu0 0.0
    %6597 = vmatpush1.xpose.msra.mxu0 %v6553
    %6598 = vmatprep.subr.mxu0 0.0
    %6599 = vmatpush1.xpose.msra.mxu0 %v6556
    %6600 = vmatprep.subr.mxu0 0.0
    %6601 = vmatpush1.xpose.msra.mxu0 %v6559
    %6602 = vmatprep.subr.mxu0 0.0
    %6603 = vmatpush1.xpose.msra.mxu0 %v6562
    %6604 = vmatprep.subr.mxu0 0.0
    %6605 = vmatpush1.xpose.msra.mxu0 %v6565
    %6606 = vmatprep.subr.mxu0 0.0
    %6607 = vmatpush1.xpose.msra.mxu0 %v6568
    %6608 = vmatprep.subr.mxu0 0.0
    %6609 = vmatpush1.xpose.msra.mxu0 %v6571
    %6610 = vmatprep.subr.mxu0 0.0
    %6611 = vmatpush1.xpose.msra.mxu0 %v6574
    %6612 = vmatprep.subr.mxu0 0.0
    %6613 = vmatpush1.xpose.msra.mxu0 %v6577
    %6614 = vmatprep.subr.mxu0 0.0
    %6615 = vmatpush1.xpose.msra.mxu0 %v6580
    %6616 = vmatprep.subr.mxu0 0.0
    %6617 = vmatpush1.xpose.msra.mxu0 %v6583
    %6618 = vmatprep.subr.mxu0 0.0
    %6619 = vmatpush1.xpose.msra.mxu0 %v6586
    %6620 = vmatprep.subr.mxu0 0.0
    %6621 = vmatpush1.xpose.msra.mxu0 0.0
    %6622 = vmatprep.subr.mxu0 0.0
    %6623 = vmatpush1.xpose.msra.mxu0 0.0
    %6624 = vmatprep.subr.mxu0 0.0
    %6625 = vmatpush1.xpose.msra.mxu0 0.0
    %6626 = vmatprep.subr.mxu0 0.0
    %6627 = vmatpush1.xpose.msra.mxu0 0.0
    %6628 = vmatprep.subr.mxu0 0.0
    %6629 = vmatpush1.xpose.msra.mxu0 0.0
    %6630 = vmatprep.subr.mxu0 0.0
    %6631 = vmatpush1.xpose.msra.mxu0 0.0
    %6632 = vmatprep.subr.mxu0 0.0
    %6633 = vmatpush1.xpose.msra.mxu0 0.0
    %6634 = vmatprep.subr.mxu0 0.0
    %6635 = vmatpush1.xpose.msra.mxu0 0.0
    %6636 = vmatprep.subr.mxu0 0.0
    %6637 = vmatpush1.xpose.msra.mxu0 0.0
    %6638 = vmatprep.subr.mxu0 0.0
    %6639 = vmatpush1.xpose.msra.mxu0 0.0
    %6640 = vmatprep.subr.mxu0 0.0
    %6641 = vmatpush1.xpose.msra.mxu0 0.0
    %6642 = vmatprep.subr.mxu0 0.0
    %6643 = vmatpush1.xpose.msra.mxu0 0.0
    %6644 = vmatprep.subr.mxu0 0.0
    %6645 = vmatpush1.xpose.msra.mxu0 0.0
    %6646 = vmatprep.subr.mxu0 0.0
    %6647 = vmatpush1.xpose.msra.mxu0 0.0
    %6648 = vmatprep.subr.mxu0 0.0
    %6649 = vmatpush1.xpose.msra.mxu0 0.0
    %6650 = vmatprep.subr.mxu0 0.0
    %6651 = vmatpush1.xpose.msra.mxu0 0.0
    %6652 = vmatprep.mubr.f32.mxu0 0.0
    %6653 = vmatmul.mubr.f32.gmra.mrb[0].mxu0 %v6538
    %v6654 = vpop.f32.mrb[0].mxu0
    %v6655 = vadd.f32 0.0, %v6654
    %v6656 = vpop.f32.mrb[0].mxu0
    %6657 = vdwg.mxu0
    %vm6658 = vcmask 1041408
    %v6659 = vsel %vm6658, %v6655, -inf
    %6660 = vmax.xlane.f32.xlu0 %v6659
    %v6661 = vpop.xlane.xlu0 %6660
    %v6662 = vsub.f32 %v6655, %v6661
    %v6663 = vmul.f32 %v6662, 1.442695
    %v6664 = vpow.pop %v6663
    %v6665 = vsel %vm6658, %v6664, 0.0
    %6666 = vadd.xlane.f32.xlu0 %v6665
    %v6667 = vpop.xlane.xlu0 %6666
    %v6668 = vrcp.pop %v6667
    %v6669 = vmul.f32 %v6664, %v6668
    %6670 = vmatprep.subr.mxu0 0.0
    %6671 = vmatpush1.msra.mxu0 %v6520
    %6672 = vmatprep.subr.mxu0 0.0
    %6673 = vmatpush1.msra.mxu0 %v6521
    %6674 = vmatprep.subr.mxu0 0.0
    %6675 = vmatpush1.msra.mxu0 %v6522
    %6676 = vmatprep.subr.mxu0 0.0
    %6677 = vmatpush1.msra.mxu0 %v6523
    %6678 = vmatprep.subr.mxu0 0.0
    %6679 = vmatpush1.msra.mxu0 %v6524
    %6680 = vmatprep.subr.mxu0 0.0
    %6681 = vmatpush1.msra.mxu0 %v6525
    %6682 = vmatprep.subr.mxu0 0.0
    %6683 = vmatpush1.msra.mxu0 %v6526
    %6684 = vmatprep.subr.mxu0 0.0
    %6685 = vmatpush1.msra.mxu0 %v6527
    %6686 = vmatprep.subr.mxu0 0.0
    %6687 = vmatpush1.msra.mxu0 %v6528
    %6688 = vmatprep.subr.mxu0 0.0
    %6689 = vmatpush1.msra.mxu0 %v6529
    %6690 = vmatprep.subr.mxu0 0.0
    %6691 = vmatpush1.msra.mxu0 %v6530
    %6692 = vmatprep.subr.mxu0 0.0
    %6693 = vmatpush1.msra.mxu0 %v6531
    %6694 = vmatprep.subr.mxu0 0.0
    %6695 = vmatpush1.msra.mxu0 %v6532
    %6696 = vmatprep.subr.mxu0 0.0
    %6697 = vmatpush1.msra.mxu0 %v6533
    %6698 = vmatprep.subr.mxu0 0.0
    %6699 = vmatpush1.msra.mxu0 %v6534
    %6700 = vmatprep.subr.mxu0 0.0
    %6701 = vmatpush1.msra.mxu0 %v6535
    %6702 = vmatprep.subr.mxu0 0.0
    %6703 = vmatpush1.msra.mxu0 0.0
    %6704 = vmatprep.subr.mxu0 0.0
    %6705 = vmatpush1.msra.mxu0 0.0
    %6706 = vmatprep.subr.mxu0 0.0
    %6707 = vmatpush1.msra.mxu0 0.0
    %6708 = vmatprep.subr.mxu0 0.0
    %6709 = vmatpush1.msra.mxu0 0.0
    %6710 = vmatprep.subr.mxu0 0.0
    %6711 = vmatpush1.msra.mxu0 0.0
    %6712 = vmatprep.subr.mxu0 0.0
    %6713 = vmatpush1.msra.mxu0 0.0
    %6714 = vmatprep.subr.mxu0 0.0
    %6715 = vmatpush1.msra.mxu0 0.0
    %6716 = vmatprep.subr.mxu0 0.0
    %6717 = vmatpush1.msra.mxu0 0.0
    %6718 = vmatprep.subr.mxu0 0.0
    %6719 = vmatpush1.msra.mxu0 0.0
    %6720 = vmatprep.subr.mxu0 0.0
    %6721 = vmatpush1.msra.mxu0 0.0
    %6722 = vmatprep.subr.mxu0 0.0
    %6723 = vmatpush1.msra.mxu0 0.0
    %6724 = vmatprep.subr.mxu0 0.0
    %6725 = vmatpush1.msra.mxu0 0.0
    %6726 = vmatprep.subr.mxu0 0.0
    %6727 = vmatpush1.msra.mxu0 0.0
    %6728 = vmatprep.subr.mxu0 0.0
    %6729 = vmatpush1.msra.mxu0 0.0
    %6730 = vmatprep.subr.mxu0 0.0
    %6731 = vmatpush1.msra.mxu0 0.0
    %6732 = vmatprep.subr.mxu0 0.0
    %6733 = vmatpush1.msra.mxu0 0.0
    %6734 = vmatprep.mubr.f32.mxu0 0.0
    %6735 = vmatmul.mubr.f32.gmra.mrb[0].mxu0 %v6669
    %v6736 = vpop.f32.mrb[0].mxu0
    %v6737 = vadd.f32 0.0, %v6736
    %v6738 = vpop.f32.mrb[0].mxu0
    %6739 = vdwg.mxu0
    %6740 = vrot.lane.b32.xlu0 %v6520, 96
    %v6741 = vpop.permute.xlu0 %6740
    %6742 = vrot.lane.b32.xlu0 %v6521, 96
    %v6743 = vpop.permute.xlu0 %6742
    %6744 = vrot.lane.b32.xlu0 %v6522, 96
    %v6745 = vpop.permute.xlu0 %6744
    %6746 = vrot.lane.b32.xlu0 %v6523, 96
    %v6747 = vpop.permute.xlu0 %6746
    %6748 = vrot.lane.b32.xlu0 %v6524, 96
    %v6749 = vpop.permute.xlu0 %6748
    %6750 = vrot.lane.b32.xlu0 %v6525, 96
    %v6751 = vpop.permute.xlu0 %6750
    %6752 = vrot.lane.b32.xlu0 %v6526, 96
    %v6753 = vpop.permute.xlu0 %6752
    %6754 = vrot.lane.b32.xlu0 %v6527, 96
    %v6755 = vpop.permute.xlu0 %6754
    %6756 = vrot.lane.b32.xlu0 %v6528, 96
    %v6757 = vpop.permute.xlu0 %6756
    %6758 = vrot.lane.b32.xlu0 %v6529, 96
    %v6759 = vpop.permute.xlu0 %6758
    %6760 = vrot.lane.b32.xlu0 %v6530, 96
    %v6761 = vpop.permute.xlu0 %6760
    %6762 = vrot.lane.b32.xlu0 %v6531, 96
    %v6763 = vpop.permute.xlu0 %6762
    %6764 = vrot.lane.b32.xlu0 %v6532, 96
    %v6765 = vpop.permute.xlu0 %6764
    %6766 = vrot.lane.b32.xlu0 %v6533, 96
    %v6767 = vpop.permute.xlu0 %6766
    %6768 = vrot.lane.b32.xlu0 %v6534, 96
    %v6769 = vpop.permute.xlu0 %6768
    %6770 = vrot.lane.b32.xlu0 %v6535, 96
    %v6771 = vpop.permute.xlu0 %6770
    %v6772 = vsel %vm3915, %v6741, 0
    %v6774 = vsel %vm3915, %v6743, 0
    %v6776 = vsel %vm3915, %v6745, 0
    %v6778 = vsel %vm3915, %v6747, 0
    %v6780 = vsel %vm3915, %v6749, 0
    %v6782 = vsel %vm3915, %v6751, 0
    %v6784 = vsel %vm3915, %v6753, 0
    %v6786 = vsel %vm3915, %v6755, 0
    %v6788 = vsel %vm3915, %v6757, 0
    %v6790 = vsel %vm3915, %v6759, 0
    %v6792 = vsel %vm3915, %v6761, 0
    %v6794 = vsel %vm3915, %v6763, 0
    %v6796 = vsel %vm3915, %v6765, 0
    %v6798 = vsel %vm3915, %v6767, 0
    %v6800 = vsel %vm3915, %v6769, 0
    %v6802 = vsel %vm3915, %v6771, 0
    %6804 = vmatprep.subr.mxu0 0.0
    %6805 = vmatpush1.xpose.msra.mxu0 %v6772
    %6806 = vmatprep.subr.mxu0 0.0
    %6807 = vmatpush1.xpose.msra.mxu0 %v6774
    %6808 = vmatprep.subr.mxu0 0.0
    %6809 = vmatpush1.xpose.msra.mxu0 %v6776
    %6810 = vmatprep.subr.mxu0 0.0
    %6811 = vmatpush1.xpose.msra.mxu0 %v6778
    %6812 = vmatprep.subr.mxu0 0.0
    %6813 = vmatpush1.xpose.msra.mxu0 %v6780
    %6814 = vmatprep.subr.mxu0 0.0
    %6815 = vmatpush1.xpose.msra.mxu0 %v6782
    %6816 = vmatprep.subr.mxu0 0.0
    %6817 = vmatpush1.xpose.msra.mxu0 %v6784
    %6818 = vmatprep.subr.mxu0 0.0
    %6819 = vmatpush1.xpose.msra.mxu0 %v6786
    %6820 = vmatprep.subr.mxu0 0.0
    %6821 = vmatpush1.xpose.msra.mxu0 %v6788
    %6822 = vmatprep.subr.mxu0 0.0
    %6823 = vmatpush1.xpose.msra.mxu0 %v6790
    %6824 = vmatprep.subr.mxu0 0.0
    %6825 = vmatpush1.xpose.msra.mxu0 %v6792
    %6826 = vmatprep.subr.mxu0 0.0
    %6827 = vmatpush1.xpose.msra.mxu0 %v6794
    %6828 = vmatprep.subr.mxu0 0.0
    %6829 = vmatpush1.xpose.msra.mxu0 %v6796
    %6830 = vmatprep.subr.mxu0 0.0
    %6831 = vmatpush1.xpose.msra.mxu0 %v6798
    %6832 = vmatprep.subr.mxu0 0.0
    %6833 = vmatpush1.xpose.msra.mxu0 %v6800
    %6834 = vmatprep.subr.mxu0 0.0
    %6835 = vmatpush1.xpose.msra.mxu0 %v6802
    %6836 = vmatprep.subr.mxu0 0.0
    %6837 = vmatpush1.xpose.msra.mxu0 0.0
    %6838 = vmatprep.subr.mxu0 0.0
    %6839 = vmatpush1.xpose.msra.mxu0 0.0
    %6840 = vmatprep.subr.mxu0 0.0
    %6841 = vmatpush1.xpose.msra.mxu0 0.0
    %6842 = vmatprep.subr.mxu0 0.0
    %6843 = vmatpush1.xpose.msra.mxu0 0.0
    %6844 = vmatprep.subr.mxu0 0.0
    %6845 = vmatpush1.xpose.msra.mxu0 0.0
    %6846 = vmatprep.subr.mxu0 0.0
    %6847 = vmatpush1.xpose.msra.mxu0 0.0
    %6848 = vmatprep.subr.mxu0 0.0
    %6849 = vmatpush1.xpose.msra.mxu0 0.0
    %6850 = vmatprep.subr.mxu0 0.0
    %6851 = vmatpush1.xpose.msra.mxu0 0.0
    %6852 = vmatprep.subr.mxu0 0.0
    %6853 = vmatpush1.xpose.msra.mxu0 0.0
    %6854 = vmatprep.subr.mxu0 0.0
    %6855 = vmatpush1.xpose.msra.mxu0 0.0
    %6856 = vmatprep.subr.mxu0 0.0
    %6857 = vmatpush1.xpose.msra.mxu0 0.0
    %6858 = vmatprep.subr.mxu0 0.0
    %6859 = vmatpush1.xpose.msra.mxu0 0.0
    %6860 = vmatprep.subr.mxu0 0.0
    %6861 = vmatpush1.xpose.msra.mxu0 0.0
    %6862 = vmatprep.subr.mxu0 0.0
    %6863 = vmatpush1.xpose.msra.mxu0 0.0
    %6864 = vmatprep.subr.mxu0 0.0
    %6865 = vmatpush1.xpose.msra.mxu0 0.0
    %6866 = vmatprep.subr.mxu0 0.0
    %6867 = vmatpush1.xpose.msra.mxu0 0.0
    %6868 = vmatprep.mubr.f32.mxu0 0.0
    %6869 = vmatmul.mubr.f32.gmra.mrb[0].mxu0 %v6538
    %v6870 = vpop.f32.mrb[0].mxu0
    %v6871 = vadd.f32 0.0, %v6870
    %v6872 = vpop.f32.mrb[0].mxu0
    %6873 = vdwg.mxu0
    %v6874 = vsel %vm6658, %v6871, -inf
    %6875 = vmax.xlane.f32.xlu0 %v6874
    %v6876 = vpop.xlane.xlu0 %6875
    %v6877 = vsub.f32 %v6871, %v6876
    %v6878 = vmul.f32 %v6877, 1.442695
    %v6879 = vpow.pop %v6878
    %v6880 = vsel %vm6658, %v6879, 0.0
    %6881 = vadd.xlane.f32.xlu0 %v6880
    %v6882 = vpop.xlane.xlu0 %6881
    %v6883 = vrcp.pop %v6882
    %v6884 = vmul.f32 %v6879, %v6883
    %6901 = vmatprep.subr.mxu0 0.0
    %6902 = vmatpush1.msra.mxu0 %v6741
    %6903 = vmatprep.subr.mxu0 0.0
    %6904 = vmatpush1.msra.mxu0 %v6743
    %6905 = vmatprep.subr.mxu0 0.0
    %6906 = vmatpush1.msra.mxu0 %v6745
    %6907 = vmatprep.subr.mxu0 0.0
    %6908 = vmatpush1.msra.mxu0 %v6747
    %6909 = vmatprep.subr.mxu0 0.0
    %6910 = vmatpush1.msra.mxu0 %v6749
    %6911 = vmatprep.subr.mxu0 0.0
    %6912 = vmatpush1.msra.mxu0 %v6751
    %6913 = vmatprep.subr.mxu0 0.0
    %6914 = vmatpush1.msra.mxu0 %v6753
    %6915 = vmatprep.subr.mxu0 0.0
    %6916 = vmatpush1.msra.mxu0 %v6755
    %6917 = vmatprep.subr.mxu0 0.0
    %6918 = vmatpush1.msra.mxu0 %v6757
    %6919 = vmatprep.subr.mxu0 0.0
    %6920 = vmatpush1.msra.mxu0 %v6759
    %6921 = vmatprep.subr.mxu0 0.0
    %6922 = vmatpush1.msra.mxu0 %v6761
    %6923 = vmatprep.subr.mxu0 0.0
    %6924 = vmatpush1.msra.mxu0 %v6763
    %6925 = vmatprep.subr.mxu0 0.0
    %6926 = vmatpush1.msra.mxu0 %v6765
    %6927 = vmatprep.subr.mxu0 0.0
    %6928 = vmatpush1.msra.mxu0 %v6767
    %6929 = vmatprep.subr.mxu0 0.0
    %6930 = vmatpush1.msra.mxu0 %v6769
    %6931 = vmatprep.subr.mxu0 0.0
    %6932 = vmatpush1.msra.mxu0 %v6771
    %6933 = vmatprep.subr.mxu0 0.0
    %6934 = vmatpush1.msra.mxu0 0.0
    %6935 = vmatprep.subr.mxu0 0.0
    %6936 = vmatpush1.msra.mxu0 0.0
    %6937 = vmatprep.subr.mxu0 0.0
    %6938 = vmatpush1.msra.mxu0 0.0
    %6939 = vmatprep.subr.mxu0 0.0
    %6940 = vmatpush1.msra.mxu0 0.0
    %6941 = vmatprep.subr.mxu0 0.0
    %6942 = vmatpush1.msra.mxu0 0.0
    %6943 = vmatprep.subr.mxu0 0.0
    %6944 = vmatpush1.msra.mxu0 0.0
    %6945 = vmatprep.subr.mxu0 0.0
    %6946 = vmatpush1.msra.mxu0 0.0
    %6947 = vmatprep.subr.mxu0 0.0
    %6948 = vmatpush1.msra.mxu0 0.0
    %6949 = vmatprep.subr.mxu0 0.0
    %6950 = vmatpush1.msra.mxu0 0.0
    %6951 = vmatprep.subr.mxu0 0.0
    %6952 = vmatpush1.msra.mxu0 0.0
    %6953 = vmatprep.subr.mxu0 0.0
    %6954 = vmatpush1.msra.mxu0 0.0
    %6955 = vmatprep.subr.mxu0 0.0
    %6956 = vmatpush1.msra.mxu0 0.0
    %6957 = vmatprep.subr.mxu0 0.0
    %6958 = vmatpush1.msra.mxu0 0.0
    %6959 = vmatprep.subr.mxu0 0.0
    %6960 = vmatpush1.msra.mxu0 0.0
    %6961 = vmatprep.subr.mxu0 0.0
    %6962 = vmatpush1.msra.mxu0 0.0
    %6963 = vmatprep.subr.mxu0 0.0
    %6964 = vmatpush1.msra.mxu0 0.0
    %6965 = vmatprep.mubr.f32.mxu0 0.0
    %6966 = vmatmul.mubr.f32.gmra.mrb[0].mxu0 %v6884
    %v6967 = vpop.f32.mrb[0].mxu0
    %v6968 = vadd.f32 0.0, %v6967
    %v6969 = vpop.f32.mrb[0].mxu0
    %6970 = vdwg.mxu0
    %v6972 = vrot.slane %v6968, 7
    %vm6974 = vcmask 1040384
    %v6975 = vsel %vm6974, %v6737, %v6972
    %v6977 = vrot.slane %v6737, 1
    %v6979 = vsel %vm6974, %v6977, %v6968
    %v6980 = vld [vmem:[#allocation16] sm:$0xff]
    %v6981 = vld [vmem:[#allocation16 + $0x8] sm:$0xff]
    %v6982 = vld [vmem:[#allocation16 + $0x10] sm:$0xff]
    %v6983 = vld [vmem:[#allocation16 + $0x18] sm:$0xff]
    %v6984 = vld [vmem:[#allocation16 + $0x20] sm:$0xff]
    %v6985 = vld [vmem:[#allocation16 + $0x28] sm:$0xff]
    %v6986 = vld [vmem:[#allocation16 + $0x30] sm:$0xff]
    %v6987 = vld [vmem:[#allocation16 + $0x38] sm:$0xff]
    %v6988 = vld [vmem:[%s55] sm:$0x3]
    %v6990 = vlaneseq
    %v6991 = vshrl.u32 %v6990, 7
    %v6992 = vsub.s32 0, %v6991
    %v6993 = vrot.slane %v6988, %v6992
    %v6994 = vlaneseq
    %v6995 = vshrl.u32 %v6994, 7
    %v6996 = vsub.s32 1, %v6995
    %v6997 = vrot.slane %v6988, %v6996
    %v7001 = vsel %vm3915, %v6975, 0
    %7003 = vmatprep.subr.mxu0 %v6981
    %7004 = vmatpush1.msra.mxu0 %v6980
    %7005 = vmatprep.subr.mxu0 %v6983
    %7006 = vmatpush1.msra.mxu0 %v6982
    %7007 = vmatprep.subr.mxu0 %v6985
    %7008 = vmatpush1.msra.mxu0 %v6984
    %7009 = vmatprep.subr.mxu0 %v6987
    %7010 = vmatpush1.msra.mxu0 %v6986
    %7011 = vmatprep.subr.mxu0 0.0
    %7012 = vmatpush1.msra.mxu0 0.0
    %7013 = vmatprep.subr.mxu0 0.0
    %7014 = vmatpush1.msra.mxu0 0.0
    %7015 = vmatprep.subr.mxu0 0.0
    %7016 = vmatpush1.msra.mxu0 0.0
    %7017 = vmatprep.subr.mxu0 0.0
    %7018 = vmatpush1.msra.mxu0 0.0
    %7019 = vmatprep.subr.mxu0 0.0
    %7020 = vmatpush1.msra.mxu0 0.0
    %7021 = vmatprep.subr.mxu0 0.0
    %7022 = vmatpush1.msra.mxu0 0.0
    %7023 = vmatprep.subr.mxu0 0.0
    %7024 = vmatpush1.msra.mxu0 0.0
    %7025 = vmatprep.subr.mxu0 0.0
    %7026 = vmatpush1.msra.mxu0 0.0
    %7027 = vmatprep.subr.mxu0 0.0
    %7028 = vmatpush1.msra.mxu0 0.0
    %7029 = vmatprep.subr.mxu0 0.0
    %7030 = vmatpush1.msra.mxu0 0.0
    %7031 = vmatprep.subr.mxu0 0.0
    %7032 = vmatpush1.msra.mxu0 0.0
    %7033 = vmatprep.subr.mxu0 0.0
    %7034 = vmatpush1.msra.mxu0 0.0
    %7035 = vmatprep.subr.mxu0 0.0
    %7036 = vmatpush1.msra.mxu0 0.0
    %7037 = vmatprep.subr.mxu0 0.0
    %7038 = vmatpush1.msra.mxu0 0.0
    %7039 = vmatprep.subr.mxu0 0.0
    %7040 = vmatpush1.msra.mxu0 0.0
    %7041 = vmatprep.subr.mxu0 0.0
    %7042 = vmatpush1.msra.mxu0 0.0
    %7043 = vmatprep.subr.mxu0 0.0
    %7044 = vmatpush1.msra.mxu0 0.0
    %7045 = vmatprep.subr.mxu0 0.0
    %7046 = vmatpush1.msra.mxu0 0.0
    %7047 = vmatprep.subr.mxu0 0.0
    %7048 = vmatpush1.msra.mxu0 0.0
    %7049 = vmatprep.subr.mxu0 0.0
    %7050 = vmatpush1.msra.mxu0 0.0
    %7051 = vmatprep.subr.mxu0 0.0
    %7052 = vmatpush1.msra.mxu0 0.0
    %7053 = vmatprep.subr.mxu0 0.0
    %7054 = vmatpush1.msra.mxu0 0.0
    %7055 = vmatprep.subr.mxu0 0.0
    %7056 = vmatpush1.msra.mxu0 0.0
    %7057 = vmatprep.subr.mxu0 0.0
    %7058 = vmatpush1.msra.mxu0 0.0
    %7059 = vmatprep.subr.mxu0 0.0
    %7060 = vmatpush1.msra.mxu0 0.0
    %7061 = vmatprep.subr.mxu0 0.0
    %7062 = vmatpush1.msra.mxu0 0.0
    %7063 = vmatprep.subr.mxu0 0.0
    %7064 = vmatpush1.msra.mxu0 0.0
    %7065 = vmatprep.subr.mxu0 0.0
    %7066 = vmatpush1.msra.mxu0 0.0
    %7067 = vmatprep.mubr.f32.mxu0 0.0
    %7068 = vmatmul.mubr.f32.gmra.mrb[0].mxu0 %v7001
    %v7069 = vpop.f32.mrb[0].mxu0
    %v7070 = vadd.f32 %v6993, %v7069
    %v7071 = vpop.f32.mrb[0].mxu0
    %v7072 = vadd.f32 %v6997, %v7071
    %7073 = vdwg.mxu0
    %v7074 = vmul.f32 %v7070, 0.5
    %v7075 = vmul.f32 %v7072, 0.5
    %v7076 = vrcp.pop 1.4142135
    %v7077 = vmul.f32 %v7070, %v7076
    %v7078 = vmul.f32 %v7072, %v7076
    %v7079 = verf.f32.pop %v7077
    %v7080 = verf.f32.pop %v7078
    %v7081 = vadd.f32 %v7079, 1.0
    %v7082 = vadd.f32 %v7080, 1.0
    %v7083 = vmul.f32 %v7074, %v7081
    %v7084 = vmul.f32 %v7075, %v7082
    %v7085 = vld [vmem:[%s57] sm:$0xff]
    %v7086 = vld [vmem:[%s57 + $0x8] sm:$0xff]
    %v7087 = vld [vmem:[%s57 + $0x10] sm:$0xff]
    %v7088 = vld [vmem:[%s57 + $0x18] sm:$0xff]
    %v7089 = vld [vmem:[%s57 + $0x20] sm:$0xff]
    %v7090 = vld [vmem:[%s57 + $0x28] sm:$0xff]
    %v7091 = vld [vmem:[%s57 + $0x30] sm:$0xff]
    %v7092 = vld [vmem:[%s57 + $0x38] sm:$0xff]
    %v7093 = vld [vmem:[%s57 + $0x40] sm:$0xff]
    %v7094 = vld [vmem:[%s57 + $0x48] sm:$0xff]
    %v7095 = vld [vmem:[%s57 + $0x50] sm:$0xff]
    %v7096 = vld [vmem:[%s57 + $0x58] sm:$0xff]
    %v7097 = vld [vmem:[%s57 + $0x60] sm:$0xff]
    %v7098 = vld [vmem:[%s57 + $0x68] sm:$0xff]
    %v7099 = vld [vmem:[%s57 + $0x70] sm:$0xff]
    %v7100 = vld [vmem:[%s57 + $0x78] sm:$0xff]
    %v7101 = vld [vmem:[%s57 + $0x80] sm:$0xff]
    %v7102 = vld [vmem:[%s57 + $0x88] sm:$0xff]
    %v7103 = vld [vmem:[%s57 + $0x90] sm:$0xff]
    %v7104 = vld [vmem:[%s57 + $0x98] sm:$0xff]
    %v7105 = vld [vmem:[%s57 + $0xa0] sm:$0xff]
    %v7106 = vld [vmem:[%s57 + $0xa8] sm:$0xff]
    %v7107 = vld [vmem:[%s57 + $0xb0] sm:$0xff]
    %v7108 = vld [vmem:[%s57 + $0xb8] sm:$0xff]
    %v7109 = vld [vmem:[%s57 + $0xc0] sm:$0xff]
    %v7110 = vld [vmem:[%s57 + $0xc8] sm:$0xff]
    %v7111 = vld [vmem:[%s57 + $0xd0] sm:$0xff]
    %v7112 = vld [vmem:[%s57 + $0xd8] sm:$0xff]
    %v7113 = vld [vmem:[%s57 + $0xe0] sm:$0xff]
    %v7114 = vld [vmem:[%s57 + $0xe8] sm:$0xff]
    %v7115 = vld [vmem:[%s57 + $0xf0] sm:$0xff]
    %v7116 = vld [vmem:[%s57 + $0xf8] sm:$0xff]
    %v7117 = vld [vmem:[%s57 + $0x100] sm:$0xff]
    %v7118 = vld [vmem:[%s57 + $0x108] sm:$0xff]
    %v7119 = vld [vmem:[%s57 + $0x110] sm:$0xff]
    %v7120 = vld [vmem:[%s57 + $0x118] sm:$0xff]
    %v7121 = vld [vmem:[%s57 + $0x120] sm:$0xff]
    %v7122 = vld [vmem:[%s57 + $0x128] sm:$0xff]
    %v7123 = vld [vmem:[%s57 + $0x130] sm:$0xff]
    %v7124 = vld [vmem:[%s57 + $0x138] sm:$0xff]
    %v7125 = vld [vmem:[%s57 + $0x140] sm:$0xff]
    %v7126 = vld [vmem:[%s57 + $0x148] sm:$0xff]
    %v7127 = vld [vmem:[%s57 + $0x150] sm:$0xff]
    %v7128 = vld [vmem:[%s57 + $0x158] sm:$0xff]
    %v7129 = vld [vmem:[%s57 + $0x160] sm:$0xff]
    %v7130 = vld [vmem:[%s57 + $0x168] sm:$0xff]
    %v7131 = vld [vmem:[%s57 + $0x170] sm:$0xff]
    %v7132 = vld [vmem:[%s57 + $0x178] sm:$0xff]
    %v7133 = vld [vmem:[%s57 + $0x180] sm:$0xff]
    %v7134 = vld [vmem:[%s57 + $0x188] sm:$0xff]
    %v7135 = vld [vmem:[%s59] sm:$0x3]
    %v7137 = vlaneseq
    %v7138 = vshrl.u32 %v7137, 7
    %v7139 = vsub.s32 0, %v7138
    %v7140 = vrot.slane %v7135, %v7139
    %v7141 = vlaneseq
    %v7142 = vshrl.u32 %v7141, 7
    %v7143 = vsub.s32 1, %v7142
    %v7144 = vrot.slane %v7135, %v7143
    %vm7147 = vcmask 588800
    %v7149 = vsel %vm7147, %v7084, 0
    %7151 = vmatprep.subr.mxu0 %v7086
    %7152 = vmatpush1.msra.mxu0 %v7085
    %7153 = vmatprep.subr.mxu0 %v7088
    %7154 = vmatpush1.msra.mxu0 %v7087
    %7155 = vmatprep.subr.mxu0 %v7090
    %7156 = vmatpush1.msra.mxu0 %v7089
    %7157 = vmatprep.subr.mxu0 %v7092
    %7158 = vmatpush1.msra.mxu0 %v7091
    %7159 = vmatprep.subr.mxu0 %v7094
    %7160 = vmatpush1.msra.mxu0 %v7093
    %7161 = vmatprep.subr.mxu0 %v7096
    %7162 = vmatpush1.msra.mxu0 %v7095
    %7163 = vmatprep.subr.mxu0 %v7098
    %7164 = vmatpush1.msra.mxu0 %v7097
    %7165 = vmatprep.subr.mxu0 %v7100
    %7166 = vmatpush1.msra.mxu0 %v7099
    %7167 = vmatprep.subr.mxu0 %v7102
    %7168 = vmatpush1.msra.mxu0 %v7101
    %7169 = vmatprep.subr.mxu0 %v7104
    %7170 = vmatpush1.msra.mxu0 %v7103
    %7171 = vmatprep.subr.mxu0 %v7106
    %7172 = vmatpush1.msra.mxu0 %v7105
    %7173 = vmatprep.subr.mxu0 %v7108
    %7174 = vmatpush1.msra.mxu0 %v7107
    %7175 = vmatprep.subr.mxu0 %v7110
    %7176 = vmatpush1.msra.mxu0 %v7109
    %7177 = vmatprep.subr.mxu0 %v7112
    %7178 = vmatpush1.msra.mxu0 %v7111
    %7179 = vmatprep.subr.mxu0 %v7114
    %7180 = vmatpush1.msra.mxu0 %v7113
    %7181 = vmatprep.subr.mxu0 %v7116
    %7182 = vmatpush1.msra.mxu0 %v7115
    %7183 = vmatprep.subr.mxu0 %v7118
    %7184 = vmatpush1.msra.mxu0 %v7117
    %7185 = vmatprep.subr.mxu0 %v7120
    %7186 = vmatpush1.msra.mxu0 %v7119
    %7187 = vmatprep.subr.mxu0 %v7122
    %7188 = vmatpush1.msra.mxu0 %v7121
    %7189 = vmatprep.subr.mxu0 %v7124
    %7190 = vmatpush1.msra.mxu0 %v7123
    %7191 = vmatprep.subr.mxu0 %v7126
    %7192 = vmatpush1.msra.mxu0 %v7125
    %7193 = vmatprep.subr.mxu0 %v7128
    %7194 = vmatpush1.msra.mxu0 %v7127
    %7195 = vmatprep.subr.mxu0 %v7130
    %7196 = vmatpush1.msra.mxu0 %v7129
    %7197 = vmatprep.subr.mxu0 %v7132
    %7198 = vmatpush1.msra.mxu0 %v7131
    %7199 = vmatprep.subr.mxu0 %v7134
    %7200 = vmatpush1.msra.mxu0 %v7133
    %7201 = vmatprep.subr.mxu0 0.0
    %7202 = vmatpush1.msra.mxu0 0.0
    %7203 = vmatprep.subr.mxu0 0.0
    %7204 = vmatpush1.msra.mxu0 0.0
    %7205 = vmatprep.subr.mxu0 0.0
    %7206 = vmatpush1.msra.mxu0 0.0
    %7207 = vmatprep.subr.mxu0 0.0
    %7208 = vmatpush1.msra.mxu0 0.0
    %7209 = vmatprep.subr.mxu0 0.0
    %7210 = vmatpush1.msra.mxu0 0.0
    %7211 = vmatprep.subr.mxu0 0.0
    %7212 = vmatpush1.msra.mxu0 0.0
    %7213 = vmatprep.subr.mxu0 0.0
    %7214 = vmatpush1.msra.mxu0 0.0
    %7215 = vmatprep.mubr.f32.mxu0 %v7149
    %7216 = vmatmul.mubr.f32.gmra.mrb[0].mxu0 %v7083
    %v7217 = vpop.f32.mrb[0].mxu0
    %v7218 = vadd.f32 %v7140, %v7217
    %v7219 = vpop.f32.mrb[0].mxu0
    %v7220 = vadd.f32 %v7144, %v7219
    %7221 = vdwg.mxu0
    %v7222 = vmul.f32 %v7218, 0.5
    %v7223 = vmul.f32 %v7220, 0.5
    %v7224 = vmul.f32 %v7218, %v7076
    %v7225 = vmul.f32 %v7220, %v7076
    %v7226 = verf.f32.pop %v7224
    %v7227 = verf.f32.pop %v7225
    %v7228 = vadd.f32 %v7226, 1.0
    %v7229 = vadd.f32 %v7227, 1.0
    %v7230 = vmul.f32 %v7222, %v7228
    %v7231 = vmul.f32 %v7223, %v7229
    %v7232 = vld [vmem:[%s61] sm:$0xff]
    %v7233 = vld [vmem:[%s61 + $0x8] sm:$0xff]
    %v7234 = vld [vmem:[%s61 + $0x10] sm:$0xff]
    %v7235 = vld [vmem:[%s61 + $0x18] sm:$0xff]
    %v7236 = vld [vmem:[%s61 + $0x20] sm:$0xff]
    %v7237 = vld [vmem:[%s61 + $0x28] sm:$0xff]
    %v7238 = vld [vmem:[%s61 + $0x30] sm:$0xff]
    %v7239 = vld [vmem:[%s61 + $0x38] sm:$0xff]
    %v7240 = vld [vmem:[%s61 + $0x40] sm:$0xff]
    %v7241 = vld [vmem:[%s61 + $0x48] sm:$0xff]
    %v7242 = vld [vmem:[%s61 + $0x50] sm:$0xff]
    %v7243 = vld [vmem:[%s61 + $0x58] sm:$0xff]
    %v7244 = vld [vmem:[%s61 + $0x60] sm:$0xff]
    %v7245 = vld [vmem:[%s61 + $0x68] sm:$0xff]
    %v7246 = vld [vmem:[%s61 + $0x70] sm:$0xff]
    %v7247 = vld [vmem:[%s61 + $0x78] sm:$0xff]
    %v7248 = vld [vmem:[%s61 + $0x80] sm:$0xff]
    %v7249 = vld [vmem:[%s61 + $0x88] sm:$0xff]
    %v7250 = vld [vmem:[%s61 + $0x90] sm:$0xff]
    %v7251 = vld [vmem:[%s61 + $0x98] sm:$0xff]
    %v7252 = vld [vmem:[%s61 + $0xa0] sm:$0xff]
    %v7253 = vld [vmem:[%s61 + $0xa8] sm:$0xff]
    %v7254 = vld [vmem:[%s61 + $0xb0] sm:$0xff]
    %v7255 = vld [vmem:[%s61 + $0xb8] sm:$0xff]
    %v7256 = vld [vmem:[%s61 + $0xc0] sm:$0xff]
    %v7257 = vld [vmem:[#allocation6] sm:$0x1]
    %v7259 = vlaneseq
    %v7260 = vshrl.u32 %v7259, 7
    %v7261 = vsub.s32 0, %v7260
    %v7262 = vrot.slane %v7257, %v7261
    %v7265 = vsel %vm7147, %v7231, 0
    %7267 = vmatprep.subr.mxu0 0.0
    %7268 = vmatpush1.msra.mxu0 %v7232
    %7269 = vmatprep.subr.mxu0 0.0
    %7270 = vmatpush1.msra.mxu0 %v7233
    %7271 = vmatprep.subr.mxu0 0.0
    %7272 = vmatpush1.msra.mxu0 %v7234
    %7273 = vmatprep.subr.mxu0 0.0
    %7274 = vmatpush1.msra.mxu0 %v7235
    %7275 = vmatprep.subr.mxu0 0.0
    %7276 = vmatpush1.msra.mxu0 %v7236
    %7277 = vmatprep.subr.mxu0 0.0
    %7278 = vmatpush1.msra.mxu0 %v7237
    %7279 = vmatprep.subr.mxu0 0.0
    %7280 = vmatpush1.msra.mxu0 %v7238
    %7281 = vmatprep.subr.mxu0 0.0
    %7282 = vmatpush1.msra.mxu0 %v7239
    %7283 = vmatprep.subr.mxu0 0.0
    %7284 = vmatpush1.msra.mxu0 %v7240
    %7285 = vmatprep.subr.mxu0 0.0
    %7286 = vmatpush1.msra.mxu0 %v7241
    %7287 = vmatprep.subr.mxu0 0.0
    %7288 = vmatpush1.msra.mxu0 %v7242
    %7289 = vmatprep.subr.mxu0 0.0
    %7290 = vmatpush1.msra.mxu0 %v7243
    %7291 = vmatprep.subr.mxu0 0.0
    %7292 = vmatpush1.msra.mxu0 %v7244
    %7293 = vmatprep.subr.mxu0 0.0
    %7294 = vmatpush1.msra.mxu0 %v7245
    %7295 = vmatprep.subr.mxu0 0.0
    %7296 = vmatpush1.msra.mxu0 %v7246
    %7297 = vmatprep.subr.mxu0 0.0
    %7298 = vmatpush1.msra.mxu0 %v7247
    %7299 = vmatprep.subr.mxu0 0.0
    %7300 = vmatpush1.msra.mxu0 %v7248
    %7301 = vmatprep.subr.mxu0 0.0
    %7302 = vmatpush1.msra.mxu0 %v7249
    %7303 = vmatprep.subr.mxu0 0.0
    %7304 = vmatpush1.msra.mxu0 %v7250
    %7305 = vmatprep.subr.mxu0 0.0
    %7306 = vmatpush1.msra.mxu0 %v7251
    %7307 = vmatprep.subr.mxu0 0.0
    %7308 = vmatpush1.msra.mxu0 %v7252
    %7309 = vmatprep.subr.mxu0 0.0
    %7310 = vmatpush1.msra.mxu0 %v7253
    %7311 = vmatprep.subr.mxu0 0.0
    %7312 = vmatpush1.msra.mxu0 %v7254
    %7313 = vmatprep.subr.mxu0 0.0
    %7314 = vmatpush1.msra.mxu0 %v7255
    %7315 = vmatprep.subr.mxu0 0.0
    %7316 = vmatpush1.msra.mxu0 %v7256
    %7317 = vmatprep.subr.mxu0 0.0
    %7318 = vmatpush1.msra.mxu0 0.0
    %7319 = vmatprep.subr.mxu0 0.0
    %7320 = vmatpush1.msra.mxu0 0.0
    %7321 = vmatprep.subr.mxu0 0.0
    %7322 = vmatpush1.msra.mxu0 0.0
    %7323 = vmatprep.subr.mxu0 0.0
    %7324 = vmatpush1.msra.mxu0 0.0
    %7325 = vmatprep.subr.mxu0 0.0
    %7326 = vmatpush1.msra.mxu0 0.0
    %7327 = vmatprep.subr.mxu0 0.0
    %7328 = vmatpush1.msra.mxu0 0.0
    %7329 = vmatprep.subr.mxu0 0.0
    %7330 = vmatpush1.msra.mxu0 0.0
    %7331 = vmatprep.mubr.f32.mxu0 %v7265
    %7332 = vmatmul.mubr.f32.gmra.mrb[0].mxu0 %v7230
    %v7333 = vpop.f32.mrb[0].mxu0
    %v7334 = vadd.f32 %v7262, %v7333
    %v7335 = vpop.f32.mrb[0].mxu0
    %7336 = vdwg.mxu0
    %v7337 = vld [vmem:[#allocation17] sm:$0xff]
    %v7338 = vld [vmem:[#allocation17 + $0x8] sm:$0xff]
    %v7339 = vld [vmem:[#allocation17 + $0x10] sm:$0xff]
    %v7340 = vld [vmem:[#allocation17 + $0x18] sm:$0xff]
    %v7341 = vld [vmem:[#allocation17 + $0x20] sm:$0xff]
    %v7342 = vld [vmem:[#allocation17 + $0x28] sm:$0xff]
    %v7343 = vld [vmem:[#allocation17 + $0x30] sm:$0xff]
    %v7344 = vld [vmem:[#allocation17 + $0x38] sm:$0xff]
    %v7345 = vld [vmem:[%s67] sm:$0x3]
    %v7347 = vlaneseq
    %v7348 = vshrl.u32 %v7347, 7
    %v7349 = vsub.s32 0, %v7348
    %v7350 = vrot.slane %v7345, %v7349
    %v7351 = vlaneseq
    %v7352 = vshrl.u32 %v7351, 7
    %v7353 = vsub.s32 1, %v7352
    %v7354 = vrot.slane %v7345, %v7353
    %v7358 = vsel %vm3915, %v6979, 0
    %7360 = vmatprep.subr.mxu0 %v7338
    %7361 = vmatpush1.msra.mxu0 %v7337
    %7362 = vmatprep.subr.mxu0 %v7340
    %7363 = vmatpush1.msra.mxu0 %v7339
    %7364 = vmatprep.subr.mxu0 %v7342
    %7365 = vmatpush1.msra.mxu0 %v7341
    %7366 = vmatprep.subr.mxu0 %v7344
    %7367 = vmatpush1.msra.mxu0 %v7343
    %7368 = vmatprep.subr.mxu0 0.0
    %7369 = vmatpush1.msra.mxu0 0.0
    %7370 = vmatprep.subr.mxu0 0.0
    %7371 = vmatpush1.msra.mxu0 0.0
    %7372 = vmatprep.subr.mxu0 0.0
    %7373 = vmatpush1.msra.mxu0 0.0
    %7374 = vmatprep.subr.mxu0 0.0
    %7375 = vmatpush1.msra.mxu0 0.0
    %7376 = vmatprep.subr.mxu0 0.0
    %7377 = vmatpush1.msra.mxu0 0.0
    %7378 = vmatprep.subr.mxu0 0.0
    %7379 = vmatpush1.msra.mxu0 0.0
    %7380 = vmatprep.subr.mxu0 0.0
    %7381 = vmatpush1.msra.mxu0 0.0
    %7382 = vmatprep.subr.mxu0 0.0
    %7383 = vmatpush1.msra.mxu0 0.0
    %7384 = vmatprep.subr.mxu0 0.0
    %7385 = vmatpush1.msra.mxu0 0.0
    %7386 = vmatprep.subr.mxu0 0.0
    %7387 = vmatpush1.msra.mxu0 0.0
    %7388 = vmatprep.subr.mxu0 0.0
    %7389 = vmatpush1.msra.mxu0 0.0
    %7390 = vmatprep.subr.mxu0 0.0
    %7391 = vmatpush1.msra.mxu0 0.0
    %7392 = vmatprep.subr.mxu0 0.0
    %7393 = vmatpush1.msra.mxu0 0.0
    %7394 = vmatprep.subr.mxu0 0.0
    %7395 = vmatpush1.msra.mxu0 0.0
    %7396 = vmatprep.subr.mxu0 0.0
    %7397 = vmatpush1.msra.mxu0 0.0
    %7398 = vmatprep.subr.mxu0 0.0
    %7399 = vmatpush1.msra.mxu0 0.0
    %7400 = vmatprep.subr.mxu0 0.0
    %7401 = vmatpush1.msra.mxu0 0.0
    %7402 = vmatprep.subr.mxu0 0.0
    %7403 = vmatpush1.msra.mxu0 0.0
    %7404 = vmatprep.subr.mxu0 0.0
    %7405 = vmatpush1.msra.mxu0 0.0
    %7406 = vmatprep.subr.mxu0 0.0
    %7407 = vmatpush1.msra.mxu0 0.0
    %7408 = vmatprep.subr.mxu0 0.0
    %7409 = vmatpush1.msra.mxu0 0.0
    %7410 = vmatprep.subr.mxu0 0.0
    %7411 = vmatpush1.msra.mxu0 0.0
    %7412 = vmatprep.subr.mxu0 0.0
    %7413 = vmatpush1.msra.mxu0 0.0
    %7414 = vmatprep.subr.mxu0 0.0
    %7415 = vmatpush1.msra.mxu0 0.0
    %7416 = vmatprep.subr.mxu0 0.0
    %7417 = vmatpush1.msra.mxu0 0.0
    %7418 = vmatprep.subr.mxu0 0.0
    %7419 = vmatpush1.msra.mxu0 0.0
    %7420 = vmatprep.subr.mxu0 0.0
    %7421 = vmatpush1.msra.mxu0 0.0
    %7422 = vmatprep.subr.mxu0 0.0
    %7423 = vmatpush1.msra.mxu0 0.0
    %7424 = vmatprep.mubr.f32.mxu0 0.0
    %7425 = vmatmul.mubr.f32.gmra.mrb[0].mxu0 %v7358
    %v7426 = vpop.f32.mrb[0].mxu0
    %v7427 = vadd.f32 %v7350, %v7426
    %v7428 = vpop.f32.mrb[0].mxu0
    %v7429 = vadd.f32 %v7354, %v7428
    %7430 = vdwg.mxu0
    %v7431 = vmul.f32 %v7427, 0.5
    %v7432 = vmul.f32 %v7429, 0.5
    %v7433 = vmul.f32 %v7427, %v7076
    %v7434 = vmul.f32 %v7429, %v7076
    %v7435 = verf.f32.pop %v7433
    %v7436 = verf.f32.pop %v7434
    %v7437 = vadd.f32 %v7435, 1.0
    %v7438 = vadd.f32 %v7436, 1.0
    %v7439 = vmul.f32 %v7431, %v7437
    %v7440 = vmul.f32 %v7432, %v7438
    %v7441 = vld [vmem:[#allocation19] sm:$0xff]
    %v7442 = vld [vmem:[#allocation19 + $0x8] sm:$0xff]
    %v7443 = vld [vmem:[#allocation19 + $0x10] sm:$0xff]
    %v7444 = vld [vmem:[#allocation19 + $0x18] sm:$0xff]
    %v7445 = vld [vmem:[#allocation19 + $0x20] sm:$0xff]
    %v7446 = vld [vmem:[#allocation19 + $0x28] sm:$0xff]
    %v7447 = vld [vmem:[#allocation19 + $0x30] sm:$0xff]
    %v7448 = vld [vmem:[#allocation19 + $0x38] sm:$0xff]
    %v7449 = vld [vmem:[#allocation19 + $0x40] sm:$0xff]
    %v7450 = vld [vmem:[#allocation19 + $0x48] sm:$0xff]
    %v7451 = vld [vmem:[#allocation19 + $0x50] sm:$0xff]
    %v7452 = vld [vmem:[#allocation19 + $0x58] sm:$0xff]
    %v7453 = vld [vmem:[#allocation19 + $0x60] sm:$0xff]
    %v7454 = vld [vmem:[#allocation19 + $0x68] sm:$0xff]
    %v7455 = vld [vmem:[#allocation19 + $0x70] sm:$0xff]
    %v7456 = vld [vmem:[#allocation19 + $0x78] sm:$0xff]
    %v7457 = vld [vmem:[#allocation19 + $0x80] sm:$0xff]
    %v7458 = vld [vmem:[#allocation19 + $0x88] sm:$0xff]
    %v7459 = vld [vmem:[#allocation19 + $0x90] sm:$0xff]
    %v7460 = vld [vmem:[#allocation19 + $0x98] sm:$0xff]
    %v7461 = vld [vmem:[#allocation19 + $0xa0] sm:$0xff]
    %v7462 = vld [vmem:[#allocation19 + $0xa8] sm:$0xff]
    %v7463 = vld [vmem:[#allocation19 + $0xb0] sm:$0xff]
    %v7464 = vld [vmem:[#allocation19 + $0xb8] sm:$0xff]
    %v7465 = vld [vmem:[#allocation19 + $0xc0] sm:$0xff]
    %v7466 = vld [vmem:[#allocation19 + $0xc8] sm:$0xff]
    %v7467 = vld [vmem:[#allocation19 + $0xd0] sm:$0xff]
    %v7468 = vld [vmem:[#allocation19 + $0xd8] sm:$0xff]
    %v7469 = vld [vmem:[#allocation19 + $0xe0] sm:$0xff]
    %v7470 = vld [vmem:[#allocation19 + $0xe8] sm:$0xff]
    %v7471 = vld [vmem:[#allocation19 + $0xf0] sm:$0xff]
    %v7472 = vld [vmem:[#allocation19 + $0xf8] sm:$0xff]
    %v7473 = vld [vmem:[#allocation19 + $0x100] sm:$0xff]
    %v7474 = vld [vmem:[#allocation19 + $0x108] sm:$0xff]
    %v7475 = vld [vmem:[#allocation19 + $0x110] sm:$0xff]
    %v7476 = vld [vmem:[#allocation19 + $0x118] sm:$0xff]
    %v7477 = vld [vmem:[#allocation19 + $0x120] sm:$0xff]
    %v7478 = vld [vmem:[#allocation19 + $0x128] sm:$0xff]
    %v7479 = vld [vmem:[#allocation19 + $0x130] sm:$0xff]
    %v7480 = vld [vmem:[#allocation19 + $0x138] sm:$0xff]
    %v7481 = vld [vmem:[#allocation19 + $0x140] sm:$0xff]
    %v7482 = vld [vmem:[#allocation19 + $0x148] sm:$0xff]
    %v7483 = vld [vmem:[#allocation19 + $0x150] sm:$0xff]
    %v7484 = vld [vmem:[#allocation19 + $0x158] sm:$0xff]
    %v7485 = vld [vmem:[#allocation19 + $0x160] sm:$0xff]
    %v7486 = vld [vmem:[#allocation19 + $0x168] sm:$0xff]
    %v7487 = vld [vmem:[#allocation19 + $0x170] sm:$0xff]
    %v7488 = vld [vmem:[#allocation19 + $0x178] sm:$0xff]
    %v7489 = vld [vmem:[#allocation19 + $0x180] sm:$0xff]
    %v7490 = vld [vmem:[#allocation19 + $0x188] sm:$0xff]
    %v7491 = vld [vmem:[%s71] sm:$0x3]
    %v7493 = vlaneseq
    %v7494 = vshrl.u32 %v7493, 7
    %v7495 = vsub.s32 0, %v7494
    %v7496 = vrot.slane %v7491, %v7495
    %v7497 = vlaneseq
    %v7498 = vshrl.u32 %v7497, 7
    %v7499 = vsub.s32 1, %v7498
    %v7500 = vrot.slane %v7491, %v7499
    %v7504 = vsel %vm7147, %v7440, 0
    %7506 = vmatprep.subr.mxu0 %v7442
    %7507 = vmatpush1.msra.mxu0 %v7441
    %7508 = vmatprep.subr.mxu0 %v7444
    %7509 = vmatpush1.msra.mxu0 %v7443
    %7510 = vmatprep.subr.mxu0 %v7446
    %7511 = vmatpush1.msra.mxu0 %v7445
    %7512 = vmatprep.subr.mxu0 %v7448
    %7513 = vmatpush1.msra.mxu0 %v7447
    %7514 = vmatprep.subr.mxu0 %v7450
    %7515 = vmatpush1.msra.mxu0 %v7449
    %7516 = vmatprep.subr.mxu0 %v7452
    %7517 = vmatpush1.msra.mxu0 %v7451
    %7518 = vmatprep.subr.mxu0 %v7454
    %7519 = vmatpush1.msra.mxu0 %v7453
    %7520 = vmatprep.subr.mxu0 %v7456
    %7521 = vmatpush1.msra.mxu0 %v7455
    %7522 = vmatprep.subr.mxu0 %v7458
    %7523 = vmatpush1.msra.mxu0 %v7457
    %7524 = vmatprep.subr.mxu0 %v7460
    %7525 = vmatpush1.msra.mxu0 %v7459
    %7526 = vmatprep.subr.mxu0 %v7462
    %7527 = vmatpush1.msra.mxu0 %v7461
    %7528 = vmatprep.subr.mxu0 %v7464
    %7529 = vmatpush1.msra.mxu0 %v7463
    %7530 = vmatprep.subr.mxu0 %v7466
    %7531 = vmatpush1.msra.mxu0 %v7465
    %7532 = vmatprep.subr.mxu0 %v7468
    %7533 = vmatpush1.msra.mxu0 %v7467
    %7534 = vmatprep.subr.mxu0 %v7470
    %7535 = vmatpush1.msra.mxu0 %v7469
    %7536 = vmatprep.subr.mxu0 %v7472
    %7537 = vmatpush1.msra.mxu0 %v7471
    %7538 = vmatprep.subr.mxu0 %v7474
    %7539 = vmatpush1.msra.mxu0 %v7473
    %7540 = vmatprep.subr.mxu0 %v7476
    %7541 = vmatpush1.msra.mxu0 %v7475
    %7542 = vmatprep.subr.mxu0 %v7478
    %7543 = vmatpush1.msra.mxu0 %v7477
    %7544 = vmatprep.subr.mxu0 %v7480
    %7545 = vmatpush1.msra.mxu0 %v7479
    %7546 = vmatprep.subr.mxu0 %v7482
    %7547 = vmatpush1.msra.mxu0 %v7481
    %7548 = vmatprep.subr.mxu0 %v7484
    %7549 = vmatpush1.msra.mxu0 %v7483
    %7550 = vmatprep.subr.mxu0 %v7486
    %7551 = vmatpush1.msra.mxu0 %v7485
    %7552 = vmatprep.subr.mxu0 %v7488
    %7553 = vmatpush1.msra.mxu0 %v7487
    %7554 = vmatprep.subr.mxu0 %v7490
    %7555 = vmatpush1.msra.mxu0 %v7489
    %7556 = vmatprep.subr.mxu0 0.0
    %7557 = vmatpush1.msra.mxu0 0.0
    %7558 = vmatprep.subr.mxu0 0.0
    %7559 = vmatpush1.msra.mxu0 0.0
    %7560 = vmatprep.subr.mxu0 0.0
    %7561 = vmatpush1.msra.mxu0 0.0
    %7562 = vmatprep.subr.mxu0 0.0
    %7563 = vmatpush1.msra.mxu0 0.0
    %7564 = vmatprep.subr.mxu0 0.0
    %7565 = vmatpush1.msra.mxu0 0.0
    %7566 = vmatprep.subr.mxu0 0.0
    %7567 = vmatpush1.msra.mxu0 0.0
    %7568 = vmatprep.subr.mxu0 0.0
    %7569 = vmatpush1.msra.mxu0 0.0
    %7570 = vmatprep.mubr.f32.mxu0 %v7504
    %7571 = vmatmul.mubr.f32.gmra.mrb[0].mxu0 %v7439
    %v7572 = vpop.f32.mrb[0].mxu0
    %v7573 = vadd.f32 %v7496, %v7572
    %v7574 = vpop.f32.mrb[0].mxu0
    %v7575 = vadd.f32 %v7500, %v7574
    %7576 = vdwg.mxu0
    %v7577 = vmul.f32 %v7573, 0.5
    %v7578 = vmul.f32 %v7575, 0.5
    %v7579 = vmul.f32 %v7573, %v7076
    %v7580 = vmul.f32 %v7575, %v7076
    %v7581 = verf.f32.pop %v7579
    %v7582 = verf.f32.pop %v7580
    %v7583 = vadd.f32 %v7581, 1.0
    %v7584 = vadd.f32 %v7582, 1.0
    %v7585 = vmul.f32 %v7577, %v7583
    %v7586 = vmul.f32 %v7578, %v7584
    %v7587 = vld [vmem:[%s73] sm:$0xff]
    %v7588 = vld [vmem:[%s73 + $0x8] sm:$0xff]
    %v7589 = vld [vmem:[%s73 + $0x10] sm:$0xff]
    %v7590 = vld [vmem:[%s73 + $0x18] sm:$0xff]
    %v7591 = vld [vmem:[%s73 + $0x20] sm:$0xff]
    %v7592 = vld [vmem:[%s73 + $0x28] sm:$0xff]
    %v7593 = vld [vmem:[%s73 + $0x30] sm:$0xff]
    %v7594 = vld [vmem:[%s73 + $0x38] sm:$0xff]
    %v7595 = vld [vmem:[%s73 + $0x40] sm:$0xff]
    %v7596 = vld [vmem:[%s73 + $0x48] sm:$0xff]
    %v7597 = vld [vmem:[%s73 + $0x50] sm:$0xff]
    %v7598 = vld [vmem:[%s73 + $0x58] sm:$0xff]
    %v7599 = vld [vmem:[%s73 + $0x60] sm:$0xff]
    %v7600 = vld [vmem:[%s73 + $0x68] sm:$0xff]
    %v7601 = vld [vmem:[%s73 + $0x70] sm:$0xff]
    %v7602 = vld [vmem:[%s73 + $0x78] sm:$0xff]
    %v7603 = vld [vmem:[%s73 + $0x80] sm:$0xff]
    %v7604 = vld [vmem:[%s73 + $0x88] sm:$0xff]
    %v7605 = vld [vmem:[%s73 + $0x90] sm:$0xff]
    %v7606 = vld [vmem:[%s73 + $0x98] sm:$0xff]
    %v7607 = vld [vmem:[%s73 + $0xa0] sm:$0xff]
    %v7608 = vld [vmem:[%s73 + $0xa8] sm:$0xff]
    %v7609 = vld [vmem:[%s73 + $0xb0] sm:$0xff]
    %v7610 = vld [vmem:[%s73 + $0xb8] sm:$0xff]
    %v7611 = vld [vmem:[%s73 + $0xc0] sm:$0xff]
    %v7612 = vld [vmem:[#allocation7] sm:$0x1]
    %v7614 = vlaneseq
    %v7615 = vshrl.u32 %v7614, 7
    %v7616 = vsub.s32 0, %v7615
    %v7617 = vrot.slane %v7612, %v7616
    %v7620 = vsel %vm7147, %v7586, 0
    %7622 = vmatprep.subr.mxu0 0.0
    %7623 = vmatpush1.msra.mxu0 %v7587
    %7624 = vmatprep.subr.mxu0 0.0
    %7625 = vmatpush1.msra.mxu0 %v7588
    %7626 = vmatprep.subr.mxu0 0.0
    %7627 = vmatpush1.msra.mxu0 %v7589
    %7628 = vmatprep.subr.mxu0 0.0
    %7629 = vmatpush1.msra.mxu0 %v7590
    %7630 = vmatprep.subr.mxu0 0.0
    %7631 = vmatpush1.msra.mxu0 %v7591
    %7632 = vmatprep.subr.mxu0 0.0
    %7633 = vmatpush1.msra.mxu0 %v7592
    %7634 = vmatprep.subr.mxu0 0.0
    %7635 = vmatpush1.msra.mxu0 %v7593
    %7636 = vmatprep.subr.mxu0 0.0
    %7637 = vmatpush1.msra.mxu0 %v7594
    %7638 = vmatprep.subr.mxu0 0.0
    %7639 = vmatpush1.msra.mxu0 %v7595
    %7640 = vmatprep.subr.mxu0 0.0
    %7641 = vmatpush1.msra.mxu0 %v7596
    %7642 = vmatprep.subr.mxu0 0.0
    %7643 = vmatpush1.msra.mxu0 %v7597
    %7644 = vmatprep.subr.mxu0 0.0
    %7645 = vmatpush1.msra.mxu0 %v7598
    %7646 = vmatprep.subr.mxu0 0.0
    %7647 = vmatpush1.msra.mxu0 %v7599
    %7648 = vmatprep.subr.mxu0 0.0
    %7649 = vmatpush1.msra.mxu0 %v7600
    %7650 = vmatprep.subr.mxu0 0.0
    %7651 = vmatpush1.msra.mxu0 %v7601
    %7652 = vmatprep.subr.mxu0 0.0
    %7653 = vmatpush1.msra.mxu0 %v7602
    %7654 = vmatprep.subr.mxu0 0.0
    %7655 = vmatpush1.msra.mxu0 %v7603
    %7656 = vmatprep.subr.mxu0 0.0
    %7657 = vmatpush1.msra.mxu0 %v7604
    %7658 = vmatprep.subr.mxu0 0.0
    %7659 = vmatpush1.msra.mxu0 %v7605
    %7660 = vmatprep.subr.mxu0 0.0
    %7661 = vmatpush1.msra.mxu0 %v7606
    %7662 = vmatprep.subr.mxu0 0.0
    %7663 = vmatpush1.msra.mxu0 %v7607
    %7664 = vmatprep.subr.mxu0 0.0
    %7665 = vmatpush1.msra.mxu0 %v7608
    %7666 = vmatprep.subr.mxu0 0.0
    %7667 = vmatpush1.msra.mxu0 %v7609
    %7668 = vmatprep.subr.mxu0 0.0
    %7669 = vmatpush1.msra.mxu0 %v7610
    %7670 = vmatprep.subr.mxu0 0.0
    %7671 = vmatpush1.msra.mxu0 %v7611
    %7672 = vmatprep.subr.mxu0 0.0
    %7673 = vmatpush1.msra.mxu0 0.0
    %7674 = vmatprep.subr.mxu0 0.0
    %7675 = vmatpush1.msra.mxu0 0.0
    %7676 = vmatprep.subr.mxu0 0.0
    %7677 = vmatpush1.msra.mxu0 0.0
    %7678 = vmatprep.subr.mxu0 0.0
    %7679 = vmatpush1.msra.mxu0 0.0
    %7680 = vmatprep.subr.mxu0 0.0
    %7681 = vmatpush1.msra.mxu0 0.0
    %7682 = vmatprep.subr.mxu0 0.0
    %7683 = vmatpush1.msra.mxu0 0.0
    %7684 = vmatprep.subr.mxu0 0.0
    %7685 = vmatpush1.msra.mxu0 0.0
    %7686 = vmatprep.mubr.f32.mxu0 %v7620
    %7687 = vmatmul.mubr.f32.gmra.mrb[0].mxu0 %v7585
    %v7688 = vpop.f32.mrb[0].mxu0
    %v7689 = vadd.f32 %v7617, %v7688
    %v7690 = vpop.f32.mrb[0].mxu0
    %7691 = vdwg.mxu0
    %v7692 = vxor.u32 %v7334, 2147483648
    %v7693 = vmul.f32 %v7692, 1.442695
    %v7694 = vpow.pop %v7693
    %v7695 = vadd.f32 %v7694, 1.0
    %v7696 = vrcp.pop %v7695
    %v7697 = vmul.f32 1.0, %v7696
    %v7698 = vmul.f32 %v7697, 2.5
    %v7699 = vadd.f32 %v7698, 0.5
    %v7700 = vxor.u32 %v7689, 2147483648
    %v7701 = vmul.f32 %v7700, 1.442695
    %v7702 = vpow.pop %v7701
    %v7703 = vadd.f32 %v7702, 1.0
    %v7704 = vrcp.pop %v7703
    %v7705 = vmul.f32 1.0, %v7704
    %v7706 = vmul.f32 %v7705, 9.9
    %v7707 = vadd.f32 %v7706, 0.1
    %v7708 = vld [vmem:[%s9] sm:$0x3]
    %v7709 = vrcp.pop %v7699
    %v7710 = vmul.f32 %v7708, %v7709
    %v7711 = vsub.f32 0.0, %v7710
    %v7712 = vmul.f32 %v7711, 1.442695
    %v7713 = vpow.pop %v7712
    %v7714 = vld [vmem:[%s1] sm:$0x3]
    %v7715 = vsub.f32 1.0, %v7713
    %v7716 = vand.u32 2147483647, %v7714
    %vm7717 = vcmp.le.f32.partialorder %v7716, 0.7853982
    %vm7718 = vcmp.lt.s32.totalorder %v7714, 0
    %v7719 = vand.u32 %v7714, 2139095040
    %v7720 = vshrl.u32 %v7719, 23
    %v7721 = vsub.s32 %v7720, 127
    %v7722 = vand.u32 2147483647, %v7714
    %v7723 = vand.u32 %v7722, 8388607
    %v7724 = vor.u32 %v7723, 8388608
    %v7725 = vsub.s32 0, %v7724
    %v7726 = vadd.s32 %v7721, 1
    %vm7727 = vcmp.gt.s32.totalorder %v7726, 0
    %v7728 = vsel %vm7727, %v7726, 0
    %v7729 = vshrl.u32 %v7728, 5
    %v7730 = vand.u32 %v7728, 31
    %v7731 = vsub.s32 32, %v7730
    %v7732 = vshrl.u32 683565275, %v7731
    %v7733 = vshll.u32 683565275, %v7730
    %v7734 = vshrl.u32 2475754826, %v7731
    %v7735 = vor.u32 %v7733, %v7734
    %v7736 = vshll.u32 2475754826, %v7730
    %v7737 = vshrl.u32 2131351028, %v7731
    %v7738 = vor.u32 %v7736, %v7737
    %v7739 = vshll.u32 2131351028, %v7730
    %v7740 = vshrl.u32 2102212464, %v7731
    %v7741 = vor.u32 %v7739, %v7740
    %v7742 = vshll.u32 2102212464, %v7730
    %v7743 = vshrl.u32 920167782, %v7731
    %v7744 = vor.u32 %v7742, %v7743
    %v7745 = vshll.u32 920167782, %v7730
    %v7746 = vshrl.u32 1326507024, %v7731
    %v7747 = vor.u32 %v7745, %v7746
    %vm7748 = vcmp.lt.s32.totalorder %v7729, 1
    %vm7749 = vcmp.lt.s32.totalorder %v7729, 2
    %vm7750 = vcmp.lt.s32.totalorder %v7729, 3
    %vm7751 = vcmp.lt.s32.totalorder %v7729, 4
    %v7752 = vsel %vm7748, %v7732, %v7735
    %v7753 = vsel %vm7751, %v7741, 2102212464
    %v7754 = vsel %vm7750, %v7738, %v7753
    %v7755 = vsel %vm7749, %v7752, %v7754
    %v7756 = vsel %vm7748, %v7735, %v7738
    %v7757 = vsel %vm7751, %v7744, 920167782
    %v7758 = vsel %vm7750, %v7741, %v7757
    %v7759 = vsel %vm7749, %v7756, %v7758
    %v7760 = vsel %vm7748, %v7738, %v7741
    %v7761 = vsel %vm7751, %v7747, 1326507024
    %v7762 = vsel %vm7750, %v7744, %v7761
    %v7763 = vsel %vm7749, %v7760, %v7762
    %v7764 = vshll.u32 %v7724, 8
    %v7765 = vmul.u32.u64.compose %v7764, %v7763
    %v7766 = vextract.low.u32 %v7765
    %v7767 = vextract.high.u32 %v7765
    %v7768 = vmul.u32.u64.compose %v7764, %v7759
    %v7769 = vextract.low.u32 %v7768
    %v7770 = vextract.high.u32 %v7768
    %v7771 = vmul.u32 %v7764, %v7755
    %v7772 = vadd.s32 %v7767, %v7769
    %vm7773 = vc.u32 %v7767, %v7769
    %v7774 = vadd.s32 %v7770, 1
    %v7775 = vsel %vm7773, %v7774, %v7770
    %v7776 = vadd.s32 %v7771, %v7775
    %v7777 = vadd.s32 %v7776, 536870912
    %v7778 = vshrl.u32 %v7777, 30
    %v7779 = vshll.u32 %v7778, 30
    %v7780 = vsub.s32 %v7776, %v7779
    %vm7781 = vcmp.lt.s32.totalorder %v7780, 0
    %v7782 = vsub.s32 0, %v7780
    %v7783 = vsel %vm7781, %v7782, %v7780
    %v7784 = vclz %v7783
    %v7785 = vsub.s32 %v7784, 2
    %vm7786 = vcmp.gt.s32.totalorder 0, %v7785
    %v7787 = vsel %vm7786, 0, %v7785
    %v7788 = vsub.s32 32, %v7787
    %v7789 = vshll.u32 %v7780, %v7787
    %v7790 = vshrl.u32 %v7772, %v7788
    %v7791 = vor.u32 %v7789, %v7790
    %v7792 = vsub.s32 4294967266, %v7787
    %v7793 = vadd.s32 %v7792, 127
    %v7794 = vshll.u32 %v7793, 23
    %v7795 = vor.u32 4788187, %v7794
    %v7796 = vand.u32 2147483647, %v7795
    %v7798 = vcvt.s32.f32 %v7791
    %v7799 = vmul.f32 %v7798, %v7796
    %v7800 = vxor.u32 %v7799, 2147483648
    %v7801 = vsel %vm7718, %v7800, %v7799
    %v7802 = vsub.s32 4, %v7778
    %v7803 = vsel %vm7718, %v7802, %v7778
    %v7804 = vsel %vm7717, %v7714, %v7801
    %v7805 = vsel %vm7717, 0, %v7803
    %v7806 = vcosq.f32.pop %v7804
    %v7807 = vsinq.f32.pop %v7804
    %vm7808 = vweird.f32 %v7714
    %v7809 = vadd.s32 %v7805, 3
    %v7810 = vand.u32 %v7809, 3
    %vm7811 = vcmp.lt.s32.totalorder %v7810, 2
    %vm7812 = vcmp.eq.s32.totalorder %v7810, 0
    %v7813 = vxor.u32 %v7807, 2147483648
    %v7814 = vsel %vm7812, %v7806, %v7813
    %vm7815 = vcmp.eq.s32.totalorder %v7810, 2
    %v7816 = vxor.u32 %v7806, 2147483648
    %v7817 = vsel %vm7815, %v7816, %v7807
    %v7818 = vsel %vm7811, %v7814, %v7817
    %v7819 = vsel %vm7808, nan, %v7818
    %7821 = vset.pattern.permute.xlu0 0
    %7822 = vperm.xlu0 %7821, %v7715
    %v7823 = vpop.permute.xlu0 %7822
    %v7825 = vmul.f32 %v7823, %v7819
    %v7826 = vand.u32 2147483647, %v7714
    %vm7827 = vcmp.le.f32.partialorder %v7826, 0.7853982
    %vm7828 = vcmp.lt.s32.totalorder %v7714, 0
    %v7829 = vand.u32 %v7714, 2139095040
    %v7830 = vshrl.u32 %v7829, 23
    %v7831 = vsub.s32 %v7830, 127
    %v7832 = vand.u32 2147483647, %v7714
    %v7833 = vand.u32 %v7832, 8388607
    %v7834 = vor.u32 %v7833, 8388608
    %v7835 = vsub.s32 0, %v7834
    %v7836 = vadd.s32 %v7831, 1
    %vm7837 = vcmp.gt.s32.totalorder %v7836, 0
    %v7838 = vsel %vm7837, %v7836, 0
    %v7839 = vshrl.u32 %v7838, 5
    %v7840 = vand.u32 %v7838, 31
    %v7841 = vsub.s32 32, %v7840
    %v7842 = vshrl.u32 683565275, %v7841
    %v7843 = vshll.u32 683565275, %v7840
    %v7844 = vshrl.u32 2475754826, %v7841
    %v7845 = vor.u32 %v7843, %v7844
    %v7846 = vshll.u32 2475754826, %v7840
    %v7847 = vshrl.u32 2131351028, %v7841
    %v7848 = vor.u32 %v7846, %v7847
    %v7849 = vshll.u32 2131351028, %v7840
    %v7850 = vshrl.u32 2102212464, %v7841
    %v7851 = vor.u32 %v7849, %v7850
    %v7852 = vshll.u32 2102212464, %v7840
    %v7853 = vshrl.u32 920167782, %v7841
    %v7854 = vor.u32 %v7852, %v7853
    %v7855 = vshll.u32 920167782, %v7840
    %v7856 = vshrl.u32 1326507024, %v7841
    %v7857 = vor.u32 %v7855, %v7856
    %vm7858 = vcmp.lt.s32.totalorder %v7839, 1
    %vm7859 = vcmp.lt.s32.totalorder %v7839, 2
    %vm7860 = vcmp.lt.s32.totalorder %v7839, 3
    %vm7861 = vcmp.lt.s32.totalorder %v7839, 4
    %v7862 = vsel %vm7858, %v7842, %v7845
    %v7863 = vsel %vm7861, %v7851, 2102212464
    %v7864 = vsel %vm7860, %v7848, %v7863
    %v7865 = vsel %vm7859, %v7862, %v7864
    %v7866 = vsel %vm7858, %v7845, %v7848
    %v7867 = vsel %vm7861, %v7854, 920167782
    %v7868 = vsel %vm7860, %v7851, %v7867
    %v7869 = vsel %vm7859, %v7866, %v7868
    %v7870 = vsel %vm7858, %v7848, %v7851
    %v7871 = vsel %vm7861, %v7857, 1326507024
    %v7872 = vsel %vm7860, %v7854, %v7871
    %v7873 = vsel %vm7859, %v7870, %v7872
    %v7874 = vshll.u32 %v7834, 8
    %v7875 = vmul.u32.u64.compose %v7874, %v7873
    %v7876 = vextract.low.u32 %v7875
    %v7877 = vextract.high.u32 %v7875
    %v7878 = vmul.u32.u64.compose %v7874, %v7869
    %v7879 = vextract.low.u32 %v7878
    %v7880 = vextract.high.u32 %v7878
    %v7881 = vmul.u32 %v7874, %v7865
    %v7882 = vadd.s32 %v7877, %v7879
    %vm7883 = vc.u32 %v7877, %v7879
    %v7884 = vadd.s32 %v7880, 1
    %v7885 = vsel %vm7883, %v7884, %v7880
    %v7886 = vadd.s32 %v7881, %v7885
    %v7887 = vadd.s32 %v7886, 536870912
    %v7888 = vshrl.u32 %v7887, 30
    %v7889 = vshll.u32 %v7888, 30
    %v7890 = vsub.s32 %v7886, %v7889
    %vm7891 = vcmp.lt.s32.totalorder %v7890, 0
    %v7892 = vsub.s32 0, %v7890
    %v7893 = vsel %vm7891, %v7892, %v7890
    %v7894 = vclz %v7893
    %v7895 = vsub.s32 %v7894, 2
    %vm7896 = vcmp.gt.s32.totalorder 0, %v7895
    %v7897 = vsel %vm7896, 0, %v7895
    %v7898 = vsub.s32 32, %v7897
    %v7899 = vshll.u32 %v7890, %v7897
    %v7900 = vshrl.u32 %v7882, %v7898
    %v7901 = vor.u32 %v7899, %v7900
    %v7902 = vsub.s32 4294967266, %v7897
    %v7903 = vadd.s32 %v7902, 127
    %v7904 = vshll.u32 %v7903, 23
    %v7905 = vor.u32 4788187, %v7904
    %v7906 = vand.u32 2147483647, %v7905
    %v7908 = vcvt.s32.f32 %v7901
    %v7909 = vmul.f32 %v7908, %v7906
    %v7910 = vxor.u32 %v7909, 2147483648
    %v7911 = vsel %vm7828, %v7910, %v7909
    %v7912 = vsub.s32 4, %v7888
    %v7913 = vsel %vm7828, %v7912, %v7888
    %v7914 = vsel %vm7827, %v7714, %v7911
    %v7915 = vsel %vm7827, 0, %v7913
    %v7916 = vcosq.f32.pop %v7914
    %v7917 = vsinq.f32.pop %v7914
    %vm7918 = vweird.f32 %v7714
    %v7919 = vand.u32 %v7915, 3
    %vm7920 = vcmp.lt.s32.totalorder %v7919, 2
    %vm7921 = vcmp.eq.s32.totalorder %v7919, 0
    %v7922 = vxor.u32 %v7917, 2147483648
    %v7923 = vsel %vm7921, %v7916, %v7922
    %vm7924 = vcmp.eq.s32.totalorder %v7919, 2
    %v7925 = vxor.u32 %v7916, 2147483648
    %v7926 = vsel %vm7924, %v7925, %v7917
    %v7927 = vsel %vm7920, %v7923, %v7926
    %v7928 = vsel %vm7918, nan, %v7927
    %7930 = vset.pattern.permute.xlu0 0
    %7931 = vperm.xlu0 %7930, %v7713
    %v7932 = vpop.permute.xlu0 %7931
    %v7934 = vmul.f32 %v7928, %v7932
    %v7935 = vsub.f32 1.0, %v7934
    %v7936 = vrcp.pop %v7935
    %v7937 = vmul.f32 %v7825, %v7936
    %7939 = vset.pattern.permute.xlu0 0
    %7940 = vperm.xlu0 %7939, %v7707
    %v7941 = vpop.permute.xlu0 %7940
    %v7943 = vmul.f32 %v7937, %v7941
    %vm7944 = vcmask 58368
    %7945 = vst.msk [vmem:[#allocation20] sm:$0x3] %vm7944, %v7943
    %vm7946 = vcmask 1024
    %7947 = vst.msk [vmem:[%s79] sm:$0x3] %vm7946, %v7699
    %7948 = vst.msk [vmem:[%s81] sm:$0x3] %vm7946, %v7707
    // Predicated region
    $region189: #{tpu_custom_call.1} parent=1 // pred_check
      _
    $region190: #{tpu_custom_call.1} parent=1 // pred_check_branch
      %7950 = sbr.rel (0) target = $region192
    $region191: #{tpu_custom_call.1} parent=1 // pred_region
      %s7952 = ssub.s32 32, 32
      %7953 = vsyncadd [#allocation10], %s7952
      %s7955 = sshll.u32 [#allocation20], 4
      %s7956 = int_to_ptr.vmem [resolvable:$true] %s7955
      %7958 = dma.vmem_to_hbm [thread:$0]  %s7956, 32, %s77, [#allocation10]
    $region192: #{tpu_custom_call.1} parent=1 // pred_fallthru
      _
    // Predicated region
    $region193: #{tpu_custom_call.1} parent=1 // pred_check
      _
    $region194: #{tpu_custom_call.1} parent=1 // pred_check_branch
      %7960 = sbr.rel (0) target = $region196
    $region195: #{tpu_custom_call.1} parent=1 // pred_region
      _
    $region196: #{tpu_custom_call.1} parent=1 // pred_fallthru
      _
    // Predicated region
    $region197: #{tpu_custom_call.1} parent=1 // pred_check
      _
    $region198: #{tpu_custom_call.1} parent=1 // pred_check_branch
      %7962 = sbr.rel (0) target = $region200
    $region199: #{tpu_custom_call.1} parent=1 // pred_region
      _
    $region200: #{tpu_custom_call.1} parent=1 // pred_fallthru
      _
    // Predicated region
    $region201: #{tpu_custom_call.1} parent=1 // pred_check
      _
    $region202: #{tpu_custom_call.1} parent=1 // pred_check_branch
      %7964 = sbr.rel (0) target = $region204
    $region203: #{tpu_custom_call.1} parent=1 // pred_region
      %7965 = dma.done [#allocation10], 32
    $region204: #{tpu_custom_call.1} parent=1 // pred_fallthru
      _
    // Predicated region
    $region205: #{tpu_custom_call.1} parent=1 // pred_check
      _
    $region206: #{tpu_custom_call.1} parent=1 // pred_check_branch
      %7967 = sbr.rel (0) target = $region208
    $region207: #{tpu_custom_call.1} parent=1 // pred_region
      _
    $region208: #{tpu_custom_call.1} parent=1 // pred_fallthru
      _
    // Predicated region
    $region209: #{tpu_custom_call.1} parent=1 // pred_check
      _
    $region210: #{tpu_custom_call.1} parent=1 // pred_check_branch
      %7969 = sbr.rel (0) target = $region212
    $region211: #{tpu_custom_call.1} parent=1 // pred_region
      _
    $region212: #{tpu_custom_call.1} parent=1 // pred_fallthru
      _
    %7970 = vsyncpa [#allocation9], 1
    %7971 = vsyncpa [#allocation12], 1
    %7972 = vsyncpa [#allocation15], 1
    %7973 = vsyncpa [#allocation18], 1
    %7974 = vsyncpa [#allocation10], 1

</llo_original>
